<compile_context>
chip_gen: v6e
topology: v6e:2x2x1
jax: 0.10.0
libtpu: 0.0.40
codegen_flags: <defaults>
</compile_context>

<pallas_src>
import functools

import jax
import jax.numpy as jnp
from jax.experimental import pallas as pl
from jax.experimental.pallas import tpu as pltpu

PRIMITIVES = ['none', 'max_pool_3x3', 'avg_pool_3x3', 'skip_connect',
              'sep_conv_3x3', 'sep_conv_5x5', 'dil_conv_3x3', 'dil_conv_5x5']

BN_EPS = 1e-5
VMEM_LIMIT = 32 * 1024 * 1024      # explicit scoped-VMEM budget, safe on v5e/v6e/v7x


def _round_up(x, m):
    return ((x + m - 1) // m) * m


def _ew_tile(M, C, n_bufs, budget=8 * 1024 * 1024):
    """Pick (tm, Mp, Cp) for a row-tiled elementwise kernel.

    n_bufs = number of (tm, Cp) f32 buffers live per grid step (inputs+outputs,
    including double-buffering). Grows tm up to 512 while staying under budget.
    """
    Cp = _round_up(C, 128)
    if M < 128:
        tm = _round_up(M, 8)
    else:
        tm = 128
        Mp128 = _round_up(M, 128)
        while tm < 512 and tm * 2 <= Mp128 and (tm * 2) * Cp * 4 * n_bufs <= budget:
            tm *= 2
    Mp = _round_up(M, tm)
    return tm, Mp, Cp


# ----------------------------------------------------------------------------
# Pallas kernels
# ----------------------------------------------------------------------------

def _matmul_stats_kernel(a_ref, b_ref, o_ref, sum_ref, sq_ref, acc_ref):
    # grid = (j, i, k) = (col-tile, row-tile, contraction-tile)
    k = pl.program_id(2)
    last_k = pl.num_programs(2) - 1

    @pl.when(k == 0)
    def _():
        acc_ref[...] = jnp.zeros_like(acc_ref)

    acc_ref[...] += jnp.dot(a_ref[...], b_ref[...],
                            preferred_element_type=jnp.float32)

    # Stats blocks are resident across the whole (i, k) sweep for a fixed j:
    # initialize once (first row tile, last K step), accumulate per row tile.
    @pl.when((k == last_k) & (pl.program_id(1) == 0))
    def _():
        sum_ref[...] = jnp.zeros_like(sum_ref)
        sq_ref[...] = jnp.zeros_like(sq_ref)

    @pl.when(k == last_k)
    def _():
        y = acc_ref[...]
        o_ref[...] = y.astype(o_ref.dtype)
        sum_ref[...] += jnp.sum(y, axis=0, keepdims=True)
        sq_ref[...] += jnp.sum(y * y, axis=0, keepdims=True)


@functools.lru_cache(maxsize=None)
def _matmul_stats_call(Mp, Kp, Np, tm, tk, tn):
    # Column tiles outermost (parallel / megacore-shardable); row tiles next so
    # the per-column stats accumulator stays resident; contraction innermost.
    grid = (Np // tn, Mp // tm, Kp // tk)
    return pl.pallas_call(
        _matmul_stats_kernel,
        out_shape=(jax.ShapeDtypeStruct((Mp, Np), jnp.float32),
                   jax.ShapeDtypeStruct((1, Np), jnp.float32),
                   jax.ShapeDtypeStruct((1, Np), jnp.float32)),
        grid_spec=pltpu.PrefetchScalarGridSpec(
            num_scalar_prefetch=0, grid=grid,
            in_specs=[pl.BlockSpec((tm, tk), lambda j, i, k: (i, k)),
                      pl.BlockSpec((tk, tn), lambda j, i, k: (k, j))],
            out_specs=[pl.BlockSpec((tm, tn), lambda j, i, k: (i, j)),
                       pl.BlockSpec((1, tn), lambda j, i, k: (0, j)),
                       pl.BlockSpec((1, tn), lambda j, i, k: (0, j))],
            scratch_shapes=[pltpu.VMEM((tm, tn), jnp.float32)]),
        compiler_params=pltpu.CompilerParams(
            dimension_semantics=("parallel", "arbitrary", "arbitrary"),
            vmem_limit_bytes=VMEM_LIMIT),
    )


def matmul_stats(a, b):
    """MXU matmul (bf16 operands, f32 accum) + fused per-column sum / sumsq.

    Zero-padded rows/columns contribute 0 to both statistics, so stats over the
    padded output equal stats over the real output.
    """
    M, K = a.shape
    K2, N = b.shape
    assert K == K2
    tm = 128 if M >= 128 else _round_up(M, 16)      # bf16 sublane packing = 16
    tk = min(512, _round_up(K, 128))
    tn = min(512, _round_up(N, 128))
    Mp, Kp, Np = _round_up(M, tm), _round_up(K, tk), _round_up(N, tn)
    ap = jnp.pad(a.astype(jnp.bfloat16), ((0, Mp - M), (0, Kp - K)))
    bp = jnp.pad(b.astype(jnp.bfloat16), ((0, Kp - K), (0, Np - N)))
    out, s, sq = _matmul_stats_call(Mp, Kp, Np, tm, tk, tn)(ap, bp)
    return out[:M, :N], s[0, :N], sq[0, :N]


def _tap_wsum_kernel(x_ref, w_ref, o_ref):
    # x_ref: (T, tm, Cp), w_ref: (T, Cp)  ->  o_ref[m, c] = sum_t x[t,m,c]*w[t,c]
    T = x_ref.shape[0]
    acc = x_ref[0] * w_ref[0:1, :]
    for t in range(1, T):
        acc = acc + x_ref[t] * w_ref[t:t + 1, :]
    o_ref[...] = acc


@functools.lru_cache(maxsize=None)
def _tap_wsum_call(T, Mp, Cp, tm):
    grid = (Mp // tm,)
    return pl.pallas_call(
        _tap_wsum_kernel,
        out_shape=jax.ShapeDtypeStruct((Mp, Cp), jnp.float32),
        grid_spec=pltpu.PrefetchScalarGridSpec(
            num_scalar_prefetch=0, grid=grid,
            in_specs=[pl.BlockSpec((T, tm, Cp), lambda i: (0, i, 0)),
                      pl.BlockSpec((T, Cp), lambda i: (0, 0))],
            out_specs=pl.BlockSpec((tm, Cp), lambda i: (i, 0))),
        compiler_params=pltpu.CompilerParams(
            dimension_semantics=("parallel",),
            vmem_limit_bytes=VMEM_LIMIT),
    )


def tap_weighted_sum(taps, w_tc):
    """taps: (T, M, C); w_tc: (T, C)  ->  (M, C) sum over taps (VPU)."""
    T, M, C = taps.shape
    tm, Mp, Cp = _ew_tile(M, C, n_bufs=2 * (T + 1))
    tp = jnp.pad(taps, ((0, 0), (0, Mp - M), (0, Cp - C)))
    wp = jnp.pad(w_tc, ((0, 0), (0, Cp - C)))
    return _tap_wsum_call(T, Mp, Cp, tm)(tp, wp)[:M, :C]


def _tap_max_kernel(x_ref, o_ref):
    T = x_ref.shape[0]
    acc = x_ref[0]
    for t in range(1, T):
        acc = jnp.maximum(acc, x_ref[t])
    o_ref[...] = acc


@functools.lru_cache(maxsize=None)
def _tap_max_call(T, Mp, Cp, tm):
    grid = (Mp // tm,)
    return pl.pallas_call(
        _tap_max_kernel,
        out_shape=jax.ShapeDtypeStruct((Mp, Cp), jnp.float32),
        grid_spec=pltpu.PrefetchScalarGridSpec(
            num_scalar_prefetch=0, grid=grid,
            in_specs=[pl.BlockSpec((T, tm, Cp), lambda i: (0, i, 0))],
            out_specs=pl.BlockSpec((tm, Cp), lambda i: (i, 0))),
        compiler_params=pltpu.CompilerParams(
            dimension_semantics=("parallel",),
            vmem_limit_bytes=VMEM_LIMIT),
    )


def tap_max(taps):
    T, M, C = taps.shape
    tm, Mp, Cp = _ew_tile(M, C, n_bufs=2 * (T + 1))
    tp = jnp.pad(taps, ((0, 0), (0, Mp - M), (0, Cp - C)))
    return _tap_max_call(T, Mp, Cp, tm)(tp)[:M, :C]


def _scale_shift_kernel(x_ref, s_ref, b_ref, o_ref, *, relu):
    y = x_ref[...] * s_ref[...] + b_ref[...]
    if relu:
        y = jnp.maximum(y, 0.0)
    o_ref[...] = y


@functools.lru_cache(maxsize=None)
def _scale_shift_call(Mp, Cp, tm, relu):
    grid = (Mp // tm,)
    return pl.pallas_call(
        functools.partial(_scale_shift_kernel, relu=relu),
        out_shape=jax.ShapeDtypeStruct((Mp, Cp), jnp.float32),
        grid_spec=pltpu.PrefetchScalarGridSpec(
            num_scalar_prefetch=0, grid=grid,
            in_specs=[pl.BlockSpec((tm, Cp), lambda i: (i, 0)),
                      pl.BlockSpec((1, Cp), lambda i: (0, 0)),
                      pl.BlockSpec((1, Cp), lambda i: (0, 0))],
            out_specs=pl.BlockSpec((tm, Cp), lambda i: (i, 0))),
        compiler_params=pltpu.CompilerParams(
            dimension_semantics=("parallel",),
            vmem_limit_bytes=VMEM_LIMIT),
    )


def scale_shift(x2d, scale, shift, relu=False):
    M, C = x2d.shape
    tm, Mp, Cp = _ew_tile(M, C, n_bufs=4)
    xp = jnp.pad(x2d, ((0, Mp - M), (0, Cp - C)))
    sp = jnp.pad(scale.reshape(1, C), ((0, 0), (0, Cp - C)))
    bp = jnp.pad(shift.reshape(1, C), ((0, 0), (0, Cp - C)))
    return _scale_shift_call(Mp, Cp, tm, bool(relu))(xp, sp, bp)[:M, :C]


def _waccum_kernel(w_ref, *refs):
    # refs = (x_0, ..., x_{P-1}, o_ref); w_ref: (P, Cp) (weights broadcast on lanes)
    xs, o_ref = refs[:-1], refs[-1]
    acc = xs[0][...] * w_ref[0:1, :]
    for p in range(1, len(xs)):
        acc = acc + xs[p][...] * w_ref[p:p + 1, :]
    o_ref[...] = acc


@functools.lru_cache(maxsize=None)
def _waccum_call(P, Mp, Cp, tm):
    grid = (Mp // tm,)
    return pl.pallas_call(
        _waccum_kernel,
        out_shape=jax.ShapeDtypeStruct((Mp, Cp), jnp.float32),
        grid_spec=pltpu.PrefetchScalarGridSpec(
            num_scalar_prefetch=0, grid=grid,
            in_specs=[pl.BlockSpec((P, Cp), lambda i: (0, 0))]
                     + [pl.BlockSpec((tm, Cp), lambda i: (i, 0))
                        for _ in range(P)],
            out_specs=pl.BlockSpec((tm, Cp), lambda i: (i, 0))),
        compiler_params=pltpu.CompilerParams(
            dimension_semantics=("parallel",),
            vmem_limit_bytes=VMEM_LIMIT),
    )


def weighted_accumulate(xs, weights):
    """xs: list of P (M, C) arrays; weights: (P,) -> sum_p w_p * x_p (VPU)."""
    P = len(xs)
    M, C = xs[0].shape
    tm, Mp, Cp = _ew_tile(M, C, n_bufs=2 * (P + 1))
    xps = [jnp.pad(x, ((0, Mp - M), (0, Cp - C))) for x in xs]
    wp = jnp.pad(jnp.broadcast_to(weights[:, None], (P, C)),
                 ((0, 0), (0, Cp - C)))
    return _waccum_call(P, Mp, Cp, tm)(wp, *xps)[:M, :C]


# ----------------------------------------------------------------------------
# NN building blocks (NHWC), built on the Pallas kernels above
# ----------------------------------------------------------------------------

def _tap_slices(x, kh, kw, stride, padding, dilation=1, pad_value=0.0):
    N, H, W, C = x.shape
    xp = jnp.pad(x, ((0, 0), (padding, padding), (padding, padding), (0, 0)),
                 constant_values=pad_value)
    Hp, Wp = H + 2 * padding, W + 2 * padding
    Ho = (Hp - dilation * (kh - 1) - 1) // stride + 1
    Wo = (Wp - dilation * (kw - 1) - 1) // stride + 1
    slices = []
    for ih in range(kh):
        for iw in range(kw):
            h0, w0 = ih * dilation, iw * dilation
            sl = xp[:, h0:h0 + (Ho - 1) * stride + 1:stride,
                    w0:w0 + (Wo - 1) * stride + 1:stride, :]
            slices.append(sl)
    return slices, (Ho, Wo)


def _im2col(x, kh, kw, stride, padding, dilation=1):
    slices, (Ho, Wo) = _tap_slices(x, kh, kw, stride, padding, dilation, 0.0)
    N, C = x.shape[0], x.shape[-1]
    cols = jnp.concatenate([s.reshape(N * Ho * Wo, C) for s in slices], axis=-1)
    return cols, (Ho, Wo)


def _extract_taps(x, kh, kw, stride, padding, dilation=1, pad_value=0.0):
    slices, (Ho, Wo) = _tap_slices(x, kh, kw, stride, padding, dilation,
                                   pad_value)
    N, C = x.shape[0], x.shape[-1]
    taps = jnp.stack([s.reshape(N * Ho * Wo, C) for s in slices], axis=0)
    return taps, (Ho, Wo)                                  # (T, M, C)


def conv2d_stats(x, w, stride=1, padding=0, dilation=1):
    """Dense conv + fused per-channel sum/sumsq (for the following BatchNorm).

    x: NHWC; w: PyTorch layout (Cout, Cin, kh, kw). No bias.
    Returns (out NHWC, sum (Cout,), sumsq (Cout,)).
    """
    Cout, Cin, kh, kw = w.shape
    N = x.shape[0]
    cols, (Ho, Wo) = _im2col(x, kh, kw, stride, padding, dilation)
    wmat = jnp.transpose(w, (2, 3, 1, 0)).reshape(kh * kw * Cin, Cout)
    out, s, sq = matmul_stats(cols, wmat)
    return out.reshape(N, Ho, Wo, Cout), s, sq


def bn_apply(x, s, sq, relu=False):
    """Training-mode BatchNorm2d (batch stats, biased variance) from
    precomputed per-channel sum / sumsq, with optional fused ReLU epilogue."""
    N, H, W, C = x.shape
    M = N * H * W
    mean = s / M
    var = jnp.maximum(sq / M - mean * mean, 0.0)   # clamp against cancellation
    inv = jax.lax.rsqrt(var + BN_EPS)
    out = scale_shift(x.reshape(M, C), inv, -mean * inv, relu=relu)
    return out.reshape(N, H, W, C)


def conv2d_bn(x, w, stride=1, padding=0, dilation=1, relu=False):
    y, s, sq = conv2d_stats(x, w, stride, padding, dilation)
    return bn_apply(y, s, sq, relu=relu)


def depthwise_conv(x, w, stride, padding, dilation=1):
    """Depthwise conv on the VPU. w: (C, 1, kh, kw), groups == C."""
    N, H, W, C = x.shape
    kh, kw = w.shape[2], w.shape[3]
    taps, (Ho, Wo) = _extract_taps(x, kh, kw, stride, padding, dilation, 0.0)
    w_tc = jnp.transpose(w[:, 0].reshape(C, kh * kw), (1, 0))     # (T, C)
    out = tap_weighted_sum(taps, w_tc)
    return out.reshape(N, Ho, Wo, C)


def max_pool_3x3(x, stride):
    # nn.MaxPool2d(3, stride, padding=1): implicit -inf padding.
    N, H, W, C = x.shape
    taps, (Ho, Wo) = _extract_taps(x, 3, 3, stride, 1, 1, pad_value=-jnp.inf)
    return tap_max(taps).reshape(N, Ho, Wo, C)


def avg_pool_3x3(x, stride):
    # nn.AvgPool2d(3, stride, padding=1, count_include_pad=False)
    N, H, W, C = x.shape
    taps, (Ho, Wo) = _extract_taps(x, 3, 3, stride, 1, 1, pad_value=0.0)
    sums = tap_weighted_sum(taps, jnp.ones((9, C), jnp.float32))
    sums = sums.reshape(N, Ho, Wo, C)
    mtaps, _ = _extract_taps(jnp.ones((1, H, W, 1), jnp.float32),
                             3, 3, stride, 1, 1, 0.0)
    counts = mtaps.sum(axis=0).reshape(1, Ho, Wo, 1)   # tiny, constant-folded
    return sums / counts


def relu_conv_bn_1x1(x, w):
    return conv2d_bn(jnp.maximum(x, 0.0), w, stride=1, padding=0)


def factorized_reduce(x_relu, p):
    # input is already ReLU'd (computed once per state in mixed_op / cell).
    # BN over the channel-concat == per-branch stats concatenated (channels are
    # disjoint and both branches share the same spatial extent / row count).
    y1, s1, q1 = conv2d_stats(x_relu, p['conv1'], stride=2)
    y2, s2, q2 = conv2d_stats(x_relu[:, 1:, 1:, :], p['conv2'], stride=2)
    y = jnp.concatenate([y1, y2], axis=-1)
    return bn_apply(y, jnp.concatenate([s1, s2]), jnp.concatenate([q1, q2]))


def sep_conv(x_relu, p, stride, pad):
    x = depthwise_conv(x_relu, p['dw1'], stride, pad)
    x = conv2d_bn(x, p['pw1'], relu=True)            # fused conv-stats + BN + ReLU
    x = depthwise_conv(x, p['dw2'], 1, pad)
    return conv2d_bn(x, p['pw2'])


def dil_conv(x_relu, p, stride, pad, dilation):
    x = depthwise_conv(x_relu, p['dw'], stride, pad, dilation)
    return conv2d_bn(x, p['pw'])


def apply_primitive(name, x, x_relu, stride, p):
    if name == 'max_pool_3x3':
        return max_pool_3x3(x, stride)
    if name == 'avg_pool_3x3':
        return avg_pool_3x3(x, stride)
    if name == 'skip_connect':
        return x if stride == 1 else factorized_reduce(x_relu, p)
    if name == 'sep_conv_3x3':
        return sep_conv(x_relu, p, stride, 1)
    if name == 'sep_conv_5x5':
        return sep_conv(x_relu, p, stride, 2)
    if name == 'dil_conv_3x3':
        return dil_conv(x_relu, p, stride, 2, 2)
    if name == 'dil_conv_5x5':
        return dil_conv(x_relu, p, stride, 4, 2)
    raise ValueError(name)


def mixed_op(x, w_row, op_params, stride, primitives):
    # ReLU on the shared input is computed once and reused by every primitive
    # whose PyTorch op starts with ReLU (sep/dil conv, factorized reduce).
    x_relu = jnp.maximum(x, 0.0)
    outs, ws = [], []
    for idx, nm in enumerate(primitives):
        if nm == 'none':           # contributes w * 0 -> skip entirely
            continue
        outs.append(apply_primitive(nm, x, x_relu, stride, op_params[nm]))
        ws.append(w_row[idx])
    shape = outs[0].shape
    flat = [o.reshape(-1, shape[-1]) for o in outs]
    # TODO(synk): batch the per-primitive pointwise convs into one pallas_call
    # (leading "parallel" grid axis) to feed v7x's second TensorCore.
    mixed = weighted_accumulate(flat, jnp.stack(ws))
    return mixed.reshape(shape)


def cell_forward(cp, s0, s1, weights, primitives):
    if cp['reduction_prev']:
        s0 = factorized_reduce(jnp.maximum(s0, 0.0), cp['pre0'])
    else:
        s0 = relu_conv_bn_1x1(s0, cp['pre0']['w'])
    s1 = relu_conv_bn_1x1(s1, cp['pre1']['w'])
    states = [s0, s1]
    offset = 0
    for _ in range(cp['steps']):
        s = None
        for j, h in enumerate(states):
            idx = offset + j
            out = mixed_op(h, weights[idx], cp['ops'][idx],
                           cp['strides'][idx], primitives)
            s = out if s is None else s + out
        offset += len(states)
        states.append(s)
    return jnp.concatenate(states[-cp['multiplier']:], axis=-1)


# ----------------------------------------------------------------------------
# FeatureExtractor
# ----------------------------------------------------------------------------

class FeatureExtractor:
    def __init__(self, C, layers, steps=4, multiplier=4, stem_multiplier=3,
                 primitives=PRIMITIVES, key=None):
        if key is None:
            key = jax.random.PRNGKey(0)
        keys = iter(jax.random.split(key, 4096))

        def w(shape):
            return 0.1 * jax.random.normal(next(keys), shape, jnp.float32)

        self.primitives = list(primitives)
        self._steps = steps
        self._multiplier = multiplier

        C_curr = stem_multiplier * C
        params = {'stem_w': w((C_curr, 3, 3, 3))}      # Conv2d(3, C_curr, 3, pad=1)

        cells = []
        C_prev_prev, C_prev, C_curr = C_curr, C_curr, C
        reduction_prev = False
        for i in range(layers):
            reduction = False
            if i in [layers // 3, 2 * layers // 3]:
                C_curr *= 2
                reduction = True
            cell = {'reduction': reduction, 'reduction_prev': reduction_prev,
                    'steps': steps, 'multiplier': multiplier}
            if reduction_prev:                          # factorized_reduce preprocess0
                cell['pre0'] = {'conv1': w((C_curr // 2, C_prev_prev, 1, 1)),
                                'conv2': w((C_curr // 2, C_prev_prev, 1, 1))}
            else:                                       # ReLUConvBN 1x1 preprocess0
                cell['pre0'] = {'w': w((C_curr, C_prev_prev, 1, 1))}
            cell['pre1'] = {'w': w((C_curr, C_prev, 1, 1))}
            ops, strides = [], []
            for si in range(steps):
                for j in range(2 + si):
                    stride = 2 if reduction and j < 2 else 1
                    ops.append({nm: self._init_primitive(nm, w, C_curr, stride)
                                for nm in self.primitives})
                    strides.append(stride)
            cell['ops'] = ops
            cell['strides'] = strides
            cells.append(cell)
            reduction_prev = reduction
            C_prev_prev, C_prev = C_prev, multiplier * C_curr
        params['cells'] = cells
        self.feats_dim = C_prev

        k = 2 * steps + (steps - 1) * steps // 2
        num_ops = len(self.primitives)
        params['alphas_normal'] = 0.001 * jax.random.normal(
            next(keys), (k, num_ops), jnp.float32)
        params['alphas_reduce'] = 0.001 * jax.random.normal(
            next(keys), (k, num_ops), jnp.float32)
        self.params = params

        # One jit over the whole forward: all pads / slices / transposes / tiny
        # softmax fuse in XLA, and per-op eager dispatch overhead disappears.
        self._jit_forward = jax.jit(self._forward_impl)

    @staticmethod
    def _init_primitive(name, w, C, stride):
        if name in ('none', 'max_pool_3x3', 'avg_pool_3x3'):
            return None
        if name == 'skip_connect':
            if stride == 1:
                return None
            return {'conv1': w((C // 2, C, 1, 1)), 'conv2': w((C // 2, C, 1, 1))}
        k = 3 if name.endswith('3x3') else 5
        if name.startswith('sep_conv'):
            return {'dw1': w((C, 1, k, k)), 'pw1': w((C, C, 1, 1)),
                    'dw2': w((C, 1, k, k)), 'pw2': w((C, C, 1, 1))}
        if name.startswith('dil_conv'):
            return {'dw': w((C, 1, k, k)), 'pw': w((C, C, 1, 1))}
        raise ValueError(name)

    def _forward_impl(self, x_nchw):
        x = jnp.transpose(x_nchw.astype(jnp.float32), (0, 2, 3, 1))  # NCHW -> NHWC
        s0 = s1 = conv2d_bn(x, self.params['stem_w'], stride=1, padding=1)  # stem
        for cp in self.params['cells']:
            alphas = (self.params['alphas_reduce'] if cp['reduction']
                      else self.params['alphas_normal'])
            weights = jax.nn.softmax(alphas, axis=-1)                # tiny (k, 8) glue
            s0, s1 = s1, cell_forward(cp, s0, s1, weights, self.primitives)
        return jnp.transpose(s1, (0, 3, 1, 2))                       # back to NCHW

    def forward(self, x_nchw):
        return self._jit_forward(x_nchw)


if __name__ == "__main__":
    key = jax.random.PRNGKey(0)
    k_in, k_model = jax.random.split(key)

    # Small but structurally faithful configuration: 2 cells (both reductions
    # for layers=2), steps=2, multiplier=2, base C=4, stem_multiplier=3.
    model = FeatureExtractor(C=4, layers=2, steps=2, multiplier=2,
                             stem_multiplier=3, key=k_model)

    x = jax.random.normal(k_in, (2, 3, 16, 16), jnp.float32)   # NCHW input
    out = model.forward(x)
    out = jax.block_until_ready(out)

    assert out.shape == (2, model.feats_dim, 4, 4), out.shape  # (2, 32, 4, 4)
    assert bool(jnp.all(jnp.isfinite(out)))
    print("KERNEL_OK")
</pallas_src>

<mosaic_0001>
module attributes {stable_mosaic.version = 11 : i64} {
  func.func @_scale_shift_kernel(%arg0: i32, %arg1: memref<512x128xf32, #tpu.memory_space<vmem>>, %arg2: memref<1x128xf32, #tpu.memory_space<vmem>>, %arg3: memref<1x128xf32, #tpu.memory_space<vmem>>, %arg4: memref<512x128xf32, #tpu.memory_space<vmem>>) attributes {dimension_semantics = [#tpu.dimension_semantics<parallel>], iteration_bounds = array<i64: 1>, scalar_prefetch = 0 : i64, scratch_operands = 0 : i64, tpu.core_type = #tpu.core_type<tc>, window_params = [{transform_indices = @transform_0, window_bounds = array<i64: 512, 128>}, {pipeline_mode = #tpu.pipeline_mode<synchronous>, transform_indices = @transform_1, window_bounds = array<i64: 1, 128>}, {pipeline_mode = #tpu.pipeline_mode<synchronous>, transform_indices = @transform_2, window_bounds = array<i64: 1, 128>}, {transform_indices = @transform_3, window_bounds = array<i64: 512, 128>}]} {
    %c0 = arith.constant 0 : index
    %c0_0 = arith.constant 0 : index
    %0 = vector.load %arg1[%c0, %c0_0] : memref<512x128xf32, #tpu.memory_space<vmem>>, vector<512x128xf32>
    %c0_1 = arith.constant 0 : index
    %c0_2 = arith.constant 0 : index
    %1 = vector.load %arg2[%c0_1, %c0_2] : memref<1x128xf32, #tpu.memory_space<vmem>>, vector<1x128xf32>
    %2 = vector.broadcast %1 : vector<1x128xf32> to vector<512x128xf32>
    %3 = arith.mulf %0, %2 : vector<512x128xf32>
    %c0_3 = arith.constant 0 : index
    %c0_4 = arith.constant 0 : index
    %4 = vector.load %arg3[%c0_3, %c0_4] : memref<1x128xf32, #tpu.memory_space<vmem>>, vector<1x128xf32>
    %5 = vector.broadcast %4 : vector<1x128xf32> to vector<512x128xf32>
    %6 = arith.addf %3, %5 : vector<512x128xf32>
    %c0_5 = arith.constant 0 : index
    %c0_6 = arith.constant 0 : index
    %7 = vector.load %arg4[%c0_5, %c0_6] : memref<512x128xf32, #tpu.memory_space<vmem>>, vector<512x128xf32>
    tpu.vector_store %arg4[%c0_5, %c0_6], %6 {strides = array<i32>} : memref<512x128xf32, #tpu.memory_space<vmem>>, vector<512x128xf32>,
    return
  }
  func.func @transform_0(%arg0: i32) -> (i32, i32) {
    %c0_i32 = arith.constant 0 : i32
    %c0_i32_0 = arith.constant 0 : i32
    return %arg0, %c0_i32 : i32, i32
  }
  func.func @transform_1(%arg0: i32) -> (i32, i32) {
    %c0_i32 = arith.constant 0 : i32
    %c0_i32_0 = arith.constant 0 : i32
    %c0_i32_1 = arith.constant 0 : i32
    return %c0_i32, %c0_i32_0 : i32, i32
  }
  func.func @transform_2(%arg0: i32) -> (i32, i32) {
    %c0_i32 = arith.constant 0 : i32
    %c0_i32_0 = arith.constant 0 : i32
    %c0_i32_1 = arith.constant 0 : i32
    return %c0_i32, %c0_i32_0 : i32, i32
  }
  func.func @transform_3(%arg0: i32) -> (i32, i32) {
    %c0_i32 = arith.constant 0 : i32
    %c0_i32_0 = arith.constant 0 : i32
    return %arg0, %c0_i32 : i32, i32
  }
}

module attributes {stable_mosaic.version = 11 : i64} {
  func.func @_matmul_stats_kernel(%arg0: i32, %arg1: i32, %arg2: i32, %arg3: memref<128x128xbf16, #tpu.memory_space<vmem>>, %arg4: memref<128x128xbf16, #tpu.memory_space<vmem>>, %arg5: memref<128x128xf32, #tpu.memory_space<vmem>>, %arg6: memref<1x128xf32, #tpu.memory_space<vmem>>, %arg7: memref<1x128xf32, #tpu.memory_space<vmem>>, %arg8: memref<128x128xf32, #tpu.memory_space<vmem>>) attributes {dimension_semantics = [#tpu.dimension_semantics<parallel>, #tpu.dimension_semantics<arbitrary>, #tpu.dimension_semantics<arbitrary>], iteration_bounds = array<i64: 1, 4, 1>, scalar_prefetch = 0 : i64, scratch_operands = 1 : i64, tpu.core_type = #tpu.core_type<tc>, window_params = [{transform_indices = @transform_0, window_bounds = array<i64: 128, 128>}, {transform_indices = @transform_1, window_bounds = array<i64: 128, 128>}, {transform_indices = @transform_2, window_bounds = array<i64: 128, 128>}, {transform_indices = @transform_3, window_bounds = array<i64: 1, 128>}, {transform_indices = @transform_4, window_bounds = array<i64: 1, 128>}]} {
    %c0_i32 = arith.constant 0 : i32
    %0 = arith.cmpi eq, %arg2, %c0_i32 : i32
    %1 = arith.extui %0 : i1 to i32
    %c0_i32_0 = arith.constant 0 : i32
    %2 = arith.cmpi ne, %1, %c0_i32_0 : i32
    scf.if %2 {
      %cst_13 = arith.constant 0.000000e+00 : f32
      %17 = vector.broadcast %cst_13 : f32 to vector<128x128xf32>
      %c0_14 = arith.constant 0 : index
      %c0_15 = arith.constant 0 : index
      %18 = vector.load %arg8[%c0_14, %c0_15] : memref<128x128xf32, #tpu.memory_space<vmem>>, vector<128x128xf32>
      tpu.vector_store %arg8[%c0_14, %c0_15], %17 {strides = array<i32>} : memref<128x128xf32, #tpu.memory_space<vmem>>, vector<128x128xf32>,
    } else {
    }
    %c0 = arith.constant 0 : index
    %c0_1 = arith.constant 0 : index
    %3 = vector.load %arg8[%c0, %c0_1] : memref<128x128xf32, #tpu.memory_space<vmem>>, vector<128x128xf32>
    %c0_2 = arith.constant 0 : index
    %c0_3 = arith.constant 0 : index
    %4 = vector.load %arg3[%c0_2, %c0_3] : memref<128x128xbf16, #tpu.memory_space<vmem>>, vector<128x128xbf16>
    %c0_4 = arith.constant 0 : index
    %c0_5 = arith.constant 0 : index
    %5 = vector.load %arg4[%c0_4, %c0_5] : memref<128x128xbf16, #tpu.memory_space<vmem>>, vector<128x128xbf16>
    %cst = arith.constant dense<0.000000e+00> : vector<128x128xf32>
    %6 = tpu.matmul %4, %5, %cst {dimension_numbers = #tpu.dot_dimension_numbers<[1], [0], [0], [1], [0, 0, 1, 1], [], []>} : vector<128x128xbf16>, vector<128x128xbf16>, vector<128x128xf32> -> vector<128x128xf32>
    %7 = arith.addf %3, %6 : vector<128x128xf32>
    %c0_6 = arith.constant 0 : index
    %c0_7 = arith.constant 0 : index
    %8 = vector.load %arg8[%c0_6, %c0_7] : memref<128x128xf32, #tpu.memory_space<vmem>>, vector<128x128xf32>
    tpu.vector_store %arg8[%c0_6, %c0_7], %7 {strides = array<i32>} : memref<128x128xf32, #tpu.memory_space<vmem>>, vector<128x128xf32>,
    %c0_i32_8 = arith.constant 0 : i32
    %9 = arith.cmpi eq, %arg2, %c0_i32_8 : i32
    %c0_i32_9 = arith.constant 0 : i32
    %10 = arith.cmpi eq, %arg1, %c0_i32_9 : i32
    %11 = arith.andi %9, %10 : i1
    %12 = arith.extui %11 : i1 to i32
    %c0_i32_10 = arith.constant 0 : i32
    %13 = arith.cmpi ne, %12, %c0_i32_10 : i32
    scf.if %13 {
      %cst_13 = arith.constant 0.000000e+00 : f32
      %17 = vector.broadcast %cst_13 : f32 to vector<1x128xf32>
      %c0_14 = arith.constant 0 : index
      %c0_15 = arith.constant 0 : index
      %18 = vector.load %arg6[%c0_14, %c0_15] : memref<1x128xf32, #tpu.memory_space<vmem>>, vector<1x128xf32>
      tpu.vector_store %arg6[%c0_14, %c0_15], %17 {strides = array<i32>} : memref<1x128xf32, #tpu.memory_space<vmem>>, vector<1x128xf32>,
      %cst_16 = arith.constant 0.000000e+00 : f32
      %19 = vector.broadcast %cst_16 : f32 to vector<1x128xf32>
      %c0_17 = arith.constant 0 : index
      %c0_18 = arith.constant 0 : index
      %20 = vector.load %arg7[%c0_17, %c0_18] : memref<1x128xf32, #tpu.memory_space<vmem>>, vector<1x128xf32>
      tpu.vector_store %arg7[%c0_17, %c0_18], %19 {strides = array<i32>} : memref<1x128xf32, #tpu.memory_space<vmem>>, vector<1x128xf32>,
    } else {
    }
    %c0_i32_11 = arith.constant 0 : i32
    %14 = arith.cmpi eq, %arg2, %c0_i32_11 : i32
    %15 = arith.extui %14 : i1 to i32
    %c0_i32_12 = arith.constant 0 : i32
    %16 = arith.cmpi ne, %15, %c0_i32_12 : i32
    scf.if %16 {
      %c0_13 = arith.constant 0 : index
      %c0_14 = arith.constant 0 : index
      %17 = vector.load %arg8[%c0_13, %c0_14] : memref<128x128xf32, #tpu.memory_space<vmem>>, vector<128x128xf32>
      %c0_15 = arith.constant 0 : index
      %c0_16 = arith.constant 0 : index
      %18 = vector.load %arg5[%c0_15, %c0_16] : memref<128x128xf32, #tpu.memory_space<vmem>>, vector<128x128xf32>
      tpu.vector_store %arg5[%c0_15, %c0_16], %17 {strides = array<i32>} : memref<128x128xf32, #tpu.memory_space<vmem>>, vector<128x128xf32>,
      %c0_17 = arith.constant 0 : index
      %c0_18 = arith.constant 0 : index
      %19 = vector.load %arg6[%c0_17, %c0_18] : memref<1x128xf32, #tpu.memory_space<vmem>>, vector<1x128xf32>
      %cst_19 = arith.constant dense<0.000000e+00> : vector<128xf32>
      %20 = vector.multi_reduction <add>, %17, %cst_19 [0] : vector<128x128xf32> to vector<128xf32>
      %21 = vector.shape_cast %20 : vector<128xf32> to vector<1x128xf32>
      %22 = arith.addf %19, %21 : vector<1x128xf32>
      %c0_20 = arith.constant 0 : index
      %c0_21 = arith.constant 0 : index
      %23 = vector.load %arg6[%c0_20, %c0_21] : memref<1x128xf32, #tpu.memory_space<vmem>>, vector<1x128xf32>
      tpu.vector_store %arg6[%c0_20, %c0_21], %22 {strides = array<i32>} : memref<1x128xf32, #tpu.memory_space<vmem>>, vector<1x128xf32>,
      %c0_22 = arith.constant 0 : index
      %c0_23 = arith.constant 0 : index
      %24 = vector.load %arg7[%c0_22, %c0_23] : memref<1x128xf32, #tpu.memory_space<vmem>>, vector<1x128xf32>
      %25 = arith.mulf %17, %17 : vector<128x128xf32>
      %cst_24 = arith.constant dense<0.000000e+00> : vector<128xf32>
      %26 = vector.multi_reduction <add>, %25, %cst_24 [0] : vector<128x128xf32> to vector<128xf32>
      %27 = vector.shape_cast %26 : vector<128xf32> to vector<1x128xf32>
      %28 = arith.addf %24, %27 : vector<1x128xf32>
      %c0_25 = arith.constant 0 : index
      %c0_26 = arith.constant 0 : index
      %29 = vector.load %arg7[%c0_25, %c0_26] : memref<1x128xf32, #tpu.memory_space<vmem>>, vector<1x128xf32>
      tpu.vector_store %arg7[%c0_25, %c0_26], %28 {strides = array<i32>} : memref<1x128xf32, #tpu.memory_space<vmem>>, vector<1x128xf32>,
    } else {
    }
    return
  }
  func.func @transform_0(%arg0: i32, %arg1: i32, %arg2: i32) -> (i32, i32) {
    %c0_i32 = arith.constant 0 : i32
    return %arg1, %arg2 : i32, i32
  }
  func.func @transform_1(%arg0: i32, %arg1: i32, %arg2: i32) -> (i32, i32) {
    %c0_i32 = arith.constant 0 : i32
    return %arg2, %arg0 : i32, i32
  }
  func.func @transform_2(%arg0: i32, %arg1: i32, %arg2: i32) -> (i32, i32) {
    %c0_i32 = arith.constant 0 : i32
    return %arg1, %arg0 : i32, i32
  }
  func.func @transform_3(%arg0: i32, %arg1: i32, %arg2: i32) -> (i32, i32) {
    %c0_i32 = arith.constant 0 : i32
    %c0_i32_0 = arith.constant 0 : i32
    return %c0_i32, %arg0 : i32, i32
  }
  func.func @transform_4(%arg0: i32, %arg1: i32, %arg2: i32) -> (i32, i32) {
    %c0_i32 = arith.constant 0 : i32
    %c0_i32_0 = arith.constant 0 : i32
    return %c0_i32, %arg0 : i32, i32
  }
}

module attributes {stable_mosaic.version = 11 : i64} {
  func.func @_tap_wsum_kernel(%arg0: i32, %arg1: memref<9x128x128xf32, #tpu.memory_space<vmem>>, %arg2: memref<9x128xf32, #tpu.memory_space<vmem>>, %arg3: memref<128x128xf32, #tpu.memory_space<vmem>>) attributes {dimension_semantics = [#tpu.dimension_semantics<parallel>], iteration_bounds = array<i64: 1>, scalar_prefetch = 0 : i64, scratch_operands = 0 : i64, tpu.core_type = #tpu.core_type<tc>, window_params = [{transform_indices = @transform_0, window_bounds = array<i64: 9, 128, 128>}, {pipeline_mode = #tpu.pipeline_mode<synchronous>, transform_indices = @transform_1, window_bounds = array<i64: 9, 128>}, {transform_indices = @transform_2, window_bounds = array<i64: 128, 128>}]} {
    %c0 = arith.constant 0 : index
    %c0_0 = arith.constant 0 : index
    %c0_1 = arith.constant 0 : index
    %0 = vector.load %arg1[%c0, %c0_0, %c0_1] : memref<9x128x128xf32, #tpu.memory_space<vmem>>, vector<1x128x128xf32>
    %1 = vector.shape_cast %0 : vector<1x128x128xf32> to vector<128x128xf32>
    %c0_2 = arith.constant 0 : index
    %c0_3 = arith.constant 0 : index
    %2 = vector.load %arg2[%c0_2, %c0_3] : memref<9x128xf32, #tpu.memory_space<vmem>>, vector<1x128xf32>
    %3 = vector.broadcast %2 : vector<1x128xf32> to vector<128x128xf32>
    %4 = arith.mulf %1, %3 : vector<128x128xf32>
    %c1 = arith.constant 1 : index
    %c0_4 = arith.constant 0 : index
    %c0_5 = arith.constant 0 : index
    %5 = vector.load %arg1[%c1, %c0_4, %c0_5] : memref<9x128x128xf32, #tpu.memory_space<vmem>>, vector<1x128x128xf32>
    %6 = vector.shape_cast %5 : vector<1x128x128xf32> to vector<128x128xf32>
    %c1_6 = arith.constant 1 : index
    %c0_7 = arith.constant 0 : index
    %7 = vector.load %arg2[%c1_6, %c0_7] : memref<9x128xf32, #tpu.memory_space<vmem>>, vector<1x128xf32>
    %8 = vector.broadcast %7 : vector<1x128xf32> to vector<128x128xf32>
    %9 = arith.mulf %6, %8 : vector<128x128xf32>
    %10 = arith.addf %4, %9 : vector<128x128xf32>
    %c2 = arith.constant 2 : index
    %c0_8 = arith.constant 0 : index
    %c0_9 = arith.constant 0 : index
    %11 = vector.load %arg1[%c2, %c0_8, %c0_9] : memref<9x128x128xf32, #tpu.memory_space<vmem>>, vector<1x128x128xf32>
    %12 = vector.shape_cast %11 : vector<1x128x128xf32> to vector<128x128xf32>
    %c2_10 = arith.constant 2 : index
    %c0_11 = arith.constant 0 : index
    %13 = vector.load %arg2[%c2_10, %c0_11] : memref<9x128xf32, #tpu.memory_space<vmem>>, vector<1x128xf32>
    %14 = vector.broadcast %13 : vector<1x128xf32> to vector<128x128xf32>
    %15 = arith.mulf %12, %14 : vector<128x128xf32>
    %16 = arith.addf %10, %15 : vector<128x128xf32>
    %c3 = arith.constant 3 : index
    %c0_12 = arith.constant 0 : index
    %c0_13 = arith.constant 0 : index
    %17 = vector.load %arg1[%c3, %c0_12, %c0_13] : memref<9x128x128xf32, #tpu.memory_space<vmem>>, vector<1x128x128xf32>
    %18 = vector.shape_cast %17 : vector<1x128x128xf32> to vector<128x128xf32>
    %c3_14 = arith.constant 3 : index
    %c0_15 = arith.constant 0 : index
    %19 = vector.load %arg2[%c3_14, %c0_15] : memref<9x128xf32, #tpu.memory_space<vmem>>, vector<1x128xf32>
    %20 = vector.broadcast %19 : vector<1x128xf32> to vector<128x128xf32>
    %21 = arith.mulf %18, %20 : vector<128x128xf32>
    %22 = arith.addf %16, %21 : vector<128x128xf32>
    %c4 = arith.constant 4 : index
    %c0_16 = arith.constant 0 : index
    %c0_17 = arith.constant 0 : index
    %23 = vector.load %arg1[%c4, %c0_16, %c0_17] : memref<9x128x128xf32, #tpu.memory_space<vmem>>, vector<1x128x128xf32>
    %24 = vector.shape_cast %23 : vector<1x128x128xf32> to vector<128x128xf32>
    %c4_18 = arith.constant 4 : index
    %c0_19 = arith.constant 0 : index
    %25 = vector.load %arg2[%c4_18, %c0_19] : memref<9x128xf32, #tpu.memory_space<vmem>>, vector<1x128xf32>
    %26 = vector.broadcast %25 : vector<1x128xf32> to vector<128x128xf32>
    %27 = arith.mulf %24, %26 : vector<128x128xf32>
    %28 = arith.addf %22, %27 : vector<128x128xf32>
    %c5 = arith.constant 5 : index
    %c0_20 = arith.constant 0 : index
    %c0_21 = arith.constant 0 : index
    %29 = vector.load %arg1[%c5, %c0_20, %c0_21] : memref<9x128x128xf32, #tpu.memory_space<vmem>>, vector<1x128x128xf32>
    %30 = vector.shape_cast %29 : vector<1x128x128xf32> to vector<128x128xf32>
    %c5_22 = arith.constant 5 : index
    %c0_23 = arith.constant 0 : index
    %31 = vector.load %arg2[%c5_22, %c0_23] : memref<9x128xf32, #tpu.memory_space<vmem>>, vector<1x128xf32>
    %32 = vector.broadcast %31 : vector<1x128xf32> to vector<128x128xf32>
    %33 = arith.mulf %30, %32 : vector<128x128xf32>
    %34 = arith.addf %28, %33 : vector<128x128xf32>
    %c6 = arith.constant 6 : index
    %c0_24 = arith.constant 0 : index
    %c0_25 = arith.constant 0 : index
    %35 = vector.load %arg1[%c6, %c0_24, %c0_25] : memref<9x128x128xf32, #tpu.memory_space<vmem>>, vector<1x128x128xf32>
    %36 = vector.shape_cast %35 : vector<1x128x128xf32> to vector<128x128xf32>
    %c6_26 = arith.constant 6 : index
    %c0_27 = arith.constant 0 : index
    %37 = vector.load %arg2[%c6_26, %c0_27] : memref<9x128xf32, #tpu.memory_space<vmem>>, vector<1x128xf32>
    %38 = vector.broadcast %37 : vector<1x128xf32> to vector<128x128xf32>
    %39 = arith.mulf %36, %38 : vector<128x128xf32>
    %40 = arith.addf %34, %39 : vector<128x128xf32>
    %c7 = arith.constant 7 : index
    %c0_28 = arith.constant 0 : index
    %c0_29 = arith.constant 0 : index
    %41 = vector.load %arg1[%c7, %c0_28, %c0_29] : memref<9x128x128xf32, #tpu.memory_space<vmem>>, vector<1x128x128xf32>
    %42 = vector.shape_cast %41 : vector<1x128x128xf32> to vector<128x128xf32>
    %c7_30 = arith.constant 7 : index
    %c0_31 = arith.constant 0 : index
    %43 = vector.load %arg2[%c7_30, %c0_31] : memref<9x128xf32, #tpu.memory_space<vmem>>, vector<1x128xf32>
    %44 = vector.broadcast %43 : vector<1x128xf32> to vector<128x128xf32>
    %45 = arith.mulf %42, %44 : vector<128x128xf32>
    %46 = arith.addf %40, %45 : vector<128x128xf32>
    %c8 = arith.constant 8 : index
    %c0_32 = arith.constant 0 : index
    %c0_33 = arith.constant 0 : index
    %47 = vector.load %arg1[%c8, %c0_32, %c0_33] : memref<9x128x128xf32, #tpu.memory_space<vmem>>, vector<1x128x128xf32>
    %48 = vector.shape_cast %47 : vector<1x128x128xf32> to vector<128x128xf32>
    %c8_34 = arith.constant 8 : index
    %c0_35 = arith.constant 0 : index
    %49 = vector.load %arg2[%c8_34, %c0_35] : memref<9x128xf32, #tpu.memory_space<vmem>>, vector<1x128xf32>
    %50 = vector.broadcast %49 : vector<1x128xf32> to vector<128x128xf32>
    %51 = arith.mulf %48, %50 : vector<128x128xf32>
    %52 = arith.addf %46, %51 : vector<128x128xf32>
    %c0_36 = arith.constant 0 : index
    %c0_37 = arith.constant 0 : index
    %53 = vector.load %arg3[%c0_36, %c0_37] : memref<128x128xf32, #tpu.memory_space<vmem>>, vector<128x128xf32>
    tpu.vector_store %arg3[%c0_36, %c0_37], %52 {strides = array<i32>} : memref<128x128xf32, #tpu.memory_space<vmem>>, vector<128x128xf32>,
    return
  }
  func.func @transform_0(%arg0: i32) -> (i32, i32, i32) {
    %c0_i32 = arith.constant 0 : i32
    %c0_i32_0 = arith.constant 0 : i32
    %c0_i32_1 = arith.constant 0 : i32
    return %c0_i32, %arg0, %c0_i32_0 : i32, i32, i32
  }
  func.func @transform_1(%arg0: i32) -> (i32, i32) {
    %c0_i32 = arith.constant 0 : i32
    %c0_i32_0 = arith.constant 0 : i32
    %c0_i32_1 = arith.constant 0 : i32
    return %c0_i32, %c0_i32_0 : i32, i32
  }
  func.func @transform_2(%arg0: i32) -> (i32, i32) {
    %c0_i32 = arith.constant 0 : i32
    %c0_i32_0 = arith.constant 0 : i32
    return %arg0, %c0_i32 : i32, i32
  }
}

module attributes {stable_mosaic.version = 11 : i64} {
  func.func @_tap_wsum_kernel(%arg0: i32, %arg1: memref<25x128x128xf32, #tpu.memory_space<vmem>>, %arg2: memref<25x128xf32, #tpu.memory_space<vmem>>, %arg3: memref<128x128xf32, #tpu.memory_space<vmem>>) attributes {dimension_semantics = [#tpu.dimension_semantics<parallel>], iteration_bounds = array<i64: 1>, scalar_prefetch = 0 : i64, scratch_operands = 0 : i64, tpu.core_type = #tpu.core_type<tc>, window_params = [{transform_indices = @transform_0, window_bounds = array<i64: 25, 128, 128>}, {pipeline_mode = #tpu.pipeline_mode<synchronous>, transform_indices = @transform_1, window_bounds = array<i64: 25, 128>}, {transform_indices = @transform_2, window_bounds = array<i64: 128, 128>}]} {
    %c0 = arith.constant 0 : index
    %c0_0 = arith.constant 0 : index
    %c0_1 = arith.constant 0 : index
    %0 = vector.load %arg1[%c0, %c0_0, %c0_1] : memref<25x128x128xf32, #tpu.memory_space<vmem>>, vector<1x128x128xf32>
    %1 = vector.shape_cast %0 : vector<1x128x128xf32> to vector<128x128xf32>
    %c0_2 = arith.constant 0 : index
    %c0_3 = arith.constant 0 : index
    %2 = vector.load %arg2[%c0_2, %c0_3] : memref<25x128xf32, #tpu.memory_space<vmem>>, vector<1x128xf32>
    %3 = vector.broadcast %2 : vector<1x128xf32> to vector<128x128xf32>
    %4 = arith.mulf %1, %3 : vector<128x128xf32>
    %c1 = arith.constant 1 : index
    %c0_4 = arith.constant 0 : index
    %c0_5 = arith.constant 0 : index
    %5 = vector.load %arg1[%c1, %c0_4, %c0_5] : memref<25x128x128xf32, #tpu.memory_space<vmem>>, vector<1x128x128xf32>
    %6 = vector.shape_cast %5 : vector<1x128x128xf32> to vector<128x128xf32>
    %c1_6 = arith.constant 1 : index
    %c0_7 = arith.constant 0 : index
    %7 = vector.load %arg2[%c1_6, %c0_7] : memref<25x128xf32, #tpu.memory_space<vmem>>, vector<1x128xf32>
    %8 = vector.broadcast %7 : vector<1x128xf32> to vector<128x128xf32>
    %9 = arith.mulf %6, %8 : vector<128x128xf32>
    %10 = arith.addf %4, %9 : vector<128x128xf32>
    %c2 = arith.constant 2 : index
    %c0_8 = arith.constant 0 : index
    %c0_9 = arith.constant 0 : index
    %11 = vector.load %arg1[%c2, %c0_8, %c0_9] : memref<25x128x128xf32, #tpu.memory_space<vmem>>, vector<1x128x128xf32>
    %12 = vector.shape_cast %11 : vector<1x128x128xf32> to vector<128x128xf32>
    %c2_10 = arith.constant 2 : index
    %c0_11 = arith.constant 0 : index
    %13 = vector.load %arg2[%c2_10, %c0_11] : memref<25x128xf32, #tpu.memory_space<vmem>>, vector<1x128xf32>
    %14 = vector.broadcast %13 : vector<1x128xf32> to vector<128x128xf32>
    %15 = arith.mulf %12, %14 : vector<128x128xf32>
    %16 = arith.addf %10, %15 : vector<128x128xf32>
    %c3 = arith.constant 3 : index
    %c0_12 = arith.constant 0 : index
    %c0_13 = arith.constant 0 : index
    %17 = vector.load %arg1[%c3, %c0_12, %c0_13] : memref<25x128x128xf32, #tpu.memory_space<vmem>>, vector<1x128x128xf32>
    %18 = vector.shape_cast %17 : vector<1x128x128xf32> to vector<128x128xf32>
    %c3_14 = arith.constant 3 : index
    %c0_15 = arith.constant 0 : index
    %19 = vector.load %arg2[%c3_14, %c0_15] : memref<25x128xf32, #tpu.memory_space<vmem>>, vector<1x128xf32>
    %20 = vector.broadcast %19 : vector<1x128xf32> to vector<128x128xf32>
    %21 = arith.mulf %18, %20 : vector<128x128xf32>
    %22 = arith.addf %16, %21 : vector<128x128xf32>
    %c4 = arith.constant 4 : index
    %c0_16 = arith.constant 0 : index
    %c0_17 = arith.constant 0 : index
    %23 = vector.load %arg1[%c4, %c0_16, %c0_17] : memref<25x128x128xf32, #tpu.memory_space<vmem>>, vector<1x128x128xf32>
    %24 = vector.shape_cast %23 : vector<1x128x128xf32> to vector<128x128xf32>
    %c4_18 = arith.constant 4 : index
    %c0_19 = arith.constant 0 : index
    %25 = vector.load %arg2[%c4_18, %c0_19] : memref<25x128xf32, #tpu.memory_space<vmem>>, vector<1x128xf32>
    %26 = vector.broadcast %25 : vector<1x128xf32> to vector<128x128xf32>
    %27 = arith.mulf %24, %26 : vector<128x128xf32>
    %28 = arith.addf %22, %27 : vector<128x128xf32>
    %c5 = arith.constant 5 : index
    %c0_20 = arith.constant 0 : index
    %c0_21 = arith.constant 0 : index
    %29 = vector.load %arg1[%c5, %c0_20, %c0_21] : memref<25x128x128xf32, #tpu.memory_space<vmem>>, vector<1x128x128xf32>
    %30 = vector.shape_cast %29 : vector<1x128x128xf32> to vector<128x128xf32>
    %c5_22 = arith.constant 5 : index
    %c0_23 = arith.constant 0 : index
    %31 = vector.load %arg2[%c5_22, %c0_23] : memref<25x128xf32, #tpu.memory_space<vmem>>, vector<1x128xf32>
    %32 = vector.broadcast %31 : vector<1x128xf32> to vector<128x128xf32>
    %33 = arith.mulf %30, %32 : vector<128x128xf32>
    %34 = arith.addf %28, %33 : vector<128x128xf32>
    %c6 = arith.constant 6 : index
    %c0_24 = arith.constant 0 : index
    %c0_25 = arith.constant 0 : index
    %35 = vector.load %arg1[%c6, %c0_24, %c0_25] : memref<25x128x128xf32, #tpu.memory_space<vmem>>, vector<1x128x128xf32>
    %36 = vector.shape_cast %35 : vector<1x128x128xf32> to vector<128x128xf32>
    %c6_26 = arith.constant 6 : index
    %c0_27 = arith.constant 0 : index
    %37 = vector.load %arg2[%c6_26, %c0_27] : memref<25x128xf32, #tpu.memory_space<vmem>>, vector<1x128xf32>
    %38 = vector.broadcast %37 : vector<1x128xf32> to vector<128x128xf32>
    %39 = arith.mulf %36, %38 : vector<128x128xf32>
    %40 = arith.addf %34, %39 : vector<128x128xf32>
    %c7 = arith.constant 7 : index
    %c0_28 = arith.constant 0 : index
    %c0_29 = arith.constant 0 : index
    %41 = vector.load %arg1[%c7, %c0_28, %c0_29] : memref<25x128x128xf32, #tpu.memory_space<vmem>>, vector<1x128x128xf32>
    %42 = vector.shape_cast %41 : vector<1x128x128xf32> to vector<128x128xf32>
    %c7_30 = arith.constant 7 : index
    %c0_31 = arith.constant 0 : index
    %43 = vector.load %arg2[%c7_30, %c0_31] : memref<25x128xf32, #tpu.memory_space<vmem>>, vector<1x128xf32>
    %44 = vector.broadcast %43 : vector<1x128xf32> to vector<128x128xf32>
    %45 = arith.mulf %42, %44 : vector<128x128xf32>
    %46 = arith.addf %40, %45 : vector<128x128xf32>
    %c8 = arith.constant 8 : index
    %c0_32 = arith.constant 0 : index
    %c0_33 = arith.constant 0 : index
    %47 = vector.load %arg1[%c8, %c0_32, %c0_33] : memref<25x128x128xf32, #tpu.memory_space<vmem>>, vector<1x128x128xf32>
    %48 = vector.shape_cast %47 : vector<1x128x128xf32> to vector<128x128xf32>
    %c8_34 = arith.constant 8 : index
    %c0_35 = arith.constant 0 : index
    %49 = vector.load %arg2[%c8_34, %c0_35] : memref<25x128xf32, #tpu.memory_space<vmem>>, vector<1x128xf32>
    %50 = vector.broadcast %49 : vector<1x128xf32> to vector<128x128xf32>
    %51 = arith.mulf %48, %50 : vector<128x128xf32>
    %52 = arith.addf %46, %51 : vector<128x128xf32>
    %c9 = arith.constant 9 : index
    %c0_36 = arith.constant 0 : index
    %c0_37 = arith.constant 0 : index
    %53 = vector.load %arg1[%c9, %c0_36, %c0_37] : memref<25x128x128xf32, #tpu.memory_space<vmem>>, vector<1x128x128xf32>
    %54 = vector.shape_cast %53 : vector<1x128x128xf32> to vector<128x128xf32>
    %c9_38 = arith.constant 9 : index
    %c0_39 = arith.constant 0 : index
    %55 = vector.load %arg2[%c9_38, %c0_39] : memref<25x128xf32, #tpu.memory_space<vmem>>, vector<1x128xf32>
    %56 = vector.broadcast %55 : vector<1x128xf32> to vector<128x128xf32>
    %57 = arith.mulf %54, %56 : vector<128x128xf32>
    %58 = arith.addf %52, %57 : vector<128x128xf32>
    %c10 = arith.constant 10 : index
    %c0_40 = arith.constant 0 : index
    %c0_41 = arith.constant 0 : index
    %59 = vector.load %arg1[%c10, %c0_40, %c0_41] : memref<25x128x128xf32, #tpu.memory_space<vmem>>, vector<1x128x128xf32>
    %60 = vector.shape_cast %59 : vector<1x128x128xf32> to vector<128x128xf32>
    %c10_42 = arith.constant 10 : index
    %c0_43 = arith.constant 0 : index
    %61 = vector.load %arg2[%c10_42, %c0_43] : memref<25x128xf32, #tpu.memory_space<vmem>>, vector<1x128xf32>
    %62 = vector.broadcast %61 : vector<1x128xf32> to vector<128x128xf32>
    %63 = arith.mulf %60, %62 : vector<128x128xf32>
    %64 = arith.addf %58, %63 : vector<128x128xf32>
    %c11 = arith.constant 11 : index
    %c0_44 = arith.constant 0 : index
    %c0_45 = arith.constant 0 : index
    %65 = vector.load %arg1[%c11, %c0_44, %c0_45] : memref<25x128x128xf32, #tpu.memory_space<vmem>>, vector<1x128x128xf32>
    %66 = vector.shape_cast %65 : vector<1x128x128xf32> to vector<128x128xf32>
    %c11_46 = arith.constant 11 : index
    %c0_47 = arith.constant 0 : index
    %67 = vector.load %arg2[%c11_46, %c0_47] : memref<25x128xf32, #tpu.memory_space<vmem>>, vector<1x128xf32>
    %68 = vector.broadcast %67 : vector<1x128xf32> to vector<128x128xf32>
    %69 = arith.mulf %66, %68 : vector<128x128xf32>
    %70 = arith.addf %64, %69 : vector<128x128xf32>
    %c12 = arith.constant 12 : index
    %c0_48 = arith.constant 0 : index
    %c0_49 = arith.constant 0 : index
    %71 = vector.load %arg1[%c12, %c0_48, %c0_49] : memref<25x128x128xf32, #tpu.memory_space<vmem>>, vector<1x128x128xf32>
    %72 = vector.shape_cast %71 : vector<1x128x128xf32> to vector<128x128xf32>
    %c12_50 = arith.constant 12 : index
    %c0_51 = arith.constant 0 : index
    %73 = vector.load %arg2[%c12_50, %c0_51] : memref<25x128xf32, #tpu.memory_space<vmem>>, vector<1x128xf32>
    %74 = vector.broadcast %73 : vector<1x128xf32> to vector<128x128xf32>
    %75 = arith.mulf %72, %74 : vector<128x128xf32>
    %76 = arith.addf %70, %75 : vector<128x128xf32>
    %c13 = arith.constant 13 : index
    %c0_52 = arith.constant 0 : index
    %c0_53 = arith.constant 0 : index
    %77 = vector.load %arg1[%c13, %c0_52, %c0_53] : memref<25x128x128xf32, #tpu.memory_space<vmem>>, vector<1x128x128xf32>
    %78 = vector.shape_cast %77 : vector<1x128x128xf32> to vector<128x128xf32>
    %c13_54 = arith.constant 13 : index
    %c0_55 = arith.constant 0 : index
    %79 = vector.load %arg2[%c13_54, %c0_55] : memref<25x128xf32, #tpu.memory_space<vmem>>, vector<1x128xf32>
    %80 = vector.broadcast %79 : vector<1x128xf32> to vector<128x128xf32>
    %81 = arith.mulf %78, %80 : vector<128x128xf32>
    %82 = arith.addf %76, %81 : vector<128x128xf32>
    %c14 = arith.constant 14 : index
    %c0_56 = arith.constant 0 : index
    %c0_57 = arith.constant 0 : index
    %83 = vector.load %arg1[%c14, %c0_56, %c0_57] : memref<25x128x128xf32, #tpu.memory_space<vmem>>, vector<1x128x128xf32>
    %84 = vector.shape_cast %83 : vector<1x128x128xf32> to vector<128x128xf32>
    %c14_58 = arith.constant 14 : index
    %c0_59 = arith.constant 0 : index
    %85 = vector.load %arg2[%c14_58, %c0_59] : memref<25x128xf32, #tpu.memory_space<vmem>>, vector<1x128xf32>
    %86 = vector.broadcast %85 : vector<1x128xf32> to vector<128x128xf32>
    %87 = arith.mulf %84, %86 : vector<128x128xf32>
    %88 = arith.addf %82, %87 : vector<128x128xf32>
    %c15 = arith.constant 15 : index
    %c0_60 = arith.constant 0 : index
    %c0_61 = arith.constant 0 : index
    %89 = vector.load %arg1[%c15, %c0_60, %c0_61] : memref<25x128x128xf32, #tpu.memory_space<vmem>>, vector<1x128x128xf32>
    %90 = vector.shape_cast %89 : vector<1x128x128xf32> to vector<128x128xf32>
    %c15_62 = arith.constant 15 : index
    %c0_63 = arith.constant 0 : index
    %91 = vector.load %arg2[%c15_62, %c0_63] : memref<25x128xf32, #tpu.memory_space<vmem>>, vector<1x128xf32>
    %92 = vector.broadcast %91 : vector<1x128xf32> to vector<128x128xf32>
    %93 = arith.mulf %90, %92 : vector<128x128xf32>
    %94 = arith.addf %88, %93 : vector<128x128xf32>
    %c16 = arith.constant 16 : index
    %c0_64 = arith.constant 0 : index
    %c0_65 = arith.constant 0 : index
    %95 = vector.load %arg1[%c16, %c0_64, %c0_65] : memref<25x128x128xf32, #tpu.memory_space<vmem>>, vector<1x128x128xf32>
    %96 = vector.shape_cast %95 : vector<1x128x128xf32> to vector<128x128xf32>
    %c16_66 = arith.constant 16 : index
    %c0_67 = arith.constant 0 : index
    %97 = vector.load %arg2[%c16_66, %c0_67] : memref<25x128xf32, #tpu.memory_space<vmem>>, vector<1x128xf32>
    %98 = vector.broadcast %97 : vector<1x128xf32> to vector<128x128xf32>
    %99 = arith.mulf %96, %98 : vector<128x128xf32>
    %100 = arith.addf %94, %99 : vector<128x128xf32>
    %c17 = arith.constant 17 : index
    %c0_68 = arith.constant 0 : index
    %c0_69 = arith.constant 0 : index
    %101 = vector.load %arg1[%c17, %c0_68, %c0_69] : memref<25x128x128xf32, #tpu.memory_space<vmem>>, vector<1x128x128xf32>
    %102 = vector.shape_cast %101 : vector<1x128x128xf32> to vector<128x128xf32>
    %c17_70 = arith.constant 17 : index
    %c0_71 = arith.constant 0 : index
    %103 = vector.load %arg2[%c17_70, %c0_71] : memref<25x128xf32, #tpu.memory_space<vmem>>, vector<1x128xf32>
    %104 = vector.broadcast %103 : vector<1x128xf32> to vector<128x128xf32>
    %105 = arith.mulf %102, %104 : vector<128x128xf32>
    %106 = arith.addf %100, %105 : vector<128x128xf32>
    %c18 = arith.constant 18 : index
    %c0_72 = arith.constant 0 : index
    %c0_73 = arith.constant 0 : index
    %107 = vector.load %arg1[%c18, %c0_72, %c0_73] : memref<25x128x128xf32, #tpu.memory_space<vmem>>, vector<1x128x128xf32>
    %108 = vector.shape_cast %107 : vector<1x128x128xf32> to vector<128x128xf32>
    %c18_74 = arith.constant 18 : index
    %c0_75 = arith.constant 0 : index
    %109 = vector.load %arg2[%c18_74, %c0_75] : memref<25x128xf32, #tpu.memory_space<vmem>>, vector<1x128xf32>
    %110 = vector.broadcast %109 : vector<1x128xf32> to vector<128x128xf32>
    %111 = arith.mulf %108, %110 : vector<128x128xf32>
    %112 = arith.addf %106, %111 : vector<128x128xf32>
    %c19 = arith.constant 19 : index
    %c0_76 = arith.constant 0 : index
    %c0_77 = arith.constant 0 : index
    %113 = vector.load %arg1[%c19, %c0_76, %c0_77] : memref<25x128x128xf32, #tpu.memory_space<vmem>>, vector<1x128x128xf32>
    %114 = vector.shape_cast %113 : vector<1x128x128xf32> to vector<128x128xf32>
    %c19_78 = arith.constant 19 : index
    %c0_79 = arith.constant 0 : index
    %115 = vector.load %arg2[%c19_78, %c0_79] : memref<25x128xf32, #tpu.memory_space<vmem>>, vector<1x128xf32>
    %116 = vector.broadcast %115 : vector<1x128xf32> to vector<128x128xf32>
    %117 = arith.mulf %114, %116 : vector<128x128xf32>
    %118 = arith.addf %112, %117 : vector<128x128xf32>
    %c20 = arith.constant 20 : index
    %c0_80 = arith.constant 0 : index
    %c0_81 = arith.constant 0 : index
    %119 = vector.load %arg1[%c20, %c0_80, %c0_81] : memref<25x128x128xf32, #tpu.memory_space<vmem>>, vector<1x128x128xf32>
    %120 = vector.shape_cast %119 : vector<1x128x128xf32> to vector<128x128xf32>
    %c20_82 = arith.constant 20 : index
    %c0_83 = arith.constant 0 : index
    %121 = vector.load %arg2[%c20_82, %c0_83] : memref<25x128xf32, #tpu.memory_space<vmem>>, vector<1x128xf32>
    %122 = vector.broadcast %121 : vector<1x128xf32> to vector<128x128xf32>
    %123 = arith.mulf %120, %122 : vector<128x128xf32>
    %124 = arith.addf %118, %123 : vector<128x128xf32>
    %c21 = arith.constant 21 : index
    %c0_84 = arith.constant 0 : index
    %c0_85 = arith.constant 0 : index
    %125 = vector.load %arg1[%c21, %c0_84, %c0_85] : memref<25x128x128xf32, #tpu.memory_space<vmem>>, vector<1x128x128xf32>
    %126 = vector.shape_cast %125 : vector<1x128x128xf32> to vector<128x128xf32>
    %c21_86 = arith.constant 21 : index
    %c0_87 = arith.constant 0 : index
    %127 = vector.load %arg2[%c21_86, %c0_87] : memref<25x128xf32, #tpu.memory_space<vmem>>, vector<1x128xf32>
    %128 = vector.broadcast %127 : vector<1x128xf32> to vector<128x128xf32>
    %129 = arith.mulf %126, %128 : vector<128x128xf32>
    %130 = arith.addf %124, %129 : vector<128x128xf32>
    %c22 = arith.constant 22 : index
    %c0_88 = arith.constant 0 : index
    %c0_89 = arith.constant 0 : index
    %131 = vector.load %arg1[%c22, %c0_88, %c0_89] : memref<25x128x128xf32, #tpu.memory_space<vmem>>, vector<1x128x128xf32>
    %132 = vector.shape_cast %131 : vector<1x128x128xf32> to vector<128x128xf32>
    %c22_90 = arith.constant 22 : index
    %c0_91 = arith.constant 0 : index
    %133 = vector.load %arg2[%c22_90, %c0_91] : memref<25x128xf32, #tpu.memory_space<vmem>>, vector<1x128xf32>
    %134 = vector.broadcast %133 : vector<1x128xf32> to vector<128x128xf32>
    %135 = arith.mulf %132, %134 : vector<128x128xf32>
    %136 = arith.addf %130, %135 : vector<128x128xf32>
    %c23 = arith.constant 23 : index
    %c0_92 = arith.constant 0 : index
    %c0_93 = arith.constant 0 : index
    %137 = vector.load %arg1[%c23, %c0_92, %c0_93] : memref<25x128x128xf32, #tpu.memory_space<vmem>>, vector<1x128x128xf32>
    %138 = vector.shape_cast %137 : vector<1x128x128xf32> to vector<128x128xf32>
    %c23_94 = arith.constant 23 : index
    %c0_95 = arith.constant 0 : index
    %139 = vector.load %arg2[%c23_94, %c0_95] : memref<25x128xf32, #tpu.memory_space<vmem>>, vector<1x128xf32>
    %140 = vector.broadcast %139 : vector<1x128xf32> to vector<128x128xf32>
    %141 = arith.mulf %138, %140 : vector<128x128xf32>
    %142 = arith.addf %136, %141 : vector<128x128xf32>
    %c24 = arith.constant 24 : index
    %c0_96 = arith.constant 0 : index
    %c0_97 = arith.constant 0 : index
    %143 = vector.load %arg1[%c24, %c0_96, %c0_97] : memref<25x128x128xf32, #tpu.memory_space<vmem>>, vector<1x128x128xf32>
    %144 = vector.shape_cast %143 : vector<1x128x128xf32> to vector<128x128xf32>
    %c24_98 = arith.constant 24 : index
    %c0_99 = arith.constant 0 : index
    %145 = vector.load %arg2[%c24_98, %c0_99] : memref<25x128xf32, #tpu.memory_space<vmem>>, vector<1x128xf32>
    %146 = vector.broadcast %145 : vector<1x128xf32> to vector<128x128xf32>
    %147 = arith.mulf %144, %146 : vector<128x128xf32>
    %148 = arith.addf %142, %147 : vector<128x128xf32>
    %c0_100 = arith.constant 0 : index
    %c0_101 = arith.constant 0 : index
    %149 = vector.load %arg3[%c0_100, %c0_101] : memref<128x128xf32, #tpu.memory_space<vmem>>, vector<128x128xf32>
    tpu.vector_store %arg3[%c0_100, %c0_101], %148 {strides = array<i32>} : memref<128x128xf32, #tpu.memory_space<vmem>>, vector<128x128xf32>,
    return
  }
  func.func @transform_0(%arg0: i32) -> (i32, i32, i32) {
    %c0_i32 = arith.constant 0 : i32
    %c0_i32_0 = arith.constant 0 : i32
    %c0_i32_1 = arith.constant 0 : i32
    return %c0_i32, %arg0, %c0_i32_0 : i32, i32, i32
  }
  func.func @transform_1(%arg0: i32) -> (i32, i32) {
    %c0_i32 = arith.constant 0 : i32
    %c0_i32_0 = arith.constant 0 : i32
    %c0_i32_1 = arith.constant 0 : i32
    return %c0_i32, %c0_i32_0 : i32, i32
  }
  func.func @transform_2(%arg0: i32) -> (i32, i32) {
    %c0_i32 = arith.constant 0 : i32
    %c0_i32_0 = arith.constant 0 : i32
    return %arg0, %c0_i32 : i32, i32
  }
}

module attributes {stable_mosaic.version = 11 : i64} {
  func.func @_matmul_stats_kernel(%arg0: i32, %arg1: i32, %arg2: i32, %arg3: memref<128x128xbf16, #tpu.memory_space<vmem>>, %arg4: memref<128x128xbf16, #tpu.memory_space<vmem>>, %arg5: memref<128x128xf32, #tpu.memory_space<vmem>>, %arg6: memref<1x128xf32, #tpu.memory_space<vmem>>, %arg7: memref<1x128xf32, #tpu.memory_space<vmem>>, %arg8: memref<128x128xf32, #tpu.memory_space<vmem>>) attributes {dimension_semantics = [#tpu.dimension_semantics<parallel>, #tpu.dimension_semantics<arbitrary>, #tpu.dimension_semantics<arbitrary>], iteration_bounds = array<i64: 1, 1, 1>, scalar_prefetch = 0 : i64, scratch_operands = 1 : i64, tpu.core_type = #tpu.core_type<tc>, window_params = [{transform_indices = @transform_0, window_bounds = array<i64: 128, 128>}, {transform_indices = @transform_1, window_bounds = array<i64: 128, 128>}, {transform_indices = @transform_2, window_bounds = array<i64: 128, 128>}, {transform_indices = @transform_3, window_bounds = array<i64: 1, 128>}, {transform_indices = @transform_4, window_bounds = array<i64: 1, 128>}]} {
    %c0_i32 = arith.constant 0 : i32
    %0 = arith.cmpi eq, %arg2, %c0_i32 : i32
    %1 = arith.extui %0 : i1 to i32
    %c0_i32_0 = arith.constant 0 : i32
    %2 = arith.cmpi ne, %1, %c0_i32_0 : i32
    scf.if %2 {
      %cst_13 = arith.constant 0.000000e+00 : f32
      %17 = vector.broadcast %cst_13 : f32 to vector<128x128xf32>
      %c0_14 = arith.constant 0 : index
      %c0_15 = arith.constant 0 : index
      %18 = vector.load %arg8[%c0_14, %c0_15] : memref<128x128xf32, #tpu.memory_space<vmem>>, vector<128x128xf32>
      tpu.vector_store %arg8[%c0_14, %c0_15], %17 {strides = array<i32>} : memref<128x128xf32, #tpu.memory_space<vmem>>, vector<128x128xf32>,
    } else {
    }
    %c0 = arith.constant 0 : index
    %c0_1 = arith.constant 0 : index
    %3 = vector.load %arg8[%c0, %c0_1] : memref<128x128xf32, #tpu.memory_space<vmem>>, vector<128x128xf32>
    %c0_2 = arith.constant 0 : index
    %c0_3 = arith.constant 0 : index
    %4 = vector.load %arg3[%c0_2, %c0_3] : memref<128x128xbf16, #tpu.memory_space<vmem>>, vector<128x128xbf16>
    %c0_4 = arith.constant 0 : index
    %c0_5 = arith.constant 0 : index
    %5 = vector.load %arg4[%c0_4, %c0_5] : memref<128x128xbf16, #tpu.memory_space<vmem>>, vector<128x128xbf16>
    %cst = arith.constant dense<0.000000e+00> : vector<128x128xf32>
    %6 = tpu.matmul %4, %5, %cst {dimension_numbers = #tpu.dot_dimension_numbers<[1], [0], [0], [1], [0, 0, 1, 1], [], []>} : vector<128x128xbf16>, vector<128x128xbf16>, vector<128x128xf32> -> vector<128x128xf32>
    %7 = arith.addf %3, %6 : vector<128x128xf32>
    %c0_6 = arith.constant 0 : index
    %c0_7 = arith.constant 0 : index
    %8 = vector.load %arg8[%c0_6, %c0_7] : memref<128x128xf32, #tpu.memory_space<vmem>>, vector<128x128xf32>
    tpu.vector_store %arg8[%c0_6, %c0_7], %7 {strides = array<i32>} : memref<128x128xf32, #tpu.memory_space<vmem>>, vector<128x128xf32>,
    %c0_i32_8 = arith.constant 0 : i32
    %9 = arith.cmpi eq, %arg2, %c0_i32_8 : i32
    %c0_i32_9 = arith.constant 0 : i32
    %10 = arith.cmpi eq, %arg1, %c0_i32_9 : i32
    %11 = arith.andi %9, %10 : i1
    %12 = arith.extui %11 : i1 to i32
    %c0_i32_10 = arith.constant 0 : i32
    %13 = arith.cmpi ne, %12, %c0_i32_10 : i32
    scf.if %13 {
      %cst_13 = arith.constant 0.000000e+00 : f32
      %17 = vector.broadcast %cst_13 : f32 to vector<1x128xf32>
      %c0_14 = arith.constant 0 : index
      %c0_15 = arith.constant 0 : index
      %18 = vector.load %arg6[%c0_14, %c0_15] : memref<1x128xf32, #tpu.memory_space<vmem>>, vector<1x128xf32>
      tpu.vector_store %arg6[%c0_14, %c0_15], %17 {strides = array<i32>} : memref<1x128xf32, #tpu.memory_space<vmem>>, vector<1x128xf32>,
      %cst_16 = arith.constant 0.000000e+00 : f32
      %19 = vector.broadcast %cst_16 : f32 to vector<1x128xf32>
      %c0_17 = arith.constant 0 : index
      %c0_18 = arith.constant 0 : index
      %20 = vector.load %arg7[%c0_17, %c0_18] : memref<1x128xf32, #tpu.memory_space<vmem>>, vector<1x128xf32>
      tpu.vector_store %arg7[%c0_17, %c0_18], %19 {strides = array<i32>} : memref<1x128xf32, #tpu.memory_space<vmem>>, vector<1x128xf32>,
    } else {
    }
    %c0_i32_11 = arith.constant 0 : i32
    %14 = arith.cmpi eq, %arg2, %c0_i32_11 : i32
    %15 = arith.extui %14 : i1 to i32
    %c0_i32_12 = arith.constant 0 : i32
    %16 = arith.cmpi ne, %15, %c0_i32_12 : i32
    scf.if %16 {
      %c0_13 = arith.constant 0 : index
      %c0_14 = arith.constant 0 : index
      %17 = vector.load %arg8[%c0_13, %c0_14] : memref<128x128xf32, #tpu.memory_space<vmem>>, vector<128x128xf32>
      %c0_15 = arith.constant 0 : index
      %c0_16 = arith.constant 0 : index
      %18 = vector.load %arg5[%c0_15, %c0_16] : memref<128x128xf32, #tpu.memory_space<vmem>>, vector<128x128xf32>
      tpu.vector_store %arg5[%c0_15, %c0_16], %17 {strides = array<i32>} : memref<128x128xf32, #tpu.memory_space<vmem>>, vector<128x128xf32>,
      %c0_17 = arith.constant 0 : index
      %c0_18 = arith.constant 0 : index
      %19 = vector.load %arg6[%c0_17, %c0_18] : memref<1x128xf32, #tpu.memory_space<vmem>>, vector<1x128xf32>
      %cst_19 = arith.constant dense<0.000000e+00> : vector<128xf32>
      %20 = vector.multi_reduction <add>, %17, %cst_19 [0] : vector<128x128xf32> to vector<128xf32>
      %21 = vector.shape_cast %20 : vector<128xf32> to vector<1x128xf32>
      %22 = arith.addf %19, %21 : vector<1x128xf32>
      %c0_20 = arith.constant 0 : index
      %c0_21 = arith.constant 0 : index
      %23 = vector.load %arg6[%c0_20, %c0_21] : memref<1x128xf32, #tpu.memory_space<vmem>>, vector<1x128xf32>
      tpu.vector_store %arg6[%c0_20, %c0_21], %22 {strides = array<i32>} : memref<1x128xf32, #tpu.memory_space<vmem>>, vector<1x128xf32>,
      %c0_22 = arith.constant 0 : index
      %c0_23 = arith.constant 0 : index
      %24 = vector.load %arg7[%c0_22, %c0_23] : memref<1x128xf32, #tpu.memory_space<vmem>>, vector<1x128xf32>
      %25 = arith.mulf %17, %17 : vector<128x128xf32>
      %cst_24 = arith.constant dense<0.000000e+00> : vector<128xf32>
      %26 = vector.multi_reduction <add>, %25, %cst_24 [0] : vector<128x128xf32> to vector<128xf32>
      %27 = vector.shape_cast %26 : vector<128xf32> to vector<1x128xf32>
      %28 = arith.addf %24, %27 : vector<1x128xf32>
      %c0_25 = arith.constant 0 : index
      %c0_26 = arith.constant 0 : index
      %29 = vector.load %arg7[%c0_25, %c0_26] : memref<1x128xf32, #tpu.memory_space<vmem>>, vector<1x128xf32>
      tpu.vector_store %arg7[%c0_25, %c0_26], %28 {strides = array<i32>} : memref<1x128xf32, #tpu.memory_space<vmem>>, vector<1x128xf32>,
    } else {
    }
    return
  }
  func.func @transform_0(%arg0: i32, %arg1: i32, %arg2: i32) -> (i32, i32) {
    %c0_i32 = arith.constant 0 : i32
    return %arg1, %arg2 : i32, i32
  }
  func.func @transform_1(%arg0: i32, %arg1: i32, %arg2: i32) -> (i32, i32) {
    %c0_i32 = arith.constant 0 : i32
    return %arg2, %arg0 : i32, i32
  }
  func.func @transform_2(%arg0: i32, %arg1: i32, %arg2: i32) -> (i32, i32) {
    %c0_i32 = arith.constant 0 : i32
    return %arg1, %arg0 : i32, i32
  }
  func.func @transform_3(%arg0: i32, %arg1: i32, %arg2: i32) -> (i32, i32) {
    %c0_i32 = arith.constant 0 : i32
    %c0_i32_0 = arith.constant 0 : i32
    return %c0_i32, %arg0 : i32, i32
  }
  func.func @transform_4(%arg0: i32, %arg1: i32, %arg2: i32) -> (i32, i32) {
    %c0_i32 = arith.constant 0 : i32
    %c0_i32_0 = arith.constant 0 : i32
    return %c0_i32, %arg0 : i32, i32
  }
}

module attributes {stable_mosaic.version = 11 : i64} {
  func.func @_scale_shift_kernel(%arg0: i32, %arg1: memref<128x128xf32, #tpu.memory_space<vmem>>, %arg2: memref<1x128xf32, #tpu.memory_space<vmem>>, %arg3: memref<1x128xf32, #tpu.memory_space<vmem>>, %arg4: memref<128x128xf32, #tpu.memory_space<vmem>>) attributes {dimension_semantics = [#tpu.dimension_semantics<parallel>], iteration_bounds = array<i64: 1>, scalar_prefetch = 0 : i64, scratch_operands = 0 : i64, tpu.core_type = #tpu.core_type<tc>, window_params = [{transform_indices = @transform_0, window_bounds = array<i64: 128, 128>}, {pipeline_mode = #tpu.pipeline_mode<synchronous>, transform_indices = @transform_1, window_bounds = array<i64: 1, 128>}, {pipeline_mode = #tpu.pipeline_mode<synchronous>, transform_indices = @transform_2, window_bounds = array<i64: 1, 128>}, {transform_indices = @transform_3, window_bounds = array<i64: 128, 128>}]} {
    %c0 = arith.constant 0 : index
    %c0_0 = arith.constant 0 : index
    %0 = vector.load %arg1[%c0, %c0_0] : memref<128x128xf32, #tpu.memory_space<vmem>>, vector<128x128xf32>
    %c0_1 = arith.constant 0 : index
    %c0_2 = arith.constant 0 : index
    %1 = vector.load %arg2[%c0_1, %c0_2] : memref<1x128xf32, #tpu.memory_space<vmem>>, vector<1x128xf32>
    %2 = vector.broadcast %1 : vector<1x128xf32> to vector<128x128xf32>
    %3 = arith.mulf %0, %2 : vector<128x128xf32>
    %c0_3 = arith.constant 0 : index
    %c0_4 = arith.constant 0 : index
    %4 = vector.load %arg3[%c0_3, %c0_4] : memref<1x128xf32, #tpu.memory_space<vmem>>, vector<1x128xf32>
    %5 = vector.broadcast %4 : vector<1x128xf32> to vector<128x128xf32>
    %6 = arith.addf %3, %5 : vector<128x128xf32>
    %cst = arith.constant 0.000000e+00 : f32
    %7 = vector.broadcast %cst : f32 to vector<128x128xf32>
    %8 = arith.maximumf %6, %7 : vector<128x128xf32>
    %c0_5 = arith.constant 0 : index
    %c0_6 = arith.constant 0 : index
    %9 = vector.load %arg4[%c0_5, %c0_6] : memref<128x128xf32, #tpu.memory_space<vmem>>, vector<128x128xf32>
    tpu.vector_store %arg4[%c0_5, %c0_6], %8 {strides = array<i32>} : memref<128x128xf32, #tpu.memory_space<vmem>>, vector<128x128xf32>,
    return
  }
  func.func @transform_0(%arg0: i32) -> (i32, i32) {
    %c0_i32 = arith.constant 0 : i32
    %c0_i32_0 = arith.constant 0 : i32
    return %arg0, %c0_i32 : i32, i32
  }
  func.func @transform_1(%arg0: i32) -> (i32, i32) {
    %c0_i32 = arith.constant 0 : i32
    %c0_i32_0 = arith.constant 0 : i32
    %c0_i32_1 = arith.constant 0 : i32
    return %c0_i32, %c0_i32_0 : i32, i32
  }
  func.func @transform_2(%arg0: i32) -> (i32, i32) {
    %c0_i32 = arith.constant 0 : i32
    %c0_i32_0 = arith.constant 0 : i32
    %c0_i32_1 = arith.constant 0 : i32
    return %c0_i32, %c0_i32_0 : i32, i32
  }
  func.func @transform_3(%arg0: i32) -> (i32, i32) {
    %c0_i32 = arith.constant 0 : i32
    %c0_i32_0 = arith.constant 0 : i32
    return %arg0, %c0_i32 : i32, i32
  }
}

module attributes {stable_mosaic.version = 11 : i64} {
  func.func @_tap_max_kernel(%arg0: i32, %arg1: memref<9x128x128xf32, #tpu.memory_space<vmem>>, %arg2: memref<128x128xf32, #tpu.memory_space<vmem>>) attributes {dimension_semantics = [#tpu.dimension_semantics<parallel>], iteration_bounds = array<i64: 1>, scalar_prefetch = 0 : i64, scratch_operands = 0 : i64, tpu.core_type = #tpu.core_type<tc>, window_params = [{transform_indices = @transform_0, window_bounds = array<i64: 9, 128, 128>}, {transform_indices = @transform_1, window_bounds = array<i64: 128, 128>}]} {
    %c0 = arith.constant 0 : index
    %c0_0 = arith.constant 0 : index
    %c0_1 = arith.constant 0 : index
    %0 = vector.load %arg1[%c0, %c0_0, %c0_1] : memref<9x128x128xf32, #tpu.memory_space<vmem>>, vector<1x128x128xf32>
    %1 = vector.shape_cast %0 : vector<1x128x128xf32> to vector<128x128xf32>
    %c1 = arith.constant 1 : index
    %c0_2 = arith.constant 0 : index
    %c0_3 = arith.constant 0 : index
    %2 = vector.load %arg1[%c1, %c0_2, %c0_3] : memref<9x128x128xf32, #tpu.memory_space<vmem>>, vector<1x128x128xf32>
    %3 = vector.shape_cast %2 : vector<1x128x128xf32> to vector<128x128xf32>
    %4 = arith.maximumf %1, %3 : vector<128x128xf32>
    %c2 = arith.constant 2 : index
    %c0_4 = arith.constant 0 : index
    %c0_5 = arith.constant 0 : index
    %5 = vector.load %arg1[%c2, %c0_4, %c0_5] : memref<9x128x128xf32, #tpu.memory_space<vmem>>, vector<1x128x128xf32>
    %6 = vector.shape_cast %5 : vector<1x128x128xf32> to vector<128x128xf32>
    %7 = arith.maximumf %4, %6 : vector<128x128xf32>
    %c3 = arith.constant 3 : index
    %c0_6 = arith.constant 0 : index
    %c0_7 = arith.constant 0 : index
    %8 = vector.load %arg1[%c3, %c0_6, %c0_7] : memref<9x128x128xf32, #tpu.memory_space<vmem>>, vector<1x128x128xf32>
    %9 = vector.shape_cast %8 : vector<1x128x128xf32> to vector<128x128xf32>
    %10 = arith.maximumf %7, %9 : vector<128x128xf32>
    %c4 = arith.constant 4 : index
    %c0_8 = arith.constant 0 : index
    %c0_9 = arith.constant 0 : index
    %11 = vector.load %arg1[%c4, %c0_8, %c0_9] : memref<9x128x128xf32, #tpu.memory_space<vmem>>, vector<1x128x128xf32>
    %12 = vector.shape_cast %11 : vector<1x128x128xf32> to vector<128x128xf32>
    %13 = arith.maximumf %10, %12 : vector<128x128xf32>
    %c5 = arith.constant 5 : index
    %c0_10 = arith.constant 0 : index
    %c0_11 = arith.constant 0 : index
    %14 = vector.load %arg1[%c5, %c0_10, %c0_11] : memref<9x128x128xf32, #tpu.memory_space<vmem>>, vector<1x128x128xf32>
    %15 = vector.shape_cast %14 : vector<1x128x128xf32> to vector<128x128xf32>
    %16 = arith.maximumf %13, %15 : vector<128x128xf32>
    %c6 = arith.constant 6 : index
    %c0_12 = arith.constant 0 : index
    %c0_13 = arith.constant 0 : index
    %17 = vector.load %arg1[%c6, %c0_12, %c0_13] : memref<9x128x128xf32, #tpu.memory_space<vmem>>, vector<1x128x128xf32>
    %18 = vector.shape_cast %17 : vector<1x128x128xf32> to vector<128x128xf32>
    %19 = arith.maximumf %16, %18 : vector<128x128xf32>
    %c7 = arith.constant 7 : index
    %c0_14 = arith.constant 0 : index
    %c0_15 = arith.constant 0 : index
    %20 = vector.load %arg1[%c7, %c0_14, %c0_15] : memref<9x128x128xf32, #tpu.memory_space<vmem>>, vector<1x128x128xf32>
    %21 = vector.shape_cast %20 : vector<1x128x128xf32> to vector<128x128xf32>
    %22 = arith.maximumf %19, %21 : vector<128x128xf32>
    %c8 = arith.constant 8 : index
    %c0_16 = arith.constant 0 : index
    %c0_17 = arith.constant 0 : index
    %23 = vector.load %arg1[%c8, %c0_16, %c0_17] : memref<9x128x128xf32, #tpu.memory_space<vmem>>, vector<1x128x128xf32>
    %24 = vector.shape_cast %23 : vector<1x128x128xf32> to vector<128x128xf32>
    %25 = arith.maximumf %22, %24 : vector<128x128xf32>
    %c0_18 = arith.constant 0 : index
    %c0_19 = arith.constant 0 : index
    %26 = vector.load %arg2[%c0_18, %c0_19] : memref<128x128xf32, #tpu.memory_space<vmem>>, vector<128x128xf32>
    tpu.vector_store %arg2[%c0_18, %c0_19], %25 {strides = array<i32>} : memref<128x128xf32, #tpu.memory_space<vmem>>, vector<128x128xf32>,
    return
  }
  func.func @transform_0(%arg0: i32) -> (i32, i32, i32) {
    %c0_i32 = arith.constant 0 : i32
    %c0_i32_0 = arith.constant 0 : i32
    %c0_i32_1 = arith.constant 0 : i32
    return %c0_i32, %arg0, %c0_i32_0 : i32, i32, i32
  }
  func.func @transform_1(%arg0: i32) -> (i32, i32) {
    %c0_i32 = arith.constant 0 : i32
    %c0_i32_0 = arith.constant 0 : i32
    return %arg0, %c0_i32 : i32, i32
  }
}

module attributes {stable_mosaic.version = 11 : i64} {
  func.func @_scale_shift_kernel(%arg0: i32, %arg1: memref<128x128xf32, #tpu.memory_space<vmem>>, %arg2: memref<1x128xf32, #tpu.memory_space<vmem>>, %arg3: memref<1x128xf32, #tpu.memory_space<vmem>>, %arg4: memref<128x128xf32, #tpu.memory_space<vmem>>) attributes {dimension_semantics = [#tpu.dimension_semantics<parallel>], iteration_bounds = array<i64: 1>, scalar_prefetch = 0 : i64, scratch_operands = 0 : i64, tpu.core_type = #tpu.core_type<tc>, window_params = [{transform_indices = @transform_0, window_bounds = array<i64: 128, 128>}, {pipeline_mode = #tpu.pipeline_mode<synchronous>, transform_indices = @transform_1, window_bounds = array<i64: 1, 128>}, {pipeline_mode = #tpu.pipeline_mode<synchronous>, transform_indices = @transform_2, window_bounds = array<i64: 1, 128>}, {transform_indices = @transform_3, window_bounds = array<i64: 128, 128>}]} {
    %c0 = arith.constant 0 : index
    %c0_0 = arith.constant 0 : index
    %0 = vector.load %arg1[%c0, %c0_0] : memref<128x128xf32, #tpu.memory_space<vmem>>, vector<128x128xf32>
    %c0_1 = arith.constant 0 : index
    %c0_2 = arith.constant 0 : index
    %1 = vector.load %arg2[%c0_1, %c0_2] : memref<1x128xf32, #tpu.memory_space<vmem>>, vector<1x128xf32>
    %2 = vector.broadcast %1 : vector<1x128xf32> to vector<128x128xf32>
    %3 = arith.mulf %0, %2 : vector<128x128xf32>
    %c0_3 = arith.constant 0 : index
    %c0_4 = arith.constant 0 : index
    %4 = vector.load %arg3[%c0_3, %c0_4] : memref<1x128xf32, #tpu.memory_space<vmem>>, vector<1x128xf32>
    %5 = vector.broadcast %4 : vector<1x128xf32> to vector<128x128xf32>
    %6 = arith.addf %3, %5 : vector<128x128xf32>
    %c0_5 = arith.constant 0 : index
    %c0_6 = arith.constant 0 : index
    %7 = vector.load %arg4[%c0_5, %c0_6] : memref<128x128xf32, #tpu.memory_space<vmem>>, vector<128x128xf32>
    tpu.vector_store %arg4[%c0_5, %c0_6], %6 {strides = array<i32>} : memref<128x128xf32, #tpu.memory_space<vmem>>, vector<128x128xf32>,
    return
  }
  func.func @transform_0(%arg0: i32) -> (i32, i32) {
    %c0_i32 = arith.constant 0 : i32
    %c0_i32_0 = arith.constant 0 : i32
    return %arg0, %c0_i32 : i32, i32
  }
  func.func @transform_1(%arg0: i32) -> (i32, i32) {
    %c0_i32 = arith.constant 0 : i32
    %c0_i32_0 = arith.constant 0 : i32
    %c0_i32_1 = arith.constant 0 : i32
    return %c0_i32, %c0_i32_0 : i32, i32
  }
  func.func @transform_2(%arg0: i32) -> (i32, i32) {
    %c0_i32 = arith.constant 0 : i32
    %c0_i32_0 = arith.constant 0 : i32
    %c0_i32_1 = arith.constant 0 : i32
    return %c0_i32, %c0_i32_0 : i32, i32
  }
  func.func @transform_3(%arg0: i32) -> (i32, i32) {
    %c0_i32 = arith.constant 0 : i32
    %c0_i32_0 = arith.constant 0 : i32
    return %arg0, %c0_i32 : i32, i32
  }
}

module attributes {stable_mosaic.version = 11 : i64} {
  func.func @_waccum_kernel(%arg0: i32, %arg1: memref<7x128xf32, #tpu.memory_space<vmem>>, %arg2: memref<128x128xf32, #tpu.memory_space<vmem>>, %arg3: memref<128x128xf32, #tpu.memory_space<vmem>>, %arg4: memref<128x128xf32, #tpu.memory_space<vmem>>, %arg5: memref<128x128xf32, #tpu.memory_space<vmem>>, %arg6: memref<128x128xf32, #tpu.memory_space<vmem>>, %arg7: memref<128x128xf32, #tpu.memory_space<vmem>>, %arg8: memref<128x128xf32, #tpu.memory_space<vmem>>, %arg9: memref<128x128xf32, #tpu.memory_space<vmem>>) attributes {dimension_semantics = [#tpu.dimension_semantics<parallel>], iteration_bounds = array<i64: 1>, scalar_prefetch = 0 : i64, scratch_operands = 0 : i64, tpu.core_type = #tpu.core_type<tc>, window_params = [{pipeline_mode = #tpu.pipeline_mode<synchronous>, transform_indices = @transform_0, window_bounds = array<i64: 7, 128>}, {transform_indices = @transform_1, window_bounds = array<i64: 128, 128>}, {transform_indices = @transform_2, window_bounds = array<i64: 128, 128>}, {transform_indices = @transform_3, window_bounds = array<i64: 128, 128>}, {transform_indices = @transform_4, window_bounds = array<i64: 128, 128>}, {transform_indices = @transform_5, window_bounds = array<i64: 128, 128>}, {transform_indices = @transform_6, window_bounds = array<i64: 128, 128>}, {transform_indices = @transform_7, window_bounds = array<i64: 128, 128>}, {transform_indices = @transform_8, window_bounds = array<i64: 128, 128>}]} {
    %c0 = arith.constant 0 : index
    %c0_0 = arith.constant 0 : index
    %0 = vector.load %arg2[%c0, %c0_0] : memref<128x128xf32, #tpu.memory_space<vmem>>, vector<128x128xf32>
    %c0_1 = arith.constant 0 : index
    %c0_2 = arith.constant 0 : index
    %1 = vector.load %arg1[%c0_1, %c0_2] : memref<7x128xf32, #tpu.memory_space<vmem>>, vector<1x128xf32>
    %2 = vector.broadcast %1 : vector<1x128xf32> to vector<128x128xf32>
    %3 = arith.mulf %0, %2 : vector<128x128xf32>
    %c0_3 = arith.constant 0 : index
    %c0_4 = arith.constant 0 : index
    %4 = vector.load %arg3[%c0_3, %c0_4] : memref<128x128xf32, #tpu.memory_space<vmem>>, vector<128x128xf32>
    %c1 = arith.constant 1 : index
    %c0_5 = arith.constant 0 : index
    %5 = vector.load %arg1[%c1, %c0_5] : memref<7x128xf32, #tpu.memory_space<vmem>>, vector<1x128xf32>
    %6 = vector.broadcast %5 : vector<1x128xf32> to vector<128x128xf32>
    %7 = arith.mulf %4, %6 : vector<128x128xf32>
    %8 = arith.addf %3, %7 : vector<128x128xf32>
    %c0_6 = arith.constant 0 : index
    %c0_7 = arith.constant 0 : index
    %9 = vector.load %arg4[%c0_6, %c0_7] : memref<128x128xf32, #tpu.memory_space<vmem>>, vector<128x128xf32>
    %c2 = arith.constant 2 : index
    %c0_8 = arith.constant 0 : index
    %10 = vector.load %arg1[%c2, %c0_8] : memref<7x128xf32, #tpu.memory_space<vmem>>, vector<1x128xf32>
    %11 = vector.broadcast %10 : vector<1x128xf32> to vector<128x128xf32>
    %12 = arith.mulf %9, %11 : vector<128x128xf32>
    %13 = arith.addf %8, %12 : vector<128x128xf32>
    %c0_9 = arith.constant 0 : index
    %c0_10 = arith.constant 0 : index
    %14 = vector.load %arg5[%c0_9, %c0_10] : memref<128x128xf32, #tpu.memory_space<vmem>>, vector<128x128xf32>
    %c3 = arith.constant 3 : index
    %c0_11 = arith.constant 0 : index
    %15 = vector.load %arg1[%c3, %c0_11] : memref<7x128xf32, #tpu.memory_space<vmem>>, vector<1x128xf32>
    %16 = vector.broadcast %15 : vector<1x128xf32> to vector<128x128xf32>
    %17 = arith.mulf %14, %16 : vector<128x128xf32>
    %18 = arith.addf %13, %17 : vector<128x128xf32>
    %c0_12 = arith.constant 0 : index
    %c0_13 = arith.constant 0 : index
    %19 = vector.load %arg6[%c0_12, %c0_13] : memref<128x128xf32, #tpu.memory_space<vmem>>, vector<128x128xf32>
    %c4 = arith.constant 4 : index
    %c0_14 = arith.constant 0 : index
    %20 = vector.load %arg1[%c4, %c0_14] : memref<7x128xf32, #tpu.memory_space<vmem>>, vector<1x128xf32>
    %21 = vector.broadcast %20 : vector<1x128xf32> to vector<128x128xf32>
    %22 = arith.mulf %19, %21 : vector<128x128xf32>
    %23 = arith.addf %18, %22 : vector<128x128xf32>
    %c0_15 = arith.constant 0 : index
    %c0_16 = arith.constant 0 : index
    %24 = vector.load %arg7[%c0_15, %c0_16] : memref<128x128xf32, #tpu.memory_space<vmem>>, vector<128x128xf32>
    %c5 = arith.constant 5 : index
    %c0_17 = arith.constant 0 : index
    %25 = vector.load %arg1[%c5, %c0_17] : memref<7x128xf32, #tpu.memory_space<vmem>>, vector<1x128xf32>
    %26 = vector.broadcast %25 : vector<1x128xf32> to vector<128x128xf32>
    %27 = arith.mulf %24, %26 : vector<128x128xf32>
    %28 = arith.addf %23, %27 : vector<128x128xf32>
    %c0_18 = arith.constant 0 : index
    %c0_19 = arith.constant 0 : index
    %29 = vector.load %arg8[%c0_18, %c0_19] : memref<128x128xf32, #tpu.memory_space<vmem>>, vector<128x128xf32>
    %c6 = arith.constant 6 : index
    %c0_20 = arith.constant 0 : index
    %30 = vector.load %arg1[%c6, %c0_20] : memref<7x128xf32, #tpu.memory_space<vmem>>, vector<1x128xf32>
    %31 = vector.broadcast %30 : vector<1x128xf32> to vector<128x128xf32>
    %32 = arith.mulf %29, %31 : vector<128x128xf32>
    %33 = arith.addf %28, %32 : vector<128x128xf32>
    %c0_21 = arith.constant 0 : index
    %c0_22 = arith.constant 0 : index
    %34 = vector.load %arg9[%c0_21, %c0_22] : memref<128x128xf32, #tpu.memory_space<vmem>>, vector<128x128xf32>
    tpu.vector_store %arg9[%c0_21, %c0_22], %33 {strides = array<i32>} : memref<128x128xf32, #tpu.memory_space<vmem>>, vector<128x128xf32>,
    return
  }
  func.func @transform_0(%arg0: i32) -> (i32, i32) {
    %c0_i32 = arith.constant 0 : i32
    %c0_i32_0 = arith.constant 0 : i32
    %c0_i32_1 = arith.constant 0 : i32
    return %c0_i32, %c0_i32_0 : i32, i32
  }
  func.func @transform_1(%arg0: i32) -> (i32, i32) {
    %c0_i32 = arith.constant 0 : i32
    %c0_i32_0 = arith.constant 0 : i32
    return %arg0, %c0_i32 : i32, i32
  }
  func.func @transform_2(%arg0: i32) -> (i32, i32) {
    %c0_i32 = arith.constant 0 : i32
    %c0_i32_0 = arith.constant 0 : i32
    return %arg0, %c0_i32 : i32, i32
  }
  func.func @transform_3(%arg0: i32) -> (i32, i32) {
    %c0_i32 = arith.constant 0 : i32
    %c0_i32_0 = arith.constant 0 : i32
    return %arg0, %c0_i32 : i32, i32
  }
  func.func @transform_4(%arg0: i32) -> (i32, i32) {
    %c0_i32 = arith.constant 0 : i32
    %c0_i32_0 = arith.constant 0 : i32
    return %arg0, %c0_i32 : i32, i32
  }
  func.func @transform_5(%arg0: i32) -> (i32, i32) {
    %c0_i32 = arith.constant 0 : i32
    %c0_i32_0 = arith.constant 0 : i32
    return %arg0, %c0_i32 : i32, i32
  }
  func.func @transform_6(%arg0: i32) -> (i32, i32) {
    %c0_i32 = arith.constant 0 : i32
    %c0_i32_0 = arith.constant 0 : i32
    return %arg0, %c0_i32 : i32, i32
  }
  func.func @transform_7(%arg0: i32) -> (i32, i32) {
    %c0_i32 = arith.constant 0 : i32
    %c0_i32_0 = arith.constant 0 : i32
    return %arg0, %c0_i32 : i32, i32
  }
  func.func @transform_8(%arg0: i32) -> (i32, i32) {
    %c0_i32 = arith.constant 0 : i32
    %c0_i32_0 = arith.constant 0 : i32
    return %arg0, %c0_i32 : i32, i32
  }
}

module attributes {stable_mosaic.version = 11 : i64} {
  func.func @_tap_wsum_kernel(%arg0: i32, %arg1: memref<9x32x128xf32, #tpu.memory_space<vmem>>, %arg2: memref<9x128xf32, #tpu.memory_space<vmem>>, %arg3: memref<32x128xf32, #tpu.memory_space<vmem>>) attributes {dimension_semantics = [#tpu.dimension_semantics<parallel>], iteration_bounds = array<i64: 1>, scalar_prefetch = 0 : i64, scratch_operands = 0 : i64, tpu.core_type = #tpu.core_type<tc>, window_params = [{transform_indices = @transform_0, window_bounds = array<i64: 9, 32, 128>}, {pipeline_mode = #tpu.pipeline_mode<synchronous>, transform_indices = @transform_1, window_bounds = array<i64: 9, 128>}, {transform_indices = @transform_2, window_bounds = array<i64: 32, 128>}]} {
    %c0 = arith.constant 0 : index
    %c0_0 = arith.constant 0 : index
    %c0_1 = arith.constant 0 : index
    %0 = vector.load %arg1[%c0, %c0_0, %c0_1] : memref<9x32x128xf32, #tpu.memory_space<vmem>>, vector<1x32x128xf32>
    %1 = vector.shape_cast %0 : vector<1x32x128xf32> to vector<32x128xf32>
    %c0_2 = arith.constant 0 : index
    %c0_3 = arith.constant 0 : index
    %2 = vector.load %arg2[%c0_2, %c0_3] : memref<9x128xf32, #tpu.memory_space<vmem>>, vector<1x128xf32>
    %3 = vector.broadcast %2 : vector<1x128xf32> to vector<32x128xf32>
    %4 = arith.mulf %1, %3 : vector<32x128xf32>
    %c1 = arith.constant 1 : index
    %c0_4 = arith.constant 0 : index
    %c0_5 = arith.constant 0 : index
    %5 = vector.load %arg1[%c1, %c0_4, %c0_5] : memref<9x32x128xf32, #tpu.memory_space<vmem>>, vector<1x32x128xf32>
    %6 = vector.shape_cast %5 : vector<1x32x128xf32> to vector<32x128xf32>
    %c1_6 = arith.constant 1 : index
    %c0_7 = arith.constant 0 : index
    %7 = vector.load %arg2[%c1_6, %c0_7] : memref<9x128xf32, #tpu.memory_space<vmem>>, vector<1x128xf32>
    %8 = vector.broadcast %7 : vector<1x128xf32> to vector<32x128xf32>
    %9 = arith.mulf %6, %8 : vector<32x128xf32>
    %10 = arith.addf %4, %9 : vector<32x128xf32>
    %c2 = arith.constant 2 : index
    %c0_8 = arith.constant 0 : index
    %c0_9 = arith.constant 0 : index
    %11 = vector.load %arg1[%c2, %c0_8, %c0_9] : memref<9x32x128xf32, #tpu.memory_space<vmem>>, vector<1x32x128xf32>
    %12 = vector.shape_cast %11 : vector<1x32x128xf32> to vector<32x128xf32>
    %c2_10 = arith.constant 2 : index
    %c0_11 = arith.constant 0 : index
    %13 = vector.load %arg2[%c2_10, %c0_11] : memref<9x128xf32, #tpu.memory_space<vmem>>, vector<1x128xf32>
    %14 = vector.broadcast %13 : vector<1x128xf32> to vector<32x128xf32>
    %15 = arith.mulf %12, %14 : vector<32x128xf32>
    %16 = arith.addf %10, %15 : vector<32x128xf32>
    %c3 = arith.constant 3 : index
    %c0_12 = arith.constant 0 : index
    %c0_13 = arith.constant 0 : index
    %17 = vector.load %arg1[%c3, %c0_12, %c0_13] : memref<9x32x128xf32, #tpu.memory_space<vmem>>, vector<1x32x128xf32>
    %18 = vector.shape_cast %17 : vector<1x32x128xf32> to vector<32x128xf32>
    %c3_14 = arith.constant 3 : index
    %c0_15 = arith.constant 0 : index
    %19 = vector.load %arg2[%c3_14, %c0_15] : memref<9x128xf32, #tpu.memory_space<vmem>>, vector<1x128xf32>
    %20 = vector.broadcast %19 : vector<1x128xf32> to vector<32x128xf32>
    %21 = arith.mulf %18, %20 : vector<32x128xf32>
    %22 = arith.addf %16, %21 : vector<32x128xf32>
    %c4 = arith.constant 4 : index
    %c0_16 = arith.constant 0 : index
    %c0_17 = arith.constant 0 : index
    %23 = vector.load %arg1[%c4, %c0_16, %c0_17] : memref<9x32x128xf32, #tpu.memory_space<vmem>>, vector<1x32x128xf32>
    %24 = vector.shape_cast %23 : vector<1x32x128xf32> to vector<32x128xf32>
    %c4_18 = arith.constant 4 : index
    %c0_19 = arith.constant 0 : index
    %25 = vector.load %arg2[%c4_18, %c0_19] : memref<9x128xf32, #tpu.memory_space<vmem>>, vector<1x128xf32>
    %26 = vector.broadcast %25 : vector<1x128xf32> to vector<32x128xf32>
    %27 = arith.mulf %24, %26 : vector<32x128xf32>
    %28 = arith.addf %22, %27 : vector<32x128xf32>
    %c5 = arith.constant 5 : index
    %c0_20 = arith.constant 0 : index
    %c0_21 = arith.constant 0 : index
    %29 = vector.load %arg1[%c5, %c0_20, %c0_21] : memref<9x32x128xf32, #tpu.memory_space<vmem>>, vector<1x32x128xf32>
    %30 = vector.shape_cast %29 : vector<1x32x128xf32> to vector<32x128xf32>
    %c5_22 = arith.constant 5 : index
    %c0_23 = arith.constant 0 : index
    %31 = vector.load %arg2[%c5_22, %c0_23] : memref<9x128xf32, #tpu.memory_space<vmem>>, vector<1x128xf32>
    %32 = vector.broadcast %31 : vector<1x128xf32> to vector<32x128xf32>
    %33 = arith.mulf %30, %32 : vector<32x128xf32>
    %34 = arith.addf %28, %33 : vector<32x128xf32>
    %c6 = arith.constant 6 : index
    %c0_24 = arith.constant 0 : index
    %c0_25 = arith.constant 0 : index
    %35 = vector.load %arg1[%c6, %c0_24, %c0_25] : memref<9x32x128xf32, #tpu.memory_space<vmem>>, vector<1x32x128xf32>
    %36 = vector.shape_cast %35 : vector<1x32x128xf32> to vector<32x128xf32>
    %c6_26 = arith.constant 6 : index
    %c0_27 = arith.constant 0 : index
    %37 = vector.load %arg2[%c6_26, %c0_27] : memref<9x128xf32, #tpu.memory_space<vmem>>, vector<1x128xf32>
    %38 = vector.broadcast %37 : vector<1x128xf32> to vector<32x128xf32>
    %39 = arith.mulf %36, %38 : vector<32x128xf32>
    %40 = arith.addf %34, %39 : vector<32x128xf32>
    %c7 = arith.constant 7 : index
    %c0_28 = arith.constant 0 : index
    %c0_29 = arith.constant 0 : index
    %41 = vector.load %arg1[%c7, %c0_28, %c0_29] : memref<9x32x128xf32, #tpu.memory_space<vmem>>, vector<1x32x128xf32>
    %42 = vector.shape_cast %41 : vector<1x32x128xf32> to vector<32x128xf32>
    %c7_30 = arith.constant 7 : index
    %c0_31 = arith.constant 0 : index
    %43 = vector.load %arg2[%c7_30, %c0_31] : memref<9x128xf32, #tpu.memory_space<vmem>>, vector<1x128xf32>
    %44 = vector.broadcast %43 : vector<1x128xf32> to vector<32x128xf32>
    %45 = arith.mulf %42, %44 : vector<32x128xf32>
    %46 = arith.addf %40, %45 : vector<32x128xf32>
    %c8 = arith.constant 8 : index
    %c0_32 = arith.constant 0 : index
    %c0_33 = arith.constant 0 : index
    %47 = vector.load %arg1[%c8, %c0_32, %c0_33] : memref<9x32x128xf32, #tpu.memory_space<vmem>>, vector<1x32x128xf32>
    %48 = vector.shape_cast %47 : vector<1x32x128xf32> to vector<32x128xf32>
    %c8_34 = arith.constant 8 : index
    %c0_35 = arith.constant 0 : index
    %49 = vector.load %arg2[%c8_34, %c0_35] : memref<9x128xf32, #tpu.memory_space<vmem>>, vector<1x128xf32>
    %50 = vector.broadcast %49 : vector<1x128xf32> to vector<32x128xf32>
    %51 = arith.mulf %48, %50 : vector<32x128xf32>
    %52 = arith.addf %46, %51 : vector<32x128xf32>
    %c0_36 = arith.constant 0 : index
    %c0_37 = arith.constant 0 : index
    %53 = vector.load %arg3[%c0_36, %c0_37] : memref<32x128xf32, #tpu.memory_space<vmem>>, vector<32x128xf32>
    tpu.vector_store %arg3[%c0_36, %c0_37], %52 {strides = array<i32>} : memref<32x128xf32, #tpu.memory_space<vmem>>, vector<32x128xf32>,
    return
  }
  func.func @transform_0(%arg0: i32) -> (i32, i32, i32) {
    %c0_i32 = arith.constant 0 : i32
    %c0_i32_0 = arith.constant 0 : i32
    %c0_i32_1 = arith.constant 0 : i32
    return %c0_i32, %arg0, %c0_i32_0 : i32, i32, i32
  }
  func.func @transform_1(%arg0: i32) -> (i32, i32) {
    %c0_i32 = arith.constant 0 : i32
    %c0_i32_0 = arith.constant 0 : i32
    %c0_i32_1 = arith.constant 0 : i32
    return %c0_i32, %c0_i32_0 : i32, i32
  }
  func.func @transform_2(%arg0: i32) -> (i32, i32) {
    %c0_i32 = arith.constant 0 : i32
    %c0_i32_0 = arith.constant 0 : i32
    return %arg0, %c0_i32 : i32, i32
  }
}

module attributes {stable_mosaic.version = 11 : i64} {
  func.func @_matmul_stats_kernel(%arg0: i32, %arg1: i32, %arg2: i32, %arg3: memref<32x128xbf16, #tpu.memory_space<vmem>>, %arg4: memref<128x128xbf16, #tpu.memory_space<vmem>>, %arg5: memref<32x128xf32, #tpu.memory_space<vmem>>, %arg6: memref<1x128xf32, #tpu.memory_space<vmem>>, %arg7: memref<1x128xf32, #tpu.memory_space<vmem>>, %arg8: memref<32x128xf32, #tpu.memory_space<vmem>>) attributes {dimension_semantics = [#tpu.dimension_semantics<parallel>, #tpu.dimension_semantics<arbitrary>, #tpu.dimension_semantics<arbitrary>], iteration_bounds = array<i64: 1, 1, 1>, scalar_prefetch = 0 : i64, scratch_operands = 1 : i64, tpu.core_type = #tpu.core_type<tc>, window_params = [{transform_indices = @transform_0, window_bounds = array<i64: 32, 128>}, {transform_indices = @transform_1, window_bounds = array<i64: 128, 128>}, {transform_indices = @transform_2, window_bounds = array<i64: 32, 128>}, {transform_indices = @transform_3, window_bounds = array<i64: 1, 128>}, {transform_indices = @transform_4, window_bounds = array<i64: 1, 128>}]} {
    %c0_i32 = arith.constant 0 : i32
    %0 = arith.cmpi eq, %arg2, %c0_i32 : i32
    %1 = arith.extui %0 : i1 to i32
    %c0_i32_0 = arith.constant 0 : i32
    %2 = arith.cmpi ne, %1, %c0_i32_0 : i32
    scf.if %2 {
      %cst_13 = arith.constant 0.000000e+00 : f32
      %17 = vector.broadcast %cst_13 : f32 to vector<32x128xf32>
      %c0_14 = arith.constant 0 : index
      %c0_15 = arith.constant 0 : index
      %18 = vector.load %arg8[%c0_14, %c0_15] : memref<32x128xf32, #tpu.memory_space<vmem>>, vector<32x128xf32>
      tpu.vector_store %arg8[%c0_14, %c0_15], %17 {strides = array<i32>} : memref<32x128xf32, #tpu.memory_space<vmem>>, vector<32x128xf32>,
    } else {
    }
    %c0 = arith.constant 0 : index
    %c0_1 = arith.constant 0 : index
    %3 = vector.load %arg8[%c0, %c0_1] : memref<32x128xf32, #tpu.memory_space<vmem>>, vector<32x128xf32>
    %c0_2 = arith.constant 0 : index
    %c0_3 = arith.constant 0 : index
    %4 = vector.load %arg3[%c0_2, %c0_3] : memref<32x128xbf16, #tpu.memory_space<vmem>>, vector<32x128xbf16>
    %c0_4 = arith.constant 0 : index
    %c0_5 = arith.constant 0 : index
    %5 = vector.load %arg4[%c0_4, %c0_5] : memref<128x128xbf16, #tpu.memory_space<vmem>>, vector<128x128xbf16>
    %cst = arith.constant dense<0.000000e+00> : vector<32x128xf32>
    %6 = tpu.matmul %4, %5, %cst {dimension_numbers = #tpu.dot_dimension_numbers<[1], [0], [0], [1], [0, 0, 1, 1], [], []>} : vector<32x128xbf16>, vector<128x128xbf16>, vector<32x128xf32> -> vector<32x128xf32>
    %7 = arith.addf %3, %6 : vector<32x128xf32>
    %c0_6 = arith.constant 0 : index
    %c0_7 = arith.constant 0 : index
    %8 = vector.load %arg8[%c0_6, %c0_7] : memref<32x128xf32, #tpu.memory_space<vmem>>, vector<32x128xf32>
    tpu.vector_store %arg8[%c0_6, %c0_7], %7 {strides = array<i32>} : memref<32x128xf32, #tpu.memory_space<vmem>>, vector<32x128xf32>,
    %c0_i32_8 = arith.constant 0 : i32
    %9 = arith.cmpi eq, %arg2, %c0_i32_8 : i32
    %c0_i32_9 = arith.constant 0 : i32
    %10 = arith.cmpi eq, %arg1, %c0_i32_9 : i32
    %11 = arith.andi %9, %10 : i1
    %12 = arith.extui %11 : i1 to i32
    %c0_i32_10 = arith.constant 0 : i32
    %13 = arith.cmpi ne, %12, %c0_i32_10 : i32
    scf.if %13 {
      %cst_13 = arith.constant 0.000000e+00 : f32
      %17 = vector.broadcast %cst_13 : f32 to vector<1x128xf32>
      %c0_14 = arith.constant 0 : index
      %c0_15 = arith.constant 0 : index
      %18 = vector.load %arg6[%c0_14, %c0_15] : memref<1x128xf32, #tpu.memory_space<vmem>>, vector<1x128xf32>
      tpu.vector_store %arg6[%c0_14, %c0_15], %17 {strides = array<i32>} : memref<1x128xf32, #tpu.memory_space<vmem>>, vector<1x128xf32>,
      %cst_16 = arith.constant 0.000000e+00 : f32
      %19 = vector.broadcast %cst_16 : f32 to vector<1x128xf32>
      %c0_17 = arith.constant 0 : index
      %c0_18 = arith.constant 0 : index
      %20 = vector.load %arg7[%c0_17, %c0_18] : memref<1x128xf32, #tpu.memory_space<vmem>>, vector<1x128xf32>
      tpu.vector_store %arg7[%c0_17, %c0_18], %19 {strides = array<i32>} : memref<1x128xf32, #tpu.memory_space<vmem>>, vector<1x128xf32>,
    } else {
    }
    %c0_i32_11 = arith.constant 0 : i32
    %14 = arith.cmpi eq, %arg2, %c0_i32_11 : i32
    %15 = arith.extui %14 : i1 to i32
    %c0_i32_12 = arith.constant 0 : i32
    %16 = arith.cmpi ne, %15, %c0_i32_12 : i32
    scf.if %16 {
      %c0_13 = arith.constant 0 : index
      %c0_14 = arith.constant 0 : index
      %17 = vector.load %arg8[%c0_13, %c0_14] : memref<32x128xf32, #tpu.memory_space<vmem>>, vector<32x128xf32>
      %c0_15 = arith.constant 0 : index
      %c0_16 = arith.constant 0 : index
      %18 = vector.load %arg5[%c0_15, %c0_16] : memref<32x128xf32, #tpu.memory_space<vmem>>, vector<32x128xf32>
      tpu.vector_store %arg5[%c0_15, %c0_16], %17 {strides = array<i32>} : memref<32x128xf32, #tpu.memory_space<vmem>>, vector<32x128xf32>,
      %c0_17 = arith.constant 0 : index
      %c0_18 = arith.constant 0 : index
      %19 = vector.load %arg6[%c0_17, %c0_18] : memref<1x128xf32, #tpu.memory_space<vmem>>, vector<1x128xf32>
      %cst_19 = arith.constant dense<0.000000e+00> : vector<128xf32>
      %20 = vector.multi_reduction <add>, %17, %cst_19 [0] : vector<32x128xf32> to vector<128xf32>
      %21 = vector.shape_cast %20 : vector<128xf32> to vector<1x128xf32>
      %22 = arith.addf %19, %21 : vector<1x128xf32>
      %c0_20 = arith.constant 0 : index
      %c0_21 = arith.constant 0 : index
      %23 = vector.load %arg6[%c0_20, %c0_21] : memref<1x128xf32, #tpu.memory_space<vmem>>, vector<1x128xf32>
      tpu.vector_store %arg6[%c0_20, %c0_21], %22 {strides = array<i32>} : memref<1x128xf32, #tpu.memory_space<vmem>>, vector<1x128xf32>,
      %c0_22 = arith.constant 0 : index
      %c0_23 = arith.constant 0 : index
      %24 = vector.load %arg7[%c0_22, %c0_23] : memref<1x128xf32, #tpu.memory_space<vmem>>, vector<1x128xf32>
      %25 = arith.mulf %17, %17 : vector<32x128xf32>
      %cst_24 = arith.constant dense<0.000000e+00> : vector<128xf32>
      %26 = vector.multi_reduction <add>, %25, %cst_24 [0] : vector<32x128xf32> to vector<128xf32>
      %27 = vector.shape_cast %26 : vector<128xf32> to vector<1x128xf32>
      %28 = arith.addf %24, %27 : vector<1x128xf32>
      %c0_25 = arith.constant 0 : index
      %c0_26 = arith.constant 0 : index
      %29 = vector.load %arg7[%c0_25, %c0_26] : memref<1x128xf32, #tpu.memory_space<vmem>>, vector<1x128xf32>
      tpu.vector_store %arg7[%c0_25, %c0_26], %28 {strides = array<i32>} : memref<1x128xf32, #tpu.memory_space<vmem>>, vector<1x128xf32>,
    } else {
    }
    return
  }
  func.func @transform_0(%arg0: i32, %arg1: i32, %arg2: i32) -> (i32, i32) {
    %c0_i32 = arith.constant 0 : i32
    return %arg1, %arg2 : i32, i32
  }
  func.func @transform_1(%arg0: i32, %arg1: i32, %arg2: i32) -> (i32, i32) {
    %c0_i32 = arith.constant 0 : i32
    return %arg2, %arg0 : i32, i32
  }
  func.func @transform_2(%arg0: i32, %arg1: i32, %arg2: i32) -> (i32, i32) {
    %c0_i32 = arith.constant 0 : i32
    return %arg1, %arg0 : i32, i32
  }
  func.func @transform_3(%arg0: i32, %arg1: i32, %arg2: i32) -> (i32, i32) {
    %c0_i32 = arith.constant 0 : i32
    %c0_i32_0 = arith.constant 0 : i32
    return %c0_i32, %arg0 : i32, i32
  }
  func.func @transform_4(%arg0: i32, %arg1: i32, %arg2: i32) -> (i32, i32) {
    %c0_i32 = arith.constant 0 : i32
    %c0_i32_0 = arith.constant 0 : i32
    return %c0_i32, %arg0 : i32, i32
  }
}

module attributes {stable_mosaic.version = 11 : i64} {
  func.func @_tap_wsum_kernel(%arg0: i32, %arg1: memref<25x32x128xf32, #tpu.memory_space<vmem>>, %arg2: memref<25x128xf32, #tpu.memory_space<vmem>>, %arg3: memref<32x128xf32, #tpu.memory_space<vmem>>) attributes {dimension_semantics = [#tpu.dimension_semantics<parallel>], iteration_bounds = array<i64: 1>, scalar_prefetch = 0 : i64, scratch_operands = 0 : i64, tpu.core_type = #tpu.core_type<tc>, window_params = [{transform_indices = @transform_0, window_bounds = array<i64: 25, 32, 128>}, {pipeline_mode = #tpu.pipeline_mode<synchronous>, transform_indices = @transform_1, window_bounds = array<i64: 25, 128>}, {transform_indices = @transform_2, window_bounds = array<i64: 32, 128>}]} {
    %c0 = arith.constant 0 : index
    %c0_0 = arith.constant 0 : index
    %c0_1 = arith.constant 0 : index
    %0 = vector.load %arg1[%c0, %c0_0, %c0_1] : memref<25x32x128xf32, #tpu.memory_space<vmem>>, vector<1x32x128xf32>
    %1 = vector.shape_cast %0 : vector<1x32x128xf32> to vector<32x128xf32>
    %c0_2 = arith.constant 0 : index
    %c0_3 = arith.constant 0 : index
    %2 = vector.load %arg2[%c0_2, %c0_3] : memref<25x128xf32, #tpu.memory_space<vmem>>, vector<1x128xf32>
    %3 = vector.broadcast %2 : vector<1x128xf32> to vector<32x128xf32>
    %4 = arith.mulf %1, %3 : vector<32x128xf32>
    %c1 = arith.constant 1 : index
    %c0_4 = arith.constant 0 : index
    %c0_5 = arith.constant 0 : index
    %5 = vector.load %arg1[%c1, %c0_4, %c0_5] : memref<25x32x128xf32, #tpu.memory_space<vmem>>, vector<1x32x128xf32>
    %6 = vector.shape_cast %5 : vector<1x32x128xf32> to vector<32x128xf32>
    %c1_6 = arith.constant 1 : index
    %c0_7 = arith.constant 0 : index
    %7 = vector.load %arg2[%c1_6, %c0_7] : memref<25x128xf32, #tpu.memory_space<vmem>>, vector<1x128xf32>
    %8 = vector.broadcast %7 : vector<1x128xf32> to vector<32x128xf32>
    %9 = arith.mulf %6, %8 : vector<32x128xf32>
    %10 = arith.addf %4, %9 : vector<32x128xf32>
    %c2 = arith.constant 2 : index
    %c0_8 = arith.constant 0 : index
    %c0_9 = arith.constant 0 : index
    %11 = vector.load %arg1[%c2, %c0_8, %c0_9] : memref<25x32x128xf32, #tpu.memory_space<vmem>>, vector<1x32x128xf32>
    %12 = vector.shape_cast %11 : vector<1x32x128xf32> to vector<32x128xf32>
    %c2_10 = arith.constant 2 : index
    %c0_11 = arith.constant 0 : index
    %13 = vector.load %arg2[%c2_10, %c0_11] : memref<25x128xf32, #tpu.memory_space<vmem>>, vector<1x128xf32>
    %14 = vector.broadcast %13 : vector<1x128xf32> to vector<32x128xf32>
    %15 = arith.mulf %12, %14 : vector<32x128xf32>
    %16 = arith.addf %10, %15 : vector<32x128xf32>
    %c3 = arith.constant 3 : index
    %c0_12 = arith.constant 0 : index
    %c0_13 = arith.constant 0 : index
    %17 = vector.load %arg1[%c3, %c0_12, %c0_13] : memref<25x32x128xf32, #tpu.memory_space<vmem>>, vector<1x32x128xf32>
    %18 = vector.shape_cast %17 : vector<1x32x128xf32> to vector<32x128xf32>
    %c3_14 = arith.constant 3 : index
    %c0_15 = arith.constant 0 : index
    %19 = vector.load %arg2[%c3_14, %c0_15] : memref<25x128xf32, #tpu.memory_space<vmem>>, vector<1x128xf32>
    %20 = vector.broadcast %19 : vector<1x128xf32> to vector<32x128xf32>
    %21 = arith.mulf %18, %20 : vector<32x128xf32>
    %22 = arith.addf %16, %21 : vector<32x128xf32>
    %c4 = arith.constant 4 : index
    %c0_16 = arith.constant 0 : index
    %c0_17 = arith.constant 0 : index
    %23 = vector.load %arg1[%c4, %c0_16, %c0_17] : memref<25x32x128xf32, #tpu.memory_space<vmem>>, vector<1x32x128xf32>
    %24 = vector.shape_cast %23 : vector<1x32x128xf32> to vector<32x128xf32>
    %c4_18 = arith.constant 4 : index
    %c0_19 = arith.constant 0 : index
    %25 = vector.load %arg2[%c4_18, %c0_19] : memref<25x128xf32, #tpu.memory_space<vmem>>, vector<1x128xf32>
    %26 = vector.broadcast %25 : vector<1x128xf32> to vector<32x128xf32>
    %27 = arith.mulf %24, %26 : vector<32x128xf32>
    %28 = arith.addf %22, %27 : vector<32x128xf32>
    %c5 = arith.constant 5 : index
    %c0_20 = arith.constant 0 : index
    %c0_21 = arith.constant 0 : index
    %29 = vector.load %arg1[%c5, %c0_20, %c0_21] : memref<25x32x128xf32, #tpu.memory_space<vmem>>, vector<1x32x128xf32>
    %30 = vector.shape_cast %29 : vector<1x32x128xf32> to vector<32x128xf32>
    %c5_22 = arith.constant 5 : index
    %c0_23 = arith.constant 0 : index
    %31 = vector.load %arg2[%c5_22, %c0_23] : memref<25x128xf32, #tpu.memory_space<vmem>>, vector<1x128xf32>
    %32 = vector.broadcast %31 : vector<1x128xf32> to vector<32x128xf32>
    %33 = arith.mulf %30, %32 : vector<32x128xf32>
    %34 = arith.addf %28, %33 : vector<32x128xf32>
    %c6 = arith.constant 6 : index
    %c0_24 = arith.constant 0 : index
    %c0_25 = arith.constant 0 : index
    %35 = vector.load %arg1[%c6, %c0_24, %c0_25] : memref<25x32x128xf32, #tpu.memory_space<vmem>>, vector<1x32x128xf32>
    %36 = vector.shape_cast %35 : vector<1x32x128xf32> to vector<32x128xf32>
    %c6_26 = arith.constant 6 : index
    %c0_27 = arith.constant 0 : index
    %37 = vector.load %arg2[%c6_26, %c0_27] : memref<25x128xf32, #tpu.memory_space<vmem>>, vector<1x128xf32>
    %38 = vector.broadcast %37 : vector<1x128xf32> to vector<32x128xf32>
    %39 = arith.mulf %36, %38 : vector<32x128xf32>
    %40 = arith.addf %34, %39 : vector<32x128xf32>
    %c7 = arith.constant 7 : index
    %c0_28 = arith.constant 0 : index
    %c0_29 = arith.constant 0 : index
    %41 = vector.load %arg1[%c7, %c0_28, %c0_29] : memref<25x32x128xf32, #tpu.memory_space<vmem>>, vector<1x32x128xf32>
    %42 = vector.shape_cast %41 : vector<1x32x128xf32> to vector<32x128xf32>
    %c7_30 = arith.constant 7 : index
    %c0_31 = arith.constant 0 : index
    %43 = vector.load %arg2[%c7_30, %c0_31] : memref<25x128xf32, #tpu.memory_space<vmem>>, vector<1x128xf32>
    %44 = vector.broadcast %43 : vector<1x128xf32> to vector<32x128xf32>
    %45 = arith.mulf %42, %44 : vector<32x128xf32>
    %46 = arith.addf %40, %45 : vector<32x128xf32>
    %c8 = arith.constant 8 : index
    %c0_32 = arith.constant 0 : index
    %c0_33 = arith.constant 0 : index
    %47 = vector.load %arg1[%c8, %c0_32, %c0_33] : memref<25x32x128xf32, #tpu.memory_space<vmem>>, vector<1x32x128xf32>
    %48 = vector.shape_cast %47 : vector<1x32x128xf32> to vector<32x128xf32>
    %c8_34 = arith.constant 8 : index
    %c0_35 = arith.constant 0 : index
    %49 = vector.load %arg2[%c8_34, %c0_35] : memref<25x128xf32, #tpu.memory_space<vmem>>, vector<1x128xf32>
    %50 = vector.broadcast %49 : vector<1x128xf32> to vector<32x128xf32>
    %51 = arith.mulf %48, %50 : vector<32x128xf32>
    %52 = arith.addf %46, %51 : vector<32x128xf32>
    %c9 = arith.constant 9 : index
    %c0_36 = arith.constant 0 : index
    %c0_37 = arith.constant 0 : index
    %53 = vector.load %arg1[%c9, %c0_36, %c0_37] : memref<25x32x128xf32, #tpu.memory_space<vmem>>, vector<1x32x128xf32>
    %54 = vector.shape_cast %53 : vector<1x32x128xf32> to vector<32x128xf32>
    %c9_38 = arith.constant 9 : index
    %c0_39 = arith.constant 0 : index
    %55 = vector.load %arg2[%c9_38, %c0_39] : memref<25x128xf32, #tpu.memory_space<vmem>>, vector<1x128xf32>
    %56 = vector.broadcast %55 : vector<1x128xf32> to vector<32x128xf32>
    %57 = arith.mulf %54, %56 : vector<32x128xf32>
    %58 = arith.addf %52, %57 : vector<32x128xf32>
    %c10 = arith.constant 10 : index
    %c0_40 = arith.constant 0 : index
    %c0_41 = arith.constant 0 : index
    %59 = vector.load %arg1[%c10, %c0_40, %c0_41] : memref<25x32x128xf32, #tpu.memory_space<vmem>>, vector<1x32x128xf32>
    %60 = vector.shape_cast %59 : vector<1x32x128xf32> to vector<32x128xf32>
    %c10_42 = arith.constant 10 : index
    %c0_43 = arith.constant 0 : index
    %61 = vector.load %arg2[%c10_42, %c0_43] : memref<25x128xf32, #tpu.memory_space<vmem>>, vector<1x128xf32>
    %62 = vector.broadcast %61 : vector<1x128xf32> to vector<32x128xf32>
    %63 = arith.mulf %60, %62 : vector<32x128xf32>
    %64 = arith.addf %58, %63 : vector<32x128xf32>
    %c11 = arith.constant 11 : index
    %c0_44 = arith.constant 0 : index
    %c0_45 = arith.constant 0 : index
    %65 = vector.load %arg1[%c11, %c0_44, %c0_45] : memref<25x32x128xf32, #tpu.memory_space<vmem>>, vector<1x32x128xf32>
    %66 = vector.shape_cast %65 : vector<1x32x128xf32> to vector<32x128xf32>
    %c11_46 = arith.constant 11 : index
    %c0_47 = arith.constant 0 : index
    %67 = vector.load %arg2[%c11_46, %c0_47] : memref<25x128xf32, #tpu.memory_space<vmem>>, vector<1x128xf32>
    %68 = vector.broadcast %67 : vector<1x128xf32> to vector<32x128xf32>
    %69 = arith.mulf %66, %68 : vector<32x128xf32>
    %70 = arith.addf %64, %69 : vector<32x128xf32>
    %c12 = arith.constant 12 : index
    %c0_48 = arith.constant 0 : index
    %c0_49 = arith.constant 0 : index
    %71 = vector.load %arg1[%c12, %c0_48, %c0_49] : memref<25x32x128xf32, #tpu.memory_space<vmem>>, vector<1x32x128xf32>
    %72 = vector.shape_cast %71 : vector<1x32x128xf32> to vector<32x128xf32>
    %c12_50 = arith.constant 12 : index
    %c0_51 = arith.constant 0 : index
    %73 = vector.load %arg2[%c12_50, %c0_51] : memref<25x128xf32, #tpu.memory_space<vmem>>, vector<1x128xf32>
    %74 = vector.broadcast %73 : vector<1x128xf32> to vector<32x128xf32>
    %75 = arith.mulf %72, %74 : vector<32x128xf32>
    %76 = arith.addf %70, %75 : vector<32x128xf32>
    %c13 = arith.constant 13 : index
    %c0_52 = arith.constant 0 : index
    %c0_53 = arith.constant 0 : index
    %77 = vector.load %arg1[%c13, %c0_52, %c0_53] : memref<25x32x128xf32, #tpu.memory_space<vmem>>, vector<1x32x128xf32>
    %78 = vector.shape_cast %77 : vector<1x32x128xf32> to vector<32x128xf32>
    %c13_54 = arith.constant 13 : index
    %c0_55 = arith.constant 0 : index
    %79 = vector.load %arg2[%c13_54, %c0_55] : memref<25x128xf32, #tpu.memory_space<vmem>>, vector<1x128xf32>
    %80 = vector.broadcast %79 : vector<1x128xf32> to vector<32x128xf32>
    %81 = arith.mulf %78, %80 : vector<32x128xf32>
    %82 = arith.addf %76, %81 : vector<32x128xf32>
    %c14 = arith.constant 14 : index
    %c0_56 = arith.constant 0 : index
    %c0_57 = arith.constant 0 : index
    %83 = vector.load %arg1[%c14, %c0_56, %c0_57] : memref<25x32x128xf32, #tpu.memory_space<vmem>>, vector<1x32x128xf32>
    %84 = vector.shape_cast %83 : vector<1x32x128xf32> to vector<32x128xf32>
    %c14_58 = arith.constant 14 : index
    %c0_59 = arith.constant 0 : index
    %85 = vector.load %arg2[%c14_58, %c0_59] : memref<25x128xf32, #tpu.memory_space<vmem>>, vector<1x128xf32>
    %86 = vector.broadcast %85 : vector<1x128xf32> to vector<32x128xf32>
    %87 = arith.mulf %84, %86 : vector<32x128xf32>
    %88 = arith.addf %82, %87 : vector<32x128xf32>
    %c15 = arith.constant 15 : index
    %c0_60 = arith.constant 0 : index
    %c0_61 = arith.constant 0 : index
    %89 = vector.load %arg1[%c15, %c0_60, %c0_61] : memref<25x32x128xf32, #tpu.memory_space<vmem>>, vector<1x32x128xf32>
    %90 = vector.shape_cast %89 : vector<1x32x128xf32> to vector<32x128xf32>
    %c15_62 = arith.constant 15 : index
    %c0_63 = arith.constant 0 : index
    %91 = vector.load %arg2[%c15_62, %c0_63] : memref<25x128xf32, #tpu.memory_space<vmem>>, vector<1x128xf32>
    %92 = vector.broadcast %91 : vector<1x128xf32> to vector<32x128xf32>
    %93 = arith.mulf %90, %92 : vector<32x128xf32>
    %94 = arith.addf %88, %93 : vector<32x128xf32>
    %c16 = arith.constant 16 : index
    %c0_64 = arith.constant 0 : index
    %c0_65 = arith.constant 0 : index
    %95 = vector.load %arg1[%c16, %c0_64, %c0_65] : memref<25x32x128xf32, #tpu.memory_space<vmem>>, vector<1x32x128xf32>
    %96 = vector.shape_cast %95 : vector<1x32x128xf32> to vector<32x128xf32>
    %c16_66 = arith.constant 16 : index
    %c0_67 = arith.constant 0 : index
    %97 = vector.load %arg2[%c16_66, %c0_67] : memref<25x128xf32, #tpu.memory_space<vmem>>, vector<1x128xf32>
    %98 = vector.broadcast %97 : vector<1x128xf32> to vector<32x128xf32>
    %99 = arith.mulf %96, %98 : vector<32x128xf32>
    %100 = arith.addf %94, %99 : vector<32x128xf32>
    %c17 = arith.constant 17 : index
    %c0_68 = arith.constant 0 : index
    %c0_69 = arith.constant 0 : index
    %101 = vector.load %arg1[%c17, %c0_68, %c0_69] : memref<25x32x128xf32, #tpu.memory_space<vmem>>, vector<1x32x128xf32>
    %102 = vector.shape_cast %101 : vector<1x32x128xf32> to vector<32x128xf32>
    %c17_70 = arith.constant 17 : index
    %c0_71 = arith.constant 0 : index
    %103 = vector.load %arg2[%c17_70, %c0_71] : memref<25x128xf32, #tpu.memory_space<vmem>>, vector<1x128xf32>
    %104 = vector.broadcast %103 : vector<1x128xf32> to vector<32x128xf32>
    %105 = arith.mulf %102, %104 : vector<32x128xf32>
    %106 = arith.addf %100, %105 : vector<32x128xf32>
    %c18 = arith.constant 18 : index
    %c0_72 = arith.constant 0 : index
    %c0_73 = arith.constant 0 : index
    %107 = vector.load %arg1[%c18, %c0_72, %c0_73] : memref<25x32x128xf32, #tpu.memory_space<vmem>>, vector<1x32x128xf32>
    %108 = vector.shape_cast %107 : vector<1x32x128xf32> to vector<32x128xf32>
    %c18_74 = arith.constant 18 : index
    %c0_75 = arith.constant 0 : index
    %109 = vector.load %arg2[%c18_74, %c0_75] : memref<25x128xf32, #tpu.memory_space<vmem>>, vector<1x128xf32>
    %110 = vector.broadcast %109 : vector<1x128xf32> to vector<32x128xf32>
    %111 = arith.mulf %108, %110 : vector<32x128xf32>
    %112 = arith.addf %106, %111 : vector<32x128xf32>
    %c19 = arith.constant 19 : index
    %c0_76 = arith.constant 0 : index
    %c0_77 = arith.constant 0 : index
    %113 = vector.load %arg1[%c19, %c0_76, %c0_77] : memref<25x32x128xf32, #tpu.memory_space<vmem>>, vector<1x32x128xf32>
    %114 = vector.shape_cast %113 : vector<1x32x128xf32> to vector<32x128xf32>
    %c19_78 = arith.constant 19 : index
    %c0_79 = arith.constant 0 : index
    %115 = vector.load %arg2[%c19_78, %c0_79] : memref<25x128xf32, #tpu.memory_space<vmem>>, vector<1x128xf32>
    %116 = vector.broadcast %115 : vector<1x128xf32> to vector<32x128xf32>
    %117 = arith.mulf %114, %116 : vector<32x128xf32>
    %118 = arith.addf %112, %117 : vector<32x128xf32>
    %c20 = arith.constant 20 : index
    %c0_80 = arith.constant 0 : index
    %c0_81 = arith.constant 0 : index
    %119 = vector.load %arg1[%c20, %c0_80, %c0_81] : memref<25x32x128xf32, #tpu.memory_space<vmem>>, vector<1x32x128xf32>
    %120 = vector.shape_cast %119 : vector<1x32x128xf32> to vector<32x128xf32>
    %c20_82 = arith.constant 20 : index
    %c0_83 = arith.constant 0 : index
    %121 = vector.load %arg2[%c20_82, %c0_83] : memref<25x128xf32, #tpu.memory_space<vmem>>, vector<1x128xf32>
    %122 = vector.broadcast %121 : vector<1x128xf32> to vector<32x128xf32>
    %123 = arith.mulf %120, %122 : vector<32x128xf32>
    %124 = arith.addf %118, %123 : vector<32x128xf32>
    %c21 = arith.constant 21 : index
    %c0_84 = arith.constant 0 : index
    %c0_85 = arith.constant 0 : index
    %125 = vector.load %arg1[%c21, %c0_84, %c0_85] : memref<25x32x128xf32, #tpu.memory_space<vmem>>, vector<1x32x128xf32>
    %126 = vector.shape_cast %125 : vector<1x32x128xf32> to vector<32x128xf32>
    %c21_86 = arith.constant 21 : index
    %c0_87 = arith.constant 0 : index
    %127 = vector.load %arg2[%c21_86, %c0_87] : memref<25x128xf32, #tpu.memory_space<vmem>>, vector<1x128xf32>
    %128 = vector.broadcast %127 : vector<1x128xf32> to vector<32x128xf32>
    %129 = arith.mulf %126, %128 : vector<32x128xf32>
    %130 = arith.addf %124, %129 : vector<32x128xf32>
    %c22 = arith.constant 22 : index
    %c0_88 = arith.constant 0 : index
    %c0_89 = arith.constant 0 : index
    %131 = vector.load %arg1[%c22, %c0_88, %c0_89] : memref<25x32x128xf32, #tpu.memory_space<vmem>>, vector<1x32x128xf32>
    %132 = vector.shape_cast %131 : vector<1x32x128xf32> to vector<32x128xf32>
    %c22_90 = arith.constant 22 : index
    %c0_91 = arith.constant 0 : index
    %133 = vector.load %arg2[%c22_90, %c0_91] : memref<25x128xf32, #tpu.memory_space<vmem>>, vector<1x128xf32>
    %134 = vector.broadcast %133 : vector<1x128xf32> to vector<32x128xf32>
    %135 = arith.mulf %132, %134 : vector<32x128xf32>
    %136 = arith.addf %130, %135 : vector<32x128xf32>
    %c23 = arith.constant 23 : index
    %c0_92 = arith.constant 0 : index
    %c0_93 = arith.constant 0 : index
    %137 = vector.load %arg1[%c23, %c0_92, %c0_93] : memref<25x32x128xf32, #tpu.memory_space<vmem>>, vector<1x32x128xf32>
    %138 = vector.shape_cast %137 : vector<1x32x128xf32> to vector<32x128xf32>
    %c23_94 = arith.constant 23 : index
    %c0_95 = arith.constant 0 : index
    %139 = vector.load %arg2[%c23_94, %c0_95] : memref<25x128xf32, #tpu.memory_space<vmem>>, vector<1x128xf32>
    %140 = vector.broadcast %139 : vector<1x128xf32> to vector<32x128xf32>
    %141 = arith.mulf %138, %140 : vector<32x128xf32>
    %142 = arith.addf %136, %141 : vector<32x128xf32>
    %c24 = arith.constant 24 : index
    %c0_96 = arith.constant 0 : index
    %c0_97 = arith.constant 0 : index
    %143 = vector.load %arg1[%c24, %c0_96, %c0_97] : memref<25x32x128xf32, #tpu.memory_space<vmem>>, vector<1x32x128xf32>
    %144 = vector.shape_cast %143 : vector<1x32x128xf32> to vector<32x128xf32>
    %c24_98 = arith.constant 24 : index
    %c0_99 = arith.constant 0 : index
    %145 = vector.load %arg2[%c24_98, %c0_99] : memref<25x128xf32, #tpu.memory_space<vmem>>, vector<1x128xf32>
    %146 = vector.broadcast %145 : vector<1x128xf32> to vector<32x128xf32>
    %147 = arith.mulf %144, %146 : vector<32x128xf32>
    %148 = arith.addf %142, %147 : vector<32x128xf32>
    %c0_100 = arith.constant 0 : index
    %c0_101 = arith.constant 0 : index
    %149 = vector.load %arg3[%c0_100, %c0_101] : memref<32x128xf32, #tpu.memory_space<vmem>>, vector<32x128xf32>
    tpu.vector_store %arg3[%c0_100, %c0_101], %148 {strides = array<i32>} : memref<32x128xf32, #tpu.memory_space<vmem>>, vector<32x128xf32>,
    return
  }
  func.func @transform_0(%arg0: i32) -> (i32, i32, i32) {
    %c0_i32 = arith.constant 0 : i32
    %c0_i32_0 = arith.constant 0 : i32
    %c0_i32_1 = arith.constant 0 : i32
    return %c0_i32, %arg0, %c0_i32_0 : i32, i32, i32
  }
  func.func @transform_1(%arg0: i32) -> (i32, i32) {
    %c0_i32 = arith.constant 0 : i32
    %c0_i32_0 = arith.constant 0 : i32
    %c0_i32_1 = arith.constant 0 : i32
    return %c0_i32, %c0_i32_0 : i32, i32
  }
  func.func @transform_2(%arg0: i32) -> (i32, i32) {
    %c0_i32 = arith.constant 0 : i32
    %c0_i32_0 = arith.constant 0 : i32
    return %arg0, %c0_i32 : i32, i32
  }
}

module attributes {stable_mosaic.version = 11 : i64} {
  func.func @_scale_shift_kernel(%arg0: i32, %arg1: memref<32x128xf32, #tpu.memory_space<vmem>>, %arg2: memref<1x128xf32, #tpu.memory_space<vmem>>, %arg3: memref<1x128xf32, #tpu.memory_space<vmem>>, %arg4: memref<32x128xf32, #tpu.memory_space<vmem>>) attributes {dimension_semantics = [#tpu.dimension_semantics<parallel>], iteration_bounds = array<i64: 1>, scalar_prefetch = 0 : i64, scratch_operands = 0 : i64, tpu.core_type = #tpu.core_type<tc>, window_params = [{transform_indices = @transform_0, window_bounds = array<i64: 32, 128>}, {pipeline_mode = #tpu.pipeline_mode<synchronous>, transform_indices = @transform_1, window_bounds = array<i64: 1, 128>}, {pipeline_mode = #tpu.pipeline_mode<synchronous>, transform_indices = @transform_2, window_bounds = array<i64: 1, 128>}, {transform_indices = @transform_3, window_bounds = array<i64: 32, 128>}]} {
    %c0 = arith.constant 0 : index
    %c0_0 = arith.constant 0 : index
    %0 = vector.load %arg1[%c0, %c0_0] : memref<32x128xf32, #tpu.memory_space<vmem>>, vector<32x128xf32>
    %c0_1 = arith.constant 0 : index
    %c0_2 = arith.constant 0 : index
    %1 = vector.load %arg2[%c0_1, %c0_2] : memref<1x128xf32, #tpu.memory_space<vmem>>, vector<1x128xf32>
    %2 = vector.broadcast %1 : vector<1x128xf32> to vector<32x128xf32>
    %3 = arith.mulf %0, %2 : vector<32x128xf32>
    %c0_3 = arith.constant 0 : index
    %c0_4 = arith.constant 0 : index
    %4 = vector.load %arg3[%c0_3, %c0_4] : memref<1x128xf32, #tpu.memory_space<vmem>>, vector<1x128xf32>
    %5 = vector.broadcast %4 : vector<1x128xf32> to vector<32x128xf32>
    %6 = arith.addf %3, %5 : vector<32x128xf32>
    %cst = arith.constant 0.000000e+00 : f32
    %7 = vector.broadcast %cst : f32 to vector<32x128xf32>
    %8 = arith.maximumf %6, %7 : vector<32x128xf32>
    %c0_5 = arith.constant 0 : index
    %c0_6 = arith.constant 0 : index
    %9 = vector.load %arg4[%c0_5, %c0_6] : memref<32x128xf32, #tpu.memory_space<vmem>>, vector<32x128xf32>
    tpu.vector_store %arg4[%c0_5, %c0_6], %8 {strides = array<i32>} : memref<32x128xf32, #tpu.memory_space<vmem>>, vector<32x128xf32>,
    return
  }
  func.func @transform_0(%arg0: i32) -> (i32, i32) {
    %c0_i32 = arith.constant 0 : i32
    %c0_i32_0 = arith.constant 0 : i32
    return %arg0, %c0_i32 : i32, i32
  }
  func.func @transform_1(%arg0: i32) -> (i32, i32) {
    %c0_i32 = arith.constant 0 : i32
    %c0_i32_0 = arith.constant 0 : i32
    %c0_i32_1 = arith.constant 0 : i32
    return %c0_i32, %c0_i32_0 : i32, i32
  }
  func.func @transform_2(%arg0: i32) -> (i32, i32) {
    %c0_i32 = arith.constant 0 : i32
    %c0_i32_0 = arith.constant 0 : i32
    %c0_i32_1 = arith.constant 0 : i32
    return %c0_i32, %c0_i32_0 : i32, i32
  }
  func.func @transform_3(%arg0: i32) -> (i32, i32) {
    %c0_i32 = arith.constant 0 : i32
    %c0_i32_0 = arith.constant 0 : i32
    return %arg0, %c0_i32 : i32, i32
  }
}

module attributes {stable_mosaic.version = 11 : i64} {
  func.func @_tap_max_kernel(%arg0: i32, %arg1: memref<9x32x128xf32, #tpu.memory_space<vmem>>, %arg2: memref<32x128xf32, #tpu.memory_space<vmem>>) attributes {dimension_semantics = [#tpu.dimension_semantics<parallel>], iteration_bounds = array<i64: 1>, scalar_prefetch = 0 : i64, scratch_operands = 0 : i64, tpu.core_type = #tpu.core_type<tc>, window_params = [{transform_indices = @transform_0, window_bounds = array<i64: 9, 32, 128>}, {transform_indices = @transform_1, window_bounds = array<i64: 32, 128>}]} {
    %c0 = arith.constant 0 : index
    %c0_0 = arith.constant 0 : index
    %c0_1 = arith.constant 0 : index
    %0 = vector.load %arg1[%c0, %c0_0, %c0_1] : memref<9x32x128xf32, #tpu.memory_space<vmem>>, vector<1x32x128xf32>
    %1 = vector.shape_cast %0 : vector<1x32x128xf32> to vector<32x128xf32>
    %c1 = arith.constant 1 : index
    %c0_2 = arith.constant 0 : index
    %c0_3 = arith.constant 0 : index
    %2 = vector.load %arg1[%c1, %c0_2, %c0_3] : memref<9x32x128xf32, #tpu.memory_space<vmem>>, vector<1x32x128xf32>
    %3 = vector.shape_cast %2 : vector<1x32x128xf32> to vector<32x128xf32>
    %4 = arith.maximumf %1, %3 : vector<32x128xf32>
    %c2 = arith.constant 2 : index
    %c0_4 = arith.constant 0 : index
    %c0_5 = arith.constant 0 : index
    %5 = vector.load %arg1[%c2, %c0_4, %c0_5] : memref<9x32x128xf32, #tpu.memory_space<vmem>>, vector<1x32x128xf32>
    %6 = vector.shape_cast %5 : vector<1x32x128xf32> to vector<32x128xf32>
    %7 = arith.maximumf %4, %6 : vector<32x128xf32>
    %c3 = arith.constant 3 : index
    %c0_6 = arith.constant 0 : index
    %c0_7 = arith.constant 0 : index
    %8 = vector.load %arg1[%c3, %c0_6, %c0_7] : memref<9x32x128xf32, #tpu.memory_space<vmem>>, vector<1x32x128xf32>
    %9 = vector.shape_cast %8 : vector<1x32x128xf32> to vector<32x128xf32>
    %10 = arith.maximumf %7, %9 : vector<32x128xf32>
    %c4 = arith.constant 4 : index
    %c0_8 = arith.constant 0 : index
    %c0_9 = arith.constant 0 : index
    %11 = vector.load %arg1[%c4, %c0_8, %c0_9] : memref<9x32x128xf32, #tpu.memory_space<vmem>>, vector<1x32x128xf32>
    %12 = vector.shape_cast %11 : vector<1x32x128xf32> to vector<32x128xf32>
    %13 = arith.maximumf %10, %12 : vector<32x128xf32>
    %c5 = arith.constant 5 : index
    %c0_10 = arith.constant 0 : index
    %c0_11 = arith.constant 0 : index
    %14 = vector.load %arg1[%c5, %c0_10, %c0_11] : memref<9x32x128xf32, #tpu.memory_space<vmem>>, vector<1x32x128xf32>
    %15 = vector.shape_cast %14 : vector<1x32x128xf32> to vector<32x128xf32>
    %16 = arith.maximumf %13, %15 : vector<32x128xf32>
    %c6 = arith.constant 6 : index
    %c0_12 = arith.constant 0 : index
    %c0_13 = arith.constant 0 : index
    %17 = vector.load %arg1[%c6, %c0_12, %c0_13] : memref<9x32x128xf32, #tpu.memory_space<vmem>>, vector<1x32x128xf32>
    %18 = vector.shape_cast %17 : vector<1x32x128xf32> to vector<32x128xf32>
    %19 = arith.maximumf %16, %18 : vector<32x128xf32>
    %c7 = arith.constant 7 : index
    %c0_14 = arith.constant 0 : index
    %c0_15 = arith.constant 0 : index
    %20 = vector.load %arg1[%c7, %c0_14, %c0_15] : memref<9x32x128xf32, #tpu.memory_space<vmem>>, vector<1x32x128xf32>
    %21 = vector.shape_cast %20 : vector<1x32x128xf32> to vector<32x128xf32>
    %22 = arith.maximumf %19, %21 : vector<32x128xf32>
    %c8 = arith.constant 8 : index
    %c0_16 = arith.constant 0 : index
    %c0_17 = arith.constant 0 : index
    %23 = vector.load %arg1[%c8, %c0_16, %c0_17] : memref<9x32x128xf32, #tpu.memory_space<vmem>>, vector<1x32x128xf32>
    %24 = vector.shape_cast %23 : vector<1x32x128xf32> to vector<32x128xf32>
    %25 = arith.maximumf %22, %24 : vector<32x128xf32>
    %c0_18 = arith.constant 0 : index
    %c0_19 = arith.constant 0 : index
    %26 = vector.load %arg2[%c0_18, %c0_19] : memref<32x128xf32, #tpu.memory_space<vmem>>, vector<32x128xf32>
    tpu.vector_store %arg2[%c0_18, %c0_19], %25 {strides = array<i32>} : memref<32x128xf32, #tpu.memory_space<vmem>>, vector<32x128xf32>,
    return
  }
  func.func @transform_0(%arg0: i32) -> (i32, i32, i32) {
    %c0_i32 = arith.constant 0 : i32
    %c0_i32_0 = arith.constant 0 : i32
    %c0_i32_1 = arith.constant 0 : i32
    return %c0_i32, %arg0, %c0_i32_0 : i32, i32, i32
  }
  func.func @transform_1(%arg0: i32) -> (i32, i32) {
    %c0_i32 = arith.constant 0 : i32
    %c0_i32_0 = arith.constant 0 : i32
    return %arg0, %c0_i32 : i32, i32
  }
}

module attributes {stable_mosaic.version = 11 : i64} {
  func.func @_scale_shift_kernel(%arg0: i32, %arg1: memref<32x128xf32, #tpu.memory_space<vmem>>, %arg2: memref<1x128xf32, #tpu.memory_space<vmem>>, %arg3: memref<1x128xf32, #tpu.memory_space<vmem>>, %arg4: memref<32x128xf32, #tpu.memory_space<vmem>>) attributes {dimension_semantics = [#tpu.dimension_semantics<parallel>], iteration_bounds = array<i64: 1>, scalar_prefetch = 0 : i64, scratch_operands = 0 : i64, tpu.core_type = #tpu.core_type<tc>, window_params = [{transform_indices = @transform_0, window_bounds = array<i64: 32, 128>}, {pipeline_mode = #tpu.pipeline_mode<synchronous>, transform_indices = @transform_1, window_bounds = array<i64: 1, 128>}, {pipeline_mode = #tpu.pipeline_mode<synchronous>, transform_indices = @transform_2, window_bounds = array<i64: 1, 128>}, {transform_indices = @transform_3, window_bounds = array<i64: 32, 128>}]} {
    %c0 = arith.constant 0 : index
    %c0_0 = arith.constant 0 : index
    %0 = vector.load %arg1[%c0, %c0_0] : memref<32x128xf32, #tpu.memory_space<vmem>>, vector<32x128xf32>
    %c0_1 = arith.constant 0 : index
    %c0_2 = arith.constant 0 : index
    %1 = vector.load %arg2[%c0_1, %c0_2] : memref<1x128xf32, #tpu.memory_space<vmem>>, vector<1x128xf32>
    %2 = vector.broadcast %1 : vector<1x128xf32> to vector<32x128xf32>
    %3 = arith.mulf %0, %2 : vector<32x128xf32>
    %c0_3 = arith.constant 0 : index
    %c0_4 = arith.constant 0 : index
    %4 = vector.load %arg3[%c0_3, %c0_4] : memref<1x128xf32, #tpu.memory_space<vmem>>, vector<1x128xf32>
    %5 = vector.broadcast %4 : vector<1x128xf32> to vector<32x128xf32>
    %6 = arith.addf %3, %5 : vector<32x128xf32>
    %c0_5 = arith.constant 0 : index
    %c0_6 = arith.constant 0 : index
    %7 = vector.load %arg4[%c0_5, %c0_6] : memref<32x128xf32, #tpu.memory_space<vmem>>, vector<32x128xf32>
    tpu.vector_store %arg4[%c0_5, %c0_6], %6 {strides = array<i32>} : memref<32x128xf32, #tpu.memory_space<vmem>>, vector<32x128xf32>,
    return
  }
  func.func @transform_0(%arg0: i32) -> (i32, i32) {
    %c0_i32 = arith.constant 0 : i32
    %c0_i32_0 = arith.constant 0 : i32
    return %arg0, %c0_i32 : i32, i32
  }
  func.func @transform_1(%arg0: i32) -> (i32, i32) {
    %c0_i32 = arith.constant 0 : i32
    %c0_i32_0 = arith.constant 0 : i32
    %c0_i32_1 = arith.constant 0 : i32
    return %c0_i32, %c0_i32_0 : i32, i32
  }
  func.func @transform_2(%arg0: i32) -> (i32, i32) {
    %c0_i32 = arith.constant 0 : i32
    %c0_i32_0 = arith.constant 0 : i32
    %c0_i32_1 = arith.constant 0 : i32
    return %c0_i32, %c0_i32_0 : i32, i32
  }
  func.func @transform_3(%arg0: i32) -> (i32, i32) {
    %c0_i32 = arith.constant 0 : i32
    %c0_i32_0 = arith.constant 0 : i32
    return %arg0, %c0_i32 : i32, i32
  }
}

module attributes {stable_mosaic.version = 11 : i64} {
  func.func @_waccum_kernel(%arg0: i32, %arg1: memref<7x128xf32, #tpu.memory_space<vmem>>, %arg2: memref<32x128xf32, #tpu.memory_space<vmem>>, %arg3: memref<32x128xf32, #tpu.memory_space<vmem>>, %arg4: memref<32x128xf32, #tpu.memory_space<vmem>>, %arg5: memref<32x128xf32, #tpu.memory_space<vmem>>, %arg6: memref<32x128xf32, #tpu.memory_space<vmem>>, %arg7: memref<32x128xf32, #tpu.memory_space<vmem>>, %arg8: memref<32x128xf32, #tpu.memory_space<vmem>>, %arg9: memref<32x128xf32, #tpu.memory_space<vmem>>) attributes {dimension_semantics = [#tpu.dimension_semantics<parallel>], iteration_bounds = array<i64: 1>, scalar_prefetch = 0 : i64, scratch_operands = 0 : i64, tpu.core_type = #tpu.core_type<tc>, window_params = [{pipeline_mode = #tpu.pipeline_mode<synchronous>, transform_indices = @transform_0, window_bounds = array<i64: 7, 128>}, {transform_indices = @transform_1, window_bounds = array<i64: 32, 128>}, {transform_indices = @transform_2, window_bounds = array<i64: 32, 128>}, {transform_indices = @transform_3, window_bounds = array<i64: 32, 128>}, {transform_indices = @transform_4, window_bounds = array<i64: 32, 128>}, {transform_indices = @transform_5, window_bounds = array<i64: 32, 128>}, {transform_indices = @transform_6, window_bounds = array<i64: 32, 128>}, {transform_indices = @transform_7, window_bounds = array<i64: 32, 128>}, {transform_indices = @transform_8, window_bounds = array<i64: 32, 128>}]} {
    %c0 = arith.constant 0 : index
    %c0_0 = arith.constant 0 : index
    %0 = vector.load %arg2[%c0, %c0_0] : memref<32x128xf32, #tpu.memory_space<vmem>>, vector<32x128xf32>
    %c0_1 = arith.constant 0 : index
    %c0_2 = arith.constant 0 : index
    %1 = vector.load %arg1[%c0_1, %c0_2] : memref<7x128xf32, #tpu.memory_space<vmem>>, vector<1x128xf32>
    %2 = vector.broadcast %1 : vector<1x128xf32> to vector<32x128xf32>
    %3 = arith.mulf %0, %2 : vector<32x128xf32>
    %c0_3 = arith.constant 0 : index
    %c0_4 = arith.constant 0 : index
    %4 = vector.load %arg3[%c0_3, %c0_4] : memref<32x128xf32, #tpu.memory_space<vmem>>, vector<32x128xf32>
    %c1 = arith.constant 1 : index
    %c0_5 = arith.constant 0 : index
    %5 = vector.load %arg1[%c1, %c0_5] : memref<7x128xf32, #tpu.memory_space<vmem>>, vector<1x128xf32>
    %6 = vector.broadcast %5 : vector<1x128xf32> to vector<32x128xf32>
    %7 = arith.mulf %4, %6 : vector<32x128xf32>
    %8 = arith.addf %3, %7 : vector<32x128xf32>
    %c0_6 = arith.constant 0 : index
    %c0_7 = arith.constant 0 : index
    %9 = vector.load %arg4[%c0_6, %c0_7] : memref<32x128xf32, #tpu.memory_space<vmem>>, vector<32x128xf32>
    %c2 = arith.constant 2 : index
    %c0_8 = arith.constant 0 : index
    %10 = vector.load %arg1[%c2, %c0_8] : memref<7x128xf32, #tpu.memory_space<vmem>>, vector<1x128xf32>
    %11 = vector.broadcast %10 : vector<1x128xf32> to vector<32x128xf32>
    %12 = arith.mulf %9, %11 : vector<32x128xf32>
    %13 = arith.addf %8, %12 : vector<32x128xf32>
    %c0_9 = arith.constant 0 : index
    %c0_10 = arith.constant 0 : index
    %14 = vector.load %arg5[%c0_9, %c0_10] : memref<32x128xf32, #tpu.memory_space<vmem>>, vector<32x128xf32>
    %c3 = arith.constant 3 : index
    %c0_11 = arith.constant 0 : index
    %15 = vector.load %arg1[%c3, %c0_11] : memref<7x128xf32, #tpu.memory_space<vmem>>, vector<1x128xf32>
    %16 = vector.broadcast %15 : vector<1x128xf32> to vector<32x128xf32>
    %17 = arith.mulf %14, %16 : vector<32x128xf32>
    %18 = arith.addf %13, %17 : vector<32x128xf32>
    %c0_12 = arith.constant 0 : index
    %c0_13 = arith.constant 0 : index
    %19 = vector.load %arg6[%c0_12, %c0_13] : memref<32x128xf32, #tpu.memory_space<vmem>>, vector<32x128xf32>
    %c4 = arith.constant 4 : index
    %c0_14 = arith.constant 0 : index
    %20 = vector.load %arg1[%c4, %c0_14] : memref<7x128xf32, #tpu.memory_space<vmem>>, vector<1x128xf32>
    %21 = vector.broadcast %20 : vector<1x128xf32> to vector<32x128xf32>
    %22 = arith.mulf %19, %21 : vector<32x128xf32>
    %23 = arith.addf %18, %22 : vector<32x128xf32>
    %c0_15 = arith.constant 0 : index
    %c0_16 = arith.constant 0 : index
    %24 = vector.load %arg7[%c0_15, %c0_16] : memref<32x128xf32, #tpu.memory_space<vmem>>, vector<32x128xf32>
    %c5 = arith.constant 5 : index
    %c0_17 = arith.constant 0 : index
    %25 = vector.load %arg1[%c5, %c0_17] : memref<7x128xf32, #tpu.memory_space<vmem>>, vector<1x128xf32>
    %26 = vector.broadcast %25 : vector<1x128xf32> to vector<32x128xf32>
    %27 = arith.mulf %24, %26 : vector<32x128xf32>
    %28 = arith.addf %23, %27 : vector<32x128xf32>
    %c0_18 = arith.constant 0 : index
    %c0_19 = arith.constant 0 : index
    %29 = vector.load %arg8[%c0_18, %c0_19] : memref<32x128xf32, #tpu.memory_space<vmem>>, vector<32x128xf32>
    %c6 = arith.constant 6 : index
    %c0_20 = arith.constant 0 : index
    %30 = vector.load %arg1[%c6, %c0_20] : memref<7x128xf32, #tpu.memory_space<vmem>>, vector<1x128xf32>
    %31 = vector.broadcast %30 : vector<1x128xf32> to vector<32x128xf32>
    %32 = arith.mulf %29, %31 : vector<32x128xf32>
    %33 = arith.addf %28, %32 : vector<32x128xf32>
    %c0_21 = arith.constant 0 : index
    %c0_22 = arith.constant 0 : index
    %34 = vector.load %arg9[%c0_21, %c0_22] : memref<32x128xf32, #tpu.memory_space<vmem>>, vector<32x128xf32>
    tpu.vector_store %arg9[%c0_21, %c0_22], %33 {strides = array<i32>} : memref<32x128xf32, #tpu.memory_space<vmem>>, vector<32x128xf32>,
    return
  }
  func.func @transform_0(%arg0: i32) -> (i32, i32) {
    %c0_i32 = arith.constant 0 : i32
    %c0_i32_0 = arith.constant 0 : i32
    %c0_i32_1 = arith.constant 0 : i32
    return %c0_i32, %c0_i32_0 : i32, i32
  }
  func.func @transform_1(%arg0: i32) -> (i32, i32) {
    %c0_i32 = arith.constant 0 : i32
    %c0_i32_0 = arith.constant 0 : i32
    return %arg0, %c0_i32 : i32, i32
  }
  func.func @transform_2(%arg0: i32) -> (i32, i32) {
    %c0_i32 = arith.constant 0 : i32
    %c0_i32_0 = arith.constant 0 : i32
    return %arg0, %c0_i32 : i32, i32
  }
  func.func @transform_3(%arg0: i32) -> (i32, i32) {
    %c0_i32 = arith.constant 0 : i32
    %c0_i32_0 = arith.constant 0 : i32
    return %arg0, %c0_i32 : i32, i32
  }
  func.func @transform_4(%arg0: i32) -> (i32, i32) {
    %c0_i32 = arith.constant 0 : i32
    %c0_i32_0 = arith.constant 0 : i32
    return %arg0, %c0_i32 : i32, i32
  }
  func.func @transform_5(%arg0: i32) -> (i32, i32) {
    %c0_i32 = arith.constant 0 : i32
    %c0_i32_0 = arith.constant 0 : i32
    return %arg0, %c0_i32 : i32, i32
  }
  func.func @transform_6(%arg0: i32) -> (i32, i32) {
    %c0_i32 = arith.constant 0 : i32
    %c0_i32_0 = arith.constant 0 : i32
    return %arg0, %c0_i32 : i32, i32
  }
  func.func @transform_7(%arg0: i32) -> (i32, i32) {
    %c0_i32 = arith.constant 0 : i32
    %c0_i32_0 = arith.constant 0 : i32
    return %arg0, %c0_i32 : i32, i32
  }
  func.func @transform_8(%arg0: i32) -> (i32, i32) {
    %c0_i32 = arith.constant 0 : i32
    %c0_i32_0 = arith.constant 0 : i32
    return %arg0, %c0_i32 : i32, i32
  }
}

</mosaic_0001>

<llo_original>
// kernel: _forward_impl.246
$region0: #{_forward_impl.246}
  #allocation0 [shape = 'u32[]', space=smem, size = 0x4, offset = 0x4, fixed_abs, tag = 'smem constant byte address 0x4 - core index']
  #allocation1 [shape = 'u32[144,128]{1,0:T(1,128)}', space=vmem, size = 0x12000, scoped, tag = 'internal scratch']
  %s0 = inlined_call_operand.vmem [shape: f32[512,128], index: 0, kind: input, shape index: {}]
  %s1 = inlined_call_operand.vmem [shape: f32[1,128], index: 1, kind: input, shape index: {}]
  %s2 = inlined_call_operand.vmem [shape: f32[1,128], index: 2, kind: input, shape index: {}]
  %s3 = inlined_call_operand.vmem [shape: f32[512,128], index: 3, kind: output, shape index: {}]
  %s4 = sld [smem:[#allocation0]]
  $region22: #{_forward_impl.246} parent=0
    _
  %s6 = ssub.s32 1, %s4
  %s7 = scalar_select 0, %s6, %s4
  // Predicated region
  $region2: #{_forward_impl.246} parent=0 // pred_check
    _
  $region3: #{_forward_impl.246} parent=0 // pred_check_branch
    %9 = sbr.rel (0) target = $region5
  $region4: #{_forward_impl.246} parent=0 // pred_region
    _
  $region5: #{_forward_impl.246} parent=0 // pred_fallthru
    _
  // Predicated region
  $region6: #{_forward_impl.246} parent=0 // pred_check
    _
  $region7: #{_forward_impl.246} parent=0 // pred_check_branch
    %11 = sbr.rel (0) target = $region9
  $region8: #{_forward_impl.246} parent=0 // pred_region
    _
  $region9: #{_forward_impl.246} parent=0 // pred_fallthru
    _
  // Predicated region
  $region10: #{_forward_impl.246} parent=0 // pred_check
    _
  $region11: #{_forward_impl.246} parent=0 // pred_check_branch
    %13 = sbr.rel (0) target = $region13
  $region12: #{_forward_impl.246} parent=0 // pred_region
    _
  $region13: #{_forward_impl.246} parent=0 // pred_fallthru
    _
  %v14 = vld [vmem:[%s0] sm:$0xff]
  %v15 = vld [vmem:[%s0 + $0x8] sm:$0xff]
  %v16 = vld [vmem:[%s0 + $0x10] sm:$0xff]
  %v17 = vld [vmem:[%s0 + $0x18] sm:$0xff]
  %v18 = vld [vmem:[%s0 + $0x20] sm:$0xff]
  %v19 = vld [vmem:[%s0 + $0x28] sm:$0xff]
  %v20 = vld [vmem:[%s0 + $0x30] sm:$0xff]
  %v21 = vld [vmem:[%s0 + $0x38] sm:$0xff]
  %v22 = vld [vmem:[%s0 + $0x40] sm:$0xff]
  %v23 = vld [vmem:[%s0 + $0x48] sm:$0xff]
  %v24 = vld [vmem:[%s0 + $0x50] sm:$0xff]
  %v25 = vld [vmem:[%s0 + $0x58] sm:$0xff]
  %v26 = vld [vmem:[%s0 + $0x60] sm:$0xff]
  %v27 = vld [vmem:[%s0 + $0x68] sm:$0xff]
  %v28 = vld [vmem:[%s0 + $0x70] sm:$0xff]
  %v29 = vld [vmem:[%s0 + $0x78] sm:$0xff]
  %v30 = vld [vmem:[%s0 + $0x80] sm:$0xff]
  %v31 = vld [vmem:[%s0 + $0x88] sm:$0xff]
  %v32 = vld [vmem:[%s0 + $0x90] sm:$0xff]
  %v33 = vld [vmem:[%s0 + $0x98] sm:$0xff]
  %v34 = vld [vmem:[%s0 + $0xa0] sm:$0xff]
  %v35 = vld [vmem:[%s0 + $0xa8] sm:$0xff]
  %v36 = vld [vmem:[%s0 + $0xb0] sm:$0xff]
  %v37 = vld [vmem:[%s0 + $0xb8] sm:$0xff]
  %v38 = vld [vmem:[%s0 + $0xc0] sm:$0xff]
  %v39 = vld [vmem:[%s0 + $0xc8] sm:$0xff]
  %v40 = vld [vmem:[%s0 + $0xd0] sm:$0xff]
  %v41 = vld [vmem:[%s0 + $0xd8] sm:$0xff]
  %v42 = vld [vmem:[%s0 + $0xe0] sm:$0xff]
  %v43 = vld [vmem:[%s0 + $0xe8] sm:$0xff]
  %v44 = vld [vmem:[%s0 + $0xf0] sm:$0xff]
  %v45 = vld [vmem:[%s0 + $0xf8] sm:$0xff]
  %v46 = vld [vmem:[%s0 + $0x100] sm:$0xff]
  %v47 = vld [vmem:[%s0 + $0x108] sm:$0xff]
  %v48 = vld [vmem:[%s0 + $0x110] sm:$0xff]
  %v49 = vld [vmem:[%s0 + $0x118] sm:$0xff]
  %v50 = vld [vmem:[%s0 + $0x120] sm:$0xff]
  %v51 = vld [vmem:[%s0 + $0x128] sm:$0xff]
  %v52 = vld [vmem:[%s0 + $0x130] sm:$0xff]
  %v53 = vld [vmem:[%s0 + $0x138] sm:$0xff]
  %v54 = vld [vmem:[%s0 + $0x140] sm:$0xff]
  %v55 = vld [vmem:[%s0 + $0x148] sm:$0xff]
  %v56 = vld [vmem:[%s0 + $0x150] sm:$0xff]
  %v57 = vld [vmem:[%s0 + $0x158] sm:$0xff]
  %v58 = vld [vmem:[%s0 + $0x160] sm:$0xff]
  %v59 = vld [vmem:[%s0 + $0x168] sm:$0xff]
  %v60 = vld [vmem:[%s0 + $0x170] sm:$0xff]
  %v61 = vld [vmem:[%s0 + $0x178] sm:$0xff]
  %v62 = vld [vmem:[%s0 + $0x180] sm:$0xff]
  %v63 = vld [vmem:[%s0 + $0x188] sm:$0xff]
  %v64 = vld [vmem:[%s0 + $0x190] sm:$0xff]
  %v65 = vld [vmem:[%s0 + $0x198] sm:$0xff]
  %v66 = vld [vmem:[%s0 + $0x1a0] sm:$0xff]
  %v67 = vld [vmem:[%s0 + $0x1a8] sm:$0xff]
  %v68 = vld [vmem:[%s0 + $0x1b0] sm:$0xff]
  %v69 = vld [vmem:[%s0 + $0x1b8] sm:$0xff]
  %v70 = vld [vmem:[%s0 + $0x1c0] sm:$0xff]
  %v71 = vld [vmem:[%s0 + $0x1c8] sm:$0xff]
  %v72 = vld [vmem:[%s0 + $0x1d0] sm:$0xff]
  %v73 = vld [vmem:[%s0 + $0x1d8] sm:$0xff]
  %v74 = vld [vmem:[%s0 + $0x1e0] sm:$0xff]
  %v75 = vld [vmem:[%s0 + $0x1e8] sm:$0xff]
  %v76 = vld [vmem:[%s0 + $0x1f0] sm:$0xff]
  %v77 = vld [vmem:[%s0 + $0x1f8] sm:$0xff]
  %v78 = vld [vmem:[%s1] sm:$0x1]
  %v80 = vlaneseq
  %v81 = vshrl.u32 %v80, 7
  %v82 = vsub.s32 0, %v81
  %v83 = vrot.slane %v78, %v82
  %v85 = vmul.f32 %v14, %v83
  %v86 = vmul.f32 %v15, %v83
  %v87 = vmul.f32 %v16, %v83
  %v88 = vmul.f32 %v17, %v83
  %v89 = vmul.f32 %v18, %v83
  %v90 = vmul.f32 %v19, %v83
  %v91 = vmul.f32 %v20, %v83
  %v92 = vmul.f32 %v21, %v83
  %v93 = vmul.f32 %v22, %v83
  %v94 = vmul.f32 %v23, %v83
  %v95 = vmul.f32 %v24, %v83
  %v96 = vmul.f32 %v25, %v83
  %v97 = vmul.f32 %v26, %v83
  %v98 = vmul.f32 %v27, %v83
  %v99 = vmul.f32 %v28, %v83
  %v100 = vmul.f32 %v29, %v83
  %v101 = vmul.f32 %v30, %v83
  %v102 = vmul.f32 %v31, %v83
  %v103 = vmul.f32 %v32, %v83
  %v104 = vmul.f32 %v33, %v83
  %v105 = vmul.f32 %v34, %v83
  %v106 = vmul.f32 %v35, %v83
  %v107 = vmul.f32 %v36, %v83
  %v108 = vmul.f32 %v37, %v83
  %v109 = vmul.f32 %v38, %v83
  %v110 = vmul.f32 %v39, %v83
  %v111 = vmul.f32 %v40, %v83
  %v112 = vmul.f32 %v41, %v83
  %v113 = vmul.f32 %v42, %v83
  %v114 = vmul.f32 %v43, %v83
  %v115 = vmul.f32 %v44, %v83
  %v116 = vmul.f32 %v45, %v83
  %v117 = vmul.f32 %v46, %v83
  %v118 = vmul.f32 %v47, %v83
  %v119 = vmul.f32 %v48, %v83
  %v120 = vmul.f32 %v49, %v83
  %v121 = vmul.f32 %v50, %v83
  %v122 = vmul.f32 %v51, %v83
  %v123 = vmul.f32 %v52, %v83
  %v124 = vmul.f32 %v53, %v83
  %v125 = vmul.f32 %v54, %v83
  %v126 = vmul.f32 %v55, %v83
  %v127 = vmul.f32 %v56, %v83
  %v128 = vmul.f32 %v57, %v83
  %v129 = vmul.f32 %v58, %v83
  %v130 = vmul.f32 %v59, %v83
  %v131 = vmul.f32 %v60, %v83
  %v132 = vmul.f32 %v61, %v83
  %v133 = vmul.f32 %v62, %v83
  %v134 = vmul.f32 %v63, %v83
  %v135 = vmul.f32 %v64, %v83
  %v136 = vmul.f32 %v65, %v83
  %v137 = vmul.f32 %v66, %v83
  %v138 = vmul.f32 %v67, %v83
  %v139 = vmul.f32 %v68, %v83
  %v140 = vmul.f32 %v69, %v83
  %v141 = vmul.f32 %v70, %v83
  %v142 = vmul.f32 %v71, %v83
  %v143 = vmul.f32 %v72, %v83
  %v144 = vmul.f32 %v73, %v83
  %v145 = vmul.f32 %v74, %v83
  %v146 = vmul.f32 %v75, %v83
  %v147 = vmul.f32 %v76, %v83
  %v148 = vmul.f32 %v77, %v83
  %v149 = vld [vmem:[%s2] sm:$0x1]
  %v151 = vlaneseq
  %v152 = vshrl.u32 %v151, 7
  %v153 = vsub.s32 0, %v152
  %v154 = vrot.slane %v149, %v153
  %v156 = vadd.f32 %v85, %v154
  %v157 = vadd.f32 %v86, %v154
  %v158 = vadd.f32 %v87, %v154
  %v159 = vadd.f32 %v88, %v154
  %v160 = vadd.f32 %v89, %v154
  %v161 = vadd.f32 %v90, %v154
  %v162 = vadd.f32 %v91, %v154
  %v163 = vadd.f32 %v92, %v154
  %v164 = vadd.f32 %v93, %v154
  %v165 = vadd.f32 %v94, %v154
  %v166 = vadd.f32 %v95, %v154
  %v167 = vadd.f32 %v96, %v154
  %v168 = vadd.f32 %v97, %v154
  %v169 = vadd.f32 %v98, %v154
  %v170 = vadd.f32 %v99, %v154
  %v171 = vadd.f32 %v100, %v154
  %v172 = vadd.f32 %v101, %v154
  %v173 = vadd.f32 %v102, %v154
  %v174 = vadd.f32 %v103, %v154
  %v175 = vadd.f32 %v104, %v154
  %v176 = vadd.f32 %v105, %v154
  %v177 = vadd.f32 %v106, %v154
  %v178 = vadd.f32 %v107, %v154
  %v179 = vadd.f32 %v108, %v154
  %v180 = vadd.f32 %v109, %v154
  %v181 = vadd.f32 %v110, %v154
  %v182 = vadd.f32 %v111, %v154
  %v183 = vadd.f32 %v112, %v154
  %v184 = vadd.f32 %v113, %v154
  %v185 = vadd.f32 %v114, %v154
  %v186 = vadd.f32 %v115, %v154
  %v187 = vadd.f32 %v116, %v154
  %v188 = vadd.f32 %v117, %v154
  %v189 = vadd.f32 %v118, %v154
  %v190 = vadd.f32 %v119, %v154
  %v191 = vadd.f32 %v120, %v154
  %v192 = vadd.f32 %v121, %v154
  %v193 = vadd.f32 %v122, %v154
  %v194 = vadd.f32 %v123, %v154
  %v195 = vadd.f32 %v124, %v154
  %v196 = vadd.f32 %v125, %v154
  %v197 = vadd.f32 %v126, %v154
  %v198 = vadd.f32 %v127, %v154
  %v199 = vadd.f32 %v128, %v154
  %v200 = vadd.f32 %v129, %v154
  %v201 = vadd.f32 %v130, %v154
  %v202 = vadd.f32 %v131, %v154
  %v203 = vadd.f32 %v132, %v154
  %v204 = vadd.f32 %v133, %v154
  %v205 = vadd.f32 %v134, %v154
  %v206 = vadd.f32 %v135, %v154
  %v207 = vadd.f32 %v136, %v154
  %v208 = vadd.f32 %v137, %v154
  %v209 = vadd.f32 %v138, %v154
  %v210 = vadd.f32 %v139, %v154
  %v211 = vadd.f32 %v140, %v154
  %v212 = vadd.f32 %v141, %v154
  %v213 = vadd.f32 %v142, %v154
  %v214 = vadd.f32 %v143, %v154
  %v215 = vadd.f32 %v144, %v154
  %v216 = vadd.f32 %v145, %v154
  %v217 = vadd.f32 %v146, %v154
  %v218 = vadd.f32 %v147, %v154
  %v219 = vadd.f32 %v148, %v154
  %220 = vst [vmem:[%s3] sm:$0xff] %v156
  %221 = vst [vmem:[%s3 + $0x8] sm:$0xff] %v157
  %222 = vst [vmem:[%s3 + $0x10] sm:$0xff] %v158
  %223 = vst [vmem:[%s3 + $0x18] sm:$0xff] %v159
  %224 = vst [vmem:[%s3 + $0x20] sm:$0xff] %v160
  %225 = vst [vmem:[%s3 + $0x28] sm:$0xff] %v161
  %226 = vst [vmem:[%s3 + $0x30] sm:$0xff] %v162
  %227 = vst [vmem:[%s3 + $0x38] sm:$0xff] %v163
  %228 = vst [vmem:[%s3 + $0x40] sm:$0xff] %v164
  %229 = vst [vmem:[%s3 + $0x48] sm:$0xff] %v165
  %230 = vst [vmem:[%s3 + $0x50] sm:$0xff] %v166
  %231 = vst [vmem:[%s3 + $0x58] sm:$0xff] %v167
  %232 = vst [vmem:[%s3 + $0x60] sm:$0xff] %v168
  %233 = vst [vmem:[%s3 + $0x68] sm:$0xff] %v169
  %234 = vst [vmem:[%s3 + $0x70] sm:$0xff] %v170
  %235 = vst [vmem:[%s3 + $0x78] sm:$0xff] %v171
  %236 = vst [vmem:[%s3 + $0x80] sm:$0xff] %v172
  %237 = vst [vmem:[%s3 + $0x88] sm:$0xff] %v173
  %238 = vst [vmem:[%s3 + $0x90] sm:$0xff] %v174
  %239 = vst [vmem:[%s3 + $0x98] sm:$0xff] %v175
  %240 = vst [vmem:[%s3 + $0xa0] sm:$0xff] %v176
  %241 = vst [vmem:[%s3 + $0xa8] sm:$0xff] %v177
  %242 = vst [vmem:[%s3 + $0xb0] sm:$0xff] %v178
  %243 = vst [vmem:[%s3 + $0xb8] sm:$0xff] %v179
  %244 = vst [vmem:[%s3 + $0xc0] sm:$0xff] %v180
  %245 = vst [vmem:[%s3 + $0xc8] sm:$0xff] %v181
  %246 = vst [vmem:[%s3 + $0xd0] sm:$0xff] %v182
  %247 = vst [vmem:[%s3 + $0xd8] sm:$0xff] %v183
  %248 = vst [vmem:[%s3 + $0xe0] sm:$0xff] %v184
  %249 = vst [vmem:[%s3 + $0xe8] sm:$0xff] %v185
  %250 = vst [vmem:[%s3 + $0xf0] sm:$0xff] %v186
  %251 = vst [vmem:[%s3 + $0xf8] sm:$0xff] %v187
  %252 = vst [vmem:[%s3 + $0x100] sm:$0xff] %v188
  %253 = vst [vmem:[%s3 + $0x108] sm:$0xff] %v189
  %254 = vst [vmem:[%s3 + $0x110] sm:$0xff] %v190
  %255 = vst [vmem:[%s3 + $0x118] sm:$0xff] %v191
  %256 = vst [vmem:[%s3 + $0x120] sm:$0xff] %v192
  %257 = vst [vmem:[%s3 + $0x128] sm:$0xff] %v193
  %258 = vst [vmem:[%s3 + $0x130] sm:$0xff] %v194
  %259 = vst [vmem:[%s3 + $0x138] sm:$0xff] %v195
  %260 = vst [vmem:[%s3 + $0x140] sm:$0xff] %v196
  %261 = vst [vmem:[%s3 + $0x148] sm:$0xff] %v197
  %262 = vst [vmem:[%s3 + $0x150] sm:$0xff] %v198
  %263 = vst [vmem:[%s3 + $0x158] sm:$0xff] %v199
  %264 = vst [vmem:[%s3 + $0x160] sm:$0xff] %v200
  %265 = vst [vmem:[%s3 + $0x168] sm:$0xff] %v201
  %266 = vst [vmem:[%s3 + $0x170] sm:$0xff] %v202
  %267 = vst [vmem:[%s3 + $0x178] sm:$0xff] %v203
  %268 = vst [vmem:[%s3 + $0x180] sm:$0xff] %v204
  %269 = vst [vmem:[%s3 + $0x188] sm:$0xff] %v205
  %270 = vst [vmem:[%s3 + $0x190] sm:$0xff] %v206
  %271 = vst [vmem:[%s3 + $0x198] sm:$0xff] %v207
  %272 = vst [vmem:[%s3 + $0x1a0] sm:$0xff] %v208
  %273 = vst [vmem:[%s3 + $0x1a8] sm:$0xff] %v209
  %274 = vst [vmem:[%s3 + $0x1b0] sm:$0xff] %v210
  %275 = vst [vmem:[%s3 + $0x1b8] sm:$0xff] %v211
  %276 = vst [vmem:[%s3 + $0x1c0] sm:$0xff] %v212
  %277 = vst [vmem:[%s3 + $0x1c8] sm:$0xff] %v213
  %278 = vst [vmem:[%s3 + $0x1d0] sm:$0xff] %v214
  %279 = vst [vmem:[%s3 + $0x1d8] sm:$0xff] %v215
  %280 = vst [vmem:[%s3 + $0x1e0] sm:$0xff] %v216
  %281 = vst [vmem:[%s3 + $0x1e8] sm:$0xff] %v217
  %282 = vst [vmem:[%s3 + $0x1f0] sm:$0xff] %v218
  %283 = vst [vmem:[%s3 + $0x1f8] sm:$0xff] %v219
  // Predicated region
  $region14: #{_forward_impl.246} parent=0 // pred_check
    _
  $region15: #{_forward_impl.246} parent=0 // pred_check_branch
    %285 = sbr.rel (0) target = $region17
  $region16: #{_forward_impl.246} parent=0 // pred_region
    _
  $region17: #{_forward_impl.246} parent=0 // pred_fallthru
    _
  // Predicated region
  $region18: #{_forward_impl.246} parent=0 // pred_check
    _
  $region19: #{_forward_impl.246} parent=0 // pred_check_branch
    %287 = sbr.rel (0) target = $region21
  $region20: #{_forward_impl.246} parent=0 // pred_region
    _
  $region21: #{_forward_impl.246} parent=0 // pred_fallthru
    _

// kernel: _forward_impl.245
$region0: #{_forward_impl.245}
  #allocation0 [shape = 'u32[]', space=smem, size = 0x4, offset = 0x4, fixed_abs, tag = 'smem constant byte address 0x4 - core index']
  #allocation1 [shape = 'u32[144,128]{1,0:T(1,128)}', space=vmem, size = 0x12000, scoped, tag = 'internal scratch']
  #allocation2 [shape = 'f32[128,128]{1,0:T(8,128)}', space=vmem, size = 0x10000, scoped, tag = 'scratch operand']
  %s0 = inlined_call_operand.vmem [shape: bf16[512,128], index: 0, kind: input, shape index: {}]
  %s1 = inlined_call_operand.vmem [shape: bf16[128,128], index: 1, kind: input, shape index: {}]
  %s2 = inlined_call_operand.vmem [shape: f32[512,128], index: 2, kind: output, shape index: {0}]
  %s3 = inlined_call_operand.vmem [shape: f32[1,128], index: 3, kind: output, shape index: {1}]
  %s4 = inlined_call_operand.vmem [shape: f32[1,128], index: 4, kind: output, shape index: {2}]
  %5 = xla_tuple %s2, %s3, %s4
  %s6 = sld [smem:[#allocation0]]
  $region69: #{_forward_impl.245} parent=0
    _
  %s8 = ssub.s32 1, %s6
  %s9 = scalar_select 0, %s8, %s6
  loop: start=0, step=1, limit=6
  $region2: #{_forward_impl.245} parent=0 // loop_pre_header
    _
  $region3: #{_forward_impl.245} parent=0 // loop_header
    %s11 = sphi 0, %s15
    %p12 = scmp.ge.s32.totalorder %s11, 6
    %s18 = sphi 0, %s37
    %s19 = sphi 0, %s33
    %s20 = sphi 0, %s29
    %s21 = sphi 0, %s18
    %s22 = sphi 0, %s19
    %s23 = sphi 0, %s20
    %s24 = sphi 0, %s21
    %s25 = sphi 0, %s22
    %s26 = sphi 0, %s23
    %s42 = sphi 0, %s44
    %s45 = sphi 0, %s42
    %s46 = sphi 0, %s45
    %s62 = sphi 0, %s46
    %s70 = sphi 0, %s72
    %s73 = sphi 0, %s70
    %s74 = sphi 0, %s73
    %s90 = sphi 0, %s74
    %s98 = sphi 0, %s100
    %s101 = sphi 0, %s98
    %s102 = sphi 0, %s101
    %s118 = sphi 0, %s102
    %s124 = sphi 0, %s126
    %s127 = sphi 0, %s124
    %s128 = sphi 0, %s127
    %s144 = sphi 0, %s128
    %s150 = sphi 0, %s152
    %s153 = sphi 0, %s150
    %s154 = sphi 0, %s153
    %s170 = sphi 0, %s154
  $region4: #{_forward_impl.245} parent=0 // loop_header_branch
    %14 = sbr.rel (%p12) target = $region8
  $region5: #{_forward_impl.245} parent=0 // loop_body
    %s16 = ssub.s32 %s11, 1
    %s17 = ssub.s32 %s11, 2
    %s27 = sadd.s32 1, %s20
    %p28 = scmp.ge.s32.totalorder %s27, 1
    %s29 = scalar_select %p28, 0, %s27
    %s30 = sadd.s32 1, %s19
    %s31 = scalar_select %p28, %s30, %s19
    %p32 = scmp.ge.s32.totalorder %s31, 4
    %s33 = scalar_select %p32, 0, %s31
    %s34 = sadd.s32 1, %s18
    %s35 = scalar_select %p32, %s34, %s18
    %p36 = scmp.ge.s32.totalorder %s35, 1
    %s37 = scalar_select %p36, 0, %s35
    %s38 = ssub.s32 %s19, %s33
    %s39 = ssub.s32 %s20, %s29
    %s40 = sor.u32 %s38, %s39
    %p41 = scmp.eq.s32.totalorder %s40, 0
    %s43 = sadd.s32 %s42, 1
    %s44 = scalar_select %p41, %s42, %s43
    %p47 = pneg %p41
    %p48 = scmp.eq.s32.totalorder %s11, 3
    %p49 = por %p47, %p48
    %p50 = scmp.ne.s32.totalorder %s42, %s45
    %p51 = scmp.eq.s32.totalorder %s11, 0
    %p52 = por %p50, %p51
    %p53 = scmp.ne.s32.totalorder %s42, %s45
    %p54 = scmp.eq.s32.totalorder %s16, 3
    %p55 = por %p53, %p54
    %p56 = scmp.ne.s32.totalorder %s45, %s46
    %p57 = scmp.eq.s32.totalorder %s16, 0
    %p58 = por %p56, %p57
    %p59 = scmp.ne.s32.totalorder %s45, %s46
    %p60 = scmp.eq.s32.totalorder %s17, 3
    %p61 = por %p59, %p60
    %p63 = scmp.ne.s32.totalorder %s46, %s62
    %p64 = scmp.eq.s32.totalorder %s17, 0
    %p65 = por %p63, %p64
    %s66 = ssub.s32 %s20, %s29
    %s67 = ssub.s32 %s18, %s37
    %s68 = sor.u32 %s66, %s67
    %p69 = scmp.eq.s32.totalorder %s68, 0
    %s71 = sadd.s32 %s70, 1
    %s72 = scalar_select %p69, %s70, %s71
    %p75 = pneg %p69
    %p76 = scmp.eq.s32.totalorder %s11, 3
    %p77 = por %p75, %p76
    %p78 = scmp.ne.s32.totalorder %s70, %s73
    %p79 = scmp.eq.s32.totalorder %s11, 0
    %p80 = por %p78, %p79
    %p81 = scmp.ne.s32.totalorder %s70, %s73
    %p82 = scmp.eq.s32.totalorder %s16, 3
    %p83 = por %p81, %p82
    %p84 = scmp.ne.s32.totalorder %s73, %s74
    %p85 = scmp.eq.s32.totalorder %s16, 0
    %p86 = por %p84, %p85
    %p87 = scmp.ne.s32.totalorder %s73, %s74
    %p88 = scmp.eq.s32.totalorder %s17, 3
    %p89 = por %p87, %p88
    %p91 = scmp.ne.s32.totalorder %s74, %s90
    %p92 = scmp.eq.s32.totalorder %s17, 0
    %p93 = por %p91, %p92
    %s94 = ssub.s32 %s19, %s33
    %s95 = ssub.s32 %s18, %s37
    %s96 = sor.u32 %s94, %s95
    %p97 = scmp.eq.s32.totalorder %s96, 0
    %s99 = sadd.s32 %s98, 1
    %s100 = scalar_select %p97, %s98, %s99
    %p103 = pneg %p97
    %p104 = scmp.eq.s32.totalorder %s11, 3
    %p105 = por %p103, %p104
    %p106 = scmp.ne.s32.totalorder %s98, %s101
    %p107 = scmp.eq.s32.totalorder %s11, 0
    %p108 = por %p106, %p107
    %p109 = scmp.ne.s32.totalorder %s98, %s101
    %p110 = scmp.eq.s32.totalorder %s16, 3
    %p111 = por %p109, %p110
    %p112 = scmp.ne.s32.totalorder %s101, %s102
    %p113 = scmp.eq.s32.totalorder %s16, 0
    %p114 = por %p112, %p113
    %p115 = scmp.ne.s32.totalorder %s101, %s102
    %p116 = scmp.eq.s32.totalorder %s17, 3
    %p117 = por %p115, %p116
    %p119 = scmp.ne.s32.totalorder %s102, %s118
    %p120 = scmp.eq.s32.totalorder %s17, 0
    %p121 = por %p119, %p120
    %s122 = ssub.s32 %s18, %s37
    %p123 = scmp.eq.s32.totalorder %s122, 0
    %s125 = sadd.s32 %s124, 1
    %s126 = scalar_select %p123, %s124, %s125
    %p129 = pneg %p123
    %p130 = scmp.eq.s32.totalorder %s11, 3
    %p131 = por %p129, %p130
    %p132 = scmp.ne.s32.totalorder %s124, %s127
    %p133 = scmp.eq.s32.totalorder %s11, 0
    %p134 = por %p132, %p133
    %p135 = scmp.ne.s32.totalorder %s124, %s127
    %p136 = scmp.eq.s32.totalorder %s16, 3
    %p137 = por %p135, %p136
    %p138 = scmp.ne.s32.totalorder %s127, %s128
    %p139 = scmp.eq.s32.totalorder %s16, 0
    %p140 = por %p138, %p139
    %p141 = scmp.ne.s32.totalorder %s127, %s128
    %p142 = scmp.eq.s32.totalorder %s17, 3
    %p143 = por %p141, %p142
    %p145 = scmp.ne.s32.totalorder %s128, %s144
    %p146 = scmp.eq.s32.totalorder %s17, 0
    %p147 = por %p145, %p146
    %s148 = ssub.s32 %s18, %s37
    %p149 = scmp.eq.s32.totalorder %s148, 0
    %s151 = sadd.s32 %s150, 1
    %s152 = scalar_select %p149, %s150, %s151
    %p155 = pneg %p149
    %p156 = scmp.eq.s32.totalorder %s11, 3
    %p157 = por %p155, %p156
    %p158 = scmp.ne.s32.totalorder %s150, %s153
    %p159 = scmp.eq.s32.totalorder %s11, 0
    %p160 = por %p158, %p159
    %p161 = scmp.ne.s32.totalorder %s150, %s153
    %p162 = scmp.eq.s32.totalorder %s16, 3
    %p163 = por %p161, %p162
    %p164 = scmp.ne.s32.totalorder %s153, %s154
    %p165 = scmp.eq.s32.totalorder %s16, 0
    %p166 = por %p164, %p165
    %p167 = scmp.ne.s32.totalorder %s153, %s154
    %p168 = scmp.eq.s32.totalorder %s17, 3
    %p169 = por %p167, %p168
    %p171 = scmp.ne.s32.totalorder %s154, %s170
    %p172 = scmp.eq.s32.totalorder %s17, 0
    %p173 = por %p171, %p172
    %p174 = scmp.le.s32.totalorder 1, %s11
    %p175 = scmp.lt.s32.totalorder %s11, 5
    %p176 = pnand %p174, %p175
    %p177 = pneg %p176
    // Predicated region
    $region9: #{_forward_impl.245} parent=5 // pred_check
      _
    $region10: #{_forward_impl.245} parent=5 // pred_check_branch
      %179 = sbr.rel (%p176) target = $region12
    $region11: #{_forward_impl.245} parent=5 // pred_region
      %s180 = ssub.s32 %s11, 1
      // Predicated region
      $region13: #{_forward_impl.245} parent=11 // pred_check
        %p181 = pneg %p86
      $region14: #{_forward_impl.245} parent=11 // pred_check_branch
        %183 = sbr.rel (%p181) target = $region16
      $region15: #{_forward_impl.245} parent=11 // pred_region
        %s184 = smul.u32 16, %s23
        %p185 = scmp.lt.s32.totalorder %s184, 15
        %s186 = scalar_select %p185, %s184, 15
        %p187 = scmp.lt.s32.totalorder %s21, 0
        %s188 = scalar_select %p187, %s21, 0
        %s189 = sadd.s32 %s188, %s186
        %s190 = smul.addr %s189, 4
        %s191 = scalar_lea.vmem %s1, %s190
        %s192 = smul.u32 16, %s23
      $region16: #{_forward_impl.245} parent=11 // pred_fallthru
        _
    $region12: #{_forward_impl.245} parent=5 // pred_fallthru
      _
    %p193 = scmp.lt.s32.totalorder %s11, 4
    // Predicated region
    $region17: #{_forward_impl.245} parent=5 // pred_check
      %p194 = pneg %p193
    $region18: #{_forward_impl.245} parent=5 // pred_check_branch
      %196 = sbr.rel (%p194) target = $region20
    $region19: #{_forward_impl.245} parent=5 // pred_region
      // Predicated region
      $region21: #{_forward_impl.245} parent=19 // pred_check
        %p197 = pneg %p52
      $region22: #{_forward_impl.245} parent=19 // pred_check_branch
        %199 = sbr.rel (%p197) target = $region24
      $region23: #{_forward_impl.245} parent=19 // pred_region
        %s200 = smul.u32 16, %s19
        %p201 = scmp.lt.s32.totalorder %s200, 63
        %s202 = scalar_select %p201, %s200, 63
        %p203 = scmp.lt.s32.totalorder %s20, 0
        %s204 = scalar_select %p203, %s20, 0
        %s205 = sadd.s32 %s204, %s202
        %s206 = smul.addr %s205, 4
        %s207 = scalar_lea.vmem %s0, %s206
        %s208 = smul.u32 16, %s19
      $region24: #{_forward_impl.245} parent=19 // pred_fallthru
        _
    $region20: #{_forward_impl.245} parent=5 // pred_fallthru
      _
    %p209 = scmp.le.s32.totalorder 1, %s11
    %p210 = scmp.lt.s32.totalorder %s11, 5
    %p211 = pnand %p209, %p210
    %p212 = pneg %p211
    // Predicated region
    $region25: #{_forward_impl.245} parent=5 // pred_check
      _
    $region26: #{_forward_impl.245} parent=5 // pred_check_branch
      %214 = sbr.rel (%p211) target = $region28
    $region27: #{_forward_impl.245} parent=5 // pred_region
      %s215 = ssub.s32 %s11, 1
      %s216 = smul.u32 16, %s22
      %p217 = scmp.lt.s32.totalorder %s216, 63
      %s218 = scalar_select %p217, %s216, 63
      %p219 = scmp.lt.s32.totalorder %s23, 0
      %s220 = scalar_select %p219, %s23, 0
      %s221 = sadd.s32 %s220, %s218
      %s222 = smul.addr %s221, 4
      %s223 = scalar_lea.vmem %s0, %s222
      %p224 = pneg %p58
      %p225 = pneg %p55
      %s226 = smul.u32 16, %s23
      %p227 = scmp.lt.s32.totalorder %s226, 15
      %s228 = scalar_select %p227, %s226, 15
      %p229 = scmp.lt.s32.totalorder %s21, 0
      %s230 = scalar_select %p229, %s21, 0
      %s231 = sadd.s32 %s230, %s228
      %s232 = smul.addr %s231, 4
      %s233 = scalar_lea.vmem %s1, %s232
      %p234 = pneg %p86
      %p235 = pneg %p83
      %p236 = pneg %p114
      %p237 = pneg %p111
      %s238 = smul.u32 16, %s22
      %p239 = scmp.lt.s32.totalorder %s238, 63
      %s240 = scalar_select %p239, %s238, 63
      %p241 = scmp.lt.s32.totalorder %s21, 0
      %s242 = scalar_select %p241, %s21, 0
      %s243 = sadd.s32 %s242, %s240
      %s244 = smul.addr %s243, 8
      %s245 = scalar_lea.vmem %s2, %s244
      %p246 = pneg %p140
      %p247 = pneg %p137
      %p248 = scmp.lt.s32.totalorder %s21, 0
      %s249 = scalar_select %p248, %s21, 0
      %s250 = scalar_lea.vmem %s3, %s249
      %p251 = pneg %p166
      %p252 = pneg %p163
      %p253 = scmp.lt.s32.totalorder %s21, 0
      %s254 = scalar_select %p253, %s21, 0
      %s255 = scalar_lea.vmem %s4, %s254
      %s256 = smul.u32 16, %s22
      %p257 = scmp.lt.s32.totalorder %s256, 63
      %s258 = scalar_select %p257, %s256, 63
      %p259 = scmp.lt.s32.totalorder %s23, 0
      %s260 = scalar_select %p259, %s23, 0
      %s261 = sadd.s32 %s260, %s258
      %s262 = smul.addr %s261, 4
      %s263 = scalar_lea.vmem %s0, %s262
      %s264 = smul.u32 16, %s22
      %s265 = smul.u32 16, %s23
      %p266 = scmp.lt.s32.totalorder %s265, 15
      %s267 = scalar_select %p266, %s265, 15
      %p268 = scmp.lt.s32.totalorder %s21, 0
      %s269 = scalar_select %p268, %s21, 0
      %s270 = sadd.s32 %s269, %s267
      %s271 = smul.addr %s270, 4
      %s272 = scalar_lea.vmem %s1, %s271
      %s273 = smul.u32 16, %s23
      %s274 = smul.u32 16, %s22
      %p275 = scmp.lt.s32.totalorder %s274, 63
      %s276 = scalar_select %p275, %s274, 63
      %p277 = scmp.lt.s32.totalorder %s21, 0
      %s278 = scalar_select %p277, %s21, 0
      %s279 = sadd.s32 %s278, %s276
      %s280 = smul.addr %s279, 8
      %s281 = scalar_lea.vmem %s2, %s280
      %s282 = smul.u32 16, %s22
      %p283 = scmp.lt.s32.totalorder %s21, 0
      %s284 = scalar_select %p283, %s21, 0
      %s285 = scalar_lea.vmem %s3, %s284
      %p286 = scmp.lt.s32.totalorder %s21, 0
      %s287 = scalar_select %p286, %s21, 0
      %s288 = scalar_lea.vmem %s4, %s287
      %p290 = scmp.eq.s32.totalorder %s23, 0
      // Predicated region
      $region29: #{_forward_impl.245} parent=27 // pred_check
        %p291 = pneg %p290
      $region30: #{_forward_impl.245} parent=27 // pred_check_branch
        %293 = sbr.rel (%p291) target = $region32
      $region31: #{_forward_impl.245} parent=27 // pred_region
        %294 = vst [vmem:[#allocation2] sm:$0xff] 0.0
        %295 = vst [vmem:[#allocation2 + $0x8] sm:$0xff] 0.0
        %296 = vst [vmem:[#allocation2 + $0x10] sm:$0xff] 0.0
        %297 = vst [vmem:[#allocation2 + $0x18] sm:$0xff] 0.0
        %298 = vst [vmem:[#allocation2 + $0x20] sm:$0xff] 0.0
        %299 = vst [vmem:[#allocation2 + $0x28] sm:$0xff] 0.0
        %300 = vst [vmem:[#allocation2 + $0x30] sm:$0xff] 0.0
        %301 = vst [vmem:[#allocation2 + $0x38] sm:$0xff] 0.0
        %302 = vst [vmem:[#allocation2 + $0x40] sm:$0xff] 0.0
        %303 = vst [vmem:[#allocation2 + $0x48] sm:$0xff] 0.0
        %304 = vst [vmem:[#allocation2 + $0x50] sm:$0xff] 0.0
        %305 = vst [vmem:[#allocation2 + $0x58] sm:$0xff] 0.0
        %306 = vst [vmem:[#allocation2 + $0x60] sm:$0xff] 0.0
        %307 = vst [vmem:[#allocation2 + $0x68] sm:$0xff] 0.0
        %308 = vst [vmem:[#allocation2 + $0x70] sm:$0xff] 0.0
        %309 = vst [vmem:[#allocation2 + $0x78] sm:$0xff] 0.0
      $region32: #{_forward_impl.245} parent=27 // pred_fallthru
        _
      %v310 = vld [vmem:[#allocation2] sm:$0xff]
      %v311 = vld [vmem:[#allocation2 + $0x8] sm:$0xff]
      %v312 = vld [vmem:[#allocation2 + $0x10] sm:$0xff]
      %v313 = vld [vmem:[#allocation2 + $0x18] sm:$0xff]
      %v314 = vld [vmem:[#allocation2 + $0x20] sm:$0xff]
      %v315 = vld [vmem:[#allocation2 + $0x28] sm:$0xff]
      %v316 = vld [vmem:[#allocation2 + $0x30] sm:$0xff]
      %v317 = vld [vmem:[#allocation2 + $0x38] sm:$0xff]
      %v318 = vld [vmem:[#allocation2 + $0x40] sm:$0xff]
      %v319 = vld [vmem:[#allocation2 + $0x48] sm:$0xff]
      %v320 = vld [vmem:[#allocation2 + $0x50] sm:$0xff]
      %v321 = vld [vmem:[#allocation2 + $0x58] sm:$0xff]
      %v322 = vld [vmem:[#allocation2 + $0x60] sm:$0xff]
      %v323 = vld [vmem:[#allocation2 + $0x68] sm:$0xff]
      %v324 = vld [vmem:[#allocation2 + $0x70] sm:$0xff]
      %v325 = vld [vmem:[#allocation2 + $0x78] sm:$0xff]
      %v326 = vld [vmem:[%s263] sm:$0xf]
      %v327 = vld [vmem:[%s263 + $0x4] sm:$0xf]
      %v328 = vld [vmem:[%s263 + $0x8] sm:$0xf]
      %v329 = vld [vmem:[%s263 + $0xc] sm:$0xf]
      %v330 = vld [vmem:[%s263 + $0x10] sm:$0xf]
      %v331 = vld [vmem:[%s263 + $0x14] sm:$0xf]
      %v332 = vld [vmem:[%s263 + $0x18] sm:$0xf]
      %v333 = vld [vmem:[%s263 + $0x1c] sm:$0xf]
      %v334 = vld [vmem:[%s263 + $0x20] sm:$0xf]
      %v335 = vld [vmem:[%s263 + $0x24] sm:$0xf]
      %v336 = vld [vmem:[%s263 + $0x28] sm:$0xf]
      %v337 = vld [vmem:[%s263 + $0x2c] sm:$0xf]
      %v338 = vld [vmem:[%s263 + $0x30] sm:$0xf]
      %v339 = vld [vmem:[%s263 + $0x34] sm:$0xf]
      %v340 = vld [vmem:[%s263 + $0x38] sm:$0xf]
      %v341 = vld [vmem:[%s263 + $0x3c] sm:$0xf]
      %v342 = vld [vmem:[%s272] sm:$0xf]
      %v343 = vld [vmem:[%s272 + $0x4] sm:$0xf]
      %v344 = vld [vmem:[%s272 + $0x8] sm:$0xf]
      %v345 = vld [vmem:[%s272 + $0xc] sm:$0xf]
      %v346 = vld [vmem:[%s272 + $0x10] sm:$0xf]
      %v347 = vld [vmem:[%s272 + $0x14] sm:$0xf]
      %v348 = vld [vmem:[%s272 + $0x18] sm:$0xf]
      %v349 = vld [vmem:[%s272 + $0x1c] sm:$0xf]
      %v350 = vld [vmem:[%s272 + $0x20] sm:$0xf]
      %v351 = vld [vmem:[%s272 + $0x24] sm:$0xf]
      %v352 = vld [vmem:[%s272 + $0x28] sm:$0xf]
      %v353 = vld [vmem:[%s272 + $0x2c] sm:$0xf]
      %v354 = vld [vmem:[%s272 + $0x30] sm:$0xf]
      %v355 = vld [vmem:[%s272 + $0x34] sm:$0xf]
      %v356 = vld [vmem:[%s272 + $0x38] sm:$0xf]
      %v357 = vld [vmem:[%s272 + $0x3c] sm:$0xf]
      %v374 = vunpack.c.l.b16 %v326
      %v375 = vunpack.c.l.b16 %v327
      %v376 = vunpack.c.l.b16 %v328
      %v377 = vunpack.c.l.b16 %v329
      %v378 = vunpack.c.l.b16 %v330
      %v379 = vunpack.c.l.b16 %v331
      %v380 = vunpack.c.l.b16 %v332
      %v381 = vunpack.c.l.b16 %v333
      %v382 = vunpack.c.l.b16 %v334
      %v383 = vunpack.c.l.b16 %v335
      %v384 = vunpack.c.l.b16 %v336
      %v385 = vunpack.c.l.b16 %v337
      %v386 = vunpack.c.l.b16 %v338
      %v387 = vunpack.c.l.b16 %v339
      %v388 = vunpack.c.l.b16 %v340
      %v389 = vunpack.c.l.b16 %v341
      %v390 = vpack.c.b16 %v375, %v374
      %v391 = vpack.c.b16 %v377, %v376
      %v392 = vpack.c.b16 %v379, %v378
      %v393 = vpack.c.b16 %v381, %v380
      %v394 = vpack.c.b16 %v383, %v382
      %v395 = vpack.c.b16 %v385, %v384
      %v396 = vpack.c.b16 %v387, %v386
      %v397 = vpack.c.b16 %v389, %v388
      %v422 = vunpack.c.l.b16 %v342
      %v423 = vunpack.c.l.b16 %v343
      %v424 = vunpack.c.l.b16 %v344
      %v425 = vunpack.c.l.b16 %v345
      %v426 = vunpack.c.l.b16 %v346
      %v427 = vunpack.c.l.b16 %v347
      %v428 = vunpack.c.l.b16 %v348
      %v429 = vunpack.c.l.b16 %v349
      %v430 = vunpack.c.l.b16 %v350
      %v431 = vunpack.c.l.b16 %v351
      %v432 = vunpack.c.l.b16 %v352
      %v433 = vunpack.c.l.b16 %v353
      %v434 = vunpack.c.l.b16 %v354
      %v435 = vunpack.c.l.b16 %v355
      %v436 = vunpack.c.l.b16 %v356
      %v437 = vunpack.c.l.b16 %v357
      %v438 = vpack.c.b16 %v423, %v422
      %v439 = vpack.c.b16 %v425, %v424
      %v440 = vpack.c.b16 %v427, %v426
      %v441 = vpack.c.b16 %v429, %v428
      %v442 = vpack.c.b16 %v431, %v430
      %v443 = vpack.c.b16 %v433, %v432
      %v444 = vpack.c.b16 %v435, %v434
      %v445 = vpack.c.b16 %v437, %v436
      %454 = vmatprep.subr.bf16.mxu0 0
      %455 = vmatpush1.bf16.msra.mxu0 %v445
      %456 = vmatprep.subr.bf16.mxu0 0
      %457 = vmatpush1.bf16.msra.mxu0 %v444
      %458 = vmatprep.subr.bf16.mxu0 0
      %459 = vmatpush1.bf16.msra.mxu0 %v443
      %460 = vmatprep.subr.bf16.mxu0 0
      %461 = vmatpush1.bf16.msra.mxu0 %v442
      %462 = vmatprep.subr.bf16.mxu0 0
      %463 = vmatpush1.bf16.msra.mxu0 %v441
      %464 = vmatprep.subr.bf16.mxu0 0
      %465 = vmatpush1.bf16.msra.mxu0 %v440
      %466 = vmatprep.subr.bf16.mxu0 0
      %467 = vmatpush1.bf16.msra.mxu0 %v439
      %468 = vmatprep.subr.bf16.mxu0 0
      %469 = vmatpush1.bf16.msra.mxu0 %v438
      %470 = vmatprep.subr.bf16.mxu0 0
      %471 = vmatpush2.bf16.msra.mxu0 0
      %472 = vmatprep.subr.bf16.mxu0 0
      %473 = vmatpush2.bf16.msra.mxu0 0
      %474 = vmatprep.subr.bf16.mxu0 0
      %475 = vmatpush2.bf16.msra.mxu0 0
      %476 = vmatprep.subr.bf16.mxu0 0
      %477 = vmatpush2.bf16.msra.mxu0 0
      %478 = vmatprep.subr.bf16.mxu0 0
      %479 = vmatpush2.bf16.msra.mxu0 0
      %480 = vmatprep.subr.bf16.mxu0 0
      %481 = vmatpush2.bf16.msra.mxu0 0
      %482 = vmatprep.subr.bf16.mxu0 0
      %483 = vmatpush2.bf16.msra.mxu0 0
      %484 = vmatprep.subr.bf16.mxu0 0
      %485 = vmatpush2.bf16.msra.mxu0 0
      %486 = vmatprep.mubr.bf16.mxu0 0
      %487 = vmatmul.mubr.bf16.gmra.mxu0 %v390
      %v488 = vpop.f32.mrf.mxu0
      %v489 = vadd.f32 0.0, %v488
      %v490 = vpop.f32.mrf.mxu0
      %v491 = vpop.f32.mrf.mxu0
      %v492 = vadd.f32 0.0, %v491
      %v493 = vpop.f32.mrf.mxu0
      %494 = vmatprep.mubr.bf16.mxu0 0
      %495 = vmatmul.mubr.bf16.gmra.mxu0 %v391
      %v496 = vpop.f32.mrf.mxu0
      %v497 = vadd.f32 0.0, %v496
      %v498 = vpop.f32.mrf.mxu0
      %v499 = vpop.f32.mrf.mxu0
      %v500 = vadd.f32 0.0, %v499
      %v501 = vpop.f32.mrf.mxu0
      %502 = vmatprep.mubr.bf16.mxu0 0
      %503 = vmatmul.mubr.bf16.gmra.mxu0 %v392
      %v504 = vpop.f32.mrf.mxu0
      %v505 = vadd.f32 0.0, %v504
      %v506 = vpop.f32.mrf.mxu0
      %v507 = vpop.f32.mrf.mxu0
      %v508 = vadd.f32 0.0, %v507
      %v509 = vpop.f32.mrf.mxu0
      %510 = vmatprep.mubr.bf16.mxu0 0
      %511 = vmatmul.mubr.bf16.gmra.mxu0 %v393
      %v512 = vpop.f32.mrf.mxu0
      %v513 = vadd.f32 0.0, %v512
      %v514 = vpop.f32.mrf.mxu0
      %v515 = vpop.f32.mrf.mxu0
      %v516 = vadd.f32 0.0, %v515
      %v517 = vpop.f32.mrf.mxu0
      %518 = vmatprep.mubr.bf16.mxu0 0
      %519 = vmatmul.mubr.bf16.gmra.mxu0 %v394
      %v520 = vpop.f32.mrf.mxu0
      %v521 = vadd.f32 0.0, %v520
      %v522 = vpop.f32.mrf.mxu0
      %v523 = vpop.f32.mrf.mxu0
      %v524 = vadd.f32 0.0, %v523
      %v525 = vpop.f32.mrf.mxu0
      %526 = vmatprep.mubr.bf16.mxu0 0
      %527 = vmatmul.mubr.bf16.gmra.mxu0 %v395
      %v528 = vpop.f32.mrf.mxu0
      %v529 = vadd.f32 0.0, %v528
      %v530 = vpop.f32.mrf.mxu0
      %v531 = vpop.f32.mrf.mxu0
      %v532 = vadd.f32 0.0, %v531
      %v533 = vpop.f32.mrf.mxu0
      %534 = vmatprep.mubr.bf16.mxu0 0
      %535 = vmatmul.mubr.bf16.gmra.mxu0 %v396
      %v536 = vpop.f32.mrf.mxu0
      %v537 = vadd.f32 0.0, %v536
      %v538 = vpop.f32.mrf.mxu0
      %v539 = vpop.f32.mrf.mxu0
      %v540 = vadd.f32 0.0, %v539
      %v541 = vpop.f32.mrf.mxu0
      %542 = vmatprep.mubr.bf16.mxu0 0
      %543 = vmatmul.mubr.bf16.gmra.mxu0 %v397
      %v544 = vpop.f32.mrf.mxu0
      %v545 = vadd.f32 0.0, %v544
      %v546 = vpop.f32.mrf.mxu0
      %v547 = vpop.f32.mrf.mxu0
      %v548 = vadd.f32 0.0, %v547
      %v549 = vpop.f32.mrf.mxu0
      %550 = vdwg.mxu0
      %v551 = vadd.f32 %v310, %v489
      %v552 = vadd.f32 %v311, %v492
      %v553 = vadd.f32 %v312, %v497
      %v554 = vadd.f32 %v313, %v500
      %v555 = vadd.f32 %v314, %v505
      %v556 = vadd.f32 %v315, %v508
      %v557 = vadd.f32 %v316, %v513
      %v558 = vadd.f32 %v317, %v516
      %v559 = vadd.f32 %v318, %v521
      %v560 = vadd.f32 %v319, %v524
      %v561 = vadd.f32 %v320, %v529
      %v562 = vadd.f32 %v321, %v532
      %v563 = vadd.f32 %v322, %v537
      %v564 = vadd.f32 %v323, %v540
      %v565 = vadd.f32 %v324, %v545
      %v566 = vadd.f32 %v325, %v548
      %567 = vst [vmem:[#allocation2] sm:$0xff] %v551
      %568 = vst [vmem:[#allocation2 + $0x8] sm:$0xff] %v552
      %569 = vst [vmem:[#allocation2 + $0x10] sm:$0xff] %v553
      %570 = vst [vmem:[#allocation2 + $0x18] sm:$0xff] %v554
      %571 = vst [vmem:[#allocation2 + $0x20] sm:$0xff] %v555
      %572 = vst [vmem:[#allocation2 + $0x28] sm:$0xff] %v556
      %573 = vst [vmem:[#allocation2 + $0x30] sm:$0xff] %v557
      %574 = vst [vmem:[#allocation2 + $0x38] sm:$0xff] %v558
      %575 = vst [vmem:[#allocation2 + $0x40] sm:$0xff] %v559
      %576 = vst [vmem:[#allocation2 + $0x48] sm:$0xff] %v560
      %577 = vst [vmem:[#allocation2 + $0x50] sm:$0xff] %v561
      %578 = vst [vmem:[#allocation2 + $0x58] sm:$0xff] %v562
      %579 = vst [vmem:[#allocation2 + $0x60] sm:$0xff] %v563
      %580 = vst [vmem:[#allocation2 + $0x68] sm:$0xff] %v564
      %581 = vst [vmem:[#allocation2 + $0x70] sm:$0xff] %v565
      %582 = vst [vmem:[#allocation2 + $0x78] sm:$0xff] %v566
      %p583 = scmp.eq.s32.totalorder %s22, 0
      %p584 = pnand %p290, %p583
      %p585 = pneg %p584
      // Predicated region
      $region33: #{_forward_impl.245} parent=27 // pred_check
        _
      $region34: #{_forward_impl.245} parent=27 // pred_check_branch
        %587 = sbr.rel (%p584) target = $region36
      $region35: #{_forward_impl.245} parent=27 // pred_region
        %588 = vst [vmem:[%s285] sm:$0x1] 0.0
        %589 = vst [vmem:[%s288] sm:$0x1] 0.0
      $region36: #{_forward_impl.245} parent=27 // pred_fallthru
        _
      // Predicated region
      $region37: #{_forward_impl.245} parent=27 // pred_check
        %p590 = pneg %p290
      $region38: #{_forward_impl.245} parent=27 // pred_check_branch
        %592 = sbr.rel (%p590) target = $region40
      $region39: #{_forward_impl.245} parent=27 // pred_region
        %v593 = vld [vmem:[#allocation2] sm:$0xff]
        %v594 = vld [vmem:[#allocation2 + $0x8] sm:$0xff]
        %v595 = vld [vmem:[#allocation2 + $0x10] sm:$0xff]
        %v596 = vld [vmem:[#allocation2 + $0x18] sm:$0xff]
        %v597 = vld [vmem:[#allocation2 + $0x20] sm:$0xff]
        %v598 = vld [vmem:[#allocation2 + $0x28] sm:$0xff]
        %v599 = vld [vmem:[#allocation2 + $0x30] sm:$0xff]
        %v600 = vld [vmem:[#allocation2 + $0x38] sm:$0xff]
        %v601 = vld [vmem:[#allocation2 + $0x40] sm:$0xff]
        %v602 = vld [vmem:[#allocation2 + $0x48] sm:$0xff]
        %v603 = vld [vmem:[#allocation2 + $0x50] sm:$0xff]
        %v604 = vld [vmem:[#allocation2 + $0x58] sm:$0xff]
        %v605 = vld [vmem:[#allocation2 + $0x60] sm:$0xff]
        %v606 = vld [vmem:[#allocation2 + $0x68] sm:$0xff]
        %v607 = vld [vmem:[#allocation2 + $0x70] sm:$0xff]
        %v608 = vld [vmem:[#allocation2 + $0x78] sm:$0xff]
        %609 = vst [vmem:[%s281] sm:$0xff] %v593
        %610 = vst [vmem:[%s281 + $0x8] sm:$0xff] %v594
        %611 = vst [vmem:[%s281 + $0x10] sm:$0xff] %v595
        %612 = vst [vmem:[%s281 + $0x18] sm:$0xff] %v596
        %613 = vst [vmem:[%s281 + $0x20] sm:$0xff] %v597
        %614 = vst [vmem:[%s281 + $0x28] sm:$0xff] %v598
        %615 = vst [vmem:[%s281 + $0x30] sm:$0xff] %v599
        %616 = vst [vmem:[%s281 + $0x38] sm:$0xff] %v600
        %617 = vst [vmem:[%s281 + $0x40] sm:$0xff] %v601
        %618 = vst [vmem:[%s281 + $0x48] sm:$0xff] %v602
        %619 = vst [vmem:[%s281 + $0x50] sm:$0xff] %v603
        %620 = vst [vmem:[%s281 + $0x58] sm:$0xff] %v604
        %621 = vst [vmem:[%s281 + $0x60] sm:$0xff] %v605
        %622 = vst [vmem:[%s281 + $0x68] sm:$0xff] %v606
        %623 = vst [vmem:[%s281 + $0x70] sm:$0xff] %v607
        %624 = vst [vmem:[%s281 + $0x78] sm:$0xff] %v608
        %v625 = vld [vmem:[%s285] sm:$0x1]
        %v626 = vadd.f32 %v593, %v594
        %v627 = vadd.f32 %v626, %v595
        %v628 = vadd.f32 %v627, %v596
        %v629 = vadd.f32 %v628, %v597
        %v630 = vadd.f32 %v629, %v598
        %v631 = vadd.f32 %v630, %v599
        %v632 = vadd.f32 %v631, %v600
        %v633 = vadd.f32 %v632, %v601
        %v634 = vadd.f32 %v633, %v602
        %v635 = vadd.f32 %v634, %v603
        %v636 = vadd.f32 %v635, %v604
        %v637 = vadd.f32 %v636, %v605
        %v638 = vadd.f32 %v637, %v606
        %v639 = vadd.f32 %v638, %v607
        %v640 = vadd.f32 %v639, %v608
        %v641 = vrot.slane %v640, 4
        %v642 = vadd.f32 %v640, %v641
        %v643 = vrot.slane %v642, 2
        %v644 = vadd.f32 %v642, %v643
        %v645 = vrot.slane %v644, 1
        %v646 = vadd.f32 %v644, %v645
        %v647 = vadd.f32 %v625, %v646
        %648 = vst [vmem:[%s285] sm:$0x1] %v647
        %v649 = vld [vmem:[%s288] sm:$0x1]
        %v650 = vmul.f32 %v593, %v593
        %v651 = vmul.f32 %v594, %v594
        %v652 = vmul.f32 %v595, %v595
        %v653 = vmul.f32 %v596, %v596
        %v654 = vmul.f32 %v597, %v597
        %v655 = vmul.f32 %v598, %v598
        %v656 = vmul.f32 %v599, %v599
        %v657 = vmul.f32 %v600, %v600
        %v658 = vmul.f32 %v601, %v601
        %v659 = vmul.f32 %v602, %v602
        %v660 = vmul.f32 %v603, %v603
        %v661 = vmul.f32 %v604, %v604
        %v662 = vmul.f32 %v605, %v605
        %v663 = vmul.f32 %v606, %v606
        %v664 = vmul.f32 %v607, %v607
        %v665 = vmul.f32 %v608, %v608
        %v666 = vadd.f32 %v650, %v651
        %v667 = vadd.f32 %v666, %v652
        %v668 = vadd.f32 %v667, %v653
        %v669 = vadd.f32 %v668, %v654
        %v670 = vadd.f32 %v669, %v655
        %v671 = vadd.f32 %v670, %v656
        %v672 = vadd.f32 %v671, %v657
        %v673 = vadd.f32 %v672, %v658
        %v674 = vadd.f32 %v673, %v659
        %v675 = vadd.f32 %v674, %v660
        %v676 = vadd.f32 %v675, %v661
        %v677 = vadd.f32 %v676, %v662
        %v678 = vadd.f32 %v677, %v663
        %v679 = vadd.f32 %v678, %v664
        %v680 = vadd.f32 %v679, %v665
        %v681 = vrot.slane %v680, 4
        %v682 = vadd.f32 %v680, %v681
        %v683 = vrot.slane %v682, 2
        %v684 = vadd.f32 %v682, %v683
        %v685 = vrot.slane %v684, 1
        %v686 = vadd.f32 %v684, %v685
        %v687 = vadd.f32 %v649, %v686
        %688 = vst [vmem:[%s288] sm:$0x1] %v687
      $region40: #{_forward_impl.245} parent=27 // pred_fallthru
        _
      %s689 = smul.u32 16, %s22
      %p690 = scmp.lt.s32.totalorder %s689, 63
      %s691 = scalar_select %p690, %s689, 63
      %p692 = scmp.lt.s32.totalorder %s21, 0
      %s693 = scalar_select %p692, %s21, 0
      %s694 = sadd.s32 %s693, %s691
      %s695 = smul.addr %s694, 8
      %s696 = scalar_lea.vmem %s2, %s695
      %p697 = scmp.lt.s32.totalorder %s21, 0
      %s698 = scalar_select %p697, %s21, 0
      %s699 = scalar_lea.vmem %s3, %s698
      %p700 = scmp.lt.s32.totalorder %s21, 0
      %s701 = scalar_select %p700, %s21, 0
      %s702 = scalar_lea.vmem %s4, %s701
      // Predicated region
      $region41: #{_forward_impl.245} parent=27 // pred_check
        %p703 = pneg %p111
      $region42: #{_forward_impl.245} parent=27 // pred_check_branch
        %705 = sbr.rel (%p703) target = $region44
      $region43: #{_forward_impl.245} parent=27 // pred_region
        %s706 = smul.u32 16, %s22
      $region44: #{_forward_impl.245} parent=27 // pred_fallthru
        _
      // Predicated region
      $region45: #{_forward_impl.245} parent=27 // pred_check
        %p707 = pneg %p137
      $region46: #{_forward_impl.245} parent=27 // pred_check_branch
        %709 = sbr.rel (%p707) target = $region48
      $region47: #{_forward_impl.245} parent=27 // pred_region
        _
      $region48: #{_forward_impl.245} parent=27 // pred_fallthru
        _
      // Predicated region
      $region49: #{_forward_impl.245} parent=27 // pred_check
        %p710 = pneg %p163
      $region50: #{_forward_impl.245} parent=27 // pred_check_branch
        %712 = sbr.rel (%p710) target = $region52
      $region51: #{_forward_impl.245} parent=27 // pred_region
        _
      $region52: #{_forward_impl.245} parent=27 // pred_fallthru
        _
      // Predicated region
      $region53: #{_forward_impl.245} parent=27 // pred_check
        %p713 = pneg %p137
      $region54: #{_forward_impl.245} parent=27 // pred_check_branch
        %715 = sbr.rel (%p713) target = $region56
      $region55: #{_forward_impl.245} parent=27 // pred_region
        %p716 = scmp.lt.s32.totalorder %s21, 0
        %s717 = scalar_select %p716, %s21, 0
        %s718 = scalar_lea.vmem %s3, %s717
      $region56: #{_forward_impl.245} parent=27 // pred_fallthru
        _
      // Predicated region
      $region57: #{_forward_impl.245} parent=27 // pred_check
        %p719 = pneg %p163
      $region58: #{_forward_impl.245} parent=27 // pred_check_branch
        %721 = sbr.rel (%p719) target = $region60
      $region59: #{_forward_impl.245} parent=27 // pred_region
        %p722 = scmp.lt.s32.totalorder %s21, 0
        %s723 = scalar_select %p722, %s21, 0
        %s724 = scalar_lea.vmem %s4, %s723
      $region60: #{_forward_impl.245} parent=27 // pred_fallthru
        _
    $region28: #{_forward_impl.245} parent=5 // pred_fallthru
      _
    %p725 = scmp.le.s32.totalorder 2, %s11
    // Predicated region
    $region61: #{_forward_impl.245} parent=5 // pred_check
      %p726 = pneg %p725
    $region62: #{_forward_impl.245} parent=5 // pred_check_branch
      %728 = sbr.rel (%p726) target = $region64
    $region63: #{_forward_impl.245} parent=5 // pred_region
      %s729 = ssub.s32 %s11, 2
      // Predicated region
      $region65: #{_forward_impl.245} parent=63 // pred_check
        %p730 = pneg %p117
      $region66: #{_forward_impl.245} parent=63 // pred_check_branch
        %732 = sbr.rel (%p730) target = $region68
      $region67: #{_forward_impl.245} parent=63 // pred_region
        %s733 = smul.u32 16, %s25
        %p734 = scmp.lt.s32.totalorder %s733, 63
        %s735 = scalar_select %p734, %s733, 63
        %p736 = scmp.lt.s32.totalorder %s24, 0
        %s737 = scalar_select %p736, %s24, 0
        %s738 = sadd.s32 %s737, %s735
        %s739 = smul.addr %s738, 8
        %s740 = scalar_lea.vmem %s2, %s739
      $region68: #{_forward_impl.245} parent=63 // pred_fallthru
        _
    $region64: #{_forward_impl.245} parent=5 // pred_fallthru
      _
  $region6: #{_forward_impl.245} parent=0 // loop_footer
    %s15 = sadd.s32 1, %s11
  $region7: #{_forward_impl.245} parent=0 // loop_footer_branch
    %10 = sbr.rel target = $region3
  $region8: #{_forward_impl.245} parent=0 // loop_exit
    _

// kernel: _forward_impl.276
$region0: #{_forward_impl.276}
  #allocation0 [shape = 'u32[]', space=smem, size = 0x4, offset = 0x4, fixed_abs, tag = 'smem constant byte address 0x4 - core index']
  #allocation1 [shape = 'u32[144,128]{1,0:T(1,128)}', space=vmem, size = 0x12000, scoped, tag = 'internal scratch']
  %s0 = inlined_call_operand.vmem [shape: f32[9,128,128], index: 0, kind: input, shape index: {}]
  %s1 = inlined_call_operand.vmem [shape: f32[9,128], index: 1, kind: input, shape index: {}]
  %s2 = inlined_call_operand.vmem [shape: f32[128,128], index: 2, kind: output, shape index: {}]
  %s3 = sld [smem:[#allocation0]]
  $region18: #{_forward_impl.276} parent=0
    _
  %s5 = ssub.s32 1, %s3
  %s6 = scalar_select 0, %s5, %s3
  // Predicated region
  $region2: #{_forward_impl.276} parent=0 // pred_check
    _
  $region3: #{_forward_impl.276} parent=0 // pred_check_branch
    %8 = sbr.rel (0) target = $region5
  $region4: #{_forward_impl.276} parent=0 // pred_region
    _
  $region5: #{_forward_impl.276} parent=0 // pred_fallthru
    _
  // Predicated region
  $region6: #{_forward_impl.276} parent=0 // pred_check
    _
  $region7: #{_forward_impl.276} parent=0 // pred_check_branch
    %10 = sbr.rel (0) target = $region9
  $region8: #{_forward_impl.276} parent=0 // pred_region
    _
  $region9: #{_forward_impl.276} parent=0 // pred_fallthru
    _
  %v11 = vld [vmem:[%s0] sm:$0xff]
  %v12 = vld [vmem:[%s0 + $0x8] sm:$0xff]
  %v13 = vld [vmem:[%s0 + $0x10] sm:$0xff]
  %v14 = vld [vmem:[%s0 + $0x18] sm:$0xff]
  %v15 = vld [vmem:[%s0 + $0x20] sm:$0xff]
  %v16 = vld [vmem:[%s0 + $0x28] sm:$0xff]
  %v17 = vld [vmem:[%s0 + $0x30] sm:$0xff]
  %v18 = vld [vmem:[%s0 + $0x38] sm:$0xff]
  %v19 = vld [vmem:[%s0 + $0x40] sm:$0xff]
  %v20 = vld [vmem:[%s0 + $0x48] sm:$0xff]
  %v21 = vld [vmem:[%s0 + $0x50] sm:$0xff]
  %v22 = vld [vmem:[%s0 + $0x58] sm:$0xff]
  %v23 = vld [vmem:[%s0 + $0x60] sm:$0xff]
  %v24 = vld [vmem:[%s0 + $0x68] sm:$0xff]
  %v25 = vld [vmem:[%s0 + $0x70] sm:$0xff]
  %v26 = vld [vmem:[%s0 + $0x78] sm:$0xff]
  %v27 = vld [vmem:[%s1] sm:$0x1]
  %v28 = vlaneseq
  %v29 = vshrl.u32 %v28, 7
  %v30 = vsub.s32 0, %v29
  %v31 = vrot.slane %v27, %v30
  %v32 = vmul.f32 %v11, %v31
  %v33 = vmul.f32 %v12, %v31
  %v34 = vmul.f32 %v13, %v31
  %v35 = vmul.f32 %v14, %v31
  %v36 = vmul.f32 %v15, %v31
  %v37 = vmul.f32 %v16, %v31
  %v38 = vmul.f32 %v17, %v31
  %v39 = vmul.f32 %v18, %v31
  %v40 = vmul.f32 %v19, %v31
  %v41 = vmul.f32 %v20, %v31
  %v42 = vmul.f32 %v21, %v31
  %v43 = vmul.f32 %v22, %v31
  %v44 = vmul.f32 %v23, %v31
  %v45 = vmul.f32 %v24, %v31
  %v46 = vmul.f32 %v25, %v31
  %v47 = vmul.f32 %v26, %v31
  %s48 = scalar_lea.vmem %s0, 128
  %v49 = vld [vmem:[%s48] sm:$0xff]
  %v50 = vld [vmem:[%s48 + $0x8] sm:$0xff]
  %v51 = vld [vmem:[%s48 + $0x10] sm:$0xff]
  %v52 = vld [vmem:[%s48 + $0x18] sm:$0xff]
  %v53 = vld [vmem:[%s48 + $0x20] sm:$0xff]
  %v54 = vld [vmem:[%s48 + $0x28] sm:$0xff]
  %v55 = vld [vmem:[%s48 + $0x30] sm:$0xff]
  %v56 = vld [vmem:[%s48 + $0x38] sm:$0xff]
  %v57 = vld [vmem:[%s48 + $0x40] sm:$0xff]
  %v58 = vld [vmem:[%s48 + $0x48] sm:$0xff]
  %v59 = vld [vmem:[%s48 + $0x50] sm:$0xff]
  %v60 = vld [vmem:[%s48 + $0x58] sm:$0xff]
  %v61 = vld [vmem:[%s48 + $0x60] sm:$0xff]
  %v62 = vld [vmem:[%s48 + $0x68] sm:$0xff]
  %v63 = vld [vmem:[%s48 + $0x70] sm:$0xff]
  %v64 = vld [vmem:[%s48 + $0x78] sm:$0xff]
  %v65 = vld [vmem:[%s1 + $0x1] sm:$0x1]
  %v66 = vlaneseq
  %v67 = vshrl.u32 %v66, 7
  %v68 = vsub.s32 0, %v67
  %v69 = vrot.slane %v65, %v68
  %v70 = vmul.f32 %v49, %v69
  %v71 = vmul.f32 %v50, %v69
  %v72 = vmul.f32 %v51, %v69
  %v73 = vmul.f32 %v52, %v69
  %v74 = vmul.f32 %v53, %v69
  %v75 = vmul.f32 %v54, %v69
  %v76 = vmul.f32 %v55, %v69
  %v77 = vmul.f32 %v56, %v69
  %v78 = vmul.f32 %v57, %v69
  %v79 = vmul.f32 %v58, %v69
  %v80 = vmul.f32 %v59, %v69
  %v81 = vmul.f32 %v60, %v69
  %v82 = vmul.f32 %v61, %v69
  %v83 = vmul.f32 %v62, %v69
  %v84 = vmul.f32 %v63, %v69
  %v85 = vmul.f32 %v64, %v69
  %v86 = vadd.f32 %v32, %v70
  %v87 = vadd.f32 %v33, %v71
  %v88 = vadd.f32 %v34, %v72
  %v89 = vadd.f32 %v35, %v73
  %v90 = vadd.f32 %v36, %v74
  %v91 = vadd.f32 %v37, %v75
  %v92 = vadd.f32 %v38, %v76
  %v93 = vadd.f32 %v39, %v77
  %v94 = vadd.f32 %v40, %v78
  %v95 = vadd.f32 %v41, %v79
  %v96 = vadd.f32 %v42, %v80
  %v97 = vadd.f32 %v43, %v81
  %v98 = vadd.f32 %v44, %v82
  %v99 = vadd.f32 %v45, %v83
  %v100 = vadd.f32 %v46, %v84
  %v101 = vadd.f32 %v47, %v85
  %s102 = scalar_lea.vmem %s0, 256
  %v103 = vld [vmem:[%s102] sm:$0xff]
  %v104 = vld [vmem:[%s102 + $0x8] sm:$0xff]
  %v105 = vld [vmem:[%s102 + $0x10] sm:$0xff]
  %v106 = vld [vmem:[%s102 + $0x18] sm:$0xff]
  %v107 = vld [vmem:[%s102 + $0x20] sm:$0xff]
  %v108 = vld [vmem:[%s102 + $0x28] sm:$0xff]
  %v109 = vld [vmem:[%s102 + $0x30] sm:$0xff]
  %v110 = vld [vmem:[%s102 + $0x38] sm:$0xff]
  %v111 = vld [vmem:[%s102 + $0x40] sm:$0xff]
  %v112 = vld [vmem:[%s102 + $0x48] sm:$0xff]
  %v113 = vld [vmem:[%s102 + $0x50] sm:$0xff]
  %v114 = vld [vmem:[%s102 + $0x58] sm:$0xff]
  %v115 = vld [vmem:[%s102 + $0x60] sm:$0xff]
  %v116 = vld [vmem:[%s102 + $0x68] sm:$0xff]
  %v117 = vld [vmem:[%s102 + $0x70] sm:$0xff]
  %v118 = vld [vmem:[%s102 + $0x78] sm:$0xff]
  %v119 = vld [vmem:[%s1 + $0x2] sm:$0x1]
  %v120 = vlaneseq
  %v121 = vshrl.u32 %v120, 7
  %v122 = vsub.s32 0, %v121
  %v123 = vrot.slane %v119, %v122
  %v124 = vmul.f32 %v103, %v123
  %v125 = vmul.f32 %v104, %v123
  %v126 = vmul.f32 %v105, %v123
  %v127 = vmul.f32 %v106, %v123
  %v128 = vmul.f32 %v107, %v123
  %v129 = vmul.f32 %v108, %v123
  %v130 = vmul.f32 %v109, %v123
  %v131 = vmul.f32 %v110, %v123
  %v132 = vmul.f32 %v111, %v123
  %v133 = vmul.f32 %v112, %v123
  %v134 = vmul.f32 %v113, %v123
  %v135 = vmul.f32 %v114, %v123
  %v136 = vmul.f32 %v115, %v123
  %v137 = vmul.f32 %v116, %v123
  %v138 = vmul.f32 %v117, %v123
  %v139 = vmul.f32 %v118, %v123
  %v140 = vadd.f32 %v86, %v124
  %v141 = vadd.f32 %v87, %v125
  %v142 = vadd.f32 %v88, %v126
  %v143 = vadd.f32 %v89, %v127
  %v144 = vadd.f32 %v90, %v128
  %v145 = vadd.f32 %v91, %v129
  %v146 = vadd.f32 %v92, %v130
  %v147 = vadd.f32 %v93, %v131
  %v148 = vadd.f32 %v94, %v132
  %v149 = vadd.f32 %v95, %v133
  %v150 = vadd.f32 %v96, %v134
  %v151 = vadd.f32 %v97, %v135
  %v152 = vadd.f32 %v98, %v136
  %v153 = vadd.f32 %v99, %v137
  %v154 = vadd.f32 %v100, %v138
  %v155 = vadd.f32 %v101, %v139
  %s156 = scalar_lea.vmem %s0, 384
  %v157 = vld [vmem:[%s156] sm:$0xff]
  %v158 = vld [vmem:[%s156 + $0x8] sm:$0xff]
  %v159 = vld [vmem:[%s156 + $0x10] sm:$0xff]
  %v160 = vld [vmem:[%s156 + $0x18] sm:$0xff]
  %v161 = vld [vmem:[%s156 + $0x20] sm:$0xff]
  %v162 = vld [vmem:[%s156 + $0x28] sm:$0xff]
  %v163 = vld [vmem:[%s156 + $0x30] sm:$0xff]
  %v164 = vld [vmem:[%s156 + $0x38] sm:$0xff]
  %v165 = vld [vmem:[%s156 + $0x40] sm:$0xff]
  %v166 = vld [vmem:[%s156 + $0x48] sm:$0xff]
  %v167 = vld [vmem:[%s156 + $0x50] sm:$0xff]
  %v168 = vld [vmem:[%s156 + $0x58] sm:$0xff]
  %v169 = vld [vmem:[%s156 + $0x60] sm:$0xff]
  %v170 = vld [vmem:[%s156 + $0x68] sm:$0xff]
  %v171 = vld [vmem:[%s156 + $0x70] sm:$0xff]
  %v172 = vld [vmem:[%s156 + $0x78] sm:$0xff]
  %v173 = vld [vmem:[%s1 + $0x3] sm:$0x1]
  %v174 = vlaneseq
  %v175 = vshrl.u32 %v174, 7
  %v176 = vsub.s32 0, %v175
  %v177 = vrot.slane %v173, %v176
  %v178 = vmul.f32 %v157, %v177
  %v179 = vmul.f32 %v158, %v177
  %v180 = vmul.f32 %v159, %v177
  %v181 = vmul.f32 %v160, %v177
  %v182 = vmul.f32 %v161, %v177
  %v183 = vmul.f32 %v162, %v177
  %v184 = vmul.f32 %v163, %v177
  %v185 = vmul.f32 %v164, %v177
  %v186 = vmul.f32 %v165, %v177
  %v187 = vmul.f32 %v166, %v177
  %v188 = vmul.f32 %v167, %v177
  %v189 = vmul.f32 %v168, %v177
  %v190 = vmul.f32 %v169, %v177
  %v191 = vmul.f32 %v170, %v177
  %v192 = vmul.f32 %v171, %v177
  %v193 = vmul.f32 %v172, %v177
  %v194 = vadd.f32 %v140, %v178
  %v195 = vadd.f32 %v141, %v179
  %v196 = vadd.f32 %v142, %v180
  %v197 = vadd.f32 %v143, %v181
  %v198 = vadd.f32 %v144, %v182
  %v199 = vadd.f32 %v145, %v183
  %v200 = vadd.f32 %v146, %v184
  %v201 = vadd.f32 %v147, %v185
  %v202 = vadd.f32 %v148, %v186
  %v203 = vadd.f32 %v149, %v187
  %v204 = vadd.f32 %v150, %v188
  %v205 = vadd.f32 %v151, %v189
  %v206 = vadd.f32 %v152, %v190
  %v207 = vadd.f32 %v153, %v191
  %v208 = vadd.f32 %v154, %v192
  %v209 = vadd.f32 %v155, %v193
  %s210 = scalar_lea.vmem %s0, 512
  %v211 = vld [vmem:[%s210] sm:$0xff]
  %v212 = vld [vmem:[%s210 + $0x8] sm:$0xff]
  %v213 = vld [vmem:[%s210 + $0x10] sm:$0xff]
  %v214 = vld [vmem:[%s210 + $0x18] sm:$0xff]
  %v215 = vld [vmem:[%s210 + $0x20] sm:$0xff]
  %v216 = vld [vmem:[%s210 + $0x28] sm:$0xff]
  %v217 = vld [vmem:[%s210 + $0x30] sm:$0xff]
  %v218 = vld [vmem:[%s210 + $0x38] sm:$0xff]
  %v219 = vld [vmem:[%s210 + $0x40] sm:$0xff]
  %v220 = vld [vmem:[%s210 + $0x48] sm:$0xff]
  %v221 = vld [vmem:[%s210 + $0x50] sm:$0xff]
  %v222 = vld [vmem:[%s210 + $0x58] sm:$0xff]
  %v223 = vld [vmem:[%s210 + $0x60] sm:$0xff]
  %v224 = vld [vmem:[%s210 + $0x68] sm:$0xff]
  %v225 = vld [vmem:[%s210 + $0x70] sm:$0xff]
  %v226 = vld [vmem:[%s210 + $0x78] sm:$0xff]
  %v227 = vld [vmem:[%s1 + $0x4] sm:$0x1]
  %v228 = vlaneseq
  %v229 = vshrl.u32 %v228, 7
  %v230 = vsub.s32 0, %v229
  %v231 = vrot.slane %v227, %v230
  %v232 = vmul.f32 %v211, %v231
  %v233 = vmul.f32 %v212, %v231
  %v234 = vmul.f32 %v213, %v231
  %v235 = vmul.f32 %v214, %v231
  %v236 = vmul.f32 %v215, %v231
  %v237 = vmul.f32 %v216, %v231
  %v238 = vmul.f32 %v217, %v231
  %v239 = vmul.f32 %v218, %v231
  %v240 = vmul.f32 %v219, %v231
  %v241 = vmul.f32 %v220, %v231
  %v242 = vmul.f32 %v221, %v231
  %v243 = vmul.f32 %v222, %v231
  %v244 = vmul.f32 %v223, %v231
  %v245 = vmul.f32 %v224, %v231
  %v246 = vmul.f32 %v225, %v231
  %v247 = vmul.f32 %v226, %v231
  %v248 = vadd.f32 %v194, %v232
  %v249 = vadd.f32 %v195, %v233
  %v250 = vadd.f32 %v196, %v234
  %v251 = vadd.f32 %v197, %v235
  %v252 = vadd.f32 %v198, %v236
  %v253 = vadd.f32 %v199, %v237
  %v254 = vadd.f32 %v200, %v238
  %v255 = vadd.f32 %v201, %v239
  %v256 = vadd.f32 %v202, %v240
  %v257 = vadd.f32 %v203, %v241
  %v258 = vadd.f32 %v204, %v242
  %v259 = vadd.f32 %v205, %v243
  %v260 = vadd.f32 %v206, %v244
  %v261 = vadd.f32 %v207, %v245
  %v262 = vadd.f32 %v208, %v246
  %v263 = vadd.f32 %v209, %v247
  %s264 = scalar_lea.vmem %s0, 640
  %v265 = vld [vmem:[%s264] sm:$0xff]
  %v266 = vld [vmem:[%s264 + $0x8] sm:$0xff]
  %v267 = vld [vmem:[%s264 + $0x10] sm:$0xff]
  %v268 = vld [vmem:[%s264 + $0x18] sm:$0xff]
  %v269 = vld [vmem:[%s264 + $0x20] sm:$0xff]
  %v270 = vld [vmem:[%s264 + $0x28] sm:$0xff]
  %v271 = vld [vmem:[%s264 + $0x30] sm:$0xff]
  %v272 = vld [vmem:[%s264 + $0x38] sm:$0xff]
  %v273 = vld [vmem:[%s264 + $0x40] sm:$0xff]
  %v274 = vld [vmem:[%s264 + $0x48] sm:$0xff]
  %v275 = vld [vmem:[%s264 + $0x50] sm:$0xff]
  %v276 = vld [vmem:[%s264 + $0x58] sm:$0xff]
  %v277 = vld [vmem:[%s264 + $0x60] sm:$0xff]
  %v278 = vld [vmem:[%s264 + $0x68] sm:$0xff]
  %v279 = vld [vmem:[%s264 + $0x70] sm:$0xff]
  %v280 = vld [vmem:[%s264 + $0x78] sm:$0xff]
  %v281 = vld [vmem:[%s1 + $0x5] sm:$0x1]
  %v282 = vlaneseq
  %v283 = vshrl.u32 %v282, 7
  %v284 = vsub.s32 0, %v283
  %v285 = vrot.slane %v281, %v284
  %v286 = vmul.f32 %v265, %v285
  %v287 = vmul.f32 %v266, %v285
  %v288 = vmul.f32 %v267, %v285
  %v289 = vmul.f32 %v268, %v285
  %v290 = vmul.f32 %v269, %v285
  %v291 = vmul.f32 %v270, %v285
  %v292 = vmul.f32 %v271, %v285
  %v293 = vmul.f32 %v272, %v285
  %v294 = vmul.f32 %v273, %v285
  %v295 = vmul.f32 %v274, %v285
  %v296 = vmul.f32 %v275, %v285
  %v297 = vmul.f32 %v276, %v285
  %v298 = vmul.f32 %v277, %v285
  %v299 = vmul.f32 %v278, %v285
  %v300 = vmul.f32 %v279, %v285
  %v301 = vmul.f32 %v280, %v285
  %v302 = vadd.f32 %v248, %v286
  %v303 = vadd.f32 %v249, %v287
  %v304 = vadd.f32 %v250, %v288
  %v305 = vadd.f32 %v251, %v289
  %v306 = vadd.f32 %v252, %v290
  %v307 = vadd.f32 %v253, %v291
  %v308 = vadd.f32 %v254, %v292
  %v309 = vadd.f32 %v255, %v293
  %v310 = vadd.f32 %v256, %v294
  %v311 = vadd.f32 %v257, %v295
  %v312 = vadd.f32 %v258, %v296
  %v313 = vadd.f32 %v259, %v297
  %v314 = vadd.f32 %v260, %v298
  %v315 = vadd.f32 %v261, %v299
  %v316 = vadd.f32 %v262, %v300
  %v317 = vadd.f32 %v263, %v301
  %s318 = scalar_lea.vmem %s0, 768
  %v319 = vld [vmem:[%s318] sm:$0xff]
  %v320 = vld [vmem:[%s318 + $0x8] sm:$0xff]
  %v321 = vld [vmem:[%s318 + $0x10] sm:$0xff]
  %v322 = vld [vmem:[%s318 + $0x18] sm:$0xff]
  %v323 = vld [vmem:[%s318 + $0x20] sm:$0xff]
  %v324 = vld [vmem:[%s318 + $0x28] sm:$0xff]
  %v325 = vld [vmem:[%s318 + $0x30] sm:$0xff]
  %v326 = vld [vmem:[%s318 + $0x38] sm:$0xff]
  %v327 = vld [vmem:[%s318 + $0x40] sm:$0xff]
  %v328 = vld [vmem:[%s318 + $0x48] sm:$0xff]
  %v329 = vld [vmem:[%s318 + $0x50] sm:$0xff]
  %v330 = vld [vmem:[%s318 + $0x58] sm:$0xff]
  %v331 = vld [vmem:[%s318 + $0x60] sm:$0xff]
  %v332 = vld [vmem:[%s318 + $0x68] sm:$0xff]
  %v333 = vld [vmem:[%s318 + $0x70] sm:$0xff]
  %v334 = vld [vmem:[%s318 + $0x78] sm:$0xff]
  %v335 = vld [vmem:[%s1 + $0x6] sm:$0x1]
  %v336 = vlaneseq
  %v337 = vshrl.u32 %v336, 7
  %v338 = vsub.s32 0, %v337
  %v339 = vrot.slane %v335, %v338
  %v340 = vmul.f32 %v319, %v339
  %v341 = vmul.f32 %v320, %v339
  %v342 = vmul.f32 %v321, %v339
  %v343 = vmul.f32 %v322, %v339
  %v344 = vmul.f32 %v323, %v339
  %v345 = vmul.f32 %v324, %v339
  %v346 = vmul.f32 %v325, %v339
  %v347 = vmul.f32 %v326, %v339
  %v348 = vmul.f32 %v327, %v339
  %v349 = vmul.f32 %v328, %v339
  %v350 = vmul.f32 %v329, %v339
  %v351 = vmul.f32 %v330, %v339
  %v352 = vmul.f32 %v331, %v339
  %v353 = vmul.f32 %v332, %v339
  %v354 = vmul.f32 %v333, %v339
  %v355 = vmul.f32 %v334, %v339
  %v356 = vadd.f32 %v302, %v340
  %v357 = vadd.f32 %v303, %v341
  %v358 = vadd.f32 %v304, %v342
  %v359 = vadd.f32 %v305, %v343
  %v360 = vadd.f32 %v306, %v344
  %v361 = vadd.f32 %v307, %v345
  %v362 = vadd.f32 %v308, %v346
  %v363 = vadd.f32 %v309, %v347
  %v364 = vadd.f32 %v310, %v348
  %v365 = vadd.f32 %v311, %v349
  %v366 = vadd.f32 %v312, %v350
  %v367 = vadd.f32 %v313, %v351
  %v368 = vadd.f32 %v314, %v352
  %v369 = vadd.f32 %v315, %v353
  %v370 = vadd.f32 %v316, %v354
  %v371 = vadd.f32 %v317, %v355
  %s372 = scalar_lea.vmem %s0, 896
  %v373 = vld [vmem:[%s372] sm:$0xff]
  %v374 = vld [vmem:[%s372 + $0x8] sm:$0xff]
  %v375 = vld [vmem:[%s372 + $0x10] sm:$0xff]
  %v376 = vld [vmem:[%s372 + $0x18] sm:$0xff]
  %v377 = vld [vmem:[%s372 + $0x20] sm:$0xff]
  %v378 = vld [vmem:[%s372 + $0x28] sm:$0xff]
  %v379 = vld [vmem:[%s372 + $0x30] sm:$0xff]
  %v380 = vld [vmem:[%s372 + $0x38] sm:$0xff]
  %v381 = vld [vmem:[%s372 + $0x40] sm:$0xff]
  %v382 = vld [vmem:[%s372 + $0x48] sm:$0xff]
  %v383 = vld [vmem:[%s372 + $0x50] sm:$0xff]
  %v384 = vld [vmem:[%s372 + $0x58] sm:$0xff]
  %v385 = vld [vmem:[%s372 + $0x60] sm:$0xff]
  %v386 = vld [vmem:[%s372 + $0x68] sm:$0xff]
  %v387 = vld [vmem:[%s372 + $0x70] sm:$0xff]
  %v388 = vld [vmem:[%s372 + $0x78] sm:$0xff]
  %v389 = vld [vmem:[%s1 + $0x7] sm:$0x1]
  %v390 = vlaneseq
  %v391 = vshrl.u32 %v390, 7
  %v392 = vsub.s32 0, %v391
  %v393 = vrot.slane %v389, %v392
  %v394 = vmul.f32 %v373, %v393
  %v395 = vmul.f32 %v374, %v393
  %v396 = vmul.f32 %v375, %v393
  %v397 = vmul.f32 %v376, %v393
  %v398 = vmul.f32 %v377, %v393
  %v399 = vmul.f32 %v378, %v393
  %v400 = vmul.f32 %v379, %v393
  %v401 = vmul.f32 %v380, %v393
  %v402 = vmul.f32 %v381, %v393
  %v403 = vmul.f32 %v382, %v393
  %v404 = vmul.f32 %v383, %v393
  %v405 = vmul.f32 %v384, %v393
  %v406 = vmul.f32 %v385, %v393
  %v407 = vmul.f32 %v386, %v393
  %v408 = vmul.f32 %v387, %v393
  %v409 = vmul.f32 %v388, %v393
  %v410 = vadd.f32 %v356, %v394
  %v411 = vadd.f32 %v357, %v395
  %v412 = vadd.f32 %v358, %v396
  %v413 = vadd.f32 %v359, %v397
  %v414 = vadd.f32 %v360, %v398
  %v415 = vadd.f32 %v361, %v399
  %v416 = vadd.f32 %v362, %v400
  %v417 = vadd.f32 %v363, %v401
  %v418 = vadd.f32 %v364, %v402
  %v419 = vadd.f32 %v365, %v403
  %v420 = vadd.f32 %v366, %v404
  %v421 = vadd.f32 %v367, %v405
  %v422 = vadd.f32 %v368, %v406
  %v423 = vadd.f32 %v369, %v407
  %v424 = vadd.f32 %v370, %v408
  %v425 = vadd.f32 %v371, %v409
  %s426 = scalar_lea.vmem %s0, 1024
  %v427 = vld [vmem:[%s426] sm:$0xff]
  %v428 = vld [vmem:[%s426 + $0x8] sm:$0xff]
  %v429 = vld [vmem:[%s426 + $0x10] sm:$0xff]
  %v430 = vld [vmem:[%s426 + $0x18] sm:$0xff]
  %v431 = vld [vmem:[%s426 + $0x20] sm:$0xff]
  %v432 = vld [vmem:[%s426 + $0x28] sm:$0xff]
  %v433 = vld [vmem:[%s426 + $0x30] sm:$0xff]
  %v434 = vld [vmem:[%s426 + $0x38] sm:$0xff]
  %v435 = vld [vmem:[%s426 + $0x40] sm:$0xff]
  %v436 = vld [vmem:[%s426 + $0x48] sm:$0xff]
  %v437 = vld [vmem:[%s426 + $0x50] sm:$0xff]
  %v438 = vld [vmem:[%s426 + $0x58] sm:$0xff]
  %v439 = vld [vmem:[%s426 + $0x60] sm:$0xff]
  %v440 = vld [vmem:[%s426 + $0x68] sm:$0xff]
  %v441 = vld [vmem:[%s426 + $0x70] sm:$0xff]
  %v442 = vld [vmem:[%s426 + $0x78] sm:$0xff]
  %v443 = vld [vmem:[%s1 + $0x8] sm:$0x1]
  %v444 = vlaneseq
  %v445 = vshrl.u32 %v444, 7
  %v446 = vsub.s32 0, %v445
  %v447 = vrot.slane %v443, %v446
  %v448 = vmul.f32 %v427, %v447
  %v449 = vmul.f32 %v428, %v447
  %v450 = vmul.f32 %v429, %v447
  %v451 = vmul.f32 %v430, %v447
  %v452 = vmul.f32 %v431, %v447
  %v453 = vmul.f32 %v432, %v447
  %v454 = vmul.f32 %v433, %v447
  %v455 = vmul.f32 %v434, %v447
  %v456 = vmul.f32 %v435, %v447
  %v457 = vmul.f32 %v436, %v447
  %v458 = vmul.f32 %v437, %v447
  %v459 = vmul.f32 %v438, %v447
  %v460 = vmul.f32 %v439, %v447
  %v461 = vmul.f32 %v440, %v447
  %v462 = vmul.f32 %v441, %v447
  %v463 = vmul.f32 %v442, %v447
  %v464 = vadd.f32 %v410, %v448
  %v465 = vadd.f32 %v411, %v449
  %v466 = vadd.f32 %v412, %v450
  %v467 = vadd.f32 %v413, %v451
  %v468 = vadd.f32 %v414, %v452
  %v469 = vadd.f32 %v415, %v453
  %v470 = vadd.f32 %v416, %v454
  %v471 = vadd.f32 %v417, %v455
  %v472 = vadd.f32 %v418, %v456
  %v473 = vadd.f32 %v419, %v457
  %v474 = vadd.f32 %v420, %v458
  %v475 = vadd.f32 %v421, %v459
  %v476 = vadd.f32 %v422, %v460
  %v477 = vadd.f32 %v423, %v461
  %v478 = vadd.f32 %v424, %v462
  %v479 = vadd.f32 %v425, %v463
  %480 = vst [vmem:[%s2] sm:$0xff] %v464
  %481 = vst [vmem:[%s2 + $0x8] sm:$0xff] %v465
  %482 = vst [vmem:[%s2 + $0x10] sm:$0xff] %v466
  %483 = vst [vmem:[%s2 + $0x18] sm:$0xff] %v467
  %484 = vst [vmem:[%s2 + $0x20] sm:$0xff] %v468
  %485 = vst [vmem:[%s2 + $0x28] sm:$0xff] %v469
  %486 = vst [vmem:[%s2 + $0x30] sm:$0xff] %v470
  %487 = vst [vmem:[%s2 + $0x38] sm:$0xff] %v471
  %488 = vst [vmem:[%s2 + $0x40] sm:$0xff] %v472
  %489 = vst [vmem:[%s2 + $0x48] sm:$0xff] %v473
  %490 = vst [vmem:[%s2 + $0x50] sm:$0xff] %v474
  %491 = vst [vmem:[%s2 + $0x58] sm:$0xff] %v475
  %492 = vst [vmem:[%s2 + $0x60] sm:$0xff] %v476
  %493 = vst [vmem:[%s2 + $0x68] sm:$0xff] %v477
  %494 = vst [vmem:[%s2 + $0x70] sm:$0xff] %v478
  %495 = vst [vmem:[%s2 + $0x78] sm:$0xff] %v479
  // Predicated region
  $region10: #{_forward_impl.276} parent=0 // pred_check
    _
  $region11: #{_forward_impl.276} parent=0 // pred_check_branch
    %497 = sbr.rel (0) target = $region13
  $region12: #{_forward_impl.276} parent=0 // pred_region
    _
  $region13: #{_forward_impl.276} parent=0 // pred_fallthru
    _
  // Predicated region
  $region14: #{_forward_impl.276} parent=0 // pred_check
    _
  $region15: #{_forward_impl.276} parent=0 // pred_check_branch
    %499 = sbr.rel (0) target = $region17
  $region16: #{_forward_impl.276} parent=0 // pred_region
    _
  $region17: #{_forward_impl.276} parent=0 // pred_fallthru
    _

// kernel: _forward_impl.286
$region0: #{_forward_impl.286}
  #allocation0 [shape = 'u32[]', space=smem, size = 0x4, offset = 0x4, fixed_abs, tag = 'smem constant byte address 0x4 - core index']
  #allocation1 [shape = 'u32[144,128]{1,0:T(1,128)}', space=vmem, size = 0x12000, scoped, tag = 'internal scratch']
  %s0 = inlined_call_operand.vmem [shape: f32[25,128,128], index: 0, kind: input, shape index: {}]
  %s1 = inlined_call_operand.vmem [shape: f32[25,128], index: 1, kind: input, shape index: {}]
  %s2 = inlined_call_operand.vmem [shape: f32[128,128], index: 2, kind: output, shape index: {}]
  %s3 = sld [smem:[#allocation0]]
  $region18: #{_forward_impl.286} parent=0
    _
  %s5 = ssub.s32 1, %s3
  %s6 = scalar_select 0, %s5, %s3
  // Predicated region
  $region2: #{_forward_impl.286} parent=0 // pred_check
    _
  $region3: #{_forward_impl.286} parent=0 // pred_check_branch
    %8 = sbr.rel (0) target = $region5
  $region4: #{_forward_impl.286} parent=0 // pred_region
    _
  $region5: #{_forward_impl.286} parent=0 // pred_fallthru
    _
  // Predicated region
  $region6: #{_forward_impl.286} parent=0 // pred_check
    _
  $region7: #{_forward_impl.286} parent=0 // pred_check_branch
    %10 = sbr.rel (0) target = $region9
  $region8: #{_forward_impl.286} parent=0 // pred_region
    _
  $region9: #{_forward_impl.286} parent=0 // pred_fallthru
    _
  %v11 = vld [vmem:[%s0] sm:$0xff]
  %v12 = vld [vmem:[%s0 + $0x8] sm:$0xff]
  %v13 = vld [vmem:[%s0 + $0x10] sm:$0xff]
  %v14 = vld [vmem:[%s0 + $0x18] sm:$0xff]
  %v15 = vld [vmem:[%s0 + $0x20] sm:$0xff]
  %v16 = vld [vmem:[%s0 + $0x28] sm:$0xff]
  %v17 = vld [vmem:[%s0 + $0x30] sm:$0xff]
  %v18 = vld [vmem:[%s0 + $0x38] sm:$0xff]
  %v19 = vld [vmem:[%s0 + $0x40] sm:$0xff]
  %v20 = vld [vmem:[%s0 + $0x48] sm:$0xff]
  %v21 = vld [vmem:[%s0 + $0x50] sm:$0xff]
  %v22 = vld [vmem:[%s0 + $0x58] sm:$0xff]
  %v23 = vld [vmem:[%s0 + $0x60] sm:$0xff]
  %v24 = vld [vmem:[%s0 + $0x68] sm:$0xff]
  %v25 = vld [vmem:[%s0 + $0x70] sm:$0xff]
  %v26 = vld [vmem:[%s0 + $0x78] sm:$0xff]
  %v27 = vld [vmem:[%s1] sm:$0x1]
  %v28 = vlaneseq
  %v29 = vshrl.u32 %v28, 7
  %v30 = vsub.s32 0, %v29
  %v31 = vrot.slane %v27, %v30
  %v32 = vmul.f32 %v11, %v31
  %v33 = vmul.f32 %v12, %v31
  %v34 = vmul.f32 %v13, %v31
  %v35 = vmul.f32 %v14, %v31
  %v36 = vmul.f32 %v15, %v31
  %v37 = vmul.f32 %v16, %v31
  %v38 = vmul.f32 %v17, %v31
  %v39 = vmul.f32 %v18, %v31
  %v40 = vmul.f32 %v19, %v31
  %v41 = vmul.f32 %v20, %v31
  %v42 = vmul.f32 %v21, %v31
  %v43 = vmul.f32 %v22, %v31
  %v44 = vmul.f32 %v23, %v31
  %v45 = vmul.f32 %v24, %v31
  %v46 = vmul.f32 %v25, %v31
  %v47 = vmul.f32 %v26, %v31
  %s48 = scalar_lea.vmem %s0, 128
  %v49 = vld [vmem:[%s48] sm:$0xff]
  %v50 = vld [vmem:[%s48 + $0x8] sm:$0xff]
  %v51 = vld [vmem:[%s48 + $0x10] sm:$0xff]
  %v52 = vld [vmem:[%s48 + $0x18] sm:$0xff]
  %v53 = vld [vmem:[%s48 + $0x20] sm:$0xff]
  %v54 = vld [vmem:[%s48 + $0x28] sm:$0xff]
  %v55 = vld [vmem:[%s48 + $0x30] sm:$0xff]
  %v56 = vld [vmem:[%s48 + $0x38] sm:$0xff]
  %v57 = vld [vmem:[%s48 + $0x40] sm:$0xff]
  %v58 = vld [vmem:[%s48 + $0x48] sm:$0xff]
  %v59 = vld [vmem:[%s48 + $0x50] sm:$0xff]
  %v60 = vld [vmem:[%s48 + $0x58] sm:$0xff]
  %v61 = vld [vmem:[%s48 + $0x60] sm:$0xff]
  %v62 = vld [vmem:[%s48 + $0x68] sm:$0xff]
  %v63 = vld [vmem:[%s48 + $0x70] sm:$0xff]
  %v64 = vld [vmem:[%s48 + $0x78] sm:$0xff]
  %v65 = vld [vmem:[%s1 + $0x1] sm:$0x1]
  %v66 = vlaneseq
  %v67 = vshrl.u32 %v66, 7
  %v68 = vsub.s32 0, %v67
  %v69 = vrot.slane %v65, %v68
  %v70 = vmul.f32 %v49, %v69
  %v71 = vmul.f32 %v50, %v69
  %v72 = vmul.f32 %v51, %v69
  %v73 = vmul.f32 %v52, %v69
  %v74 = vmul.f32 %v53, %v69
  %v75 = vmul.f32 %v54, %v69
  %v76 = vmul.f32 %v55, %v69
  %v77 = vmul.f32 %v56, %v69
  %v78 = vmul.f32 %v57, %v69
  %v79 = vmul.f32 %v58, %v69
  %v80 = vmul.f32 %v59, %v69
  %v81 = vmul.f32 %v60, %v69
  %v82 = vmul.f32 %v61, %v69
  %v83 = vmul.f32 %v62, %v69
  %v84 = vmul.f32 %v63, %v69
  %v85 = vmul.f32 %v64, %v69
  %v86 = vadd.f32 %v32, %v70
  %v87 = vadd.f32 %v33, %v71
  %v88 = vadd.f32 %v34, %v72
  %v89 = vadd.f32 %v35, %v73
  %v90 = vadd.f32 %v36, %v74
  %v91 = vadd.f32 %v37, %v75
  %v92 = vadd.f32 %v38, %v76
  %v93 = vadd.f32 %v39, %v77
  %v94 = vadd.f32 %v40, %v78
  %v95 = vadd.f32 %v41, %v79
  %v96 = vadd.f32 %v42, %v80
  %v97 = vadd.f32 %v43, %v81
  %v98 = vadd.f32 %v44, %v82
  %v99 = vadd.f32 %v45, %v83
  %v100 = vadd.f32 %v46, %v84
  %v101 = vadd.f32 %v47, %v85
  %s102 = scalar_lea.vmem %s0, 256
  %v103 = vld [vmem:[%s102] sm:$0xff]
  %v104 = vld [vmem:[%s102 + $0x8] sm:$0xff]
  %v105 = vld [vmem:[%s102 + $0x10] sm:$0xff]
  %v106 = vld [vmem:[%s102 + $0x18] sm:$0xff]
  %v107 = vld [vmem:[%s102 + $0x20] sm:$0xff]
  %v108 = vld [vmem:[%s102 + $0x28] sm:$0xff]
  %v109 = vld [vmem:[%s102 + $0x30] sm:$0xff]
  %v110 = vld [vmem:[%s102 + $0x38] sm:$0xff]
  %v111 = vld [vmem:[%s102 + $0x40] sm:$0xff]
  %v112 = vld [vmem:[%s102 + $0x48] sm:$0xff]
  %v113 = vld [vmem:[%s102 + $0x50] sm:$0xff]
  %v114 = vld [vmem:[%s102 + $0x58] sm:$0xff]
  %v115 = vld [vmem:[%s102 + $0x60] sm:$0xff]
  %v116 = vld [vmem:[%s102 + $0x68] sm:$0xff]
  %v117 = vld [vmem:[%s102 + $0x70] sm:$0xff]
  %v118 = vld [vmem:[%s102 + $0x78] sm:$0xff]
  %v119 = vld [vmem:[%s1 + $0x2] sm:$0x1]
  %v120 = vlaneseq
  %v121 = vshrl.u32 %v120, 7
  %v122 = vsub.s32 0, %v121
  %v123 = vrot.slane %v119, %v122
  %v124 = vmul.f32 %v103, %v123
  %v125 = vmul.f32 %v104, %v123
  %v126 = vmul.f32 %v105, %v123
  %v127 = vmul.f32 %v106, %v123
  %v128 = vmul.f32 %v107, %v123
  %v129 = vmul.f32 %v108, %v123
  %v130 = vmul.f32 %v109, %v123
  %v131 = vmul.f32 %v110, %v123
  %v132 = vmul.f32 %v111, %v123
  %v133 = vmul.f32 %v112, %v123
  %v134 = vmul.f32 %v113, %v123
  %v135 = vmul.f32 %v114, %v123
  %v136 = vmul.f32 %v115, %v123
  %v137 = vmul.f32 %v116, %v123
  %v138 = vmul.f32 %v117, %v123
  %v139 = vmul.f32 %v118, %v123
  %v140 = vadd.f32 %v86, %v124
  %v141 = vadd.f32 %v87, %v125
  %v142 = vadd.f32 %v88, %v126
  %v143 = vadd.f32 %v89, %v127
  %v144 = vadd.f32 %v90, %v128
  %v145 = vadd.f32 %v91, %v129
  %v146 = vadd.f32 %v92, %v130
  %v147 = vadd.f32 %v93, %v131
  %v148 = vadd.f32 %v94, %v132
  %v149 = vadd.f32 %v95, %v133
  %v150 = vadd.f32 %v96, %v134
  %v151 = vadd.f32 %v97, %v135
  %v152 = vadd.f32 %v98, %v136
  %v153 = vadd.f32 %v99, %v137
  %v154 = vadd.f32 %v100, %v138
  %v155 = vadd.f32 %v101, %v139
  %s156 = scalar_lea.vmem %s0, 384
  %v157 = vld [vmem:[%s156] sm:$0xff]
  %v158 = vld [vmem:[%s156 + $0x8] sm:$0xff]
  %v159 = vld [vmem:[%s156 + $0x10] sm:$0xff]
  %v160 = vld [vmem:[%s156 + $0x18] sm:$0xff]
  %v161 = vld [vmem:[%s156 + $0x20] sm:$0xff]
  %v162 = vld [vmem:[%s156 + $0x28] sm:$0xff]
  %v163 = vld [vmem:[%s156 + $0x30] sm:$0xff]
  %v164 = vld [vmem:[%s156 + $0x38] sm:$0xff]
  %v165 = vld [vmem:[%s156 + $0x40] sm:$0xff]
  %v166 = vld [vmem:[%s156 + $0x48] sm:$0xff]
  %v167 = vld [vmem:[%s156 + $0x50] sm:$0xff]
  %v168 = vld [vmem:[%s156 + $0x58] sm:$0xff]
  %v169 = vld [vmem:[%s156 + $0x60] sm:$0xff]
  %v170 = vld [vmem:[%s156 + $0x68] sm:$0xff]
  %v171 = vld [vmem:[%s156 + $0x70] sm:$0xff]
  %v172 = vld [vmem:[%s156 + $0x78] sm:$0xff]
  %v173 = vld [vmem:[%s1 + $0x3] sm:$0x1]
  %v174 = vlaneseq
  %v175 = vshrl.u32 %v174, 7
  %v176 = vsub.s32 0, %v175
  %v177 = vrot.slane %v173, %v176
  %v178 = vmul.f32 %v157, %v177
  %v179 = vmul.f32 %v158, %v177
  %v180 = vmul.f32 %v159, %v177
  %v181 = vmul.f32 %v160, %v177
  %v182 = vmul.f32 %v161, %v177
  %v183 = vmul.f32 %v162, %v177
  %v184 = vmul.f32 %v163, %v177
  %v185 = vmul.f32 %v164, %v177
  %v186 = vmul.f32 %v165, %v177
  %v187 = vmul.f32 %v166, %v177
  %v188 = vmul.f32 %v167, %v177
  %v189 = vmul.f32 %v168, %v177
  %v190 = vmul.f32 %v169, %v177
  %v191 = vmul.f32 %v170, %v177
  %v192 = vmul.f32 %v171, %v177
  %v193 = vmul.f32 %v172, %v177
  %v194 = vadd.f32 %v140, %v178
  %v195 = vadd.f32 %v141, %v179
  %v196 = vadd.f32 %v142, %v180
  %v197 = vadd.f32 %v143, %v181
  %v198 = vadd.f32 %v144, %v182
  %v199 = vadd.f32 %v145, %v183
  %v200 = vadd.f32 %v146, %v184
  %v201 = vadd.f32 %v147, %v185
  %v202 = vadd.f32 %v148, %v186
  %v203 = vadd.f32 %v149, %v187
  %v204 = vadd.f32 %v150, %v188
  %v205 = vadd.f32 %v151, %v189
  %v206 = vadd.f32 %v152, %v190
  %v207 = vadd.f32 %v153, %v191
  %v208 = vadd.f32 %v154, %v192
  %v209 = vadd.f32 %v155, %v193
  %s210 = scalar_lea.vmem %s0, 512
  %v211 = vld [vmem:[%s210] sm:$0xff]
  %v212 = vld [vmem:[%s210 + $0x8] sm:$0xff]
  %v213 = vld [vmem:[%s210 + $0x10] sm:$0xff]
  %v214 = vld [vmem:[%s210 + $0x18] sm:$0xff]
  %v215 = vld [vmem:[%s210 + $0x20] sm:$0xff]
  %v216 = vld [vmem:[%s210 + $0x28] sm:$0xff]
  %v217 = vld [vmem:[%s210 + $0x30] sm:$0xff]
  %v218 = vld [vmem:[%s210 + $0x38] sm:$0xff]
  %v219 = vld [vmem:[%s210 + $0x40] sm:$0xff]
  %v220 = vld [vmem:[%s210 + $0x48] sm:$0xff]
  %v221 = vld [vmem:[%s210 + $0x50] sm:$0xff]
  %v222 = vld [vmem:[%s210 + $0x58] sm:$0xff]
  %v223 = vld [vmem:[%s210 + $0x60] sm:$0xff]
  %v224 = vld [vmem:[%s210 + $0x68] sm:$0xff]
  %v225 = vld [vmem:[%s210 + $0x70] sm:$0xff]
  %v226 = vld [vmem:[%s210 + $0x78] sm:$0xff]
  %v227 = vld [vmem:[%s1 + $0x4] sm:$0x1]
  %v228 = vlaneseq
  %v229 = vshrl.u32 %v228, 7
  %v230 = vsub.s32 0, %v229
  %v231 = vrot.slane %v227, %v230
  %v232 = vmul.f32 %v211, %v231
  %v233 = vmul.f32 %v212, %v231
  %v234 = vmul.f32 %v213, %v231
  %v235 = vmul.f32 %v214, %v231
  %v236 = vmul.f32 %v215, %v231
  %v237 = vmul.f32 %v216, %v231
  %v238 = vmul.f32 %v217, %v231
  %v239 = vmul.f32 %v218, %v231
  %v240 = vmul.f32 %v219, %v231
  %v241 = vmul.f32 %v220, %v231
  %v242 = vmul.f32 %v221, %v231
  %v243 = vmul.f32 %v222, %v231
  %v244 = vmul.f32 %v223, %v231
  %v245 = vmul.f32 %v224, %v231
  %v246 = vmul.f32 %v225, %v231
  %v247 = vmul.f32 %v226, %v231
  %v248 = vadd.f32 %v194, %v232
  %v249 = vadd.f32 %v195, %v233
  %v250 = vadd.f32 %v196, %v234
  %v251 = vadd.f32 %v197, %v235
  %v252 = vadd.f32 %v198, %v236
  %v253 = vadd.f32 %v199, %v237
  %v254 = vadd.f32 %v200, %v238
  %v255 = vadd.f32 %v201, %v239
  %v256 = vadd.f32 %v202, %v240
  %v257 = vadd.f32 %v203, %v241
  %v258 = vadd.f32 %v204, %v242
  %v259 = vadd.f32 %v205, %v243
  %v260 = vadd.f32 %v206, %v244
  %v261 = vadd.f32 %v207, %v245
  %v262 = vadd.f32 %v208, %v246
  %v263 = vadd.f32 %v209, %v247
  %s264 = scalar_lea.vmem %s0, 640
  %v265 = vld [vmem:[%s264] sm:$0xff]
  %v266 = vld [vmem:[%s264 + $0x8] sm:$0xff]
  %v267 = vld [vmem:[%s264 + $0x10] sm:$0xff]
  %v268 = vld [vmem:[%s264 + $0x18] sm:$0xff]
  %v269 = vld [vmem:[%s264 + $0x20] sm:$0xff]
  %v270 = vld [vmem:[%s264 + $0x28] sm:$0xff]
  %v271 = vld [vmem:[%s264 + $0x30] sm:$0xff]
  %v272 = vld [vmem:[%s264 + $0x38] sm:$0xff]
  %v273 = vld [vmem:[%s264 + $0x40] sm:$0xff]
  %v274 = vld [vmem:[%s264 + $0x48] sm:$0xff]
  %v275 = vld [vmem:[%s264 + $0x50] sm:$0xff]
  %v276 = vld [vmem:[%s264 + $0x58] sm:$0xff]
  %v277 = vld [vmem:[%s264 + $0x60] sm:$0xff]
  %v278 = vld [vmem:[%s264 + $0x68] sm:$0xff]
  %v279 = vld [vmem:[%s264 + $0x70] sm:$0xff]
  %v280 = vld [vmem:[%s264 + $0x78] sm:$0xff]
  %v281 = vld [vmem:[%s1 + $0x5] sm:$0x1]
  %v282 = vlaneseq
  %v283 = vshrl.u32 %v282, 7
  %v284 = vsub.s32 0, %v283
  %v285 = vrot.slane %v281, %v284
  %v286 = vmul.f32 %v265, %v285
  %v287 = vmul.f32 %v266, %v285
  %v288 = vmul.f32 %v267, %v285
  %v289 = vmul.f32 %v268, %v285
  %v290 = vmul.f32 %v269, %v285
  %v291 = vmul.f32 %v270, %v285
  %v292 = vmul.f32 %v271, %v285
  %v293 = vmul.f32 %v272, %v285
  %v294 = vmul.f32 %v273, %v285
  %v295 = vmul.f32 %v274, %v285
  %v296 = vmul.f32 %v275, %v285
  %v297 = vmul.f32 %v276, %v285
  %v298 = vmul.f32 %v277, %v285
  %v299 = vmul.f32 %v278, %v285
  %v300 = vmul.f32 %v279, %v285
  %v301 = vmul.f32 %v280, %v285
  %v302 = vadd.f32 %v248, %v286
  %v303 = vadd.f32 %v249, %v287
  %v304 = vadd.f32 %v250, %v288
  %v305 = vadd.f32 %v251, %v289
  %v306 = vadd.f32 %v252, %v290
  %v307 = vadd.f32 %v253, %v291
  %v308 = vadd.f32 %v254, %v292
  %v309 = vadd.f32 %v255, %v293
  %v310 = vadd.f32 %v256, %v294
  %v311 = vadd.f32 %v257, %v295
  %v312 = vadd.f32 %v258, %v296
  %v313 = vadd.f32 %v259, %v297
  %v314 = vadd.f32 %v260, %v298
  %v315 = vadd.f32 %v261, %v299
  %v316 = vadd.f32 %v262, %v300
  %v317 = vadd.f32 %v263, %v301
  %s318 = scalar_lea.vmem %s0, 768
  %v319 = vld [vmem:[%s318] sm:$0xff]
  %v320 = vld [vmem:[%s318 + $0x8] sm:$0xff]
  %v321 = vld [vmem:[%s318 + $0x10] sm:$0xff]
  %v322 = vld [vmem:[%s318 + $0x18] sm:$0xff]
  %v323 = vld [vmem:[%s318 + $0x20] sm:$0xff]
  %v324 = vld [vmem:[%s318 + $0x28] sm:$0xff]
  %v325 = vld [vmem:[%s318 + $0x30] sm:$0xff]
  %v326 = vld [vmem:[%s318 + $0x38] sm:$0xff]
  %v327 = vld [vmem:[%s318 + $0x40] sm:$0xff]
  %v328 = vld [vmem:[%s318 + $0x48] sm:$0xff]
  %v329 = vld [vmem:[%s318 + $0x50] sm:$0xff]
  %v330 = vld [vmem:[%s318 + $0x58] sm:$0xff]
  %v331 = vld [vmem:[%s318 + $0x60] sm:$0xff]
  %v332 = vld [vmem:[%s318 + $0x68] sm:$0xff]
  %v333 = vld [vmem:[%s318 + $0x70] sm:$0xff]
  %v334 = vld [vmem:[%s318 + $0x78] sm:$0xff]
  %v335 = vld [vmem:[%s1 + $0x6] sm:$0x1]
  %v336 = vlaneseq
  %v337 = vshrl.u32 %v336, 7
  %v338 = vsub.s32 0, %v337
  %v339 = vrot.slane %v335, %v338
  %v340 = vmul.f32 %v319, %v339
  %v341 = vmul.f32 %v320, %v339
  %v342 = vmul.f32 %v321, %v339
  %v343 = vmul.f32 %v322, %v339
  %v344 = vmul.f32 %v323, %v339
  %v345 = vmul.f32 %v324, %v339
  %v346 = vmul.f32 %v325, %v339
  %v347 = vmul.f32 %v326, %v339
  %v348 = vmul.f32 %v327, %v339
  %v349 = vmul.f32 %v328, %v339
  %v350 = vmul.f32 %v329, %v339
  %v351 = vmul.f32 %v330, %v339
  %v352 = vmul.f32 %v331, %v339
  %v353 = vmul.f32 %v332, %v339
  %v354 = vmul.f32 %v333, %v339
  %v355 = vmul.f32 %v334, %v339
  %v356 = vadd.f32 %v302, %v340
  %v357 = vadd.f32 %v303, %v341
  %v358 = vadd.f32 %v304, %v342
  %v359 = vadd.f32 %v305, %v343
  %v360 = vadd.f32 %v306, %v344
  %v361 = vadd.f32 %v307, %v345
  %v362 = vadd.f32 %v308, %v346
  %v363 = vadd.f32 %v309, %v347
  %v364 = vadd.f32 %v310, %v348
  %v365 = vadd.f32 %v311, %v349
  %v366 = vadd.f32 %v312, %v350
  %v367 = vadd.f32 %v313, %v351
  %v368 = vadd.f32 %v314, %v352
  %v369 = vadd.f32 %v315, %v353
  %v370 = vadd.f32 %v316, %v354
  %v371 = vadd.f32 %v317, %v355
  %s372 = scalar_lea.vmem %s0, 896
  %v373 = vld [vmem:[%s372] sm:$0xff]
  %v374 = vld [vmem:[%s372 + $0x8] sm:$0xff]
  %v375 = vld [vmem:[%s372 + $0x10] sm:$0xff]
  %v376 = vld [vmem:[%s372 + $0x18] sm:$0xff]
  %v377 = vld [vmem:[%s372 + $0x20] sm:$0xff]
  %v378 = vld [vmem:[%s372 + $0x28] sm:$0xff]
  %v379 = vld [vmem:[%s372 + $0x30] sm:$0xff]
  %v380 = vld [vmem:[%s372 + $0x38] sm:$0xff]
  %v381 = vld [vmem:[%s372 + $0x40] sm:$0xff]
  %v382 = vld [vmem:[%s372 + $0x48] sm:$0xff]
  %v383 = vld [vmem:[%s372 + $0x50] sm:$0xff]
  %v384 = vld [vmem:[%s372 + $0x58] sm:$0xff]
  %v385 = vld [vmem:[%s372 + $0x60] sm:$0xff]
  %v386 = vld [vmem:[%s372 + $0x68] sm:$0xff]
  %v387 = vld [vmem:[%s372 + $0x70] sm:$0xff]
  %v388 = vld [vmem:[%s372 + $0x78] sm:$0xff]
  %v389 = vld [vmem:[%s1 + $0x7] sm:$0x1]
  %v390 = vlaneseq
  %v391 = vshrl.u32 %v390, 7
  %v392 = vsub.s32 0, %v391
  %v393 = vrot.slane %v389, %v392
  %v394 = vmul.f32 %v373, %v393
  %v395 = vmul.f32 %v374, %v393
  %v396 = vmul.f32 %v375, %v393
  %v397 = vmul.f32 %v376, %v393
  %v398 = vmul.f32 %v377, %v393
  %v399 = vmul.f32 %v378, %v393
  %v400 = vmul.f32 %v379, %v393
  %v401 = vmul.f32 %v380, %v393
  %v402 = vmul.f32 %v381, %v393
  %v403 = vmul.f32 %v382, %v393
  %v404 = vmul.f32 %v383, %v393
  %v405 = vmul.f32 %v384, %v393
  %v406 = vmul.f32 %v385, %v393
  %v407 = vmul.f32 %v386, %v393
  %v408 = vmul.f32 %v387, %v393
  %v409 = vmul.f32 %v388, %v393
  %v410 = vadd.f32 %v356, %v394
  %v411 = vadd.f32 %v357, %v395
  %v412 = vadd.f32 %v358, %v396
  %v413 = vadd.f32 %v359, %v397
  %v414 = vadd.f32 %v360, %v398
  %v415 = vadd.f32 %v361, %v399
  %v416 = vadd.f32 %v362, %v400
  %v417 = vadd.f32 %v363, %v401
  %v418 = vadd.f32 %v364, %v402
  %v419 = vadd.f32 %v365, %v403
  %v420 = vadd.f32 %v366, %v404
  %v421 = vadd.f32 %v367, %v405
  %v422 = vadd.f32 %v368, %v406
  %v423 = vadd.f32 %v369, %v407
  %v424 = vadd.f32 %v370, %v408
  %v425 = vadd.f32 %v371, %v409
  %s426 = scalar_lea.vmem %s0, 1024
  %v427 = vld [vmem:[%s426] sm:$0xff]
  %v428 = vld [vmem:[%s426 + $0x8] sm:$0xff]
  %v429 = vld [vmem:[%s426 + $0x10] sm:$0xff]
  %v430 = vld [vmem:[%s426 + $0x18] sm:$0xff]
  %v431 = vld [vmem:[%s426 + $0x20] sm:$0xff]
  %v432 = vld [vmem:[%s426 + $0x28] sm:$0xff]
  %v433 = vld [vmem:[%s426 + $0x30] sm:$0xff]
  %v434 = vld [vmem:[%s426 + $0x38] sm:$0xff]
  %v435 = vld [vmem:[%s426 + $0x40] sm:$0xff]
  %v436 = vld [vmem:[%s426 + $0x48] sm:$0xff]
  %v437 = vld [vmem:[%s426 + $0x50] sm:$0xff]
  %v438 = vld [vmem:[%s426 + $0x58] sm:$0xff]
  %v439 = vld [vmem:[%s426 + $0x60] sm:$0xff]
  %v440 = vld [vmem:[%s426 + $0x68] sm:$0xff]
  %v441 = vld [vmem:[%s426 + $0x70] sm:$0xff]
  %v442 = vld [vmem:[%s426 + $0x78] sm:$0xff]
  %v443 = vld [vmem:[%s1 + $0x8] sm:$0x1]
  %v444 = vlaneseq
  %v445 = vshrl.u32 %v444, 7
  %v446 = vsub.s32 0, %v445
  %v447 = vrot.slane %v443, %v446
  %v448 = vmul.f32 %v427, %v447
  %v449 = vmul.f32 %v428, %v447
  %v450 = vmul.f32 %v429, %v447
  %v451 = vmul.f32 %v430, %v447
  %v452 = vmul.f32 %v431, %v447
  %v453 = vmul.f32 %v432, %v447
  %v454 = vmul.f32 %v433, %v447
  %v455 = vmul.f32 %v434, %v447
  %v456 = vmul.f32 %v435, %v447
  %v457 = vmul.f32 %v436, %v447
  %v458 = vmul.f32 %v437, %v447
  %v459 = vmul.f32 %v438, %v447
  %v460 = vmul.f32 %v439, %v447
  %v461 = vmul.f32 %v440, %v447
  %v462 = vmul.f32 %v441, %v447
  %v463 = vmul.f32 %v442, %v447
  %v464 = vadd.f32 %v410, %v448
  %v465 = vadd.f32 %v411, %v449
  %v466 = vadd.f32 %v412, %v450
  %v467 = vadd.f32 %v413, %v451
  %v468 = vadd.f32 %v414, %v452
  %v469 = vadd.f32 %v415, %v453
  %v470 = vadd.f32 %v416, %v454
  %v471 = vadd.f32 %v417, %v455
  %v472 = vadd.f32 %v418, %v456
  %v473 = vadd.f32 %v419, %v457
  %v474 = vadd.f32 %v420, %v458
  %v475 = vadd.f32 %v421, %v459
  %v476 = vadd.f32 %v422, %v460
  %v477 = vadd.f32 %v423, %v461
  %v478 = vadd.f32 %v424, %v462
  %v479 = vadd.f32 %v425, %v463
  %s480 = scalar_lea.vmem %s0, 1152
  %v481 = vld [vmem:[%s480] sm:$0xff]
  %v482 = vld [vmem:[%s480 + $0x8] sm:$0xff]
  %v483 = vld [vmem:[%s480 + $0x10] sm:$0xff]
  %v484 = vld [vmem:[%s480 + $0x18] sm:$0xff]
  %v485 = vld [vmem:[%s480 + $0x20] sm:$0xff]
  %v486 = vld [vmem:[%s480 + $0x28] sm:$0xff]
  %v487 = vld [vmem:[%s480 + $0x30] sm:$0xff]
  %v488 = vld [vmem:[%s480 + $0x38] sm:$0xff]
  %v489 = vld [vmem:[%s480 + $0x40] sm:$0xff]
  %v490 = vld [vmem:[%s480 + $0x48] sm:$0xff]
  %v491 = vld [vmem:[%s480 + $0x50] sm:$0xff]
  %v492 = vld [vmem:[%s480 + $0x58] sm:$0xff]
  %v493 = vld [vmem:[%s480 + $0x60] sm:$0xff]
  %v494 = vld [vmem:[%s480 + $0x68] sm:$0xff]
  %v495 = vld [vmem:[%s480 + $0x70] sm:$0xff]
  %v496 = vld [vmem:[%s480 + $0x78] sm:$0xff]
  %v497 = vld [vmem:[%s1 + $0x9] sm:$0x1]
  %v498 = vlaneseq
  %v499 = vshrl.u32 %v498, 7
  %v500 = vsub.s32 0, %v499
  %v501 = vrot.slane %v497, %v500
  %v502 = vmul.f32 %v481, %v501
  %v503 = vmul.f32 %v482, %v501
  %v504 = vmul.f32 %v483, %v501
  %v505 = vmul.f32 %v484, %v501
  %v506 = vmul.f32 %v485, %v501
  %v507 = vmul.f32 %v486, %v501
  %v508 = vmul.f32 %v487, %v501
  %v509 = vmul.f32 %v488, %v501
  %v510 = vmul.f32 %v489, %v501
  %v511 = vmul.f32 %v490, %v501
  %v512 = vmul.f32 %v491, %v501
  %v513 = vmul.f32 %v492, %v501
  %v514 = vmul.f32 %v493, %v501
  %v515 = vmul.f32 %v494, %v501
  %v516 = vmul.f32 %v495, %v501
  %v517 = vmul.f32 %v496, %v501
  %v518 = vadd.f32 %v464, %v502
  %v519 = vadd.f32 %v465, %v503
  %v520 = vadd.f32 %v466, %v504
  %v521 = vadd.f32 %v467, %v505
  %v522 = vadd.f32 %v468, %v506
  %v523 = vadd.f32 %v469, %v507
  %v524 = vadd.f32 %v470, %v508
  %v525 = vadd.f32 %v471, %v509
  %v526 = vadd.f32 %v472, %v510
  %v527 = vadd.f32 %v473, %v511
  %v528 = vadd.f32 %v474, %v512
  %v529 = vadd.f32 %v475, %v513
  %v530 = vadd.f32 %v476, %v514
  %v531 = vadd.f32 %v477, %v515
  %v532 = vadd.f32 %v478, %v516
  %v533 = vadd.f32 %v479, %v517
  %s534 = scalar_lea.vmem %s0, 1280
  %v535 = vld [vmem:[%s534] sm:$0xff]
  %v536 = vld [vmem:[%s534 + $0x8] sm:$0xff]
  %v537 = vld [vmem:[%s534 + $0x10] sm:$0xff]
  %v538 = vld [vmem:[%s534 + $0x18] sm:$0xff]
  %v539 = vld [vmem:[%s534 + $0x20] sm:$0xff]
  %v540 = vld [vmem:[%s534 + $0x28] sm:$0xff]
  %v541 = vld [vmem:[%s534 + $0x30] sm:$0xff]
  %v542 = vld [vmem:[%s534 + $0x38] sm:$0xff]
  %v543 = vld [vmem:[%s534 + $0x40] sm:$0xff]
  %v544 = vld [vmem:[%s534 + $0x48] sm:$0xff]
  %v545 = vld [vmem:[%s534 + $0x50] sm:$0xff]
  %v546 = vld [vmem:[%s534 + $0x58] sm:$0xff]
  %v547 = vld [vmem:[%s534 + $0x60] sm:$0xff]
  %v548 = vld [vmem:[%s534 + $0x68] sm:$0xff]
  %v549 = vld [vmem:[%s534 + $0x70] sm:$0xff]
  %v550 = vld [vmem:[%s534 + $0x78] sm:$0xff]
  %v551 = vld [vmem:[%s1 + $0xa] sm:$0x1]
  %v552 = vlaneseq
  %v553 = vshrl.u32 %v552, 7
  %v554 = vsub.s32 0, %v553
  %v555 = vrot.slane %v551, %v554
  %v556 = vmul.f32 %v535, %v555
  %v557 = vmul.f32 %v536, %v555
  %v558 = vmul.f32 %v537, %v555
  %v559 = vmul.f32 %v538, %v555
  %v560 = vmul.f32 %v539, %v555
  %v561 = vmul.f32 %v540, %v555
  %v562 = vmul.f32 %v541, %v555
  %v563 = vmul.f32 %v542, %v555
  %v564 = vmul.f32 %v543, %v555
  %v565 = vmul.f32 %v544, %v555
  %v566 = vmul.f32 %v545, %v555
  %v567 = vmul.f32 %v546, %v555
  %v568 = vmul.f32 %v547, %v555
  %v569 = vmul.f32 %v548, %v555
  %v570 = vmul.f32 %v549, %v555
  %v571 = vmul.f32 %v550, %v555
  %v572 = vadd.f32 %v518, %v556
  %v573 = vadd.f32 %v519, %v557
  %v574 = vadd.f32 %v520, %v558
  %v575 = vadd.f32 %v521, %v559
  %v576 = vadd.f32 %v522, %v560
  %v577 = vadd.f32 %v523, %v561
  %v578 = vadd.f32 %v524, %v562
  %v579 = vadd.f32 %v525, %v563
  %v580 = vadd.f32 %v526, %v564
  %v581 = vadd.f32 %v527, %v565
  %v582 = vadd.f32 %v528, %v566
  %v583 = vadd.f32 %v529, %v567
  %v584 = vadd.f32 %v530, %v568
  %v585 = vadd.f32 %v531, %v569
  %v586 = vadd.f32 %v532, %v570
  %v587 = vadd.f32 %v533, %v571
  %s588 = scalar_lea.vmem %s0, 1408
  %v589 = vld [vmem:[%s588] sm:$0xff]
  %v590 = vld [vmem:[%s588 + $0x8] sm:$0xff]
  %v591 = vld [vmem:[%s588 + $0x10] sm:$0xff]
  %v592 = vld [vmem:[%s588 + $0x18] sm:$0xff]
  %v593 = vld [vmem:[%s588 + $0x20] sm:$0xff]
  %v594 = vld [vmem:[%s588 + $0x28] sm:$0xff]
  %v595 = vld [vmem:[%s588 + $0x30] sm:$0xff]
  %v596 = vld [vmem:[%s588 + $0x38] sm:$0xff]
  %v597 = vld [vmem:[%s588 + $0x40] sm:$0xff]
  %v598 = vld [vmem:[%s588 + $0x48] sm:$0xff]
  %v599 = vld [vmem:[%s588 + $0x50] sm:$0xff]
  %v600 = vld [vmem:[%s588 + $0x58] sm:$0xff]
  %v601 = vld [vmem:[%s588 + $0x60] sm:$0xff]
  %v602 = vld [vmem:[%s588 + $0x68] sm:$0xff]
  %v603 = vld [vmem:[%s588 + $0x70] sm:$0xff]
  %v604 = vld [vmem:[%s588 + $0x78] sm:$0xff]
  %v605 = vld [vmem:[%s1 + $0xb] sm:$0x1]
  %v606 = vlaneseq
  %v607 = vshrl.u32 %v606, 7
  %v608 = vsub.s32 0, %v607
  %v609 = vrot.slane %v605, %v608
  %v610 = vmul.f32 %v589, %v609
  %v611 = vmul.f32 %v590, %v609
  %v612 = vmul.f32 %v591, %v609
  %v613 = vmul.f32 %v592, %v609
  %v614 = vmul.f32 %v593, %v609
  %v615 = vmul.f32 %v594, %v609
  %v616 = vmul.f32 %v595, %v609
  %v617 = vmul.f32 %v596, %v609
  %v618 = vmul.f32 %v597, %v609
  %v619 = vmul.f32 %v598, %v609
  %v620 = vmul.f32 %v599, %v609
  %v621 = vmul.f32 %v600, %v609
  %v622 = vmul.f32 %v601, %v609
  %v623 = vmul.f32 %v602, %v609
  %v624 = vmul.f32 %v603, %v609
  %v625 = vmul.f32 %v604, %v609
  %v626 = vadd.f32 %v572, %v610
  %v627 = vadd.f32 %v573, %v611
  %v628 = vadd.f32 %v574, %v612
  %v629 = vadd.f32 %v575, %v613
  %v630 = vadd.f32 %v576, %v614
  %v631 = vadd.f32 %v577, %v615
  %v632 = vadd.f32 %v578, %v616
  %v633 = vadd.f32 %v579, %v617
  %v634 = vadd.f32 %v580, %v618
  %v635 = vadd.f32 %v581, %v619
  %v636 = vadd.f32 %v582, %v620
  %v637 = vadd.f32 %v583, %v621
  %v638 = vadd.f32 %v584, %v622
  %v639 = vadd.f32 %v585, %v623
  %v640 = vadd.f32 %v586, %v624
  %v641 = vadd.f32 %v587, %v625
  %s642 = scalar_lea.vmem %s0, 1536
  %v643 = vld [vmem:[%s642] sm:$0xff]
  %v644 = vld [vmem:[%s642 + $0x8] sm:$0xff]
  %v645 = vld [vmem:[%s642 + $0x10] sm:$0xff]
  %v646 = vld [vmem:[%s642 + $0x18] sm:$0xff]
  %v647 = vld [vmem:[%s642 + $0x20] sm:$0xff]
  %v648 = vld [vmem:[%s642 + $0x28] sm:$0xff]
  %v649 = vld [vmem:[%s642 + $0x30] sm:$0xff]
  %v650 = vld [vmem:[%s642 + $0x38] sm:$0xff]
  %v651 = vld [vmem:[%s642 + $0x40] sm:$0xff]
  %v652 = vld [vmem:[%s642 + $0x48] sm:$0xff]
  %v653 = vld [vmem:[%s642 + $0x50] sm:$0xff]
  %v654 = vld [vmem:[%s642 + $0x58] sm:$0xff]
  %v655 = vld [vmem:[%s642 + $0x60] sm:$0xff]
  %v656 = vld [vmem:[%s642 + $0x68] sm:$0xff]
  %v657 = vld [vmem:[%s642 + $0x70] sm:$0xff]
  %v658 = vld [vmem:[%s642 + $0x78] sm:$0xff]
  %v659 = vld [vmem:[%s1 + $0xc] sm:$0x1]
  %v660 = vlaneseq
  %v661 = vshrl.u32 %v660, 7
  %v662 = vsub.s32 0, %v661
  %v663 = vrot.slane %v659, %v662
  %v664 = vmul.f32 %v643, %v663
  %v665 = vmul.f32 %v644, %v663
  %v666 = vmul.f32 %v645, %v663
  %v667 = vmul.f32 %v646, %v663
  %v668 = vmul.f32 %v647, %v663
  %v669 = vmul.f32 %v648, %v663
  %v670 = vmul.f32 %v649, %v663
  %v671 = vmul.f32 %v650, %v663
  %v672 = vmul.f32 %v651, %v663
  %v673 = vmul.f32 %v652, %v663
  %v674 = vmul.f32 %v653, %v663
  %v675 = vmul.f32 %v654, %v663
  %v676 = vmul.f32 %v655, %v663
  %v677 = vmul.f32 %v656, %v663
  %v678 = vmul.f32 %v657, %v663
  %v679 = vmul.f32 %v658, %v663
  %v680 = vadd.f32 %v626, %v664
  %v681 = vadd.f32 %v627, %v665
  %v682 = vadd.f32 %v628, %v666
  %v683 = vadd.f32 %v629, %v667
  %v684 = vadd.f32 %v630, %v668
  %v685 = vadd.f32 %v631, %v669
  %v686 = vadd.f32 %v632, %v670
  %v687 = vadd.f32 %v633, %v671
  %v688 = vadd.f32 %v634, %v672
  %v689 = vadd.f32 %v635, %v673
  %v690 = vadd.f32 %v636, %v674
  %v691 = vadd.f32 %v637, %v675
  %v692 = vadd.f32 %v638, %v676
  %v693 = vadd.f32 %v639, %v677
  %v694 = vadd.f32 %v640, %v678
  %v695 = vadd.f32 %v641, %v679
  %s696 = scalar_lea.vmem %s0, 1664
  %v697 = vld [vmem:[%s696] sm:$0xff]
  %v698 = vld [vmem:[%s696 + $0x8] sm:$0xff]
  %v699 = vld [vmem:[%s696 + $0x10] sm:$0xff]
  %v700 = vld [vmem:[%s696 + $0x18] sm:$0xff]
  %v701 = vld [vmem:[%s696 + $0x20] sm:$0xff]
  %v702 = vld [vmem:[%s696 + $0x28] sm:$0xff]
  %v703 = vld [vmem:[%s696 + $0x30] sm:$0xff]
  %v704 = vld [vmem:[%s696 + $0x38] sm:$0xff]
  %v705 = vld [vmem:[%s696 + $0x40] sm:$0xff]
  %v706 = vld [vmem:[%s696 + $0x48] sm:$0xff]
  %v707 = vld [vmem:[%s696 + $0x50] sm:$0xff]
  %v708 = vld [vmem:[%s696 + $0x58] sm:$0xff]
  %v709 = vld [vmem:[%s696 + $0x60] sm:$0xff]
  %v710 = vld [vmem:[%s696 + $0x68] sm:$0xff]
  %v711 = vld [vmem:[%s696 + $0x70] sm:$0xff]
  %v712 = vld [vmem:[%s696 + $0x78] sm:$0xff]
  %v713 = vld [vmem:[%s1 + $0xd] sm:$0x1]
  %v714 = vlaneseq
  %v715 = vshrl.u32 %v714, 7
  %v716 = vsub.s32 0, %v715
  %v717 = vrot.slane %v713, %v716
  %v718 = vmul.f32 %v697, %v717
  %v719 = vmul.f32 %v698, %v717
  %v720 = vmul.f32 %v699, %v717
  %v721 = vmul.f32 %v700, %v717
  %v722 = vmul.f32 %v701, %v717
  %v723 = vmul.f32 %v702, %v717
  %v724 = vmul.f32 %v703, %v717
  %v725 = vmul.f32 %v704, %v717
  %v726 = vmul.f32 %v705, %v717
  %v727 = vmul.f32 %v706, %v717
  %v728 = vmul.f32 %v707, %v717
  %v729 = vmul.f32 %v708, %v717
  %v730 = vmul.f32 %v709, %v717
  %v731 = vmul.f32 %v710, %v717
  %v732 = vmul.f32 %v711, %v717
  %v733 = vmul.f32 %v712, %v717
  %v734 = vadd.f32 %v680, %v718
  %v735 = vadd.f32 %v681, %v719
  %v736 = vadd.f32 %v682, %v720
  %v737 = vadd.f32 %v683, %v721
  %v738 = vadd.f32 %v684, %v722
  %v739 = vadd.f32 %v685, %v723
  %v740 = vadd.f32 %v686, %v724
  %v741 = vadd.f32 %v687, %v725
  %v742 = vadd.f32 %v688, %v726
  %v743 = vadd.f32 %v689, %v727
  %v744 = vadd.f32 %v690, %v728
  %v745 = vadd.f32 %v691, %v729
  %v746 = vadd.f32 %v692, %v730
  %v747 = vadd.f32 %v693, %v731
  %v748 = vadd.f32 %v694, %v732
  %v749 = vadd.f32 %v695, %v733
  %s750 = scalar_lea.vmem %s0, 1792
  %v751 = vld [vmem:[%s750] sm:$0xff]
  %v752 = vld [vmem:[%s750 + $0x8] sm:$0xff]
  %v753 = vld [vmem:[%s750 + $0x10] sm:$0xff]
  %v754 = vld [vmem:[%s750 + $0x18] sm:$0xff]
  %v755 = vld [vmem:[%s750 + $0x20] sm:$0xff]
  %v756 = vld [vmem:[%s750 + $0x28] sm:$0xff]
  %v757 = vld [vmem:[%s750 + $0x30] sm:$0xff]
  %v758 = vld [vmem:[%s750 + $0x38] sm:$0xff]
  %v759 = vld [vmem:[%s750 + $0x40] sm:$0xff]
  %v760 = vld [vmem:[%s750 + $0x48] sm:$0xff]
  %v761 = vld [vmem:[%s750 + $0x50] sm:$0xff]
  %v762 = vld [vmem:[%s750 + $0x58] sm:$0xff]
  %v763 = vld [vmem:[%s750 + $0x60] sm:$0xff]
  %v764 = vld [vmem:[%s750 + $0x68] sm:$0xff]
  %v765 = vld [vmem:[%s750 + $0x70] sm:$0xff]
  %v766 = vld [vmem:[%s750 + $0x78] sm:$0xff]
  %v767 = vld [vmem:[%s1 + $0xe] sm:$0x1]
  %v768 = vlaneseq
  %v769 = vshrl.u32 %v768, 7
  %v770 = vsub.s32 0, %v769
  %v771 = vrot.slane %v767, %v770
  %v772 = vmul.f32 %v751, %v771
  %v773 = vmul.f32 %v752, %v771
  %v774 = vmul.f32 %v753, %v771
  %v775 = vmul.f32 %v754, %v771
  %v776 = vmul.f32 %v755, %v771
  %v777 = vmul.f32 %v756, %v771
  %v778 = vmul.f32 %v757, %v771
  %v779 = vmul.f32 %v758, %v771
  %v780 = vmul.f32 %v759, %v771
  %v781 = vmul.f32 %v760, %v771
  %v782 = vmul.f32 %v761, %v771
  %v783 = vmul.f32 %v762, %v771
  %v784 = vmul.f32 %v763, %v771
  %v785 = vmul.f32 %v764, %v771
  %v786 = vmul.f32 %v765, %v771
  %v787 = vmul.f32 %v766, %v771
  %v788 = vadd.f32 %v734, %v772
  %v789 = vadd.f32 %v735, %v773
  %v790 = vadd.f32 %v736, %v774
  %v791 = vadd.f32 %v737, %v775
  %v792 = vadd.f32 %v738, %v776
  %v793 = vadd.f32 %v739, %v777
  %v794 = vadd.f32 %v740, %v778
  %v795 = vadd.f32 %v741, %v779
  %v796 = vadd.f32 %v742, %v780
  %v797 = vadd.f32 %v743, %v781
  %v798 = vadd.f32 %v744, %v782
  %v799 = vadd.f32 %v745, %v783
  %v800 = vadd.f32 %v746, %v784
  %v801 = vadd.f32 %v747, %v785
  %v802 = vadd.f32 %v748, %v786
  %v803 = vadd.f32 %v749, %v787
  %s804 = scalar_lea.vmem %s0, 1920
  %v805 = vld [vmem:[%s804] sm:$0xff]
  %v806 = vld [vmem:[%s804 + $0x8] sm:$0xff]
  %v807 = vld [vmem:[%s804 + $0x10] sm:$0xff]
  %v808 = vld [vmem:[%s804 + $0x18] sm:$0xff]
  %v809 = vld [vmem:[%s804 + $0x20] sm:$0xff]
  %v810 = vld [vmem:[%s804 + $0x28] sm:$0xff]
  %v811 = vld [vmem:[%s804 + $0x30] sm:$0xff]
  %v812 = vld [vmem:[%s804 + $0x38] sm:$0xff]
  %v813 = vld [vmem:[%s804 + $0x40] sm:$0xff]
  %v814 = vld [vmem:[%s804 + $0x48] sm:$0xff]
  %v815 = vld [vmem:[%s804 + $0x50] sm:$0xff]
  %v816 = vld [vmem:[%s804 + $0x58] sm:$0xff]
  %v817 = vld [vmem:[%s804 + $0x60] sm:$0xff]
  %v818 = vld [vmem:[%s804 + $0x68] sm:$0xff]
  %v819 = vld [vmem:[%s804 + $0x70] sm:$0xff]
  %v820 = vld [vmem:[%s804 + $0x78] sm:$0xff]
  %v821 = vld [vmem:[%s1 + $0xf] sm:$0x1]
  %v822 = vlaneseq
  %v823 = vshrl.u32 %v822, 7
  %v824 = vsub.s32 0, %v823
  %v825 = vrot.slane %v821, %v824
  %v826 = vmul.f32 %v805, %v825
  %v827 = vmul.f32 %v806, %v825
  %v828 = vmul.f32 %v807, %v825
  %v829 = vmul.f32 %v808, %v825
  %v830 = vmul.f32 %v809, %v825
  %v831 = vmul.f32 %v810, %v825
  %v832 = vmul.f32 %v811, %v825
  %v833 = vmul.f32 %v812, %v825
  %v834 = vmul.f32 %v813, %v825
  %v835 = vmul.f32 %v814, %v825
  %v836 = vmul.f32 %v815, %v825
  %v837 = vmul.f32 %v816, %v825
  %v838 = vmul.f32 %v817, %v825
  %v839 = vmul.f32 %v818, %v825
  %v840 = vmul.f32 %v819, %v825
  %v841 = vmul.f32 %v820, %v825
  %v842 = vadd.f32 %v788, %v826
  %v843 = vadd.f32 %v789, %v827
  %v844 = vadd.f32 %v790, %v828
  %v845 = vadd.f32 %v791, %v829
  %v846 = vadd.f32 %v792, %v830
  %v847 = vadd.f32 %v793, %v831
  %v848 = vadd.f32 %v794, %v832
  %v849 = vadd.f32 %v795, %v833
  %v850 = vadd.f32 %v796, %v834
  %v851 = vadd.f32 %v797, %v835
  %v852 = vadd.f32 %v798, %v836
  %v853 = vadd.f32 %v799, %v837
  %v854 = vadd.f32 %v800, %v838
  %v855 = vadd.f32 %v801, %v839
  %v856 = vadd.f32 %v802, %v840
  %v857 = vadd.f32 %v803, %v841
  %s858 = scalar_lea.vmem %s0, 2048
  %v859 = vld [vmem:[%s858] sm:$0xff]
  %v860 = vld [vmem:[%s858 + $0x8] sm:$0xff]
  %v861 = vld [vmem:[%s858 + $0x10] sm:$0xff]
  %v862 = vld [vmem:[%s858 + $0x18] sm:$0xff]
  %v863 = vld [vmem:[%s858 + $0x20] sm:$0xff]
  %v864 = vld [vmem:[%s858 + $0x28] sm:$0xff]
  %v865 = vld [vmem:[%s858 + $0x30] sm:$0xff]
  %v866 = vld [vmem:[%s858 + $0x38] sm:$0xff]
  %v867 = vld [vmem:[%s858 + $0x40] sm:$0xff]
  %v868 = vld [vmem:[%s858 + $0x48] sm:$0xff]
  %v869 = vld [vmem:[%s858 + $0x50] sm:$0xff]
  %v870 = vld [vmem:[%s858 + $0x58] sm:$0xff]
  %v871 = vld [vmem:[%s858 + $0x60] sm:$0xff]
  %v872 = vld [vmem:[%s858 + $0x68] sm:$0xff]
  %v873 = vld [vmem:[%s858 + $0x70] sm:$0xff]
  %v874 = vld [vmem:[%s858 + $0x78] sm:$0xff]
  %v875 = vld [vmem:[%s1 + $0x10] sm:$0x1]
  %v876 = vlaneseq
  %v877 = vshrl.u32 %v876, 7
  %v878 = vsub.s32 0, %v877
  %v879 = vrot.slane %v875, %v878
  %v880 = vmul.f32 %v859, %v879
  %v881 = vmul.f32 %v860, %v879
  %v882 = vmul.f32 %v861, %v879
  %v883 = vmul.f32 %v862, %v879
  %v884 = vmul.f32 %v863, %v879
  %v885 = vmul.f32 %v864, %v879
  %v886 = vmul.f32 %v865, %v879
  %v887 = vmul.f32 %v866, %v879
  %v888 = vmul.f32 %v867, %v879
  %v889 = vmul.f32 %v868, %v879
  %v890 = vmul.f32 %v869, %v879
  %v891 = vmul.f32 %v870, %v879
  %v892 = vmul.f32 %v871, %v879
  %v893 = vmul.f32 %v872, %v879
  %v894 = vmul.f32 %v873, %v879
  %v895 = vmul.f32 %v874, %v879
  %v896 = vadd.f32 %v842, %v880
  %v897 = vadd.f32 %v843, %v881
  %v898 = vadd.f32 %v844, %v882
  %v899 = vadd.f32 %v845, %v883
  %v900 = vadd.f32 %v846, %v884
  %v901 = vadd.f32 %v847, %v885
  %v902 = vadd.f32 %v848, %v886
  %v903 = vadd.f32 %v849, %v887
  %v904 = vadd.f32 %v850, %v888
  %v905 = vadd.f32 %v851, %v889
  %v906 = vadd.f32 %v852, %v890
  %v907 = vadd.f32 %v853, %v891
  %v908 = vadd.f32 %v854, %v892
  %v909 = vadd.f32 %v855, %v893
  %v910 = vadd.f32 %v856, %v894
  %v911 = vadd.f32 %v857, %v895
  %s912 = scalar_lea.vmem %s0, 2176
  %v913 = vld [vmem:[%s912] sm:$0xff]
  %v914 = vld [vmem:[%s912 + $0x8] sm:$0xff]
  %v915 = vld [vmem:[%s912 + $0x10] sm:$0xff]
  %v916 = vld [vmem:[%s912 + $0x18] sm:$0xff]
  %v917 = vld [vmem:[%s912 + $0x20] sm:$0xff]
  %v918 = vld [vmem:[%s912 + $0x28] sm:$0xff]
  %v919 = vld [vmem:[%s912 + $0x30] sm:$0xff]
  %v920 = vld [vmem:[%s912 + $0x38] sm:$0xff]
  %v921 = vld [vmem:[%s912 + $0x40] sm:$0xff]
  %v922 = vld [vmem:[%s912 + $0x48] sm:$0xff]
  %v923 = vld [vmem:[%s912 + $0x50] sm:$0xff]
  %v924 = vld [vmem:[%s912 + $0x58] sm:$0xff]
  %v925 = vld [vmem:[%s912 + $0x60] sm:$0xff]
  %v926 = vld [vmem:[%s912 + $0x68] sm:$0xff]
  %v927 = vld [vmem:[%s912 + $0x70] sm:$0xff]
  %v928 = vld [vmem:[%s912 + $0x78] sm:$0xff]
  %v929 = vld [vmem:[%s1 + $0x11] sm:$0x1]
  %v930 = vlaneseq
  %v931 = vshrl.u32 %v930, 7
  %v932 = vsub.s32 0, %v931
  %v933 = vrot.slane %v929, %v932
  %v934 = vmul.f32 %v913, %v933
  %v935 = vmul.f32 %v914, %v933
  %v936 = vmul.f32 %v915, %v933
  %v937 = vmul.f32 %v916, %v933
  %v938 = vmul.f32 %v917, %v933
  %v939 = vmul.f32 %v918, %v933
  %v940 = vmul.f32 %v919, %v933
  %v941 = vmul.f32 %v920, %v933
  %v942 = vmul.f32 %v921, %v933
  %v943 = vmul.f32 %v922, %v933
  %v944 = vmul.f32 %v923, %v933
  %v945 = vmul.f32 %v924, %v933
  %v946 = vmul.f32 %v925, %v933
  %v947 = vmul.f32 %v926, %v933
  %v948 = vmul.f32 %v927, %v933
  %v949 = vmul.f32 %v928, %v933
  %v950 = vadd.f32 %v896, %v934
  %v951 = vadd.f32 %v897, %v935
  %v952 = vadd.f32 %v898, %v936
  %v953 = vadd.f32 %v899, %v937
  %v954 = vadd.f32 %v900, %v938
  %v955 = vadd.f32 %v901, %v939
  %v956 = vadd.f32 %v902, %v940
  %v957 = vadd.f32 %v903, %v941
  %v958 = vadd.f32 %v904, %v942
  %v959 = vadd.f32 %v905, %v943
  %v960 = vadd.f32 %v906, %v944
  %v961 = vadd.f32 %v907, %v945
  %v962 = vadd.f32 %v908, %v946
  %v963 = vadd.f32 %v909, %v947
  %v964 = vadd.f32 %v910, %v948
  %v965 = vadd.f32 %v911, %v949
  %s966 = scalar_lea.vmem %s0, 2304
  %v967 = vld [vmem:[%s966] sm:$0xff]
  %v968 = vld [vmem:[%s966 + $0x8] sm:$0xff]
  %v969 = vld [vmem:[%s966 + $0x10] sm:$0xff]
  %v970 = vld [vmem:[%s966 + $0x18] sm:$0xff]
  %v971 = vld [vmem:[%s966 + $0x20] sm:$0xff]
  %v972 = vld [vmem:[%s966 + $0x28] sm:$0xff]
  %v973 = vld [vmem:[%s966 + $0x30] sm:$0xff]
  %v974 = vld [vmem:[%s966 + $0x38] sm:$0xff]
  %v975 = vld [vmem:[%s966 + $0x40] sm:$0xff]
  %v976 = vld [vmem:[%s966 + $0x48] sm:$0xff]
  %v977 = vld [vmem:[%s966 + $0x50] sm:$0xff]
  %v978 = vld [vmem:[%s966 + $0x58] sm:$0xff]
  %v979 = vld [vmem:[%s966 + $0x60] sm:$0xff]
  %v980 = vld [vmem:[%s966 + $0x68] sm:$0xff]
  %v981 = vld [vmem:[%s966 + $0x70] sm:$0xff]
  %v982 = vld [vmem:[%s966 + $0x78] sm:$0xff]
  %v983 = vld [vmem:[%s1 + $0x12] sm:$0x1]
  %v984 = vlaneseq
  %v985 = vshrl.u32 %v984, 7
  %v986 = vsub.s32 0, %v985
  %v987 = vrot.slane %v983, %v986
  %v988 = vmul.f32 %v967, %v987
  %v989 = vmul.f32 %v968, %v987
  %v990 = vmul.f32 %v969, %v987
  %v991 = vmul.f32 %v970, %v987
  %v992 = vmul.f32 %v971, %v987
  %v993 = vmul.f32 %v972, %v987
  %v994 = vmul.f32 %v973, %v987
  %v995 = vmul.f32 %v974, %v987
  %v996 = vmul.f32 %v975, %v987
  %v997 = vmul.f32 %v976, %v987
  %v998 = vmul.f32 %v977, %v987
  %v999 = vmul.f32 %v978, %v987
  %v1000 = vmul.f32 %v979, %v987
  %v1001 = vmul.f32 %v980, %v987
  %v1002 = vmul.f32 %v981, %v987
  %v1003 = vmul.f32 %v982, %v987
  %v1004 = vadd.f32 %v950, %v988
  %v1005 = vadd.f32 %v951, %v989
  %v1006 = vadd.f32 %v952, %v990
  %v1007 = vadd.f32 %v953, %v991
  %v1008 = vadd.f32 %v954, %v992
  %v1009 = vadd.f32 %v955, %v993
  %v1010 = vadd.f32 %v956, %v994
  %v1011 = vadd.f32 %v957, %v995
  %v1012 = vadd.f32 %v958, %v996
  %v1013 = vadd.f32 %v959, %v997
  %v1014 = vadd.f32 %v960, %v998
  %v1015 = vadd.f32 %v961, %v999
  %v1016 = vadd.f32 %v962, %v1000
  %v1017 = vadd.f32 %v963, %v1001
  %v1018 = vadd.f32 %v964, %v1002
  %v1019 = vadd.f32 %v965, %v1003
  %s1020 = scalar_lea.vmem %s0, 2432
  %v1021 = vld [vmem:[%s1020] sm:$0xff]
  %v1022 = vld [vmem:[%s1020 + $0x8] sm:$0xff]
  %v1023 = vld [vmem:[%s1020 + $0x10] sm:$0xff]
  %v1024 = vld [vmem:[%s1020 + $0x18] sm:$0xff]
  %v1025 = vld [vmem:[%s1020 + $0x20] sm:$0xff]
  %v1026 = vld [vmem:[%s1020 + $0x28] sm:$0xff]
  %v1027 = vld [vmem:[%s1020 + $0x30] sm:$0xff]
  %v1028 = vld [vmem:[%s1020 + $0x38] sm:$0xff]
  %v1029 = vld [vmem:[%s1020 + $0x40] sm:$0xff]
  %v1030 = vld [vmem:[%s1020 + $0x48] sm:$0xff]
  %v1031 = vld [vmem:[%s1020 + $0x50] sm:$0xff]
  %v1032 = vld [vmem:[%s1020 + $0x58] sm:$0xff]
  %v1033 = vld [vmem:[%s1020 + $0x60] sm:$0xff]
  %v1034 = vld [vmem:[%s1020 + $0x68] sm:$0xff]
  %v1035 = vld [vmem:[%s1020 + $0x70] sm:$0xff]
  %v1036 = vld [vmem:[%s1020 + $0x78] sm:$0xff]
  %v1037 = vld [vmem:[%s1 + $0x13] sm:$0x1]
  %v1038 = vlaneseq
  %v1039 = vshrl.u32 %v1038, 7
  %v1040 = vsub.s32 0, %v1039
  %v1041 = vrot.slane %v1037, %v1040
  %v1042 = vmul.f32 %v1021, %v1041
  %v1043 = vmul.f32 %v1022, %v1041
  %v1044 = vmul.f32 %v1023, %v1041
  %v1045 = vmul.f32 %v1024, %v1041
  %v1046 = vmul.f32 %v1025, %v1041
  %v1047 = vmul.f32 %v1026, %v1041
  %v1048 = vmul.f32 %v1027, %v1041
  %v1049 = vmul.f32 %v1028, %v1041
  %v1050 = vmul.f32 %v1029, %v1041
  %v1051 = vmul.f32 %v1030, %v1041
  %v1052 = vmul.f32 %v1031, %v1041
  %v1053 = vmul.f32 %v1032, %v1041
  %v1054 = vmul.f32 %v1033, %v1041
  %v1055 = vmul.f32 %v1034, %v1041
  %v1056 = vmul.f32 %v1035, %v1041
  %v1057 = vmul.f32 %v1036, %v1041
  %v1058 = vadd.f32 %v1004, %v1042
  %v1059 = vadd.f32 %v1005, %v1043
  %v1060 = vadd.f32 %v1006, %v1044
  %v1061 = vadd.f32 %v1007, %v1045
  %v1062 = vadd.f32 %v1008, %v1046
  %v1063 = vadd.f32 %v1009, %v1047
  %v1064 = vadd.f32 %v1010, %v1048
  %v1065 = vadd.f32 %v1011, %v1049
  %v1066 = vadd.f32 %v1012, %v1050
  %v1067 = vadd.f32 %v1013, %v1051
  %v1068 = vadd.f32 %v1014, %v1052
  %v1069 = vadd.f32 %v1015, %v1053
  %v1070 = vadd.f32 %v1016, %v1054
  %v1071 = vadd.f32 %v1017, %v1055
  %v1072 = vadd.f32 %v1018, %v1056
  %v1073 = vadd.f32 %v1019, %v1057
  %s1074 = scalar_lea.vmem %s0, 2560
  %v1075 = vld [vmem:[%s1074] sm:$0xff]
  %v1076 = vld [vmem:[%s1074 + $0x8] sm:$0xff]
  %v1077 = vld [vmem:[%s1074 + $0x10] sm:$0xff]
  %v1078 = vld [vmem:[%s1074 + $0x18] sm:$0xff]
  %v1079 = vld [vmem:[%s1074 + $0x20] sm:$0xff]
  %v1080 = vld [vmem:[%s1074 + $0x28] sm:$0xff]
  %v1081 = vld [vmem:[%s1074 + $0x30] sm:$0xff]
  %v1082 = vld [vmem:[%s1074 + $0x38] sm:$0xff]
  %v1083 = vld [vmem:[%s1074 + $0x40] sm:$0xff]
  %v1084 = vld [vmem:[%s1074 + $0x48] sm:$0xff]
  %v1085 = vld [vmem:[%s1074 + $0x50] sm:$0xff]
  %v1086 = vld [vmem:[%s1074 + $0x58] sm:$0xff]
  %v1087 = vld [vmem:[%s1074 + $0x60] sm:$0xff]
  %v1088 = vld [vmem:[%s1074 + $0x68] sm:$0xff]
  %v1089 = vld [vmem:[%s1074 + $0x70] sm:$0xff]
  %v1090 = vld [vmem:[%s1074 + $0x78] sm:$0xff]
  %v1091 = vld [vmem:[%s1 + $0x14] sm:$0x1]
  %v1092 = vlaneseq
  %v1093 = vshrl.u32 %v1092, 7
  %v1094 = vsub.s32 0, %v1093
  %v1095 = vrot.slane %v1091, %v1094
  %v1096 = vmul.f32 %v1075, %v1095
  %v1097 = vmul.f32 %v1076, %v1095
  %v1098 = vmul.f32 %v1077, %v1095
  %v1099 = vmul.f32 %v1078, %v1095
  %v1100 = vmul.f32 %v1079, %v1095
  %v1101 = vmul.f32 %v1080, %v1095
  %v1102 = vmul.f32 %v1081, %v1095
  %v1103 = vmul.f32 %v1082, %v1095
  %v1104 = vmul.f32 %v1083, %v1095
  %v1105 = vmul.f32 %v1084, %v1095
  %v1106 = vmul.f32 %v1085, %v1095
  %v1107 = vmul.f32 %v1086, %v1095
  %v1108 = vmul.f32 %v1087, %v1095
  %v1109 = vmul.f32 %v1088, %v1095
  %v1110 = vmul.f32 %v1089, %v1095
  %v1111 = vmul.f32 %v1090, %v1095
  %v1112 = vadd.f32 %v1058, %v1096
  %v1113 = vadd.f32 %v1059, %v1097
  %v1114 = vadd.f32 %v1060, %v1098
  %v1115 = vadd.f32 %v1061, %v1099
  %v1116 = vadd.f32 %v1062, %v1100
  %v1117 = vadd.f32 %v1063, %v1101
  %v1118 = vadd.f32 %v1064, %v1102
  %v1119 = vadd.f32 %v1065, %v1103
  %v1120 = vadd.f32 %v1066, %v1104
  %v1121 = vadd.f32 %v1067, %v1105
  %v1122 = vadd.f32 %v1068, %v1106
  %v1123 = vadd.f32 %v1069, %v1107
  %v1124 = vadd.f32 %v1070, %v1108
  %v1125 = vadd.f32 %v1071, %v1109
  %v1126 = vadd.f32 %v1072, %v1110
  %v1127 = vadd.f32 %v1073, %v1111
  %s1128 = scalar_lea.vmem %s0, 2688
  %v1129 = vld [vmem:[%s1128] sm:$0xff]
  %v1130 = vld [vmem:[%s1128 + $0x8] sm:$0xff]
  %v1131 = vld [vmem:[%s1128 + $0x10] sm:$0xff]
  %v1132 = vld [vmem:[%s1128 + $0x18] sm:$0xff]
  %v1133 = vld [vmem:[%s1128 + $0x20] sm:$0xff]
  %v1134 = vld [vmem:[%s1128 + $0x28] sm:$0xff]
  %v1135 = vld [vmem:[%s1128 + $0x30] sm:$0xff]
  %v1136 = vld [vmem:[%s1128 + $0x38] sm:$0xff]
  %v1137 = vld [vmem:[%s1128 + $0x40] sm:$0xff]
  %v1138 = vld [vmem:[%s1128 + $0x48] sm:$0xff]
  %v1139 = vld [vmem:[%s1128 + $0x50] sm:$0xff]
  %v1140 = vld [vmem:[%s1128 + $0x58] sm:$0xff]
  %v1141 = vld [vmem:[%s1128 + $0x60] sm:$0xff]
  %v1142 = vld [vmem:[%s1128 + $0x68] sm:$0xff]
  %v1143 = vld [vmem:[%s1128 + $0x70] sm:$0xff]
  %v1144 = vld [vmem:[%s1128 + $0x78] sm:$0xff]
  %v1145 = vld [vmem:[%s1 + $0x15] sm:$0x1]
  %v1146 = vlaneseq
  %v1147 = vshrl.u32 %v1146, 7
  %v1148 = vsub.s32 0, %v1147
  %v1149 = vrot.slane %v1145, %v1148
  %v1150 = vmul.f32 %v1129, %v1149
  %v1151 = vmul.f32 %v1130, %v1149
  %v1152 = vmul.f32 %v1131, %v1149
  %v1153 = vmul.f32 %v1132, %v1149
  %v1154 = vmul.f32 %v1133, %v1149
  %v1155 = vmul.f32 %v1134, %v1149
  %v1156 = vmul.f32 %v1135, %v1149
  %v1157 = vmul.f32 %v1136, %v1149
  %v1158 = vmul.f32 %v1137, %v1149
  %v1159 = vmul.f32 %v1138, %v1149
  %v1160 = vmul.f32 %v1139, %v1149
  %v1161 = vmul.f32 %v1140, %v1149
  %v1162 = vmul.f32 %v1141, %v1149
  %v1163 = vmul.f32 %v1142, %v1149
  %v1164 = vmul.f32 %v1143, %v1149
  %v1165 = vmul.f32 %v1144, %v1149
  %v1166 = vadd.f32 %v1112, %v1150
  %v1167 = vadd.f32 %v1113, %v1151
  %v1168 = vadd.f32 %v1114, %v1152
  %v1169 = vadd.f32 %v1115, %v1153
  %v1170 = vadd.f32 %v1116, %v1154
  %v1171 = vadd.f32 %v1117, %v1155
  %v1172 = vadd.f32 %v1118, %v1156
  %v1173 = vadd.f32 %v1119, %v1157
  %v1174 = vadd.f32 %v1120, %v1158
  %v1175 = vadd.f32 %v1121, %v1159
  %v1176 = vadd.f32 %v1122, %v1160
  %v1177 = vadd.f32 %v1123, %v1161
  %v1178 = vadd.f32 %v1124, %v1162
  %v1179 = vadd.f32 %v1125, %v1163
  %v1180 = vadd.f32 %v1126, %v1164
  %v1181 = vadd.f32 %v1127, %v1165
  %s1182 = scalar_lea.vmem %s0, 2816
  %v1183 = vld [vmem:[%s1182] sm:$0xff]
  %v1184 = vld [vmem:[%s1182 + $0x8] sm:$0xff]
  %v1185 = vld [vmem:[%s1182 + $0x10] sm:$0xff]
  %v1186 = vld [vmem:[%s1182 + $0x18] sm:$0xff]
  %v1187 = vld [vmem:[%s1182 + $0x20] sm:$0xff]
  %v1188 = vld [vmem:[%s1182 + $0x28] sm:$0xff]
  %v1189 = vld [vmem:[%s1182 + $0x30] sm:$0xff]
  %v1190 = vld [vmem:[%s1182 + $0x38] sm:$0xff]
  %v1191 = vld [vmem:[%s1182 + $0x40] sm:$0xff]
  %v1192 = vld [vmem:[%s1182 + $0x48] sm:$0xff]
  %v1193 = vld [vmem:[%s1182 + $0x50] sm:$0xff]
  %v1194 = vld [vmem:[%s1182 + $0x58] sm:$0xff]
  %v1195 = vld [vmem:[%s1182 + $0x60] sm:$0xff]
  %v1196 = vld [vmem:[%s1182 + $0x68] sm:$0xff]
  %v1197 = vld [vmem:[%s1182 + $0x70] sm:$0xff]
  %v1198 = vld [vmem:[%s1182 + $0x78] sm:$0xff]
  %v1199 = vld [vmem:[%s1 + $0x16] sm:$0x1]
  %v1200 = vlaneseq
  %v1201 = vshrl.u32 %v1200, 7
  %v1202 = vsub.s32 0, %v1201
  %v1203 = vrot.slane %v1199, %v1202
  %v1204 = vmul.f32 %v1183, %v1203
  %v1205 = vmul.f32 %v1184, %v1203
  %v1206 = vmul.f32 %v1185, %v1203
  %v1207 = vmul.f32 %v1186, %v1203
  %v1208 = vmul.f32 %v1187, %v1203
  %v1209 = vmul.f32 %v1188, %v1203
  %v1210 = vmul.f32 %v1189, %v1203
  %v1211 = vmul.f32 %v1190, %v1203
  %v1212 = vmul.f32 %v1191, %v1203
  %v1213 = vmul.f32 %v1192, %v1203
  %v1214 = vmul.f32 %v1193, %v1203
  %v1215 = vmul.f32 %v1194, %v1203
  %v1216 = vmul.f32 %v1195, %v1203
  %v1217 = vmul.f32 %v1196, %v1203
  %v1218 = vmul.f32 %v1197, %v1203
  %v1219 = vmul.f32 %v1198, %v1203
  %v1220 = vadd.f32 %v1166, %v1204
  %v1221 = vadd.f32 %v1167, %v1205
  %v1222 = vadd.f32 %v1168, %v1206
  %v1223 = vadd.f32 %v1169, %v1207
  %v1224 = vadd.f32 %v1170, %v1208
  %v1225 = vadd.f32 %v1171, %v1209
  %v1226 = vadd.f32 %v1172, %v1210
  %v1227 = vadd.f32 %v1173, %v1211
  %v1228 = vadd.f32 %v1174, %v1212
  %v1229 = vadd.f32 %v1175, %v1213
  %v1230 = vadd.f32 %v1176, %v1214
  %v1231 = vadd.f32 %v1177, %v1215
  %v1232 = vadd.f32 %v1178, %v1216
  %v1233 = vadd.f32 %v1179, %v1217
  %v1234 = vadd.f32 %v1180, %v1218
  %v1235 = vadd.f32 %v1181, %v1219
  %s1236 = scalar_lea.vmem %s0, 2944
  %v1237 = vld [vmem:[%s1236] sm:$0xff]
  %v1238 = vld [vmem:[%s1236 + $0x8] sm:$0xff]
  %v1239 = vld [vmem:[%s1236 + $0x10] sm:$0xff]
  %v1240 = vld [vmem:[%s1236 + $0x18] sm:$0xff]
  %v1241 = vld [vmem:[%s1236 + $0x20] sm:$0xff]
  %v1242 = vld [vmem:[%s1236 + $0x28] sm:$0xff]
  %v1243 = vld [vmem:[%s1236 + $0x30] sm:$0xff]
  %v1244 = vld [vmem:[%s1236 + $0x38] sm:$0xff]
  %v1245 = vld [vmem:[%s1236 + $0x40] sm:$0xff]
  %v1246 = vld [vmem:[%s1236 + $0x48] sm:$0xff]
  %v1247 = vld [vmem:[%s1236 + $0x50] sm:$0xff]
  %v1248 = vld [vmem:[%s1236 + $0x58] sm:$0xff]
  %v1249 = vld [vmem:[%s1236 + $0x60] sm:$0xff]
  %v1250 = vld [vmem:[%s1236 + $0x68] sm:$0xff]
  %v1251 = vld [vmem:[%s1236 + $0x70] sm:$0xff]
  %v1252 = vld [vmem:[%s1236 + $0x78] sm:$0xff]
  %v1253 = vld [vmem:[%s1 + $0x17] sm:$0x1]
  %v1254 = vlaneseq
  %v1255 = vshrl.u32 %v1254, 7
  %v1256 = vsub.s32 0, %v1255
  %v1257 = vrot.slane %v1253, %v1256
  %v1258 = vmul.f32 %v1237, %v1257
  %v1259 = vmul.f32 %v1238, %v1257
  %v1260 = vmul.f32 %v1239, %v1257
  %v1261 = vmul.f32 %v1240, %v1257
  %v1262 = vmul.f32 %v1241, %v1257
  %v1263 = vmul.f32 %v1242, %v1257
  %v1264 = vmul.f32 %v1243, %v1257
  %v1265 = vmul.f32 %v1244, %v1257
  %v1266 = vmul.f32 %v1245, %v1257
  %v1267 = vmul.f32 %v1246, %v1257
  %v1268 = vmul.f32 %v1247, %v1257
  %v1269 = vmul.f32 %v1248, %v1257
  %v1270 = vmul.f32 %v1249, %v1257
  %v1271 = vmul.f32 %v1250, %v1257
  %v1272 = vmul.f32 %v1251, %v1257
  %v1273 = vmul.f32 %v1252, %v1257
  %v1274 = vadd.f32 %v1220, %v1258
  %v1275 = vadd.f32 %v1221, %v1259
  %v1276 = vadd.f32 %v1222, %v1260
  %v1277 = vadd.f32 %v1223, %v1261
  %v1278 = vadd.f32 %v1224, %v1262
  %v1279 = vadd.f32 %v1225, %v1263
  %v1280 = vadd.f32 %v1226, %v1264
  %v1281 = vadd.f32 %v1227, %v1265
  %v1282 = vadd.f32 %v1228, %v1266
  %v1283 = vadd.f32 %v1229, %v1267
  %v1284 = vadd.f32 %v1230, %v1268
  %v1285 = vadd.f32 %v1231, %v1269
  %v1286 = vadd.f32 %v1232, %v1270
  %v1287 = vadd.f32 %v1233, %v1271
  %v1288 = vadd.f32 %v1234, %v1272
  %v1289 = vadd.f32 %v1235, %v1273
  %s1290 = scalar_lea.vmem %s0, 3072
  %v1291 = vld [vmem:[%s1290] sm:$0xff]
  %v1292 = vld [vmem:[%s1290 + $0x8] sm:$0xff]
  %v1293 = vld [vmem:[%s1290 + $0x10] sm:$0xff]
  %v1294 = vld [vmem:[%s1290 + $0x18] sm:$0xff]
  %v1295 = vld [vmem:[%s1290 + $0x20] sm:$0xff]
  %v1296 = vld [vmem:[%s1290 + $0x28] sm:$0xff]
  %v1297 = vld [vmem:[%s1290 + $0x30] sm:$0xff]
  %v1298 = vld [vmem:[%s1290 + $0x38] sm:$0xff]
  %v1299 = vld [vmem:[%s1290 + $0x40] sm:$0xff]
  %v1300 = vld [vmem:[%s1290 + $0x48] sm:$0xff]
  %v1301 = vld [vmem:[%s1290 + $0x50] sm:$0xff]
  %v1302 = vld [vmem:[%s1290 + $0x58] sm:$0xff]
  %v1303 = vld [vmem:[%s1290 + $0x60] sm:$0xff]
  %v1304 = vld [vmem:[%s1290 + $0x68] sm:$0xff]
  %v1305 = vld [vmem:[%s1290 + $0x70] sm:$0xff]
  %v1306 = vld [vmem:[%s1290 + $0x78] sm:$0xff]
  %v1307 = vld [vmem:[%s1 + $0x18] sm:$0x1]
  %v1308 = vlaneseq
  %v1309 = vshrl.u32 %v1308, 7
  %v1310 = vsub.s32 0, %v1309
  %v1311 = vrot.slane %v1307, %v1310
  %v1312 = vmul.f32 %v1291, %v1311
  %v1313 = vmul.f32 %v1292, %v1311
  %v1314 = vmul.f32 %v1293, %v1311
  %v1315 = vmul.f32 %v1294, %v1311
  %v1316 = vmul.f32 %v1295, %v1311
  %v1317 = vmul.f32 %v1296, %v1311
  %v1318 = vmul.f32 %v1297, %v1311
  %v1319 = vmul.f32 %v1298, %v1311
  %v1320 = vmul.f32 %v1299, %v1311
  %v1321 = vmul.f32 %v1300, %v1311
  %v1322 = vmul.f32 %v1301, %v1311
  %v1323 = vmul.f32 %v1302, %v1311
  %v1324 = vmul.f32 %v1303, %v1311
  %v1325 = vmul.f32 %v1304, %v1311
  %v1326 = vmul.f32 %v1305, %v1311
  %v1327 = vmul.f32 %v1306, %v1311
  %v1328 = vadd.f32 %v1274, %v1312
  %v1329 = vadd.f32 %v1275, %v1313
  %v1330 = vadd.f32 %v1276, %v1314
  %v1331 = vadd.f32 %v1277, %v1315
  %v1332 = vadd.f32 %v1278, %v1316
  %v1333 = vadd.f32 %v1279, %v1317
  %v1334 = vadd.f32 %v1280, %v1318
  %v1335 = vadd.f32 %v1281, %v1319
  %v1336 = vadd.f32 %v1282, %v1320
  %v1337 = vadd.f32 %v1283, %v1321
  %v1338 = vadd.f32 %v1284, %v1322
  %v1339 = vadd.f32 %v1285, %v1323
  %v1340 = vadd.f32 %v1286, %v1324
  %v1341 = vadd.f32 %v1287, %v1325
  %v1342 = vadd.f32 %v1288, %v1326
  %v1343 = vadd.f32 %v1289, %v1327
  %1344 = vst [vmem:[%s2] sm:$0xff] %v1328
  %1345 = vst [vmem:[%s2 + $0x8] sm:$0xff] %v1329
  %1346 = vst [vmem:[%s2 + $0x10] sm:$0xff] %v1330
  %1347 = vst [vmem:[%s2 + $0x18] sm:$0xff] %v1331
  %1348 = vst [vmem:[%s2 + $0x20] sm:$0xff] %v1332
  %1349 = vst [vmem:[%s2 + $0x28] sm:$0xff] %v1333
  %1350 = vst [vmem:[%s2 + $0x30] sm:$0xff] %v1334
  %1351 = vst [vmem:[%s2 + $0x38] sm:$0xff] %v1335
  %1352 = vst [vmem:[%s2 + $0x40] sm:$0xff] %v1336
  %1353 = vst [vmem:[%s2 + $0x48] sm:$0xff] %v1337
  %1354 = vst [vmem:[%s2 + $0x50] sm:$0xff] %v1338
  %1355 = vst [vmem:[%s2 + $0x58] sm:$0xff] %v1339
  %1356 = vst [vmem:[%s2 + $0x60] sm:$0xff] %v1340
  %1357 = vst [vmem:[%s2 + $0x68] sm:$0xff] %v1341
  %1358 = vst [vmem:[%s2 + $0x70] sm:$0xff] %v1342
  %1359 = vst [vmem:[%s2 + $0x78] sm:$0xff] %v1343
  // Predicated region
  $region10: #{_forward_impl.286} parent=0 // pred_check
    _
  $region11: #{_forward_impl.286} parent=0 // pred_check_branch
    %1361 = sbr.rel (0) target = $region13
  $region12: #{_forward_impl.286} parent=0 // pred_region
    _
  $region13: #{_forward_impl.286} parent=0 // pred_fallthru
    _
  // Predicated region
  $region14: #{_forward_impl.286} parent=0 // pred_check
    _
  $region15: #{_forward_impl.286} parent=0 // pred_check_branch
    %1363 = sbr.rel (0) target = $region17
  $region16: #{_forward_impl.286} parent=0 // pred_region
    _
  $region17: #{_forward_impl.286} parent=0 // pred_fallthru
    _

// kernel: _forward_impl.331
$region0: #{_forward_impl.331}
  #allocation0 [shape = 'u32[]', space=smem, size = 0x4, offset = 0x4, fixed_abs, tag = 'smem constant byte address 0x4 - core index']
  #allocation1 [shape = 'u32[144,128]{1,0:T(1,128)}', space=vmem, size = 0x12000, scoped, tag = 'internal scratch']
  #allocation2 [shape = 'f32[128,128]{1,0:T(8,128)}', space=vmem, size = 0x10000, scoped, tag = 'scratch operand']
  %s0 = inlined_call_operand.vmem [shape: bf16[128,128], index: 0, kind: input, shape index: {}]
  %s1 = inlined_call_operand.vmem [shape: bf16[128,128], index: 1, kind: input, shape index: {}]
  %s2 = inlined_call_operand.vmem [shape: f32[128,128], index: 2, kind: output, shape index: {0}]
  %s3 = inlined_call_operand.vmem [shape: f32[1,128], index: 3, kind: output, shape index: {1}]
  %s4 = inlined_call_operand.vmem [shape: f32[1,128], index: 4, kind: output, shape index: {2}]
  %5 = xla_tuple %s2, %s3, %s4
  %s6 = sld [smem:[#allocation0]]
  $region46: #{_forward_impl.331} parent=0
    _
  %s8 = ssub.s32 1, %s6
  %s9 = scalar_select 0, %s8, %s6
  // Predicated region
  $region2: #{_forward_impl.331} parent=0 // pred_check
    _
  $region3: #{_forward_impl.331} parent=0 // pred_check_branch
    %11 = sbr.rel (0) target = $region5
  $region4: #{_forward_impl.331} parent=0 // pred_region
    _
  $region5: #{_forward_impl.331} parent=0 // pred_fallthru
    _
  // Predicated region
  $region6: #{_forward_impl.331} parent=0 // pred_check
    _
  $region7: #{_forward_impl.331} parent=0 // pred_check_branch
    %13 = sbr.rel (0) target = $region9
  $region8: #{_forward_impl.331} parent=0 // pred_region
    _
  $region9: #{_forward_impl.331} parent=0 // pred_fallthru
    _
  %p15 = scmp.eq.s32.totalorder 0, 0
  // Predicated region
  $region10: #{_forward_impl.331} parent=0 // pred_check
    %p16 = pneg %p15
  $region11: #{_forward_impl.331} parent=0 // pred_check_branch
    %18 = sbr.rel (%p16) target = $region13
  $region12: #{_forward_impl.331} parent=0 // pred_region
    %19 = vst [vmem:[#allocation2] sm:$0xff] 0.0
    %20 = vst [vmem:[#allocation2 + $0x8] sm:$0xff] 0.0
    %21 = vst [vmem:[#allocation2 + $0x10] sm:$0xff] 0.0
    %22 = vst [vmem:[#allocation2 + $0x18] sm:$0xff] 0.0
    %23 = vst [vmem:[#allocation2 + $0x20] sm:$0xff] 0.0
    %24 = vst [vmem:[#allocation2 + $0x28] sm:$0xff] 0.0
    %25 = vst [vmem:[#allocation2 + $0x30] sm:$0xff] 0.0
    %26 = vst [vmem:[#allocation2 + $0x38] sm:$0xff] 0.0
    %27 = vst [vmem:[#allocation2 + $0x40] sm:$0xff] 0.0
    %28 = vst [vmem:[#allocation2 + $0x48] sm:$0xff] 0.0
    %29 = vst [vmem:[#allocation2 + $0x50] sm:$0xff] 0.0
    %30 = vst [vmem:[#allocation2 + $0x58] sm:$0xff] 0.0
    %31 = vst [vmem:[#allocation2 + $0x60] sm:$0xff] 0.0
    %32 = vst [vmem:[#allocation2 + $0x68] sm:$0xff] 0.0
    %33 = vst [vmem:[#allocation2 + $0x70] sm:$0xff] 0.0
    %34 = vst [vmem:[#allocation2 + $0x78] sm:$0xff] 0.0
  $region13: #{_forward_impl.331} parent=0 // pred_fallthru
    _
  %v35 = vld [vmem:[#allocation2] sm:$0xff]
  %v36 = vld [vmem:[#allocation2 + $0x8] sm:$0xff]
  %v37 = vld [vmem:[#allocation2 + $0x10] sm:$0xff]
  %v38 = vld [vmem:[#allocation2 + $0x18] sm:$0xff]
  %v39 = vld [vmem:[#allocation2 + $0x20] sm:$0xff]
  %v40 = vld [vmem:[#allocation2 + $0x28] sm:$0xff]
  %v41 = vld [vmem:[#allocation2 + $0x30] sm:$0xff]
  %v42 = vld [vmem:[#allocation2 + $0x38] sm:$0xff]
  %v43 = vld [vmem:[#allocation2 + $0x40] sm:$0xff]
  %v44 = vld [vmem:[#allocation2 + $0x48] sm:$0xff]
  %v45 = vld [vmem:[#allocation2 + $0x50] sm:$0xff]
  %v46 = vld [vmem:[#allocation2 + $0x58] sm:$0xff]
  %v47 = vld [vmem:[#allocation2 + $0x60] sm:$0xff]
  %v48 = vld [vmem:[#allocation2 + $0x68] sm:$0xff]
  %v49 = vld [vmem:[#allocation2 + $0x70] sm:$0xff]
  %v50 = vld [vmem:[#allocation2 + $0x78] sm:$0xff]
  %v51 = vld [vmem:[%s0] sm:$0xf]
  %v52 = vld [vmem:[%s0 + $0x4] sm:$0xf]
  %v53 = vld [vmem:[%s0 + $0x8] sm:$0xf]
  %v54 = vld [vmem:[%s0 + $0xc] sm:$0xf]
  %v55 = vld [vmem:[%s0 + $0x10] sm:$0xf]
  %v56 = vld [vmem:[%s0 + $0x14] sm:$0xf]
  %v57 = vld [vmem:[%s0 + $0x18] sm:$0xf]
  %v58 = vld [vmem:[%s0 + $0x1c] sm:$0xf]
  %v59 = vld [vmem:[%s0 + $0x20] sm:$0xf]
  %v60 = vld [vmem:[%s0 + $0x24] sm:$0xf]
  %v61 = vld [vmem:[%s0 + $0x28] sm:$0xf]
  %v62 = vld [vmem:[%s0 + $0x2c] sm:$0xf]
  %v63 = vld [vmem:[%s0 + $0x30] sm:$0xf]
  %v64 = vld [vmem:[%s0 + $0x34] sm:$0xf]
  %v65 = vld [vmem:[%s0 + $0x38] sm:$0xf]
  %v66 = vld [vmem:[%s0 + $0x3c] sm:$0xf]
  %v67 = vld [vmem:[%s1] sm:$0xf]
  %v68 = vld [vmem:[%s1 + $0x4] sm:$0xf]
  %v69 = vld [vmem:[%s1 + $0x8] sm:$0xf]
  %v70 = vld [vmem:[%s1 + $0xc] sm:$0xf]
  %v71 = vld [vmem:[%s1 + $0x10] sm:$0xf]
  %v72 = vld [vmem:[%s1 + $0x14] sm:$0xf]
  %v73 = vld [vmem:[%s1 + $0x18] sm:$0xf]
  %v74 = vld [vmem:[%s1 + $0x1c] sm:$0xf]
  %v75 = vld [vmem:[%s1 + $0x20] sm:$0xf]
  %v76 = vld [vmem:[%s1 + $0x24] sm:$0xf]
  %v77 = vld [vmem:[%s1 + $0x28] sm:$0xf]
  %v78 = vld [vmem:[%s1 + $0x2c] sm:$0xf]
  %v79 = vld [vmem:[%s1 + $0x30] sm:$0xf]
  %v80 = vld [vmem:[%s1 + $0x34] sm:$0xf]
  %v81 = vld [vmem:[%s1 + $0x38] sm:$0xf]
  %v82 = vld [vmem:[%s1 + $0x3c] sm:$0xf]
  %v99 = vunpack.c.l.b16 %v51
  %v100 = vunpack.c.l.b16 %v52
  %v101 = vunpack.c.l.b16 %v53
  %v102 = vunpack.c.l.b16 %v54
  %v103 = vunpack.c.l.b16 %v55
  %v104 = vunpack.c.l.b16 %v56
  %v105 = vunpack.c.l.b16 %v57
  %v106 = vunpack.c.l.b16 %v58
  %v107 = vunpack.c.l.b16 %v59
  %v108 = vunpack.c.l.b16 %v60
  %v109 = vunpack.c.l.b16 %v61
  %v110 = vunpack.c.l.b16 %v62
  %v111 = vunpack.c.l.b16 %v63
  %v112 = vunpack.c.l.b16 %v64
  %v113 = vunpack.c.l.b16 %v65
  %v114 = vunpack.c.l.b16 %v66
  %v115 = vpack.c.b16 %v100, %v99
  %v116 = vpack.c.b16 %v102, %v101
  %v117 = vpack.c.b16 %v104, %v103
  %v118 = vpack.c.b16 %v106, %v105
  %v119 = vpack.c.b16 %v108, %v107
  %v120 = vpack.c.b16 %v110, %v109
  %v121 = vpack.c.b16 %v112, %v111
  %v122 = vpack.c.b16 %v114, %v113
  %v147 = vunpack.c.l.b16 %v67
  %v148 = vunpack.c.l.b16 %v68
  %v149 = vunpack.c.l.b16 %v69
  %v150 = vunpack.c.l.b16 %v70
  %v151 = vunpack.c.l.b16 %v71
  %v152 = vunpack.c.l.b16 %v72
  %v153 = vunpack.c.l.b16 %v73
  %v154 = vunpack.c.l.b16 %v74
  %v155 = vunpack.c.l.b16 %v75
  %v156 = vunpack.c.l.b16 %v76
  %v157 = vunpack.c.l.b16 %v77
  %v158 = vunpack.c.l.b16 %v78
  %v159 = vunpack.c.l.b16 %v79
  %v160 = vunpack.c.l.b16 %v80
  %v161 = vunpack.c.l.b16 %v81
  %v162 = vunpack.c.l.b16 %v82
  %v163 = vpack.c.b16 %v148, %v147
  %v164 = vpack.c.b16 %v150, %v149
  %v165 = vpack.c.b16 %v152, %v151
  %v166 = vpack.c.b16 %v154, %v153
  %v167 = vpack.c.b16 %v156, %v155
  %v168 = vpack.c.b16 %v158, %v157
  %v169 = vpack.c.b16 %v160, %v159
  %v170 = vpack.c.b16 %v162, %v161
  %179 = vmatprep.subr.bf16.mxu0 0
  %180 = vmatpush1.bf16.msra.mxu0 %v170
  %181 = vmatprep.subr.bf16.mxu0 0
  %182 = vmatpush1.bf16.msra.mxu0 %v169
  %183 = vmatprep.subr.bf16.mxu0 0
  %184 = vmatpush1.bf16.msra.mxu0 %v168
  %185 = vmatprep.subr.bf16.mxu0 0
  %186 = vmatpush1.bf16.msra.mxu0 %v167
  %187 = vmatprep.subr.bf16.mxu0 0
  %188 = vmatpush1.bf16.msra.mxu0 %v166
  %189 = vmatprep.subr.bf16.mxu0 0
  %190 = vmatpush1.bf16.msra.mxu0 %v165
  %191 = vmatprep.subr.bf16.mxu0 0
  %192 = vmatpush1.bf16.msra.mxu0 %v164
  %193 = vmatprep.subr.bf16.mxu0 0
  %194 = vmatpush1.bf16.msra.mxu0 %v163
  %195 = vmatprep.subr.bf16.mxu0 0
  %196 = vmatpush2.bf16.msra.mxu0 0
  %197 = vmatprep.subr.bf16.mxu0 0
  %198 = vmatpush2.bf16.msra.mxu0 0
  %199 = vmatprep.subr.bf16.mxu0 0
  %200 = vmatpush2.bf16.msra.mxu0 0
  %201 = vmatprep.subr.bf16.mxu0 0
  %202 = vmatpush2.bf16.msra.mxu0 0
  %203 = vmatprep.subr.bf16.mxu0 0
  %204 = vmatpush2.bf16.msra.mxu0 0
  %205 = vmatprep.subr.bf16.mxu0 0
  %206 = vmatpush2.bf16.msra.mxu0 0
  %207 = vmatprep.subr.bf16.mxu0 0
  %208 = vmatpush2.bf16.msra.mxu0 0
  %209 = vmatprep.subr.bf16.mxu0 0
  %210 = vmatpush2.bf16.msra.mxu0 0
  %211 = vmatprep.mubr.bf16.mxu0 0
  %212 = vmatmul.mubr.bf16.gmra.mxu0 %v115
  %v213 = vpop.f32.mrf.mxu0
  %v214 = vadd.f32 0.0, %v213
  %v215 = vpop.f32.mrf.mxu0
  %v216 = vpop.f32.mrf.mxu0
  %v217 = vadd.f32 0.0, %v216
  %v218 = vpop.f32.mrf.mxu0
  %219 = vmatprep.mubr.bf16.mxu0 0
  %220 = vmatmul.mubr.bf16.gmra.mxu0 %v116
  %v221 = vpop.f32.mrf.mxu0
  %v222 = vadd.f32 0.0, %v221
  %v223 = vpop.f32.mrf.mxu0
  %v224 = vpop.f32.mrf.mxu0
  %v225 = vadd.f32 0.0, %v224
  %v226 = vpop.f32.mrf.mxu0
  %227 = vmatprep.mubr.bf16.mxu0 0
  %228 = vmatmul.mubr.bf16.gmra.mxu0 %v117
  %v229 = vpop.f32.mrf.mxu0
  %v230 = vadd.f32 0.0, %v229
  %v231 = vpop.f32.mrf.mxu0
  %v232 = vpop.f32.mrf.mxu0
  %v233 = vadd.f32 0.0, %v232
  %v234 = vpop.f32.mrf.mxu0
  %235 = vmatprep.mubr.bf16.mxu0 0
  %236 = vmatmul.mubr.bf16.gmra.mxu0 %v118
  %v237 = vpop.f32.mrf.mxu0
  %v238 = vadd.f32 0.0, %v237
  %v239 = vpop.f32.mrf.mxu0
  %v240 = vpop.f32.mrf.mxu0
  %v241 = vadd.f32 0.0, %v240
  %v242 = vpop.f32.mrf.mxu0
  %243 = vmatprep.mubr.bf16.mxu0 0
  %244 = vmatmul.mubr.bf16.gmra.mxu0 %v119
  %v245 = vpop.f32.mrf.mxu0
  %v246 = vadd.f32 0.0, %v245
  %v247 = vpop.f32.mrf.mxu0
  %v248 = vpop.f32.mrf.mxu0
  %v249 = vadd.f32 0.0, %v248
  %v250 = vpop.f32.mrf.mxu0
  %251 = vmatprep.mubr.bf16.mxu0 0
  %252 = vmatmul.mubr.bf16.gmra.mxu0 %v120
  %v253 = vpop.f32.mrf.mxu0
  %v254 = vadd.f32 0.0, %v253
  %v255 = vpop.f32.mrf.mxu0
  %v256 = vpop.f32.mrf.mxu0
  %v257 = vadd.f32 0.0, %v256
  %v258 = vpop.f32.mrf.mxu0
  %259 = vmatprep.mubr.bf16.mxu0 0
  %260 = vmatmul.mubr.bf16.gmra.mxu0 %v121
  %v261 = vpop.f32.mrf.mxu0
  %v262 = vadd.f32 0.0, %v261
  %v263 = vpop.f32.mrf.mxu0
  %v264 = vpop.f32.mrf.mxu0
  %v265 = vadd.f32 0.0, %v264
  %v266 = vpop.f32.mrf.mxu0
  %267 = vmatprep.mubr.bf16.mxu0 0
  %268 = vmatmul.mubr.bf16.gmra.mxu0 %v122
  %v269 = vpop.f32.mrf.mxu0
  %v270 = vadd.f32 0.0, %v269
  %v271 = vpop.f32.mrf.mxu0
  %v272 = vpop.f32.mrf.mxu0
  %v273 = vadd.f32 0.0, %v272
  %v274 = vpop.f32.mrf.mxu0
  %275 = vdwg.mxu0
  %v276 = vadd.f32 %v35, %v214
  %v277 = vadd.f32 %v36, %v217
  %v278 = vadd.f32 %v37, %v222
  %v279 = vadd.f32 %v38, %v225
  %v280 = vadd.f32 %v39, %v230
  %v281 = vadd.f32 %v40, %v233
  %v282 = vadd.f32 %v41, %v238
  %v283 = vadd.f32 %v42, %v241
  %v284 = vadd.f32 %v43, %v246
  %v285 = vadd.f32 %v44, %v249
  %v286 = vadd.f32 %v45, %v254
  %v287 = vadd.f32 %v46, %v257
  %v288 = vadd.f32 %v47, %v262
  %v289 = vadd.f32 %v48, %v265
  %v290 = vadd.f32 %v49, %v270
  %v291 = vadd.f32 %v50, %v273
  %292 = vst [vmem:[#allocation2] sm:$0xff] %v276
  %293 = vst [vmem:[#allocation2 + $0x8] sm:$0xff] %v277
  %294 = vst [vmem:[#allocation2 + $0x10] sm:$0xff] %v278
  %295 = vst [vmem:[#allocation2 + $0x18] sm:$0xff] %v279
  %296 = vst [vmem:[#allocation2 + $0x20] sm:$0xff] %v280
  %297 = vst [vmem:[#allocation2 + $0x28] sm:$0xff] %v281
  %298 = vst [vmem:[#allocation2 + $0x30] sm:$0xff] %v282
  %299 = vst [vmem:[#allocation2 + $0x38] sm:$0xff] %v283
  %300 = vst [vmem:[#allocation2 + $0x40] sm:$0xff] %v284
  %301 = vst [vmem:[#allocation2 + $0x48] sm:$0xff] %v285
  %302 = vst [vmem:[#allocation2 + $0x50] sm:$0xff] %v286
  %303 = vst [vmem:[#allocation2 + $0x58] sm:$0xff] %v287
  %304 = vst [vmem:[#allocation2 + $0x60] sm:$0xff] %v288
  %305 = vst [vmem:[#allocation2 + $0x68] sm:$0xff] %v289
  %306 = vst [vmem:[#allocation2 + $0x70] sm:$0xff] %v290
  %307 = vst [vmem:[#allocation2 + $0x78] sm:$0xff] %v291
  %p308 = scmp.eq.s32.totalorder 0, 0
  %p309 = pnand %p15, %p308
  %p310 = pneg %p309
  // Predicated region
  $region14: #{_forward_impl.331} parent=0 // pred_check
    _
  $region15: #{_forward_impl.331} parent=0 // pred_check_branch
    %312 = sbr.rel (%p309) target = $region17
  $region16: #{_forward_impl.331} parent=0 // pred_region
    %313 = vst [vmem:[%s3] sm:$0x1] 0.0
    %314 = vst [vmem:[%s4] sm:$0x1] 0.0
  $region17: #{_forward_impl.331} parent=0 // pred_fallthru
    _
  // Predicated region
  $region18: #{_forward_impl.331} parent=0 // pred_check
    %p315 = pneg %p15
  $region19: #{_forward_impl.331} parent=0 // pred_check_branch
    %317 = sbr.rel (%p315) target = $region21
  $region20: #{_forward_impl.331} parent=0 // pred_region
    %v318 = vld [vmem:[#allocation2] sm:$0xff]
    %v319 = vld [vmem:[#allocation2 + $0x8] sm:$0xff]
    %v320 = vld [vmem:[#allocation2 + $0x10] sm:$0xff]
    %v321 = vld [vmem:[#allocation2 + $0x18] sm:$0xff]
    %v322 = vld [vmem:[#allocation2 + $0x20] sm:$0xff]
    %v323 = vld [vmem:[#allocation2 + $0x28] sm:$0xff]
    %v324 = vld [vmem:[#allocation2 + $0x30] sm:$0xff]
    %v325 = vld [vmem:[#allocation2 + $0x38] sm:$0xff]
    %v326 = vld [vmem:[#allocation2 + $0x40] sm:$0xff]
    %v327 = vld [vmem:[#allocation2 + $0x48] sm:$0xff]
    %v328 = vld [vmem:[#allocation2 + $0x50] sm:$0xff]
    %v329 = vld [vmem:[#allocation2 + $0x58] sm:$0xff]
    %v330 = vld [vmem:[#allocation2 + $0x60] sm:$0xff]
    %v331 = vld [vmem:[#allocation2 + $0x68] sm:$0xff]
    %v332 = vld [vmem:[#allocation2 + $0x70] sm:$0xff]
    %v333 = vld [vmem:[#allocation2 + $0x78] sm:$0xff]
    %334 = vst [vmem:[%s2] sm:$0xff] %v318
    %335 = vst [vmem:[%s2 + $0x8] sm:$0xff] %v319
    %336 = vst [vmem:[%s2 + $0x10] sm:$0xff] %v320
    %337 = vst [vmem:[%s2 + $0x18] sm:$0xff] %v321
    %338 = vst [vmem:[%s2 + $0x20] sm:$0xff] %v322
    %339 = vst [vmem:[%s2 + $0x28] sm:$0xff] %v323
    %340 = vst [vmem:[%s2 + $0x30] sm:$0xff] %v324
    %341 = vst [vmem:[%s2 + $0x38] sm:$0xff] %v325
    %342 = vst [vmem:[%s2 + $0x40] sm:$0xff] %v326
    %343 = vst [vmem:[%s2 + $0x48] sm:$0xff] %v327
    %344 = vst [vmem:[%s2 + $0x50] sm:$0xff] %v328
    %345 = vst [vmem:[%s2 + $0x58] sm:$0xff] %v329
    %346 = vst [vmem:[%s2 + $0x60] sm:$0xff] %v330
    %347 = vst [vmem:[%s2 + $0x68] sm:$0xff] %v331
    %348 = vst [vmem:[%s2 + $0x70] sm:$0xff] %v332
    %349 = vst [vmem:[%s2 + $0x78] sm:$0xff] %v333
    %v350 = vld [vmem:[%s3] sm:$0x1]
    %v351 = vadd.f32 %v318, %v319
    %v352 = vadd.f32 %v351, %v320
    %v353 = vadd.f32 %v352, %v321
    %v354 = vadd.f32 %v353, %v322
    %v355 = vadd.f32 %v354, %v323
    %v356 = vadd.f32 %v355, %v324
    %v357 = vadd.f32 %v356, %v325
    %v358 = vadd.f32 %v357, %v326
    %v359 = vadd.f32 %v358, %v327
    %v360 = vadd.f32 %v359, %v328
    %v361 = vadd.f32 %v360, %v329
    %v362 = vadd.f32 %v361, %v330
    %v363 = vadd.f32 %v362, %v331
    %v364 = vadd.f32 %v363, %v332
    %v365 = vadd.f32 %v364, %v333
    %v366 = vrot.slane %v365, 4
    %v367 = vadd.f32 %v365, %v366
    %v368 = vrot.slane %v367, 2
    %v369 = vadd.f32 %v367, %v368
    %v370 = vrot.slane %v369, 1
    %v371 = vadd.f32 %v369, %v370
    %v372 = vadd.f32 %v350, %v371
    %373 = vst [vmem:[%s3] sm:$0x1] %v372
    %v374 = vld [vmem:[%s4] sm:$0x1]
    %v375 = vmul.f32 %v318, %v318
    %v376 = vmul.f32 %v319, %v319
    %v377 = vmul.f32 %v320, %v320
    %v378 = vmul.f32 %v321, %v321
    %v379 = vmul.f32 %v322, %v322
    %v380 = vmul.f32 %v323, %v323
    %v381 = vmul.f32 %v324, %v324
    %v382 = vmul.f32 %v325, %v325
    %v383 = vmul.f32 %v326, %v326
    %v384 = vmul.f32 %v327, %v327
    %v385 = vmul.f32 %v328, %v328
    %v386 = vmul.f32 %v329, %v329
    %v387 = vmul.f32 %v330, %v330
    %v388 = vmul.f32 %v331, %v331
    %v389 = vmul.f32 %v332, %v332
    %v390 = vmul.f32 %v333, %v333
    %v391 = vadd.f32 %v375, %v376
    %v392 = vadd.f32 %v391, %v377
    %v393 = vadd.f32 %v392, %v378
    %v394 = vadd.f32 %v393, %v379
    %v395 = vadd.f32 %v394, %v380
    %v396 = vadd.f32 %v395, %v381
    %v397 = vadd.f32 %v396, %v382
    %v398 = vadd.f32 %v397, %v383
    %v399 = vadd.f32 %v398, %v384
    %v400 = vadd.f32 %v399, %v385
    %v401 = vadd.f32 %v400, %v386
    %v402 = vadd.f32 %v401, %v387
    %v403 = vadd.f32 %v402, %v388
    %v404 = vadd.f32 %v403, %v389
    %v405 = vadd.f32 %v404, %v390
    %v406 = vrot.slane %v405, 4
    %v407 = vadd.f32 %v405, %v406
    %v408 = vrot.slane %v407, 2
    %v409 = vadd.f32 %v407, %v408
    %v410 = vrot.slane %v409, 1
    %v411 = vadd.f32 %v409, %v410
    %v412 = vadd.f32 %v374, %v411
    %413 = vst [vmem:[%s4] sm:$0x1] %v412
  $region21: #{_forward_impl.331} parent=0 // pred_fallthru
    _
  // Predicated region
  $region22: #{_forward_impl.331} parent=0 // pred_check
    _
  $region23: #{_forward_impl.331} parent=0 // pred_check_branch
    %415 = sbr.rel (0) target = $region25
  $region24: #{_forward_impl.331} parent=0 // pred_region
    _
  $region25: #{_forward_impl.331} parent=0 // pred_fallthru
    _
  // Predicated region
  $region26: #{_forward_impl.331} parent=0 // pred_check
    _
  $region27: #{_forward_impl.331} parent=0 // pred_check_branch
    %417 = sbr.rel (0) target = $region29
  $region28: #{_forward_impl.331} parent=0 // pred_region
    _
  $region29: #{_forward_impl.331} parent=0 // pred_fallthru
    _
  // Predicated region
  $region30: #{_forward_impl.331} parent=0 // pred_check
    _
  $region31: #{_forward_impl.331} parent=0 // pred_check_branch
    %419 = sbr.rel (0) target = $region33
  $region32: #{_forward_impl.331} parent=0 // pred_region
    _
  $region33: #{_forward_impl.331} parent=0 // pred_fallthru
    _
  // Predicated region
  $region34: #{_forward_impl.331} parent=0 // pred_check
    _
  $region35: #{_forward_impl.331} parent=0 // pred_check_branch
    %421 = sbr.rel (0) target = $region37
  $region36: #{_forward_impl.331} parent=0 // pred_region
    _
  $region37: #{_forward_impl.331} parent=0 // pred_fallthru
    _
  // Predicated region
  $region38: #{_forward_impl.331} parent=0 // pred_check
    _
  $region39: #{_forward_impl.331} parent=0 // pred_check_branch
    %423 = sbr.rel (0) target = $region41
  $region40: #{_forward_impl.331} parent=0 // pred_region
    _
  $region41: #{_forward_impl.331} parent=0 // pred_fallthru
    _
  // Predicated region
  $region42: #{_forward_impl.331} parent=0 // pred_check
    _
  $region43: #{_forward_impl.331} parent=0 // pred_check_branch
    %425 = sbr.rel (0) target = $region45
  $region44: #{_forward_impl.331} parent=0 // pred_region
    _
  $region45: #{_forward_impl.331} parent=0 // pred_fallthru
    _

// kernel: _forward_impl.332
$region0: #{_forward_impl.332}
  #allocation0 [shape = 'u32[]', space=smem, size = 0x4, offset = 0x4, fixed_abs, tag = 'smem constant byte address 0x4 - core index']
  #allocation1 [shape = 'u32[144,128]{1,0:T(1,128)}', space=vmem, size = 0x12000, scoped, tag = 'internal scratch']
  %s0 = inlined_call_operand.vmem [shape: f32[128,128], index: 0, kind: input, shape index: {}]
  %s1 = inlined_call_operand.vmem [shape: f32[1,128], index: 1, kind: input, shape index: {}]
  %s2 = inlined_call_operand.vmem [shape: f32[1,128], index: 2, kind: input, shape index: {}]
  %s3 = inlined_call_operand.vmem [shape: f32[128,128], index: 3, kind: output, shape index: {}]
  %s4 = sld [smem:[#allocation0]]
  $region22: #{_forward_impl.332} parent=0
    _
  %s6 = ssub.s32 1, %s4
  %s7 = scalar_select 0, %s6, %s4
  // Predicated region
  $region2: #{_forward_impl.332} parent=0 // pred_check
    _
  $region3: #{_forward_impl.332} parent=0 // pred_check_branch
    %9 = sbr.rel (0) target = $region5
  $region4: #{_forward_impl.332} parent=0 // pred_region
    _
  $region5: #{_forward_impl.332} parent=0 // pred_fallthru
    _
  // Predicated region
  $region6: #{_forward_impl.332} parent=0 // pred_check
    _
  $region7: #{_forward_impl.332} parent=0 // pred_check_branch
    %11 = sbr.rel (0) target = $region9
  $region8: #{_forward_impl.332} parent=0 // pred_region
    _
  $region9: #{_forward_impl.332} parent=0 // pred_fallthru
    _
  // Predicated region
  $region10: #{_forward_impl.332} parent=0 // pred_check
    _
  $region11: #{_forward_impl.332} parent=0 // pred_check_branch
    %13 = sbr.rel (0) target = $region13
  $region12: #{_forward_impl.332} parent=0 // pred_region
    _
  $region13: #{_forward_impl.332} parent=0 // pred_fallthru
    _
  %v14 = vld [vmem:[%s0] sm:$0xff]
  %v15 = vld [vmem:[%s0 + $0x8] sm:$0xff]
  %v16 = vld [vmem:[%s0 + $0x10] sm:$0xff]
  %v17 = vld [vmem:[%s0 + $0x18] sm:$0xff]
  %v18 = vld [vmem:[%s0 + $0x20] sm:$0xff]
  %v19 = vld [vmem:[%s0 + $0x28] sm:$0xff]
  %v20 = vld [vmem:[%s0 + $0x30] sm:$0xff]
  %v21 = vld [vmem:[%s0 + $0x38] sm:$0xff]
  %v22 = vld [vmem:[%s0 + $0x40] sm:$0xff]
  %v23 = vld [vmem:[%s0 + $0x48] sm:$0xff]
  %v24 = vld [vmem:[%s0 + $0x50] sm:$0xff]
  %v25 = vld [vmem:[%s0 + $0x58] sm:$0xff]
  %v26 = vld [vmem:[%s0 + $0x60] sm:$0xff]
  %v27 = vld [vmem:[%s0 + $0x68] sm:$0xff]
  %v28 = vld [vmem:[%s0 + $0x70] sm:$0xff]
  %v29 = vld [vmem:[%s0 + $0x78] sm:$0xff]
  %v30 = vld [vmem:[%s1] sm:$0x1]
  %v32 = vlaneseq
  %v33 = vshrl.u32 %v32, 7
  %v34 = vsub.s32 0, %v33
  %v35 = vrot.slane %v30, %v34
  %v37 = vmul.f32 %v14, %v35
  %v38 = vmul.f32 %v15, %v35
  %v39 = vmul.f32 %v16, %v35
  %v40 = vmul.f32 %v17, %v35
  %v41 = vmul.f32 %v18, %v35
  %v42 = vmul.f32 %v19, %v35
  %v43 = vmul.f32 %v20, %v35
  %v44 = vmul.f32 %v21, %v35
  %v45 = vmul.f32 %v22, %v35
  %v46 = vmul.f32 %v23, %v35
  %v47 = vmul.f32 %v24, %v35
  %v48 = vmul.f32 %v25, %v35
  %v49 = vmul.f32 %v26, %v35
  %v50 = vmul.f32 %v27, %v35
  %v51 = vmul.f32 %v28, %v35
  %v52 = vmul.f32 %v29, %v35
  %v53 = vld [vmem:[%s2] sm:$0x1]
  %v55 = vlaneseq
  %v56 = vshrl.u32 %v55, 7
  %v57 = vsub.s32 0, %v56
  %v58 = vrot.slane %v53, %v57
  %v60 = vadd.f32 %v37, %v58
  %v61 = vadd.f32 %v38, %v58
  %v62 = vadd.f32 %v39, %v58
  %v63 = vadd.f32 %v40, %v58
  %v64 = vadd.f32 %v41, %v58
  %v65 = vadd.f32 %v42, %v58
  %v66 = vadd.f32 %v43, %v58
  %v67 = vadd.f32 %v44, %v58
  %v68 = vadd.f32 %v45, %v58
  %v69 = vadd.f32 %v46, %v58
  %v70 = vadd.f32 %v47, %v58
  %v71 = vadd.f32 %v48, %v58
  %v72 = vadd.f32 %v49, %v58
  %v73 = vadd.f32 %v50, %v58
  %v74 = vadd.f32 %v51, %v58
  %v75 = vadd.f32 %v52, %v58
  %v76 = vmax.f32 %v60, 0.0
  %v77 = vmax.f32 %v61, 0.0
  %v78 = vmax.f32 %v62, 0.0
  %v79 = vmax.f32 %v63, 0.0
  %v80 = vmax.f32 %v64, 0.0
  %v81 = vmax.f32 %v65, 0.0
  %v82 = vmax.f32 %v66, 0.0
  %v83 = vmax.f32 %v67, 0.0
  %v84 = vmax.f32 %v68, 0.0
  %v85 = vmax.f32 %v69, 0.0
  %v86 = vmax.f32 %v70, 0.0
  %v87 = vmax.f32 %v71, 0.0
  %v88 = vmax.f32 %v72, 0.0
  %v89 = vmax.f32 %v73, 0.0
  %v90 = vmax.f32 %v74, 0.0
  %v91 = vmax.f32 %v75, 0.0
  %92 = vst [vmem:[%s3] sm:$0xff] %v76
  %93 = vst [vmem:[%s3 + $0x8] sm:$0xff] %v77
  %94 = vst [vmem:[%s3 + $0x10] sm:$0xff] %v78
  %95 = vst [vmem:[%s3 + $0x18] sm:$0xff] %v79
  %96 = vst [vmem:[%s3 + $0x20] sm:$0xff] %v80
  %97 = vst [vmem:[%s3 + $0x28] sm:$0xff] %v81
  %98 = vst [vmem:[%s3 + $0x30] sm:$0xff] %v82
  %99 = vst [vmem:[%s3 + $0x38] sm:$0xff] %v83
  %100 = vst [vmem:[%s3 + $0x40] sm:$0xff] %v84
  %101 = vst [vmem:[%s3 + $0x48] sm:$0xff] %v85
  %102 = vst [vmem:[%s3 + $0x50] sm:$0xff] %v86
  %103 = vst [vmem:[%s3 + $0x58] sm:$0xff] %v87
  %104 = vst [vmem:[%s3 + $0x60] sm:$0xff] %v88
  %105 = vst [vmem:[%s3 + $0x68] sm:$0xff] %v89
  %106 = vst [vmem:[%s3 + $0x70] sm:$0xff] %v90
  %107 = vst [vmem:[%s3 + $0x78] sm:$0xff] %v91
  // Predicated region
  $region14: #{_forward_impl.332} parent=0 // pred_check
    _
  $region15: #{_forward_impl.332} parent=0 // pred_check_branch
    %109 = sbr.rel (0) target = $region17
  $region16: #{_forward_impl.332} parent=0 // pred_region
    _
  $region17: #{_forward_impl.332} parent=0 // pred_fallthru
    _
  // Predicated region
  $region18: #{_forward_impl.332} parent=0 // pred_check
    _
  $region19: #{_forward_impl.332} parent=0 // pred_check_branch
    %111 = sbr.rel (0) target = $region21
  $region20: #{_forward_impl.332} parent=0 // pred_region
    _
  $region21: #{_forward_impl.332} parent=0 // pred_fallthru
    _

// kernel: _forward_impl.341
$region0: #{_forward_impl.341}
  #allocation0 [shape = 'u32[]', space=smem, size = 0x4, offset = 0x4, fixed_abs, tag = 'smem constant byte address 0x4 - core index']
  #allocation1 [shape = 'u32[144,128]{1,0:T(1,128)}', space=vmem, size = 0x12000, scoped, tag = 'internal scratch']
  %s0 = inlined_call_operand.vmem [shape: f32[128,128], index: 0, kind: input, shape index: {}]
  %s1 = inlined_call_operand.vmem [shape: f32[1,128], index: 1, kind: input, shape index: {}]
  %s2 = inlined_call_operand.vmem [shape: f32[1,128], index: 2, kind: input, shape index: {}]
  %s3 = inlined_call_operand.vmem [shape: f32[128,128], index: 3, kind: output, shape index: {}]
  %s4 = sld [smem:[#allocation0]]
  $region22: #{_forward_impl.341} parent=0
    _
  %s6 = ssub.s32 1, %s4
  %s7 = scalar_select 0, %s6, %s4
  // Predicated region
  $region2: #{_forward_impl.341} parent=0 // pred_check
    _
  $region3: #{_forward_impl.341} parent=0 // pred_check_branch
    %9 = sbr.rel (0) target = $region5
  $region4: #{_forward_impl.341} parent=0 // pred_region
    _
  $region5: #{_forward_impl.341} parent=0 // pred_fallthru
    _
  // Predicated region
  $region6: #{_forward_impl.341} parent=0 // pred_check
    _
  $region7: #{_forward_impl.341} parent=0 // pred_check_branch
    %11 = sbr.rel (0) target = $region9
  $region8: #{_forward_impl.341} parent=0 // pred_region
    _
  $region9: #{_forward_impl.341} parent=0 // pred_fallthru
    _
  // Predicated region
  $region10: #{_forward_impl.341} parent=0 // pred_check
    _
  $region11: #{_forward_impl.341} parent=0 // pred_check_branch
    %13 = sbr.rel (0) target = $region13
  $region12: #{_forward_impl.341} parent=0 // pred_region
    _
  $region13: #{_forward_impl.341} parent=0 // pred_fallthru
    _
  %v14 = vld [vmem:[%s0] sm:$0xff]
  %v15 = vld [vmem:[%s0 + $0x8] sm:$0xff]
  %v16 = vld [vmem:[%s0 + $0x10] sm:$0xff]
  %v17 = vld [vmem:[%s0 + $0x18] sm:$0xff]
  %v18 = vld [vmem:[%s0 + $0x20] sm:$0xff]
  %v19 = vld [vmem:[%s0 + $0x28] sm:$0xff]
  %v20 = vld [vmem:[%s0 + $0x30] sm:$0xff]
  %v21 = vld [vmem:[%s0 + $0x38] sm:$0xff]
  %v22 = vld [vmem:[%s0 + $0x40] sm:$0xff]
  %v23 = vld [vmem:[%s0 + $0x48] sm:$0xff]
  %v24 = vld [vmem:[%s0 + $0x50] sm:$0xff]
  %v25 = vld [vmem:[%s0 + $0x58] sm:$0xff]
  %v26 = vld [vmem:[%s0 + $0x60] sm:$0xff]
  %v27 = vld [vmem:[%s0 + $0x68] sm:$0xff]
  %v28 = vld [vmem:[%s0 + $0x70] sm:$0xff]
  %v29 = vld [vmem:[%s0 + $0x78] sm:$0xff]
  %v30 = vld [vmem:[%s1] sm:$0x1]
  %v32 = vlaneseq
  %v33 = vshrl.u32 %v32, 7
  %v34 = vsub.s32 0, %v33
  %v35 = vrot.slane %v30, %v34
  %v37 = vmul.f32 %v14, %v35
  %v38 = vmul.f32 %v15, %v35
  %v39 = vmul.f32 %v16, %v35
  %v40 = vmul.f32 %v17, %v35
  %v41 = vmul.f32 %v18, %v35
  %v42 = vmul.f32 %v19, %v35
  %v43 = vmul.f32 %v20, %v35
  %v44 = vmul.f32 %v21, %v35
  %v45 = vmul.f32 %v22, %v35
  %v46 = vmul.f32 %v23, %v35
  %v47 = vmul.f32 %v24, %v35
  %v48 = vmul.f32 %v25, %v35
  %v49 = vmul.f32 %v26, %v35
  %v50 = vmul.f32 %v27, %v35
  %v51 = vmul.f32 %v28, %v35
  %v52 = vmul.f32 %v29, %v35
  %v53 = vld [vmem:[%s2] sm:$0x1]
  %v55 = vlaneseq
  %v56 = vshrl.u32 %v55, 7
  %v57 = vsub.s32 0, %v56
  %v58 = vrot.slane %v53, %v57
  %v60 = vadd.f32 %v37, %v58
  %v61 = vadd.f32 %v38, %v58
  %v62 = vadd.f32 %v39, %v58
  %v63 = vadd.f32 %v40, %v58
  %v64 = vadd.f32 %v41, %v58
  %v65 = vadd.f32 %v42, %v58
  %v66 = vadd.f32 %v43, %v58
  %v67 = vadd.f32 %v44, %v58
  %v68 = vadd.f32 %v45, %v58
  %v69 = vadd.f32 %v46, %v58
  %v70 = vadd.f32 %v47, %v58
  %v71 = vadd.f32 %v48, %v58
  %v72 = vadd.f32 %v49, %v58
  %v73 = vadd.f32 %v50, %v58
  %v74 = vadd.f32 %v51, %v58
  %v75 = vadd.f32 %v52, %v58
  %76 = vst [vmem:[%s3] sm:$0xff] %v60
  %77 = vst [vmem:[%s3 + $0x8] sm:$0xff] %v61
  %78 = vst [vmem:[%s3 + $0x10] sm:$0xff] %v62
  %79 = vst [vmem:[%s3 + $0x18] sm:$0xff] %v63
  %80 = vst [vmem:[%s3 + $0x20] sm:$0xff] %v64
  %81 = vst [vmem:[%s3 + $0x28] sm:$0xff] %v65
  %82 = vst [vmem:[%s3 + $0x30] sm:$0xff] %v66
  %83 = vst [vmem:[%s3 + $0x38] sm:$0xff] %v67
  %84 = vst [vmem:[%s3 + $0x40] sm:$0xff] %v68
  %85 = vst [vmem:[%s3 + $0x48] sm:$0xff] %v69
  %86 = vst [vmem:[%s3 + $0x50] sm:$0xff] %v70
  %87 = vst [vmem:[%s3 + $0x58] sm:$0xff] %v71
  %88 = vst [vmem:[%s3 + $0x60] sm:$0xff] %v72
  %89 = vst [vmem:[%s3 + $0x68] sm:$0xff] %v73
  %90 = vst [vmem:[%s3 + $0x70] sm:$0xff] %v74
  %91 = vst [vmem:[%s3 + $0x78] sm:$0xff] %v75
  // Predicated region
  $region14: #{_forward_impl.341} parent=0 // pred_check
    _
  $region15: #{_forward_impl.341} parent=0 // pred_check_branch
    %93 = sbr.rel (0) target = $region17
  $region16: #{_forward_impl.341} parent=0 // pred_region
    _
  $region17: #{_forward_impl.341} parent=0 // pred_fallthru
    _
  // Predicated region
  $region18: #{_forward_impl.341} parent=0 // pred_check
    _
  $region19: #{_forward_impl.341} parent=0 // pred_check_branch
    %95 = sbr.rel (0) target = $region21
  $region20: #{_forward_impl.341} parent=0 // pred_region
    _
  $region21: #{_forward_impl.341} parent=0 // pred_fallthru
    _

// kernel: _forward_impl.251
$region0: #{_forward_impl.251}
  #allocation0 [shape = 'u32[]', space=smem, size = 0x4, offset = 0x4, fixed_abs, tag = 'smem constant byte address 0x4 - core index']
  #allocation1 [shape = 'u32[144,128]{1,0:T(1,128)}', space=vmem, size = 0x12000, scoped, tag = 'internal scratch']
  %s0 = inlined_call_operand.vmem [shape: f32[9,128,128], index: 0, kind: input, shape index: {}]
  %s1 = inlined_call_operand.vmem [shape: f32[128,128], index: 1, kind: output, shape index: {}]
  %s2 = sld [smem:[#allocation0]]
  $region14: #{_forward_impl.251} parent=0
    _
  %s4 = ssub.s32 1, %s2
  %s5 = scalar_select 0, %s4, %s2
  // Predicated region
  $region2: #{_forward_impl.251} parent=0 // pred_check
    _
  $region3: #{_forward_impl.251} parent=0 // pred_check_branch
    %7 = sbr.rel (0) target = $region5
  $region4: #{_forward_impl.251} parent=0 // pred_region
    _
  $region5: #{_forward_impl.251} parent=0 // pred_fallthru
    _
  %v8 = vld [vmem:[%s0] sm:$0xff]
  %v9 = vld [vmem:[%s0 + $0x8] sm:$0xff]
  %v10 = vld [vmem:[%s0 + $0x10] sm:$0xff]
  %v11 = vld [vmem:[%s0 + $0x18] sm:$0xff]
  %v12 = vld [vmem:[%s0 + $0x20] sm:$0xff]
  %v13 = vld [vmem:[%s0 + $0x28] sm:$0xff]
  %v14 = vld [vmem:[%s0 + $0x30] sm:$0xff]
  %v15 = vld [vmem:[%s0 + $0x38] sm:$0xff]
  %v16 = vld [vmem:[%s0 + $0x40] sm:$0xff]
  %v17 = vld [vmem:[%s0 + $0x48] sm:$0xff]
  %v18 = vld [vmem:[%s0 + $0x50] sm:$0xff]
  %v19 = vld [vmem:[%s0 + $0x58] sm:$0xff]
  %v20 = vld [vmem:[%s0 + $0x60] sm:$0xff]
  %v21 = vld [vmem:[%s0 + $0x68] sm:$0xff]
  %v22 = vld [vmem:[%s0 + $0x70] sm:$0xff]
  %v23 = vld [vmem:[%s0 + $0x78] sm:$0xff]
  %s24 = scalar_lea.vmem %s0, 128
  %v25 = vld [vmem:[%s24] sm:$0xff]
  %v26 = vld [vmem:[%s24 + $0x8] sm:$0xff]
  %v27 = vld [vmem:[%s24 + $0x10] sm:$0xff]
  %v28 = vld [vmem:[%s24 + $0x18] sm:$0xff]
  %v29 = vld [vmem:[%s24 + $0x20] sm:$0xff]
  %v30 = vld [vmem:[%s24 + $0x28] sm:$0xff]
  %v31 = vld [vmem:[%s24 + $0x30] sm:$0xff]
  %v32 = vld [vmem:[%s24 + $0x38] sm:$0xff]
  %v33 = vld [vmem:[%s24 + $0x40] sm:$0xff]
  %v34 = vld [vmem:[%s24 + $0x48] sm:$0xff]
  %v35 = vld [vmem:[%s24 + $0x50] sm:$0xff]
  %v36 = vld [vmem:[%s24 + $0x58] sm:$0xff]
  %v37 = vld [vmem:[%s24 + $0x60] sm:$0xff]
  %v38 = vld [vmem:[%s24 + $0x68] sm:$0xff]
  %v39 = vld [vmem:[%s24 + $0x70] sm:$0xff]
  %v40 = vld [vmem:[%s24 + $0x78] sm:$0xff]
  %v41 = vmax.f32 %v8, %v25
  %v42 = vmax.f32 %v9, %v26
  %v43 = vmax.f32 %v10, %v27
  %v44 = vmax.f32 %v11, %v28
  %v45 = vmax.f32 %v12, %v29
  %v46 = vmax.f32 %v13, %v30
  %v47 = vmax.f32 %v14, %v31
  %v48 = vmax.f32 %v15, %v32
  %v49 = vmax.f32 %v16, %v33
  %v50 = vmax.f32 %v17, %v34
  %v51 = vmax.f32 %v18, %v35
  %v52 = vmax.f32 %v19, %v36
  %v53 = vmax.f32 %v20, %v37
  %v54 = vmax.f32 %v21, %v38
  %v55 = vmax.f32 %v22, %v39
  %v56 = vmax.f32 %v23, %v40
  %s57 = scalar_lea.vmem %s0, 256
  %v58 = vld [vmem:[%s57] sm:$0xff]
  %v59 = vld [vmem:[%s57 + $0x8] sm:$0xff]
  %v60 = vld [vmem:[%s57 + $0x10] sm:$0xff]
  %v61 = vld [vmem:[%s57 + $0x18] sm:$0xff]
  %v62 = vld [vmem:[%s57 + $0x20] sm:$0xff]
  %v63 = vld [vmem:[%s57 + $0x28] sm:$0xff]
  %v64 = vld [vmem:[%s57 + $0x30] sm:$0xff]
  %v65 = vld [vmem:[%s57 + $0x38] sm:$0xff]
  %v66 = vld [vmem:[%s57 + $0x40] sm:$0xff]
  %v67 = vld [vmem:[%s57 + $0x48] sm:$0xff]
  %v68 = vld [vmem:[%s57 + $0x50] sm:$0xff]
  %v69 = vld [vmem:[%s57 + $0x58] sm:$0xff]
  %v70 = vld [vmem:[%s57 + $0x60] sm:$0xff]
  %v71 = vld [vmem:[%s57 + $0x68] sm:$0xff]
  %v72 = vld [vmem:[%s57 + $0x70] sm:$0xff]
  %v73 = vld [vmem:[%s57 + $0x78] sm:$0xff]
  %v74 = vmax.f32 %v41, %v58
  %v75 = vmax.f32 %v42, %v59
  %v76 = vmax.f32 %v43, %v60
  %v77 = vmax.f32 %v44, %v61
  %v78 = vmax.f32 %v45, %v62
  %v79 = vmax.f32 %v46, %v63
  %v80 = vmax.f32 %v47, %v64
  %v81 = vmax.f32 %v48, %v65
  %v82 = vmax.f32 %v49, %v66
  %v83 = vmax.f32 %v50, %v67
  %v84 = vmax.f32 %v51, %v68
  %v85 = vmax.f32 %v52, %v69
  %v86 = vmax.f32 %v53, %v70
  %v87 = vmax.f32 %v54, %v71
  %v88 = vmax.f32 %v55, %v72
  %v89 = vmax.f32 %v56, %v73
  %s90 = scalar_lea.vmem %s0, 384
  %v91 = vld [vmem:[%s90] sm:$0xff]
  %v92 = vld [vmem:[%s90 + $0x8] sm:$0xff]
  %v93 = vld [vmem:[%s90 + $0x10] sm:$0xff]
  %v94 = vld [vmem:[%s90 + $0x18] sm:$0xff]
  %v95 = vld [vmem:[%s90 + $0x20] sm:$0xff]
  %v96 = vld [vmem:[%s90 + $0x28] sm:$0xff]
  %v97 = vld [vmem:[%s90 + $0x30] sm:$0xff]
  %v98 = vld [vmem:[%s90 + $0x38] sm:$0xff]
  %v99 = vld [vmem:[%s90 + $0x40] sm:$0xff]
  %v100 = vld [vmem:[%s90 + $0x48] sm:$0xff]
  %v101 = vld [vmem:[%s90 + $0x50] sm:$0xff]
  %v102 = vld [vmem:[%s90 + $0x58] sm:$0xff]
  %v103 = vld [vmem:[%s90 + $0x60] sm:$0xff]
  %v104 = vld [vmem:[%s90 + $0x68] sm:$0xff]
  %v105 = vld [vmem:[%s90 + $0x70] sm:$0xff]
  %v106 = vld [vmem:[%s90 + $0x78] sm:$0xff]
  %v107 = vmax.f32 %v74, %v91
  %v108 = vmax.f32 %v75, %v92
  %v109 = vmax.f32 %v76, %v93
  %v110 = vmax.f32 %v77, %v94
  %v111 = vmax.f32 %v78, %v95
  %v112 = vmax.f32 %v79, %v96
  %v113 = vmax.f32 %v80, %v97
  %v114 = vmax.f32 %v81, %v98
  %v115 = vmax.f32 %v82, %v99
  %v116 = vmax.f32 %v83, %v100
  %v117 = vmax.f32 %v84, %v101
  %v118 = vmax.f32 %v85, %v102
  %v119 = vmax.f32 %v86, %v103
  %v120 = vmax.f32 %v87, %v104
  %v121 = vmax.f32 %v88, %v105
  %v122 = vmax.f32 %v89, %v106
  %s123 = scalar_lea.vmem %s0, 512
  %v124 = vld [vmem:[%s123] sm:$0xff]
  %v125 = vld [vmem:[%s123 + $0x8] sm:$0xff]
  %v126 = vld [vmem:[%s123 + $0x10] sm:$0xff]
  %v127 = vld [vmem:[%s123 + $0x18] sm:$0xff]
  %v128 = vld [vmem:[%s123 + $0x20] sm:$0xff]
  %v129 = vld [vmem:[%s123 + $0x28] sm:$0xff]
  %v130 = vld [vmem:[%s123 + $0x30] sm:$0xff]
  %v131 = vld [vmem:[%s123 + $0x38] sm:$0xff]
  %v132 = vld [vmem:[%s123 + $0x40] sm:$0xff]
  %v133 = vld [vmem:[%s123 + $0x48] sm:$0xff]
  %v134 = vld [vmem:[%s123 + $0x50] sm:$0xff]
  %v135 = vld [vmem:[%s123 + $0x58] sm:$0xff]
  %v136 = vld [vmem:[%s123 + $0x60] sm:$0xff]
  %v137 = vld [vmem:[%s123 + $0x68] sm:$0xff]
  %v138 = vld [vmem:[%s123 + $0x70] sm:$0xff]
  %v139 = vld [vmem:[%s123 + $0x78] sm:$0xff]
  %v140 = vmax.f32 %v107, %v124
  %v141 = vmax.f32 %v108, %v125
  %v142 = vmax.f32 %v109, %v126
  %v143 = vmax.f32 %v110, %v127
  %v144 = vmax.f32 %v111, %v128
  %v145 = vmax.f32 %v112, %v129
  %v146 = vmax.f32 %v113, %v130
  %v147 = vmax.f32 %v114, %v131
  %v148 = vmax.f32 %v115, %v132
  %v149 = vmax.f32 %v116, %v133
  %v150 = vmax.f32 %v117, %v134
  %v151 = vmax.f32 %v118, %v135
  %v152 = vmax.f32 %v119, %v136
  %v153 = vmax.f32 %v120, %v137
  %v154 = vmax.f32 %v121, %v138
  %v155 = vmax.f32 %v122, %v139
  %s156 = scalar_lea.vmem %s0, 640
  %v157 = vld [vmem:[%s156] sm:$0xff]
  %v158 = vld [vmem:[%s156 + $0x8] sm:$0xff]
  %v159 = vld [vmem:[%s156 + $0x10] sm:$0xff]
  %v160 = vld [vmem:[%s156 + $0x18] sm:$0xff]
  %v161 = vld [vmem:[%s156 + $0x20] sm:$0xff]
  %v162 = vld [vmem:[%s156 + $0x28] sm:$0xff]
  %v163 = vld [vmem:[%s156 + $0x30] sm:$0xff]
  %v164 = vld [vmem:[%s156 + $0x38] sm:$0xff]
  %v165 = vld [vmem:[%s156 + $0x40] sm:$0xff]
  %v166 = vld [vmem:[%s156 + $0x48] sm:$0xff]
  %v167 = vld [vmem:[%s156 + $0x50] sm:$0xff]
  %v168 = vld [vmem:[%s156 + $0x58] sm:$0xff]
  %v169 = vld [vmem:[%s156 + $0x60] sm:$0xff]
  %v170 = vld [vmem:[%s156 + $0x68] sm:$0xff]
  %v171 = vld [vmem:[%s156 + $0x70] sm:$0xff]
  %v172 = vld [vmem:[%s156 + $0x78] sm:$0xff]
  %v173 = vmax.f32 %v140, %v157
  %v174 = vmax.f32 %v141, %v158
  %v175 = vmax.f32 %v142, %v159
  %v176 = vmax.f32 %v143, %v160
  %v177 = vmax.f32 %v144, %v161
  %v178 = vmax.f32 %v145, %v162
  %v179 = vmax.f32 %v146, %v163
  %v180 = vmax.f32 %v147, %v164
  %v181 = vmax.f32 %v148, %v165
  %v182 = vmax.f32 %v149, %v166
  %v183 = vmax.f32 %v150, %v167
  %v184 = vmax.f32 %v151, %v168
  %v185 = vmax.f32 %v152, %v169
  %v186 = vmax.f32 %v153, %v170
  %v187 = vmax.f32 %v154, %v171
  %v188 = vmax.f32 %v155, %v172
  %s189 = scalar_lea.vmem %s0, 768
  %v190 = vld [vmem:[%s189] sm:$0xff]
  %v191 = vld [vmem:[%s189 + $0x8] sm:$0xff]
  %v192 = vld [vmem:[%s189 + $0x10] sm:$0xff]
  %v193 = vld [vmem:[%s189 + $0x18] sm:$0xff]
  %v194 = vld [vmem:[%s189 + $0x20] sm:$0xff]
  %v195 = vld [vmem:[%s189 + $0x28] sm:$0xff]
  %v196 = vld [vmem:[%s189 + $0x30] sm:$0xff]
  %v197 = vld [vmem:[%s189 + $0x38] sm:$0xff]
  %v198 = vld [vmem:[%s189 + $0x40] sm:$0xff]
  %v199 = vld [vmem:[%s189 + $0x48] sm:$0xff]
  %v200 = vld [vmem:[%s189 + $0x50] sm:$0xff]
  %v201 = vld [vmem:[%s189 + $0x58] sm:$0xff]
  %v202 = vld [vmem:[%s189 + $0x60] sm:$0xff]
  %v203 = vld [vmem:[%s189 + $0x68] sm:$0xff]
  %v204 = vld [vmem:[%s189 + $0x70] sm:$0xff]
  %v205 = vld [vmem:[%s189 + $0x78] sm:$0xff]
  %v206 = vmax.f32 %v173, %v190
  %v207 = vmax.f32 %v174, %v191
  %v208 = vmax.f32 %v175, %v192
  %v209 = vmax.f32 %v176, %v193
  %v210 = vmax.f32 %v177, %v194
  %v211 = vmax.f32 %v178, %v195
  %v212 = vmax.f32 %v179, %v196
  %v213 = vmax.f32 %v180, %v197
  %v214 = vmax.f32 %v181, %v198
  %v215 = vmax.f32 %v182, %v199
  %v216 = vmax.f32 %v183, %v200
  %v217 = vmax.f32 %v184, %v201
  %v218 = vmax.f32 %v185, %v202
  %v219 = vmax.f32 %v186, %v203
  %v220 = vmax.f32 %v187, %v204
  %v221 = vmax.f32 %v188, %v205
  %s222 = scalar_lea.vmem %s0, 896
  %v223 = vld [vmem:[%s222] sm:$0xff]
  %v224 = vld [vmem:[%s222 + $0x8] sm:$0xff]
  %v225 = vld [vmem:[%s222 + $0x10] sm:$0xff]
  %v226 = vld [vmem:[%s222 + $0x18] sm:$0xff]
  %v227 = vld [vmem:[%s222 + $0x20] sm:$0xff]
  %v228 = vld [vmem:[%s222 + $0x28] sm:$0xff]
  %v229 = vld [vmem:[%s222 + $0x30] sm:$0xff]
  %v230 = vld [vmem:[%s222 + $0x38] sm:$0xff]
  %v231 = vld [vmem:[%s222 + $0x40] sm:$0xff]
  %v232 = vld [vmem:[%s222 + $0x48] sm:$0xff]
  %v233 = vld [vmem:[%s222 + $0x50] sm:$0xff]
  %v234 = vld [vmem:[%s222 + $0x58] sm:$0xff]
  %v235 = vld [vmem:[%s222 + $0x60] sm:$0xff]
  %v236 = vld [vmem:[%s222 + $0x68] sm:$0xff]
  %v237 = vld [vmem:[%s222 + $0x70] sm:$0xff]
  %v238 = vld [vmem:[%s222 + $0x78] sm:$0xff]
  %v239 = vmax.f32 %v206, %v223
  %v240 = vmax.f32 %v207, %v224
  %v241 = vmax.f32 %v208, %v225
  %v242 = vmax.f32 %v209, %v226
  %v243 = vmax.f32 %v210, %v227
  %v244 = vmax.f32 %v211, %v228
  %v245 = vmax.f32 %v212, %v229
  %v246 = vmax.f32 %v213, %v230
  %v247 = vmax.f32 %v214, %v231
  %v248 = vmax.f32 %v215, %v232
  %v249 = vmax.f32 %v216, %v233
  %v250 = vmax.f32 %v217, %v234
  %v251 = vmax.f32 %v218, %v235
  %v252 = vmax.f32 %v219, %v236
  %v253 = vmax.f32 %v220, %v237
  %v254 = vmax.f32 %v221, %v238
  %s255 = scalar_lea.vmem %s0, 1024
  %v256 = vld [vmem:[%s255] sm:$0xff]
  %v257 = vld [vmem:[%s255 + $0x8] sm:$0xff]
  %v258 = vld [vmem:[%s255 + $0x10] sm:$0xff]
  %v259 = vld [vmem:[%s255 + $0x18] sm:$0xff]
  %v260 = vld [vmem:[%s255 + $0x20] sm:$0xff]
  %v261 = vld [vmem:[%s255 + $0x28] sm:$0xff]
  %v262 = vld [vmem:[%s255 + $0x30] sm:$0xff]
  %v263 = vld [vmem:[%s255 + $0x38] sm:$0xff]
  %v264 = vld [vmem:[%s255 + $0x40] sm:$0xff]
  %v265 = vld [vmem:[%s255 + $0x48] sm:$0xff]
  %v266 = vld [vmem:[%s255 + $0x50] sm:$0xff]
  %v267 = vld [vmem:[%s255 + $0x58] sm:$0xff]
  %v268 = vld [vmem:[%s255 + $0x60] sm:$0xff]
  %v269 = vld [vmem:[%s255 + $0x68] sm:$0xff]
  %v270 = vld [vmem:[%s255 + $0x70] sm:$0xff]
  %v271 = vld [vmem:[%s255 + $0x78] sm:$0xff]
  %v272 = vmax.f32 %v239, %v256
  %v273 = vmax.f32 %v240, %v257
  %v274 = vmax.f32 %v241, %v258
  %v275 = vmax.f32 %v242, %v259
  %v276 = vmax.f32 %v243, %v260
  %v277 = vmax.f32 %v244, %v261
  %v278 = vmax.f32 %v245, %v262
  %v279 = vmax.f32 %v246, %v263
  %v280 = vmax.f32 %v247, %v264
  %v281 = vmax.f32 %v248, %v265
  %v282 = vmax.f32 %v249, %v266
  %v283 = vmax.f32 %v250, %v267
  %v284 = vmax.f32 %v251, %v268
  %v285 = vmax.f32 %v252, %v269
  %v286 = vmax.f32 %v253, %v270
  %v287 = vmax.f32 %v254, %v271
  %288 = vst [vmem:[%s1] sm:$0xff] %v272
  %289 = vst [vmem:[%s1 + $0x8] sm:$0xff] %v273
  %290 = vst [vmem:[%s1 + $0x10] sm:$0xff] %v274
  %291 = vst [vmem:[%s1 + $0x18] sm:$0xff] %v275
  %292 = vst [vmem:[%s1 + $0x20] sm:$0xff] %v276
  %293 = vst [vmem:[%s1 + $0x28] sm:$0xff] %v277
  %294 = vst [vmem:[%s1 + $0x30] sm:$0xff] %v278
  %295 = vst [vmem:[%s1 + $0x38] sm:$0xff] %v279
  %296 = vst [vmem:[%s1 + $0x40] sm:$0xff] %v280
  %297 = vst [vmem:[%s1 + $0x48] sm:$0xff] %v281
  %298 = vst [vmem:[%s1 + $0x50] sm:$0xff] %v282
  %299 = vst [vmem:[%s1 + $0x58] sm:$0xff] %v283
  %300 = vst [vmem:[%s1 + $0x60] sm:$0xff] %v284
  %301 = vst [vmem:[%s1 + $0x68] sm:$0xff] %v285
  %302 = vst [vmem:[%s1 + $0x70] sm:$0xff] %v286
  %303 = vst [vmem:[%s1 + $0x78] sm:$0xff] %v287
  // Predicated region
  $region6: #{_forward_impl.251} parent=0 // pred_check
    _
  $region7: #{_forward_impl.251} parent=0 // pred_check_branch
    %305 = sbr.rel (0) target = $region9
  $region8: #{_forward_impl.251} parent=0 // pred_region
    _
  $region9: #{_forward_impl.251} parent=0 // pred_fallthru
    _
  // Predicated region
  $region10: #{_forward_impl.251} parent=0 // pred_check
    _
  $region11: #{_forward_impl.251} parent=0 // pred_check_branch
    %307 = sbr.rel (0) target = $region13
  $region12: #{_forward_impl.251} parent=0 // pred_region
    _
  $region13: #{_forward_impl.251} parent=0 // pred_fallthru
    _

// kernel: _forward_impl.320
$region0: #{_forward_impl.320}
  #allocation0 [shape = 'u32[]', space=smem, size = 0x4, offset = 0x4, fixed_abs, tag = 'smem constant byte address 0x4 - core index']
  #allocation1 [shape = 'u32[144,128]{1,0:T(1,128)}', space=vmem, size = 0x12000, scoped, tag = 'internal scratch']
  %s0 = inlined_call_operand.vmem [shape: f32[7,128], index: 0, kind: input, shape index: {}]
  %s1 = inlined_call_operand.vmem [shape: f32[128,128], index: 1, kind: input, shape index: {}]
  %s2 = inlined_call_operand.vmem [shape: f32[128,128], index: 2, kind: input, shape index: {}]
  %s3 = inlined_call_operand.vmem [shape: f32[128,128], index: 3, kind: input, shape index: {}]
  %s4 = inlined_call_operand.vmem [shape: f32[128,128], index: 4, kind: input, shape index: {}]
  %s5 = inlined_call_operand.vmem [shape: f32[128,128], index: 5, kind: input, shape index: {}]
  %s6 = inlined_call_operand.vmem [shape: f32[128,128], index: 6, kind: input, shape index: {}]
  %s7 = inlined_call_operand.vmem [shape: f32[128,128], index: 7, kind: input, shape index: {}]
  %s8 = inlined_call_operand.vmem [shape: f32[128,128], index: 8, kind: output, shape index: {}]
  %s9 = sld [smem:[#allocation0]]
  $region42: #{_forward_impl.320} parent=0
    _
  %s11 = ssub.s32 1, %s9
  %s12 = scalar_select 0, %s11, %s9
  // Predicated region
  $region2: #{_forward_impl.320} parent=0 // pred_check
    _
  $region3: #{_forward_impl.320} parent=0 // pred_check_branch
    %14 = sbr.rel (0) target = $region5
  $region4: #{_forward_impl.320} parent=0 // pred_region
    _
  $region5: #{_forward_impl.320} parent=0 // pred_fallthru
    _
  // Predicated region
  $region6: #{_forward_impl.320} parent=0 // pred_check
    _
  $region7: #{_forward_impl.320} parent=0 // pred_check_branch
    %16 = sbr.rel (0) target = $region9
  $region8: #{_forward_impl.320} parent=0 // pred_region
    _
  $region9: #{_forward_impl.320} parent=0 // pred_fallthru
    _
  // Predicated region
  $region10: #{_forward_impl.320} parent=0 // pred_check
    _
  $region11: #{_forward_impl.320} parent=0 // pred_check_branch
    %18 = sbr.rel (0) target = $region13
  $region12: #{_forward_impl.320} parent=0 // pred_region
    _
  $region13: #{_forward_impl.320} parent=0 // pred_fallthru
    _
  // Predicated region
  $region14: #{_forward_impl.320} parent=0 // pred_check
    _
  $region15: #{_forward_impl.320} parent=0 // pred_check_branch
    %20 = sbr.rel (0) target = $region17
  $region16: #{_forward_impl.320} parent=0 // pred_region
    _
  $region17: #{_forward_impl.320} parent=0 // pred_fallthru
    _
  // Predicated region
  $region18: #{_forward_impl.320} parent=0 // pred_check
    _
  $region19: #{_forward_impl.320} parent=0 // pred_check_branch
    %22 = sbr.rel (0) target = $region21
  $region20: #{_forward_impl.320} parent=0 // pred_region
    _
  $region21: #{_forward_impl.320} parent=0 // pred_fallthru
    _
  // Predicated region
  $region22: #{_forward_impl.320} parent=0 // pred_check
    _
  $region23: #{_forward_impl.320} parent=0 // pred_check_branch
    %24 = sbr.rel (0) target = $region25
  $region24: #{_forward_impl.320} parent=0 // pred_region
    _
  $region25: #{_forward_impl.320} parent=0 // pred_fallthru
    _
  // Predicated region
  $region26: #{_forward_impl.320} parent=0 // pred_check
    _
  $region27: #{_forward_impl.320} parent=0 // pred_check_branch
    %26 = sbr.rel (0) target = $region29
  $region28: #{_forward_impl.320} parent=0 // pred_region
    _
  $region29: #{_forward_impl.320} parent=0 // pred_fallthru
    _
  // Predicated region
  $region30: #{_forward_impl.320} parent=0 // pred_check
    _
  $region31: #{_forward_impl.320} parent=0 // pred_check_branch
    %28 = sbr.rel (0) target = $region33
  $region32: #{_forward_impl.320} parent=0 // pred_region
    _
  $region33: #{_forward_impl.320} parent=0 // pred_fallthru
    _
  %v29 = vld [vmem:[%s1] sm:$0xff]
  %v30 = vld [vmem:[%s1 + $0x8] sm:$0xff]
  %v31 = vld [vmem:[%s1 + $0x10] sm:$0xff]
  %v32 = vld [vmem:[%s1 + $0x18] sm:$0xff]
  %v33 = vld [vmem:[%s1 + $0x20] sm:$0xff]
  %v34 = vld [vmem:[%s1 + $0x28] sm:$0xff]
  %v35 = vld [vmem:[%s1 + $0x30] sm:$0xff]
  %v36 = vld [vmem:[%s1 + $0x38] sm:$0xff]
  %v37 = vld [vmem:[%s1 + $0x40] sm:$0xff]
  %v38 = vld [vmem:[%s1 + $0x48] sm:$0xff]
  %v39 = vld [vmem:[%s1 + $0x50] sm:$0xff]
  %v40 = vld [vmem:[%s1 + $0x58] sm:$0xff]
  %v41 = vld [vmem:[%s1 + $0x60] sm:$0xff]
  %v42 = vld [vmem:[%s1 + $0x68] sm:$0xff]
  %v43 = vld [vmem:[%s1 + $0x70] sm:$0xff]
  %v44 = vld [vmem:[%s1 + $0x78] sm:$0xff]
  %v45 = vld [vmem:[%s0] sm:$0x1]
  %v46 = vlaneseq
  %v47 = vshrl.u32 %v46, 7
  %v48 = vsub.s32 0, %v47
  %v49 = vrot.slane %v45, %v48
  %v50 = vmul.f32 %v29, %v49
  %v51 = vmul.f32 %v30, %v49
  %v52 = vmul.f32 %v31, %v49
  %v53 = vmul.f32 %v32, %v49
  %v54 = vmul.f32 %v33, %v49
  %v55 = vmul.f32 %v34, %v49
  %v56 = vmul.f32 %v35, %v49
  %v57 = vmul.f32 %v36, %v49
  %v58 = vmul.f32 %v37, %v49
  %v59 = vmul.f32 %v38, %v49
  %v60 = vmul.f32 %v39, %v49
  %v61 = vmul.f32 %v40, %v49
  %v62 = vmul.f32 %v41, %v49
  %v63 = vmul.f32 %v42, %v49
  %v64 = vmul.f32 %v43, %v49
  %v65 = vmul.f32 %v44, %v49
  %v66 = vld [vmem:[%s2] sm:$0xff]
  %v67 = vld [vmem:[%s2 + $0x8] sm:$0xff]
  %v68 = vld [vmem:[%s2 + $0x10] sm:$0xff]
  %v69 = vld [vmem:[%s2 + $0x18] sm:$0xff]
  %v70 = vld [vmem:[%s2 + $0x20] sm:$0xff]
  %v71 = vld [vmem:[%s2 + $0x28] sm:$0xff]
  %v72 = vld [vmem:[%s2 + $0x30] sm:$0xff]
  %v73 = vld [vmem:[%s2 + $0x38] sm:$0xff]
  %v74 = vld [vmem:[%s2 + $0x40] sm:$0xff]
  %v75 = vld [vmem:[%s2 + $0x48] sm:$0xff]
  %v76 = vld [vmem:[%s2 + $0x50] sm:$0xff]
  %v77 = vld [vmem:[%s2 + $0x58] sm:$0xff]
  %v78 = vld [vmem:[%s2 + $0x60] sm:$0xff]
  %v79 = vld [vmem:[%s2 + $0x68] sm:$0xff]
  %v80 = vld [vmem:[%s2 + $0x70] sm:$0xff]
  %v81 = vld [vmem:[%s2 + $0x78] sm:$0xff]
  %v82 = vld [vmem:[%s0 + $0x1] sm:$0x1]
  %v83 = vlaneseq
  %v84 = vshrl.u32 %v83, 7
  %v85 = vsub.s32 0, %v84
  %v86 = vrot.slane %v82, %v85
  %v87 = vmul.f32 %v66, %v86
  %v88 = vmul.f32 %v67, %v86
  %v89 = vmul.f32 %v68, %v86
  %v90 = vmul.f32 %v69, %v86
  %v91 = vmul.f32 %v70, %v86
  %v92 = vmul.f32 %v71, %v86
  %v93 = vmul.f32 %v72, %v86
  %v94 = vmul.f32 %v73, %v86
  %v95 = vmul.f32 %v74, %v86
  %v96 = vmul.f32 %v75, %v86
  %v97 = vmul.f32 %v76, %v86
  %v98 = vmul.f32 %v77, %v86
  %v99 = vmul.f32 %v78, %v86
  %v100 = vmul.f32 %v79, %v86
  %v101 = vmul.f32 %v80, %v86
  %v102 = vmul.f32 %v81, %v86
  %v103 = vadd.f32 %v50, %v87
  %v104 = vadd.f32 %v51, %v88
  %v105 = vadd.f32 %v52, %v89
  %v106 = vadd.f32 %v53, %v90
  %v107 = vadd.f32 %v54, %v91
  %v108 = vadd.f32 %v55, %v92
  %v109 = vadd.f32 %v56, %v93
  %v110 = vadd.f32 %v57, %v94
  %v111 = vadd.f32 %v58, %v95
  %v112 = vadd.f32 %v59, %v96
  %v113 = vadd.f32 %v60, %v97
  %v114 = vadd.f32 %v61, %v98
  %v115 = vadd.f32 %v62, %v99
  %v116 = vadd.f32 %v63, %v100
  %v117 = vadd.f32 %v64, %v101
  %v118 = vadd.f32 %v65, %v102
  %v119 = vld [vmem:[%s3] sm:$0xff]
  %v120 = vld [vmem:[%s3 + $0x8] sm:$0xff]
  %v121 = vld [vmem:[%s3 + $0x10] sm:$0xff]
  %v122 = vld [vmem:[%s3 + $0x18] sm:$0xff]
  %v123 = vld [vmem:[%s3 + $0x20] sm:$0xff]
  %v124 = vld [vmem:[%s3 + $0x28] sm:$0xff]
  %v125 = vld [vmem:[%s3 + $0x30] sm:$0xff]
  %v126 = vld [vmem:[%s3 + $0x38] sm:$0xff]
  %v127 = vld [vmem:[%s3 + $0x40] sm:$0xff]
  %v128 = vld [vmem:[%s3 + $0x48] sm:$0xff]
  %v129 = vld [vmem:[%s3 + $0x50] sm:$0xff]
  %v130 = vld [vmem:[%s3 + $0x58] sm:$0xff]
  %v131 = vld [vmem:[%s3 + $0x60] sm:$0xff]
  %v132 = vld [vmem:[%s3 + $0x68] sm:$0xff]
  %v133 = vld [vmem:[%s3 + $0x70] sm:$0xff]
  %v134 = vld [vmem:[%s3 + $0x78] sm:$0xff]
  %v135 = vld [vmem:[%s0 + $0x2] sm:$0x1]
  %v136 = vlaneseq
  %v137 = vshrl.u32 %v136, 7
  %v138 = vsub.s32 0, %v137
  %v139 = vrot.slane %v135, %v138
  %v140 = vmul.f32 %v119, %v139
  %v141 = vmul.f32 %v120, %v139
  %v142 = vmul.f32 %v121, %v139
  %v143 = vmul.f32 %v122, %v139
  %v144 = vmul.f32 %v123, %v139
  %v145 = vmul.f32 %v124, %v139
  %v146 = vmul.f32 %v125, %v139
  %v147 = vmul.f32 %v126, %v139
  %v148 = vmul.f32 %v127, %v139
  %v149 = vmul.f32 %v128, %v139
  %v150 = vmul.f32 %v129, %v139
  %v151 = vmul.f32 %v130, %v139
  %v152 = vmul.f32 %v131, %v139
  %v153 = vmul.f32 %v132, %v139
  %v154 = vmul.f32 %v133, %v139
  %v155 = vmul.f32 %v134, %v139
  %v156 = vadd.f32 %v103, %v140
  %v157 = vadd.f32 %v104, %v141
  %v158 = vadd.f32 %v105, %v142
  %v159 = vadd.f32 %v106, %v143
  %v160 = vadd.f32 %v107, %v144
  %v161 = vadd.f32 %v108, %v145
  %v162 = vadd.f32 %v109, %v146
  %v163 = vadd.f32 %v110, %v147
  %v164 = vadd.f32 %v111, %v148
  %v165 = vadd.f32 %v112, %v149
  %v166 = vadd.f32 %v113, %v150
  %v167 = vadd.f32 %v114, %v151
  %v168 = vadd.f32 %v115, %v152
  %v169 = vadd.f32 %v116, %v153
  %v170 = vadd.f32 %v117, %v154
  %v171 = vadd.f32 %v118, %v155
  %v172 = vld [vmem:[%s4] sm:$0xff]
  %v173 = vld [vmem:[%s4 + $0x8] sm:$0xff]
  %v174 = vld [vmem:[%s4 + $0x10] sm:$0xff]
  %v175 = vld [vmem:[%s4 + $0x18] sm:$0xff]
  %v176 = vld [vmem:[%s4 + $0x20] sm:$0xff]
  %v177 = vld [vmem:[%s4 + $0x28] sm:$0xff]
  %v178 = vld [vmem:[%s4 + $0x30] sm:$0xff]
  %v179 = vld [vmem:[%s4 + $0x38] sm:$0xff]
  %v180 = vld [vmem:[%s4 + $0x40] sm:$0xff]
  %v181 = vld [vmem:[%s4 + $0x48] sm:$0xff]
  %v182 = vld [vmem:[%s4 + $0x50] sm:$0xff]
  %v183 = vld [vmem:[%s4 + $0x58] sm:$0xff]
  %v184 = vld [vmem:[%s4 + $0x60] sm:$0xff]
  %v185 = vld [vmem:[%s4 + $0x68] sm:$0xff]
  %v186 = vld [vmem:[%s4 + $0x70] sm:$0xff]
  %v187 = vld [vmem:[%s4 + $0x78] sm:$0xff]
  %v188 = vld [vmem:[%s0 + $0x3] sm:$0x1]
  %v189 = vlaneseq
  %v190 = vshrl.u32 %v189, 7
  %v191 = vsub.s32 0, %v190
  %v192 = vrot.slane %v188, %v191
  %v193 = vmul.f32 %v172, %v192
  %v194 = vmul.f32 %v173, %v192
  %v195 = vmul.f32 %v174, %v192
  %v196 = vmul.f32 %v175, %v192
  %v197 = vmul.f32 %v176, %v192
  %v198 = vmul.f32 %v177, %v192
  %v199 = vmul.f32 %v178, %v192
  %v200 = vmul.f32 %v179, %v192
  %v201 = vmul.f32 %v180, %v192
  %v202 = vmul.f32 %v181, %v192
  %v203 = vmul.f32 %v182, %v192
  %v204 = vmul.f32 %v183, %v192
  %v205 = vmul.f32 %v184, %v192
  %v206 = vmul.f32 %v185, %v192
  %v207 = vmul.f32 %v186, %v192
  %v208 = vmul.f32 %v187, %v192
  %v209 = vadd.f32 %v156, %v193
  %v210 = vadd.f32 %v157, %v194
  %v211 = vadd.f32 %v158, %v195
  %v212 = vadd.f32 %v159, %v196
  %v213 = vadd.f32 %v160, %v197
  %v214 = vadd.f32 %v161, %v198
  %v215 = vadd.f32 %v162, %v199
  %v216 = vadd.f32 %v163, %v200
  %v217 = vadd.f32 %v164, %v201
  %v218 = vadd.f32 %v165, %v202
  %v219 = vadd.f32 %v166, %v203
  %v220 = vadd.f32 %v167, %v204
  %v221 = vadd.f32 %v168, %v205
  %v222 = vadd.f32 %v169, %v206
  %v223 = vadd.f32 %v170, %v207
  %v224 = vadd.f32 %v171, %v208
  %v225 = vld [vmem:[%s5] sm:$0xff]
  %v226 = vld [vmem:[%s5 + $0x8] sm:$0xff]
  %v227 = vld [vmem:[%s5 + $0x10] sm:$0xff]
  %v228 = vld [vmem:[%s5 + $0x18] sm:$0xff]
  %v229 = vld [vmem:[%s5 + $0x20] sm:$0xff]
  %v230 = vld [vmem:[%s5 + $0x28] sm:$0xff]
  %v231 = vld [vmem:[%s5 + $0x30] sm:$0xff]
  %v232 = vld [vmem:[%s5 + $0x38] sm:$0xff]
  %v233 = vld [vmem:[%s5 + $0x40] sm:$0xff]
  %v234 = vld [vmem:[%s5 + $0x48] sm:$0xff]
  %v235 = vld [vmem:[%s5 + $0x50] sm:$0xff]
  %v236 = vld [vmem:[%s5 + $0x58] sm:$0xff]
  %v237 = vld [vmem:[%s5 + $0x60] sm:$0xff]
  %v238 = vld [vmem:[%s5 + $0x68] sm:$0xff]
  %v239 = vld [vmem:[%s5 + $0x70] sm:$0xff]
  %v240 = vld [vmem:[%s5 + $0x78] sm:$0xff]
  %v241 = vld [vmem:[%s0 + $0x4] sm:$0x1]
  %v242 = vlaneseq
  %v243 = vshrl.u32 %v242, 7
  %v244 = vsub.s32 0, %v243
  %v245 = vrot.slane %v241, %v244
  %v246 = vmul.f32 %v225, %v245
  %v247 = vmul.f32 %v226, %v245
  %v248 = vmul.f32 %v227, %v245
  %v249 = vmul.f32 %v228, %v245
  %v250 = vmul.f32 %v229, %v245
  %v251 = vmul.f32 %v230, %v245
  %v252 = vmul.f32 %v231, %v245
  %v253 = vmul.f32 %v232, %v245
  %v254 = vmul.f32 %v233, %v245
  %v255 = vmul.f32 %v234, %v245
  %v256 = vmul.f32 %v235, %v245
  %v257 = vmul.f32 %v236, %v245
  %v258 = vmul.f32 %v237, %v245
  %v259 = vmul.f32 %v238, %v245
  %v260 = vmul.f32 %v239, %v245
  %v261 = vmul.f32 %v240, %v245
  %v262 = vadd.f32 %v209, %v246
  %v263 = vadd.f32 %v210, %v247
  %v264 = vadd.f32 %v211, %v248
  %v265 = vadd.f32 %v212, %v249
  %v266 = vadd.f32 %v213, %v250
  %v267 = vadd.f32 %v214, %v251
  %v268 = vadd.f32 %v215, %v252
  %v269 = vadd.f32 %v216, %v253
  %v270 = vadd.f32 %v217, %v254
  %v271 = vadd.f32 %v218, %v255
  %v272 = vadd.f32 %v219, %v256
  %v273 = vadd.f32 %v220, %v257
  %v274 = vadd.f32 %v221, %v258
  %v275 = vadd.f32 %v222, %v259
  %v276 = vadd.f32 %v223, %v260
  %v277 = vadd.f32 %v224, %v261
  %v278 = vld [vmem:[%s6] sm:$0xff]
  %v279 = vld [vmem:[%s6 + $0x8] sm:$0xff]
  %v280 = vld [vmem:[%s6 + $0x10] sm:$0xff]
  %v281 = vld [vmem:[%s6 + $0x18] sm:$0xff]
  %v282 = vld [vmem:[%s6 + $0x20] sm:$0xff]
  %v283 = vld [vmem:[%s6 + $0x28] sm:$0xff]
  %v284 = vld [vmem:[%s6 + $0x30] sm:$0xff]
  %v285 = vld [vmem:[%s6 + $0x38] sm:$0xff]
  %v286 = vld [vmem:[%s6 + $0x40] sm:$0xff]
  %v287 = vld [vmem:[%s6 + $0x48] sm:$0xff]
  %v288 = vld [vmem:[%s6 + $0x50] sm:$0xff]
  %v289 = vld [vmem:[%s6 + $0x58] sm:$0xff]
  %v290 = vld [vmem:[%s6 + $0x60] sm:$0xff]
  %v291 = vld [vmem:[%s6 + $0x68] sm:$0xff]
  %v292 = vld [vmem:[%s6 + $0x70] sm:$0xff]
  %v293 = vld [vmem:[%s6 + $0x78] sm:$0xff]
  %v294 = vld [vmem:[%s0 + $0x5] sm:$0x1]
  %v295 = vlaneseq
  %v296 = vshrl.u32 %v295, 7
  %v297 = vsub.s32 0, %v296
  %v298 = vrot.slane %v294, %v297
  %v299 = vmul.f32 %v278, %v298
  %v300 = vmul.f32 %v279, %v298
  %v301 = vmul.f32 %v280, %v298
  %v302 = vmul.f32 %v281, %v298
  %v303 = vmul.f32 %v282, %v298
  %v304 = vmul.f32 %v283, %v298
  %v305 = vmul.f32 %v284, %v298
  %v306 = vmul.f32 %v285, %v298
  %v307 = vmul.f32 %v286, %v298
  %v308 = vmul.f32 %v287, %v298
  %v309 = vmul.f32 %v288, %v298
  %v310 = vmul.f32 %v289, %v298
  %v311 = vmul.f32 %v290, %v298
  %v312 = vmul.f32 %v291, %v298
  %v313 = vmul.f32 %v292, %v298
  %v314 = vmul.f32 %v293, %v298
  %v315 = vadd.f32 %v262, %v299
  %v316 = vadd.f32 %v263, %v300
  %v317 = vadd.f32 %v264, %v301
  %v318 = vadd.f32 %v265, %v302
  %v319 = vadd.f32 %v266, %v303
  %v320 = vadd.f32 %v267, %v304
  %v321 = vadd.f32 %v268, %v305
  %v322 = vadd.f32 %v269, %v306
  %v323 = vadd.f32 %v270, %v307
  %v324 = vadd.f32 %v271, %v308
  %v325 = vadd.f32 %v272, %v309
  %v326 = vadd.f32 %v273, %v310
  %v327 = vadd.f32 %v274, %v311
  %v328 = vadd.f32 %v275, %v312
  %v329 = vadd.f32 %v276, %v313
  %v330 = vadd.f32 %v277, %v314
  %v331 = vld [vmem:[%s7] sm:$0xff]
  %v332 = vld [vmem:[%s7 + $0x8] sm:$0xff]
  %v333 = vld [vmem:[%s7 + $0x10] sm:$0xff]
  %v334 = vld [vmem:[%s7 + $0x18] sm:$0xff]
  %v335 = vld [vmem:[%s7 + $0x20] sm:$0xff]
  %v336 = vld [vmem:[%s7 + $0x28] sm:$0xff]
  %v337 = vld [vmem:[%s7 + $0x30] sm:$0xff]
  %v338 = vld [vmem:[%s7 + $0x38] sm:$0xff]
  %v339 = vld [vmem:[%s7 + $0x40] sm:$0xff]
  %v340 = vld [vmem:[%s7 + $0x48] sm:$0xff]
  %v341 = vld [vmem:[%s7 + $0x50] sm:$0xff]
  %v342 = vld [vmem:[%s7 + $0x58] sm:$0xff]
  %v343 = vld [vmem:[%s7 + $0x60] sm:$0xff]
  %v344 = vld [vmem:[%s7 + $0x68] sm:$0xff]
  %v345 = vld [vmem:[%s7 + $0x70] sm:$0xff]
  %v346 = vld [vmem:[%s7 + $0x78] sm:$0xff]
  %v347 = vld [vmem:[%s0 + $0x6] sm:$0x1]
  %v348 = vlaneseq
  %v349 = vshrl.u32 %v348, 7
  %v350 = vsub.s32 0, %v349
  %v351 = vrot.slane %v347, %v350
  %v352 = vmul.f32 %v331, %v351
  %v353 = vmul.f32 %v332, %v351
  %v354 = vmul.f32 %v333, %v351
  %v355 = vmul.f32 %v334, %v351
  %v356 = vmul.f32 %v335, %v351
  %v357 = vmul.f32 %v336, %v351
  %v358 = vmul.f32 %v337, %v351
  %v359 = vmul.f32 %v338, %v351
  %v360 = vmul.f32 %v339, %v351
  %v361 = vmul.f32 %v340, %v351
  %v362 = vmul.f32 %v341, %v351
  %v363 = vmul.f32 %v342, %v351
  %v364 = vmul.f32 %v343, %v351
  %v365 = vmul.f32 %v344, %v351
  %v366 = vmul.f32 %v345, %v351
  %v367 = vmul.f32 %v346, %v351
  %v368 = vadd.f32 %v315, %v352
  %v369 = vadd.f32 %v316, %v353
  %v370 = vadd.f32 %v317, %v354
  %v371 = vadd.f32 %v318, %v355
  %v372 = vadd.f32 %v319, %v356
  %v373 = vadd.f32 %v320, %v357
  %v374 = vadd.f32 %v321, %v358
  %v375 = vadd.f32 %v322, %v359
  %v376 = vadd.f32 %v323, %v360
  %v377 = vadd.f32 %v324, %v361
  %v378 = vadd.f32 %v325, %v362
  %v379 = vadd.f32 %v326, %v363
  %v380 = vadd.f32 %v327, %v364
  %v381 = vadd.f32 %v328, %v365
  %v382 = vadd.f32 %v329, %v366
  %v383 = vadd.f32 %v330, %v367
  %384 = vst [vmem:[%s8] sm:$0xff] %v368
  %385 = vst [vmem:[%s8 + $0x8] sm:$0xff] %v369
  %386 = vst [vmem:[%s8 + $0x10] sm:$0xff] %v370
  %387 = vst [vmem:[%s8 + $0x18] sm:$0xff] %v371
  %388 = vst [vmem:[%s8 + $0x20] sm:$0xff] %v372
  %389 = vst [vmem:[%s8 + $0x28] sm:$0xff] %v373
  %390 = vst [vmem:[%s8 + $0x30] sm:$0xff] %v374
  %391 = vst [vmem:[%s8 + $0x38] sm:$0xff] %v375
  %392 = vst [vmem:[%s8 + $0x40] sm:$0xff] %v376
  %393 = vst [vmem:[%s8 + $0x48] sm:$0xff] %v377
  %394 = vst [vmem:[%s8 + $0x50] sm:$0xff] %v378
  %395 = vst [vmem:[%s8 + $0x58] sm:$0xff] %v379
  %396 = vst [vmem:[%s8 + $0x60] sm:$0xff] %v380
  %397 = vst [vmem:[%s8 + $0x68] sm:$0xff] %v381
  %398 = vst [vmem:[%s8 + $0x70] sm:$0xff] %v382
  %399 = vst [vmem:[%s8 + $0x78] sm:$0xff] %v383
  // Predicated region
  $region34: #{_forward_impl.320} parent=0 // pred_check
    _
  $region35: #{_forward_impl.320} parent=0 // pred_check_branch
    %401 = sbr.rel (0) target = $region37
  $region36: #{_forward_impl.320} parent=0 // pred_region
    _
  $region37: #{_forward_impl.320} parent=0 // pred_fallthru
    _
  // Predicated region
  $region38: #{_forward_impl.320} parent=0 // pred_check
    _
  $region39: #{_forward_impl.320} parent=0 // pred_check_branch
    %403 = sbr.rel (0) target = $region41
  $region40: #{_forward_impl.320} parent=0 // pred_region
    _
  $region41: #{_forward_impl.320} parent=0 // pred_fallthru
    _

// kernel: _forward_impl.394
$region0: #{_forward_impl.394}
  #allocation0 [shape = 'u32[]', space=smem, size = 0x4, offset = 0x4, fixed_abs, tag = 'smem constant byte address 0x4 - core index']
  #allocation1 [shape = 'u32[144,128]{1,0:T(1,128)}', space=vmem, size = 0x12000, scoped, tag = 'internal scratch']
  %s0 = inlined_call_operand.vmem [shape: f32[9,32,128], index: 0, kind: input, shape index: {}]
  %s1 = inlined_call_operand.vmem [shape: f32[9,128], index: 1, kind: input, shape index: {}]
  %s2 = inlined_call_operand.vmem [shape: f32[32,128], index: 2, kind: output, shape index: {}]
  %s3 = sld [smem:[#allocation0]]
  $region18: #{_forward_impl.394} parent=0
    _
  %s5 = ssub.s32 1, %s3
  %s6 = scalar_select 0, %s5, %s3
  // Predicated region
  $region2: #{_forward_impl.394} parent=0 // pred_check
    _
  $region3: #{_forward_impl.394} parent=0 // pred_check_branch
    %8 = sbr.rel (0) target = $region5
  $region4: #{_forward_impl.394} parent=0 // pred_region
    _
  $region5: #{_forward_impl.394} parent=0 // pred_fallthru
    _
  // Predicated region
  $region6: #{_forward_impl.394} parent=0 // pred_check
    _
  $region7: #{_forward_impl.394} parent=0 // pred_check_branch
    %10 = sbr.rel (0) target = $region9
  $region8: #{_forward_impl.394} parent=0 // pred_region
    _
  $region9: #{_forward_impl.394} parent=0 // pred_fallthru
    _
  %v11 = vld [vmem:[%s0] sm:$0xff]
  %v12 = vld [vmem:[%s0 + $0x8] sm:$0xff]
  %v13 = vld [vmem:[%s0 + $0x10] sm:$0xff]
  %v14 = vld [vmem:[%s0 + $0x18] sm:$0xff]
  %v15 = vld [vmem:[%s1] sm:$0x1]
  %v16 = vlaneseq
  %v17 = vshrl.u32 %v16, 7
  %v18 = vsub.s32 0, %v17
  %v19 = vrot.slane %v15, %v18
  %v20 = vmul.f32 %v11, %v19
  %v21 = vmul.f32 %v12, %v19
  %v22 = vmul.f32 %v13, %v19
  %v23 = vmul.f32 %v14, %v19
  %s24 = scalar_lea.vmem %s0, 32
  %v25 = vld [vmem:[%s24] sm:$0xff]
  %v26 = vld [vmem:[%s24 + $0x8] sm:$0xff]
  %v27 = vld [vmem:[%s24 + $0x10] sm:$0xff]
  %v28 = vld [vmem:[%s24 + $0x18] sm:$0xff]
  %v29 = vld [vmem:[%s1 + $0x1] sm:$0x1]
  %v30 = vlaneseq
  %v31 = vshrl.u32 %v30, 7
  %v32 = vsub.s32 0, %v31
  %v33 = vrot.slane %v29, %v32
  %v34 = vmul.f32 %v25, %v33
  %v35 = vmul.f32 %v26, %v33
  %v36 = vmul.f32 %v27, %v33
  %v37 = vmul.f32 %v28, %v33
  %v38 = vadd.f32 %v20, %v34
  %v39 = vadd.f32 %v21, %v35
  %v40 = vadd.f32 %v22, %v36
  %v41 = vadd.f32 %v23, %v37
  %s42 = scalar_lea.vmem %s0, 64
  %v43 = vld [vmem:[%s42] sm:$0xff]
  %v44 = vld [vmem:[%s42 + $0x8] sm:$0xff]
  %v45 = vld [vmem:[%s42 + $0x10] sm:$0xff]
  %v46 = vld [vmem:[%s42 + $0x18] sm:$0xff]
  %v47 = vld [vmem:[%s1 + $0x2] sm:$0x1]
  %v48 = vlaneseq
  %v49 = vshrl.u32 %v48, 7
  %v50 = vsub.s32 0, %v49
  %v51 = vrot.slane %v47, %v50
  %v52 = vmul.f32 %v43, %v51
  %v53 = vmul.f32 %v44, %v51
  %v54 = vmul.f32 %v45, %v51
  %v55 = vmul.f32 %v46, %v51
  %v56 = vadd.f32 %v38, %v52
  %v57 = vadd.f32 %v39, %v53
  %v58 = vadd.f32 %v40, %v54
  %v59 = vadd.f32 %v41, %v55
  %s60 = scalar_lea.vmem %s0, 96
  %v61 = vld [vmem:[%s60] sm:$0xff]
  %v62 = vld [vmem:[%s60 + $0x8] sm:$0xff]
  %v63 = vld [vmem:[%s60 + $0x10] sm:$0xff]
  %v64 = vld [vmem:[%s60 + $0x18] sm:$0xff]
  %v65 = vld [vmem:[%s1 + $0x3] sm:$0x1]
  %v66 = vlaneseq
  %v67 = vshrl.u32 %v66, 7
  %v68 = vsub.s32 0, %v67
  %v69 = vrot.slane %v65, %v68
  %v70 = vmul.f32 %v61, %v69
  %v71 = vmul.f32 %v62, %v69
  %v72 = vmul.f32 %v63, %v69
  %v73 = vmul.f32 %v64, %v69
  %v74 = vadd.f32 %v56, %v70
  %v75 = vadd.f32 %v57, %v71
  %v76 = vadd.f32 %v58, %v72
  %v77 = vadd.f32 %v59, %v73
  %s78 = scalar_lea.vmem %s0, 128
  %v79 = vld [vmem:[%s78] sm:$0xff]
  %v80 = vld [vmem:[%s78 + $0x8] sm:$0xff]
  %v81 = vld [vmem:[%s78 + $0x10] sm:$0xff]
  %v82 = vld [vmem:[%s78 + $0x18] sm:$0xff]
  %v83 = vld [vmem:[%s1 + $0x4] sm:$0x1]
  %v84 = vlaneseq
  %v85 = vshrl.u32 %v84, 7
  %v86 = vsub.s32 0, %v85
  %v87 = vrot.slane %v83, %v86
  %v88 = vmul.f32 %v79, %v87
  %v89 = vmul.f32 %v80, %v87
  %v90 = vmul.f32 %v81, %v87
  %v91 = vmul.f32 %v82, %v87
  %v92 = vadd.f32 %v74, %v88
  %v93 = vadd.f32 %v75, %v89
  %v94 = vadd.f32 %v76, %v90
  %v95 = vadd.f32 %v77, %v91
  %s96 = scalar_lea.vmem %s0, 160
  %v97 = vld [vmem:[%s96] sm:$0xff]
  %v98 = vld [vmem:[%s96 + $0x8] sm:$0xff]
  %v99 = vld [vmem:[%s96 + $0x10] sm:$0xff]
  %v100 = vld [vmem:[%s96 + $0x18] sm:$0xff]
  %v101 = vld [vmem:[%s1 + $0x5] sm:$0x1]
  %v102 = vlaneseq
  %v103 = vshrl.u32 %v102, 7
  %v104 = vsub.s32 0, %v103
  %v105 = vrot.slane %v101, %v104
  %v106 = vmul.f32 %v97, %v105
  %v107 = vmul.f32 %v98, %v105
  %v108 = vmul.f32 %v99, %v105
  %v109 = vmul.f32 %v100, %v105
  %v110 = vadd.f32 %v92, %v106
  %v111 = vadd.f32 %v93, %v107
  %v112 = vadd.f32 %v94, %v108
  %v113 = vadd.f32 %v95, %v109
  %s114 = scalar_lea.vmem %s0, 192
  %v115 = vld [vmem:[%s114] sm:$0xff]
  %v116 = vld [vmem:[%s114 + $0x8] sm:$0xff]
  %v117 = vld [vmem:[%s114 + $0x10] sm:$0xff]
  %v118 = vld [vmem:[%s114 + $0x18] sm:$0xff]
  %v119 = vld [vmem:[%s1 + $0x6] sm:$0x1]
  %v120 = vlaneseq
  %v121 = vshrl.u32 %v120, 7
  %v122 = vsub.s32 0, %v121
  %v123 = vrot.slane %v119, %v122
  %v124 = vmul.f32 %v115, %v123
  %v125 = vmul.f32 %v116, %v123
  %v126 = vmul.f32 %v117, %v123
  %v127 = vmul.f32 %v118, %v123
  %v128 = vadd.f32 %v110, %v124
  %v129 = vadd.f32 %v111, %v125
  %v130 = vadd.f32 %v112, %v126
  %v131 = vadd.f32 %v113, %v127
  %s132 = scalar_lea.vmem %s0, 224
  %v133 = vld [vmem:[%s132] sm:$0xff]
  %v134 = vld [vmem:[%s132 + $0x8] sm:$0xff]
  %v135 = vld [vmem:[%s132 + $0x10] sm:$0xff]
  %v136 = vld [vmem:[%s132 + $0x18] sm:$0xff]
  %v137 = vld [vmem:[%s1 + $0x7] sm:$0x1]
  %v138 = vlaneseq
  %v139 = vshrl.u32 %v138, 7
  %v140 = vsub.s32 0, %v139
  %v141 = vrot.slane %v137, %v140
  %v142 = vmul.f32 %v133, %v141
  %v143 = vmul.f32 %v134, %v141
  %v144 = vmul.f32 %v135, %v141
  %v145 = vmul.f32 %v136, %v141
  %v146 = vadd.f32 %v128, %v142
  %v147 = vadd.f32 %v129, %v143
  %v148 = vadd.f32 %v130, %v144
  %v149 = vadd.f32 %v131, %v145
  %s150 = scalar_lea.vmem %s0, 256
  %v151 = vld [vmem:[%s150] sm:$0xff]
  %v152 = vld [vmem:[%s150 + $0x8] sm:$0xff]
  %v153 = vld [vmem:[%s150 + $0x10] sm:$0xff]
  %v154 = vld [vmem:[%s150 + $0x18] sm:$0xff]
  %v155 = vld [vmem:[%s1 + $0x8] sm:$0x1]
  %v156 = vlaneseq
  %v157 = vshrl.u32 %v156, 7
  %v158 = vsub.s32 0, %v157
  %v159 = vrot.slane %v155, %v158
  %v160 = vmul.f32 %v151, %v159
  %v161 = vmul.f32 %v152, %v159
  %v162 = vmul.f32 %v153, %v159
  %v163 = vmul.f32 %v154, %v159
  %v164 = vadd.f32 %v146, %v160
  %v165 = vadd.f32 %v147, %v161
  %v166 = vadd.f32 %v148, %v162
  %v167 = vadd.f32 %v149, %v163
  %168 = vst [vmem:[%s2] sm:$0xff] %v164
  %169 = vst [vmem:[%s2 + $0x8] sm:$0xff] %v165
  %170 = vst [vmem:[%s2 + $0x10] sm:$0xff] %v166
  %171 = vst [vmem:[%s2 + $0x18] sm:$0xff] %v167
  // Predicated region
  $region10: #{_forward_impl.394} parent=0 // pred_check
    _
  $region11: #{_forward_impl.394} parent=0 // pred_check_branch
    %173 = sbr.rel (0) target = $region13
  $region12: #{_forward_impl.394} parent=0 // pred_region
    _
  $region13: #{_forward_impl.394} parent=0 // pred_fallthru
    _
  // Predicated region
  $region14: #{_forward_impl.394} parent=0 // pred_check
    _
  $region15: #{_forward_impl.394} parent=0 // pred_check_branch
    %175 = sbr.rel (0) target = $region17
  $region16: #{_forward_impl.394} parent=0 // pred_region
    _
  $region17: #{_forward_impl.394} parent=0 // pred_fallthru
    _

// kernel: _forward_impl.449
$region0: #{_forward_impl.449}
  #allocation0 [shape = 'u32[]', space=smem, size = 0x4, offset = 0x4, fixed_abs, tag = 'smem constant byte address 0x4 - core index']
  #allocation1 [shape = 'u32[144,128]{1,0:T(1,128)}', space=vmem, size = 0x12000, scoped, tag = 'internal scratch']
  #allocation2 [shape = 'f32[32,128]{1,0:T(8,128)}', space=vmem, size = 0x4000, scoped, tag = 'scratch operand']
  %s0 = inlined_call_operand.vmem [shape: bf16[32,128], index: 0, kind: input, shape index: {}]
  %s1 = inlined_call_operand.vmem [shape: bf16[128,128], index: 1, kind: input, shape index: {}]
  %s2 = inlined_call_operand.vmem [shape: f32[32,128], index: 2, kind: output, shape index: {0}]
  %s3 = inlined_call_operand.vmem [shape: f32[1,128], index: 3, kind: output, shape index: {1}]
  %s4 = inlined_call_operand.vmem [shape: f32[1,128], index: 4, kind: output, shape index: {2}]
  %5 = xla_tuple %s2, %s3, %s4
  %s6 = sld [smem:[#allocation0]]
  $region46: #{_forward_impl.449} parent=0
    _
  %s8 = ssub.s32 1, %s6
  %s9 = scalar_select 0, %s8, %s6
  // Predicated region
  $region2: #{_forward_impl.449} parent=0 // pred_check
    _
  $region3: #{_forward_impl.449} parent=0 // pred_check_branch
    %11 = sbr.rel (0) target = $region5
  $region4: #{_forward_impl.449} parent=0 // pred_region
    _
  $region5: #{_forward_impl.449} parent=0 // pred_fallthru
    _
  // Predicated region
  $region6: #{_forward_impl.449} parent=0 // pred_check
    _
  $region7: #{_forward_impl.449} parent=0 // pred_check_branch
    %13 = sbr.rel (0) target = $region9
  $region8: #{_forward_impl.449} parent=0 // pred_region
    _
  $region9: #{_forward_impl.449} parent=0 // pred_fallthru
    _
  %p15 = scmp.eq.s32.totalorder 0, 0
  // Predicated region
  $region10: #{_forward_impl.449} parent=0 // pred_check
    %p16 = pneg %p15
  $region11: #{_forward_impl.449} parent=0 // pred_check_branch
    %18 = sbr.rel (%p16) target = $region13
  $region12: #{_forward_impl.449} parent=0 // pred_region
    %19 = vst [vmem:[#allocation2] sm:$0xff] 0.0
    %20 = vst [vmem:[#allocation2 + $0x8] sm:$0xff] 0.0
    %21 = vst [vmem:[#allocation2 + $0x10] sm:$0xff] 0.0
    %22 = vst [vmem:[#allocation2 + $0x18] sm:$0xff] 0.0
  $region13: #{_forward_impl.449} parent=0 // pred_fallthru
    _
  %v23 = vld [vmem:[#allocation2] sm:$0xff]
  %v24 = vld [vmem:[#allocation2 + $0x8] sm:$0xff]
  %v25 = vld [vmem:[#allocation2 + $0x10] sm:$0xff]
  %v26 = vld [vmem:[#allocation2 + $0x18] sm:$0xff]
  %v27 = vld [vmem:[%s0] sm:$0xf]
  %v28 = vld [vmem:[%s0 + $0x4] sm:$0xf]
  %v29 = vld [vmem:[%s0 + $0x8] sm:$0xf]
  %v30 = vld [vmem:[%s0 + $0xc] sm:$0xf]
  %v31 = vld [vmem:[%s1] sm:$0xf]
  %v32 = vld [vmem:[%s1 + $0x4] sm:$0xf]
  %v33 = vld [vmem:[%s1 + $0x8] sm:$0xf]
  %v34 = vld [vmem:[%s1 + $0xc] sm:$0xf]
  %v35 = vld [vmem:[%s1 + $0x10] sm:$0xf]
  %v36 = vld [vmem:[%s1 + $0x14] sm:$0xf]
  %v37 = vld [vmem:[%s1 + $0x18] sm:$0xf]
  %v38 = vld [vmem:[%s1 + $0x1c] sm:$0xf]
  %v39 = vld [vmem:[%s1 + $0x20] sm:$0xf]
  %v40 = vld [vmem:[%s1 + $0x24] sm:$0xf]
  %v41 = vld [vmem:[%s1 + $0x28] sm:$0xf]
  %v42 = vld [vmem:[%s1 + $0x2c] sm:$0xf]
  %v43 = vld [vmem:[%s1 + $0x30] sm:$0xf]
  %v44 = vld [vmem:[%s1 + $0x34] sm:$0xf]
  %v45 = vld [vmem:[%s1 + $0x38] sm:$0xf]
  %v46 = vld [vmem:[%s1 + $0x3c] sm:$0xf]
  %v51 = vunpack.c.l.b16 %v27
  %v52 = vunpack.c.l.b16 %v28
  %v53 = vunpack.c.l.b16 %v29
  %v54 = vunpack.c.l.b16 %v30
  %v55 = vpack.c.b16 %v52, %v51
  %v56 = vpack.c.b16 %v54, %v53
  %v75 = vunpack.c.l.b16 %v31
  %v76 = vunpack.c.l.b16 %v32
  %v77 = vunpack.c.l.b16 %v33
  %v78 = vunpack.c.l.b16 %v34
  %v79 = vunpack.c.l.b16 %v35
  %v80 = vunpack.c.l.b16 %v36
  %v81 = vunpack.c.l.b16 %v37
  %v82 = vunpack.c.l.b16 %v38
  %v83 = vunpack.c.l.b16 %v39
  %v84 = vunpack.c.l.b16 %v40
  %v85 = vunpack.c.l.b16 %v41
  %v86 = vunpack.c.l.b16 %v42
  %v87 = vunpack.c.l.b16 %v43
  %v88 = vunpack.c.l.b16 %v44
  %v89 = vunpack.c.l.b16 %v45
  %v90 = vunpack.c.l.b16 %v46
  %v91 = vpack.c.b16 %v76, %v75
  %v92 = vpack.c.b16 %v78, %v77
  %v93 = vpack.c.b16 %v80, %v79
  %v94 = vpack.c.b16 %v82, %v81
  %v95 = vpack.c.b16 %v84, %v83
  %v96 = vpack.c.b16 %v86, %v85
  %v97 = vpack.c.b16 %v88, %v87
  %v98 = vpack.c.b16 %v90, %v89
  %107 = vmatprep.subr.bf16.mxu0 0
  %108 = vmatpush1.bf16.msra.mxu0 %v98
  %109 = vmatprep.subr.bf16.mxu0 0
  %110 = vmatpush1.bf16.msra.mxu0 %v97
  %111 = vmatprep.subr.bf16.mxu0 0
  %112 = vmatpush1.bf16.msra.mxu0 %v96
  %113 = vmatprep.subr.bf16.mxu0 0
  %114 = vmatpush1.bf16.msra.mxu0 %v95
  %115 = vmatprep.subr.bf16.mxu0 0
  %116 = vmatpush1.bf16.msra.mxu0 %v94
  %117 = vmatprep.subr.bf16.mxu0 0
  %118 = vmatpush1.bf16.msra.mxu0 %v93
  %119 = vmatprep.subr.bf16.mxu0 0
  %120 = vmatpush1.bf16.msra.mxu0 %v92
  %121 = vmatprep.subr.bf16.mxu0 0
  %122 = vmatpush1.bf16.msra.mxu0 %v91
  %123 = vmatprep.subr.bf16.mxu0 0
  %124 = vmatpush2.bf16.msra.mxu0 0
  %125 = vmatprep.subr.bf16.mxu0 0
  %126 = vmatpush2.bf16.msra.mxu0 0
  %127 = vmatprep.subr.bf16.mxu0 0
  %128 = vmatpush2.bf16.msra.mxu0 0
  %129 = vmatprep.subr.bf16.mxu0 0
  %130 = vmatpush2.bf16.msra.mxu0 0
  %131 = vmatprep.subr.bf16.mxu0 0
  %132 = vmatpush2.bf16.msra.mxu0 0
  %133 = vmatprep.subr.bf16.mxu0 0
  %134 = vmatpush2.bf16.msra.mxu0 0
  %135 = vmatprep.subr.bf16.mxu0 0
  %136 = vmatpush2.bf16.msra.mxu0 0
  %137 = vmatprep.subr.bf16.mxu0 0
  %138 = vmatpush2.bf16.msra.mxu0 0
  %139 = vmatprep.mubr.bf16.mxu0 0
  %140 = vmatmul.mubr.bf16.gmra.mxu0 %v55
  %v141 = vpop.f32.mrf.mxu0
  %v142 = vadd.f32 0.0, %v141
  %v143 = vpop.f32.mrf.mxu0
  %v144 = vpop.f32.mrf.mxu0
  %v145 = vadd.f32 0.0, %v144
  %v146 = vpop.f32.mrf.mxu0
  %147 = vmatprep.mubr.bf16.mxu0 0
  %148 = vmatmul.mubr.bf16.gmra.mxu0 %v56
  %v149 = vpop.f32.mrf.mxu0
  %v150 = vadd.f32 0.0, %v149
  %v151 = vpop.f32.mrf.mxu0
  %v152 = vpop.f32.mrf.mxu0
  %v153 = vadd.f32 0.0, %v152
  %v154 = vpop.f32.mrf.mxu0
  %155 = vdwg.mxu0
  %v156 = vadd.f32 %v23, %v142
  %v157 = vadd.f32 %v24, %v145
  %v158 = vadd.f32 %v25, %v150
  %v159 = vadd.f32 %v26, %v153
  %160 = vst [vmem:[#allocation2] sm:$0xff] %v156
  %161 = vst [vmem:[#allocation2 + $0x8] sm:$0xff] %v157
  %162 = vst [vmem:[#allocation2 + $0x10] sm:$0xff] %v158
  %163 = vst [vmem:[#allocation2 + $0x18] sm:$0xff] %v159
  %p164 = scmp.eq.s32.totalorder 0, 0
  %p165 = pnand %p15, %p164
  %p166 = pneg %p165
  // Predicated region
  $region14: #{_forward_impl.449} parent=0 // pred_check
    _
  $region15: #{_forward_impl.449} parent=0 // pred_check_branch
    %168 = sbr.rel (%p165) target = $region17
  $region16: #{_forward_impl.449} parent=0 // pred_region
    %169 = vst [vmem:[%s3] sm:$0x1] 0.0
    %170 = vst [vmem:[%s4] sm:$0x1] 0.0
  $region17: #{_forward_impl.449} parent=0 // pred_fallthru
    _
  // Predicated region
  $region18: #{_forward_impl.449} parent=0 // pred_check
    %p171 = pneg %p15
  $region19: #{_forward_impl.449} parent=0 // pred_check_branch
    %173 = sbr.rel (%p171) target = $region21
  $region20: #{_forward_impl.449} parent=0 // pred_region
    %v174 = vld [vmem:[#allocation2] sm:$0xff]
    %v175 = vld [vmem:[#allocation2 + $0x8] sm:$0xff]
    %v176 = vld [vmem:[#allocation2 + $0x10] sm:$0xff]
    %v177 = vld [vmem:[#allocation2 + $0x18] sm:$0xff]
    %178 = vst [vmem:[%s2] sm:$0xff] %v174
    %179 = vst [vmem:[%s2 + $0x8] sm:$0xff] %v175
    %180 = vst [vmem:[%s2 + $0x10] sm:$0xff] %v176
    %181 = vst [vmem:[%s2 + $0x18] sm:$0xff] %v177
    %v182 = vld [vmem:[%s3] sm:$0x1]
    %v183 = vadd.f32 %v174, %v175
    %v184 = vadd.f32 %v183, %v176
    %v185 = vadd.f32 %v184, %v177
    %v186 = vrot.slane %v185, 4
    %v187 = vadd.f32 %v185, %v186
    %v188 = vrot.slane %v187, 2
    %v189 = vadd.f32 %v187, %v188
    %v190 = vrot.slane %v189, 1
    %v191 = vadd.f32 %v189, %v190
    %v192 = vadd.f32 %v182, %v191
    %193 = vst [vmem:[%s3] sm:$0x1] %v192
    %v194 = vld [vmem:[%s4] sm:$0x1]
    %v195 = vmul.f32 %v174, %v174
    %v196 = vmul.f32 %v175, %v175
    %v197 = vmul.f32 %v176, %v176
    %v198 = vmul.f32 %v177, %v177
    %v199 = vadd.f32 %v195, %v196
    %v200 = vadd.f32 %v199, %v197
    %v201 = vadd.f32 %v200, %v198
    %v202 = vrot.slane %v201, 4
    %v203 = vadd.f32 %v201, %v202
    %v204 = vrot.slane %v203, 2
    %v205 = vadd.f32 %v203, %v204
    %v206 = vrot.slane %v205, 1
    %v207 = vadd.f32 %v205, %v206
    %v208 = vadd.f32 %v194, %v207
    %209 = vst [vmem:[%s4] sm:$0x1] %v208
  $region21: #{_forward_impl.449} parent=0 // pred_fallthru
    _
  // Predicated region
  $region22: #{_forward_impl.449} parent=0 // pred_check
    _
  $region23: #{_forward_impl.449} parent=0 // pred_check_branch
    %211 = sbr.rel (0) target = $region25
  $region24: #{_forward_impl.449} parent=0 // pred_region
    _
  $region25: #{_forward_impl.449} parent=0 // pred_fallthru
    _
  // Predicated region
  $region26: #{_forward_impl.449} parent=0 // pred_check
    _
  $region27: #{_forward_impl.449} parent=0 // pred_check_branch
    %213 = sbr.rel (0) target = $region29
  $region28: #{_forward_impl.449} parent=0 // pred_region
    _
  $region29: #{_forward_impl.449} parent=0 // pred_fallthru
    _
  // Predicated region
  $region30: #{_forward_impl.449} parent=0 // pred_check
    _
  $region31: #{_forward_impl.449} parent=0 // pred_check_branch
    %215 = sbr.rel (0) target = $region33
  $region32: #{_forward_impl.449} parent=0 // pred_region
    _
  $region33: #{_forward_impl.449} parent=0 // pred_fallthru
    _
  // Predicated region
  $region34: #{_forward_impl.449} parent=0 // pred_check
    _
  $region35: #{_forward_impl.449} parent=0 // pred_check_branch
    %217 = sbr.rel (0) target = $region37
  $region36: #{_forward_impl.449} parent=0 // pred_region
    _
  $region37: #{_forward_impl.449} parent=0 // pred_fallthru
    _
  // Predicated region
  $region38: #{_forward_impl.449} parent=0 // pred_check
    _
  $region39: #{_forward_impl.449} parent=0 // pred_check_branch
    %219 = sbr.rel (0) target = $region41
  $region40: #{_forward_impl.449} parent=0 // pred_region
    _
  $region41: #{_forward_impl.449} parent=0 // pred_fallthru
    _
  // Predicated region
  $region42: #{_forward_impl.449} parent=0 // pred_check
    _
  $region43: #{_forward_impl.449} parent=0 // pred_check_branch
    %221 = sbr.rel (0) target = $region45
  $region44: #{_forward_impl.449} parent=0 // pred_region
    _
  $region45: #{_forward_impl.449} parent=0 // pred_fallthru
    _

// kernel: _forward_impl.450
$region0: #{_forward_impl.450}
  #allocation0 [shape = 'u32[]', space=smem, size = 0x4, offset = 0x4, fixed_abs, tag = 'smem constant byte address 0x4 - core index']
  #allocation1 [shape = 'u32[144,128]{1,0:T(1,128)}', space=vmem, size = 0x12000, scoped, tag = 'internal scratch']
  %s0 = inlined_call_operand.vmem [shape: f32[32,128], index: 0, kind: input, shape index: {}]
  %s1 = inlined_call_operand.vmem [shape: f32[1,128], index: 1, kind: input, shape index: {}]
  %s2 = inlined_call_operand.vmem [shape: f32[1,128], index: 2, kind: input, shape index: {}]
  %s3 = inlined_call_operand.vmem [shape: f32[32,128], index: 3, kind: output, shape index: {}]
  %s4 = sld [smem:[#allocation0]]
  $region22: #{_forward_impl.450} parent=0
    _
  %s6 = ssub.s32 1, %s4
  %s7 = scalar_select 0, %s6, %s4
  // Predicated region
  $region2: #{_forward_impl.450} parent=0 // pred_check
    _
  $region3: #{_forward_impl.450} parent=0 // pred_check_branch
    %9 = sbr.rel (0) target = $region5
  $region4: #{_forward_impl.450} parent=0 // pred_region
    _
  $region5: #{_forward_impl.450} parent=0 // pred_fallthru
    _
  // Predicated region
  $region6: #{_forward_impl.450} parent=0 // pred_check
    _
  $region7: #{_forward_impl.450} parent=0 // pred_check_branch
    %11 = sbr.rel (0) target = $region9
  $region8: #{_forward_impl.450} parent=0 // pred_region
    _
  $region9: #{_forward_impl.450} parent=0 // pred_fallthru
    _
  // Predicated region
  $region10: #{_forward_impl.450} parent=0 // pred_check
    _
  $region11: #{_forward_impl.450} parent=0 // pred_check_branch
    %13 = sbr.rel (0) target = $region13
  $region12: #{_forward_impl.450} parent=0 // pred_region
    _
  $region13: #{_forward_impl.450} parent=0 // pred_fallthru
    _
  %v14 = vld [vmem:[%s0] sm:$0xff]
  %v15 = vld [vmem:[%s0 + $0x8] sm:$0xff]
  %v16 = vld [vmem:[%s0 + $0x10] sm:$0xff]
  %v17 = vld [vmem:[%s0 + $0x18] sm:$0xff]
  %v18 = vld [vmem:[%s1] sm:$0x1]
  %v20 = vlaneseq
  %v21 = vshrl.u32 %v20, 7
  %v22 = vsub.s32 0, %v21
  %v23 = vrot.slane %v18, %v22
  %v25 = vmul.f32 %v14, %v23
  %v26 = vmul.f32 %v15, %v23
  %v27 = vmul.f32 %v16, %v23
  %v28 = vmul.f32 %v17, %v23
  %v29 = vld [vmem:[%s2] sm:$0x1]
  %v31 = vlaneseq
  %v32 = vshrl.u32 %v31, 7
  %v33 = vsub.s32 0, %v32
  %v34 = vrot.slane %v29, %v33
  %v36 = vadd.f32 %v25, %v34
  %v37 = vadd.f32 %v26, %v34
  %v38 = vadd.f32 %v27, %v34
  %v39 = vadd.f32 %v28, %v34
  %v40 = vmax.f32 %v36, 0.0
  %v41 = vmax.f32 %v37, 0.0
  %v42 = vmax.f32 %v38, 0.0
  %v43 = vmax.f32 %v39, 0.0
  %44 = vst [vmem:[%s3] sm:$0xff] %v40
  %45 = vst [vmem:[%s3 + $0x8] sm:$0xff] %v41
  %46 = vst [vmem:[%s3 + $0x10] sm:$0xff] %v42
  %47 = vst [vmem:[%s3 + $0x18] sm:$0xff] %v43
  // Predicated region
  $region14: #{_forward_impl.450} parent=0 // pred_check
    _
  $region15: #{_forward_impl.450} parent=0 // pred_check_branch
    %49 = sbr.rel (0) target = $region17
  $region16: #{_forward_impl.450} parent=0 // pred_region
    _
  $region17: #{_forward_impl.450} parent=0 // pred_fallthru
    _
  // Predicated region
  $region18: #{_forward_impl.450} parent=0 // pred_check
    _
  $region19: #{_forward_impl.450} parent=0 // pred_check_branch
    %51 = sbr.rel (0) target = $region21
  $region20: #{_forward_impl.450} parent=0 // pred_region
    _
  $region21: #{_forward_impl.450} parent=0 // pred_fallthru
    _

// kernel: _forward_impl.404
$region0: #{_forward_impl.404}
  #allocation0 [shape = 'u32[]', space=smem, size = 0x4, offset = 0x4, fixed_abs, tag = 'smem constant byte address 0x4 - core index']
  #allocation1 [shape = 'u32[144,128]{1,0:T(1,128)}', space=vmem, size = 0x12000, scoped, tag = 'internal scratch']
  %s0 = inlined_call_operand.vmem [shape: f32[25,32,128], index: 0, kind: input, shape index: {}]
  %s1 = inlined_call_operand.vmem [shape: f32[25,128], index: 1, kind: input, shape index: {}]
  %s2 = inlined_call_operand.vmem [shape: f32[32,128], index: 2, kind: output, shape index: {}]
  %s3 = sld [smem:[#allocation0]]
  $region18: #{_forward_impl.404} parent=0
    _
  %s5 = ssub.s32 1, %s3
  %s6 = scalar_select 0, %s5, %s3
  // Predicated region
  $region2: #{_forward_impl.404} parent=0 // pred_check
    _
  $region3: #{_forward_impl.404} parent=0 // pred_check_branch
    %8 = sbr.rel (0) target = $region5
  $region4: #{_forward_impl.404} parent=0 // pred_region
    _
  $region5: #{_forward_impl.404} parent=0 // pred_fallthru
    _
  // Predicated region
  $region6: #{_forward_impl.404} parent=0 // pred_check
    _
  $region7: #{_forward_impl.404} parent=0 // pred_check_branch
    %10 = sbr.rel (0) target = $region9
  $region8: #{_forward_impl.404} parent=0 // pred_region
    _
  $region9: #{_forward_impl.404} parent=0 // pred_fallthru
    _
  %v11 = vld [vmem:[%s0] sm:$0xff]
  %v12 = vld [vmem:[%s0 + $0x8] sm:$0xff]
  %v13 = vld [vmem:[%s0 + $0x10] sm:$0xff]
  %v14 = vld [vmem:[%s0 + $0x18] sm:$0xff]
  %v15 = vld [vmem:[%s1] sm:$0x1]
  %v16 = vlaneseq
  %v17 = vshrl.u32 %v16, 7
  %v18 = vsub.s32 0, %v17
  %v19 = vrot.slane %v15, %v18
  %v20 = vmul.f32 %v11, %v19
  %v21 = vmul.f32 %v12, %v19
  %v22 = vmul.f32 %v13, %v19
  %v23 = vmul.f32 %v14, %v19
  %s24 = scalar_lea.vmem %s0, 32
  %v25 = vld [vmem:[%s24] sm:$0xff]
  %v26 = vld [vmem:[%s24 + $0x8] sm:$0xff]
  %v27 = vld [vmem:[%s24 + $0x10] sm:$0xff]
  %v28 = vld [vmem:[%s24 + $0x18] sm:$0xff]
  %v29 = vld [vmem:[%s1 + $0x1] sm:$0x1]
  %v30 = vlaneseq
  %v31 = vshrl.u32 %v30, 7
  %v32 = vsub.s32 0, %v31
  %v33 = vrot.slane %v29, %v32
  %v34 = vmul.f32 %v25, %v33
  %v35 = vmul.f32 %v26, %v33
  %v36 = vmul.f32 %v27, %v33
  %v37 = vmul.f32 %v28, %v33
  %v38 = vadd.f32 %v20, %v34
  %v39 = vadd.f32 %v21, %v35
  %v40 = vadd.f32 %v22, %v36
  %v41 = vadd.f32 %v23, %v37
  %s42 = scalar_lea.vmem %s0, 64
  %v43 = vld [vmem:[%s42] sm:$0xff]
  %v44 = vld [vmem:[%s42 + $0x8] sm:$0xff]
  %v45 = vld [vmem:[%s42 + $0x10] sm:$0xff]
  %v46 = vld [vmem:[%s42 + $0x18] sm:$0xff]
  %v47 = vld [vmem:[%s1 + $0x2] sm:$0x1]
  %v48 = vlaneseq
  %v49 = vshrl.u32 %v48, 7
  %v50 = vsub.s32 0, %v49
  %v51 = vrot.slane %v47, %v50
  %v52 = vmul.f32 %v43, %v51
  %v53 = vmul.f32 %v44, %v51
  %v54 = vmul.f32 %v45, %v51
  %v55 = vmul.f32 %v46, %v51
  %v56 = vadd.f32 %v38, %v52
  %v57 = vadd.f32 %v39, %v53
  %v58 = vadd.f32 %v40, %v54
  %v59 = vadd.f32 %v41, %v55
  %s60 = scalar_lea.vmem %s0, 96
  %v61 = vld [vmem:[%s60] sm:$0xff]
  %v62 = vld [vmem:[%s60 + $0x8] sm:$0xff]
  %v63 = vld [vmem:[%s60 + $0x10] sm:$0xff]
  %v64 = vld [vmem:[%s60 + $0x18] sm:$0xff]
  %v65 = vld [vmem:[%s1 + $0x3] sm:$0x1]
  %v66 = vlaneseq
  %v67 = vshrl.u32 %v66, 7
  %v68 = vsub.s32 0, %v67
  %v69 = vrot.slane %v65, %v68
  %v70 = vmul.f32 %v61, %v69
  %v71 = vmul.f32 %v62, %v69
  %v72 = vmul.f32 %v63, %v69
  %v73 = vmul.f32 %v64, %v69
  %v74 = vadd.f32 %v56, %v70
  %v75 = vadd.f32 %v57, %v71
  %v76 = vadd.f32 %v58, %v72
  %v77 = vadd.f32 %v59, %v73
  %s78 = scalar_lea.vmem %s0, 128
  %v79 = vld [vmem:[%s78] sm:$0xff]
  %v80 = vld [vmem:[%s78 + $0x8] sm:$0xff]
  %v81 = vld [vmem:[%s78 + $0x10] sm:$0xff]
  %v82 = vld [vmem:[%s78 + $0x18] sm:$0xff]
  %v83 = vld [vmem:[%s1 + $0x4] sm:$0x1]
  %v84 = vlaneseq
  %v85 = vshrl.u32 %v84, 7
  %v86 = vsub.s32 0, %v85
  %v87 = vrot.slane %v83, %v86
  %v88 = vmul.f32 %v79, %v87
  %v89 = vmul.f32 %v80, %v87
  %v90 = vmul.f32 %v81, %v87
  %v91 = vmul.f32 %v82, %v87
  %v92 = vadd.f32 %v74, %v88
  %v93 = vadd.f32 %v75, %v89
  %v94 = vadd.f32 %v76, %v90
  %v95 = vadd.f32 %v77, %v91
  %s96 = scalar_lea.vmem %s0, 160
  %v97 = vld [vmem:[%s96] sm:$0xff]
  %v98 = vld [vmem:[%s96 + $0x8] sm:$0xff]
  %v99 = vld [vmem:[%s96 + $0x10] sm:$0xff]
  %v100 = vld [vmem:[%s96 + $0x18] sm:$0xff]
  %v101 = vld [vmem:[%s1 + $0x5] sm:$0x1]
  %v102 = vlaneseq
  %v103 = vshrl.u32 %v102, 7
  %v104 = vsub.s32 0, %v103
  %v105 = vrot.slane %v101, %v104
  %v106 = vmul.f32 %v97, %v105
  %v107 = vmul.f32 %v98, %v105
  %v108 = vmul.f32 %v99, %v105
  %v109 = vmul.f32 %v100, %v105
  %v110 = vadd.f32 %v92, %v106
  %v111 = vadd.f32 %v93, %v107
  %v112 = vadd.f32 %v94, %v108
  %v113 = vadd.f32 %v95, %v109
  %s114 = scalar_lea.vmem %s0, 192
  %v115 = vld [vmem:[%s114] sm:$0xff]
  %v116 = vld [vmem:[%s114 + $0x8] sm:$0xff]
  %v117 = vld [vmem:[%s114 + $0x10] sm:$0xff]
  %v118 = vld [vmem:[%s114 + $0x18] sm:$0xff]
  %v119 = vld [vmem:[%s1 + $0x6] sm:$0x1]
  %v120 = vlaneseq
  %v121 = vshrl.u32 %v120, 7
  %v122 = vsub.s32 0, %v121
  %v123 = vrot.slane %v119, %v122
  %v124 = vmul.f32 %v115, %v123
  %v125 = vmul.f32 %v116, %v123
  %v126 = vmul.f32 %v117, %v123
  %v127 = vmul.f32 %v118, %v123
  %v128 = vadd.f32 %v110, %v124
  %v129 = vadd.f32 %v111, %v125
  %v130 = vadd.f32 %v112, %v126
  %v131 = vadd.f32 %v113, %v127
  %s132 = scalar_lea.vmem %s0, 224
  %v133 = vld [vmem:[%s132] sm:$0xff]
  %v134 = vld [vmem:[%s132 + $0x8] sm:$0xff]
  %v135 = vld [vmem:[%s132 + $0x10] sm:$0xff]
  %v136 = vld [vmem:[%s132 + $0x18] sm:$0xff]
  %v137 = vld [vmem:[%s1 + $0x7] sm:$0x1]
  %v138 = vlaneseq
  %v139 = vshrl.u32 %v138, 7
  %v140 = vsub.s32 0, %v139
  %v141 = vrot.slane %v137, %v140
  %v142 = vmul.f32 %v133, %v141
  %v143 = vmul.f32 %v134, %v141
  %v144 = vmul.f32 %v135, %v141
  %v145 = vmul.f32 %v136, %v141
  %v146 = vadd.f32 %v128, %v142
  %v147 = vadd.f32 %v129, %v143
  %v148 = vadd.f32 %v130, %v144
  %v149 = vadd.f32 %v131, %v145
  %s150 = scalar_lea.vmem %s0, 256
  %v151 = vld [vmem:[%s150] sm:$0xff]
  %v152 = vld [vmem:[%s150 + $0x8] sm:$0xff]
  %v153 = vld [vmem:[%s150 + $0x10] sm:$0xff]
  %v154 = vld [vmem:[%s150 + $0x18] sm:$0xff]
  %v155 = vld [vmem:[%s1 + $0x8] sm:$0x1]
  %v156 = vlaneseq
  %v157 = vshrl.u32 %v156, 7
  %v158 = vsub.s32 0, %v157
  %v159 = vrot.slane %v155, %v158
  %v160 = vmul.f32 %v151, %v159
  %v161 = vmul.f32 %v152, %v159
  %v162 = vmul.f32 %v153, %v159
  %v163 = vmul.f32 %v154, %v159
  %v164 = vadd.f32 %v146, %v160
  %v165 = vadd.f32 %v147, %v161
  %v166 = vadd.f32 %v148, %v162
  %v167 = vadd.f32 %v149, %v163
  %s168 = scalar_lea.vmem %s0, 288
  %v169 = vld [vmem:[%s168] sm:$0xff]
  %v170 = vld [vmem:[%s168 + $0x8] sm:$0xff]
  %v171 = vld [vmem:[%s168 + $0x10] sm:$0xff]
  %v172 = vld [vmem:[%s168 + $0x18] sm:$0xff]
  %v173 = vld [vmem:[%s1 + $0x9] sm:$0x1]
  %v174 = vlaneseq
  %v175 = vshrl.u32 %v174, 7
  %v176 = vsub.s32 0, %v175
  %v177 = vrot.slane %v173, %v176
  %v178 = vmul.f32 %v169, %v177
  %v179 = vmul.f32 %v170, %v177
  %v180 = vmul.f32 %v171, %v177
  %v181 = vmul.f32 %v172, %v177
  %v182 = vadd.f32 %v164, %v178
  %v183 = vadd.f32 %v165, %v179
  %v184 = vadd.f32 %v166, %v180
  %v185 = vadd.f32 %v167, %v181
  %s186 = scalar_lea.vmem %s0, 320
  %v187 = vld [vmem:[%s186] sm:$0xff]
  %v188 = vld [vmem:[%s186 + $0x8] sm:$0xff]
  %v189 = vld [vmem:[%s186 + $0x10] sm:$0xff]
  %v190 = vld [vmem:[%s186 + $0x18] sm:$0xff]
  %v191 = vld [vmem:[%s1 + $0xa] sm:$0x1]
  %v192 = vlaneseq
  %v193 = vshrl.u32 %v192, 7
  %v194 = vsub.s32 0, %v193
  %v195 = vrot.slane %v191, %v194
  %v196 = vmul.f32 %v187, %v195
  %v197 = vmul.f32 %v188, %v195
  %v198 = vmul.f32 %v189, %v195
  %v199 = vmul.f32 %v190, %v195
  %v200 = vadd.f32 %v182, %v196
  %v201 = vadd.f32 %v183, %v197
  %v202 = vadd.f32 %v184, %v198
  %v203 = vadd.f32 %v185, %v199
  %s204 = scalar_lea.vmem %s0, 352
  %v205 = vld [vmem:[%s204] sm:$0xff]
  %v206 = vld [vmem:[%s204 + $0x8] sm:$0xff]
  %v207 = vld [vmem:[%s204 + $0x10] sm:$0xff]
  %v208 = vld [vmem:[%s204 + $0x18] sm:$0xff]
  %v209 = vld [vmem:[%s1 + $0xb] sm:$0x1]
  %v210 = vlaneseq
  %v211 = vshrl.u32 %v210, 7
  %v212 = vsub.s32 0, %v211
  %v213 = vrot.slane %v209, %v212
  %v214 = vmul.f32 %v205, %v213
  %v215 = vmul.f32 %v206, %v213
  %v216 = vmul.f32 %v207, %v213
  %v217 = vmul.f32 %v208, %v213
  %v218 = vadd.f32 %v200, %v214
  %v219 = vadd.f32 %v201, %v215
  %v220 = vadd.f32 %v202, %v216
  %v221 = vadd.f32 %v203, %v217
  %s222 = scalar_lea.vmem %s0, 384
  %v223 = vld [vmem:[%s222] sm:$0xff]
  %v224 = vld [vmem:[%s222 + $0x8] sm:$0xff]
  %v225 = vld [vmem:[%s222 + $0x10] sm:$0xff]
  %v226 = vld [vmem:[%s222 + $0x18] sm:$0xff]
  %v227 = vld [vmem:[%s1 + $0xc] sm:$0x1]
  %v228 = vlaneseq
  %v229 = vshrl.u32 %v228, 7
  %v230 = vsub.s32 0, %v229
  %v231 = vrot.slane %v227, %v230
  %v232 = vmul.f32 %v223, %v231
  %v233 = vmul.f32 %v224, %v231
  %v234 = vmul.f32 %v225, %v231
  %v235 = vmul.f32 %v226, %v231
  %v236 = vadd.f32 %v218, %v232
  %v237 = vadd.f32 %v219, %v233
  %v238 = vadd.f32 %v220, %v234
  %v239 = vadd.f32 %v221, %v235
  %s240 = scalar_lea.vmem %s0, 416
  %v241 = vld [vmem:[%s240] sm:$0xff]
  %v242 = vld [vmem:[%s240 + $0x8] sm:$0xff]
  %v243 = vld [vmem:[%s240 + $0x10] sm:$0xff]
  %v244 = vld [vmem:[%s240 + $0x18] sm:$0xff]
  %v245 = vld [vmem:[%s1 + $0xd] sm:$0x1]
  %v246 = vlaneseq
  %v247 = vshrl.u32 %v246, 7
  %v248 = vsub.s32 0, %v247
  %v249 = vrot.slane %v245, %v248
  %v250 = vmul.f32 %v241, %v249
  %v251 = vmul.f32 %v242, %v249
  %v252 = vmul.f32 %v243, %v249
  %v253 = vmul.f32 %v244, %v249
  %v254 = vadd.f32 %v236, %v250
  %v255 = vadd.f32 %v237, %v251
  %v256 = vadd.f32 %v238, %v252
  %v257 = vadd.f32 %v239, %v253
  %s258 = scalar_lea.vmem %s0, 448
  %v259 = vld [vmem:[%s258] sm:$0xff]
  %v260 = vld [vmem:[%s258 + $0x8] sm:$0xff]
  %v261 = vld [vmem:[%s258 + $0x10] sm:$0xff]
  %v262 = vld [vmem:[%s258 + $0x18] sm:$0xff]
  %v263 = vld [vmem:[%s1 + $0xe] sm:$0x1]
  %v264 = vlaneseq
  %v265 = vshrl.u32 %v264, 7
  %v266 = vsub.s32 0, %v265
  %v267 = vrot.slane %v263, %v266
  %v268 = vmul.f32 %v259, %v267
  %v269 = vmul.f32 %v260, %v267
  %v270 = vmul.f32 %v261, %v267
  %v271 = vmul.f32 %v262, %v267
  %v272 = vadd.f32 %v254, %v268
  %v273 = vadd.f32 %v255, %v269
  %v274 = vadd.f32 %v256, %v270
  %v275 = vadd.f32 %v257, %v271
  %s276 = scalar_lea.vmem %s0, 480
  %v277 = vld [vmem:[%s276] sm:$0xff]
  %v278 = vld [vmem:[%s276 + $0x8] sm:$0xff]
  %v279 = vld [vmem:[%s276 + $0x10] sm:$0xff]
  %v280 = vld [vmem:[%s276 + $0x18] sm:$0xff]
  %v281 = vld [vmem:[%s1 + $0xf] sm:$0x1]
  %v282 = vlaneseq
  %v283 = vshrl.u32 %v282, 7
  %v284 = vsub.s32 0, %v283
  %v285 = vrot.slane %v281, %v284
  %v286 = vmul.f32 %v277, %v285
  %v287 = vmul.f32 %v278, %v285
  %v288 = vmul.f32 %v279, %v285
  %v289 = vmul.f32 %v280, %v285
  %v290 = vadd.f32 %v272, %v286
  %v291 = vadd.f32 %v273, %v287
  %v292 = vadd.f32 %v274, %v288
  %v293 = vadd.f32 %v275, %v289
  %s294 = scalar_lea.vmem %s0, 512
  %v295 = vld [vmem:[%s294] sm:$0xff]
  %v296 = vld [vmem:[%s294 + $0x8] sm:$0xff]
  %v297 = vld [vmem:[%s294 + $0x10] sm:$0xff]
  %v298 = vld [vmem:[%s294 + $0x18] sm:$0xff]
  %v299 = vld [vmem:[%s1 + $0x10] sm:$0x1]
  %v300 = vlaneseq
  %v301 = vshrl.u32 %v300, 7
  %v302 = vsub.s32 0, %v301
  %v303 = vrot.slane %v299, %v302
  %v304 = vmul.f32 %v295, %v303
  %v305 = vmul.f32 %v296, %v303
  %v306 = vmul.f32 %v297, %v303
  %v307 = vmul.f32 %v298, %v303
  %v308 = vadd.f32 %v290, %v304
  %v309 = vadd.f32 %v291, %v305
  %v310 = vadd.f32 %v292, %v306
  %v311 = vadd.f32 %v293, %v307
  %s312 = scalar_lea.vmem %s0, 544
  %v313 = vld [vmem:[%s312] sm:$0xff]
  %v314 = vld [vmem:[%s312 + $0x8] sm:$0xff]
  %v315 = vld [vmem:[%s312 + $0x10] sm:$0xff]
  %v316 = vld [vmem:[%s312 + $0x18] sm:$0xff]
  %v317 = vld [vmem:[%s1 + $0x11] sm:$0x1]
  %v318 = vlaneseq
  %v319 = vshrl.u32 %v318, 7
  %v320 = vsub.s32 0, %v319
  %v321 = vrot.slane %v317, %v320
  %v322 = vmul.f32 %v313, %v321
  %v323 = vmul.f32 %v314, %v321
  %v324 = vmul.f32 %v315, %v321
  %v325 = vmul.f32 %v316, %v321
  %v326 = vadd.f32 %v308, %v322
  %v327 = vadd.f32 %v309, %v323
  %v328 = vadd.f32 %v310, %v324
  %v329 = vadd.f32 %v311, %v325
  %s330 = scalar_lea.vmem %s0, 576
  %v331 = vld [vmem:[%s330] sm:$0xff]
  %v332 = vld [vmem:[%s330 + $0x8] sm:$0xff]
  %v333 = vld [vmem:[%s330 + $0x10] sm:$0xff]
  %v334 = vld [vmem:[%s330 + $0x18] sm:$0xff]
  %v335 = vld [vmem:[%s1 + $0x12] sm:$0x1]
  %v336 = vlaneseq
  %v337 = vshrl.u32 %v336, 7
  %v338 = vsub.s32 0, %v337
  %v339 = vrot.slane %v335, %v338
  %v340 = vmul.f32 %v331, %v339
  %v341 = vmul.f32 %v332, %v339
  %v342 = vmul.f32 %v333, %v339
  %v343 = vmul.f32 %v334, %v339
  %v344 = vadd.f32 %v326, %v340
  %v345 = vadd.f32 %v327, %v341
  %v346 = vadd.f32 %v328, %v342
  %v347 = vadd.f32 %v329, %v343
  %s348 = scalar_lea.vmem %s0, 608
  %v349 = vld [vmem:[%s348] sm:$0xff]
  %v350 = vld [vmem:[%s348 + $0x8] sm:$0xff]
  %v351 = vld [vmem:[%s348 + $0x10] sm:$0xff]
  %v352 = vld [vmem:[%s348 + $0x18] sm:$0xff]
  %v353 = vld [vmem:[%s1 + $0x13] sm:$0x1]
  %v354 = vlaneseq
  %v355 = vshrl.u32 %v354, 7
  %v356 = vsub.s32 0, %v355
  %v357 = vrot.slane %v353, %v356
  %v358 = vmul.f32 %v349, %v357
  %v359 = vmul.f32 %v350, %v357
  %v360 = vmul.f32 %v351, %v357
  %v361 = vmul.f32 %v352, %v357
  %v362 = vadd.f32 %v344, %v358
  %v363 = vadd.f32 %v345, %v359
  %v364 = vadd.f32 %v346, %v360
  %v365 = vadd.f32 %v347, %v361
  %s366 = scalar_lea.vmem %s0, 640
  %v367 = vld [vmem:[%s366] sm:$0xff]
  %v368 = vld [vmem:[%s366 + $0x8] sm:$0xff]
  %v369 = vld [vmem:[%s366 + $0x10] sm:$0xff]
  %v370 = vld [vmem:[%s366 + $0x18] sm:$0xff]
  %v371 = vld [vmem:[%s1 + $0x14] sm:$0x1]
  %v372 = vlaneseq
  %v373 = vshrl.u32 %v372, 7
  %v374 = vsub.s32 0, %v373
  %v375 = vrot.slane %v371, %v374
  %v376 = vmul.f32 %v367, %v375
  %v377 = vmul.f32 %v368, %v375
  %v378 = vmul.f32 %v369, %v375
  %v379 = vmul.f32 %v370, %v375
  %v380 = vadd.f32 %v362, %v376
  %v381 = vadd.f32 %v363, %v377
  %v382 = vadd.f32 %v364, %v378
  %v383 = vadd.f32 %v365, %v379
  %s384 = scalar_lea.vmem %s0, 672
  %v385 = vld [vmem:[%s384] sm:$0xff]
  %v386 = vld [vmem:[%s384 + $0x8] sm:$0xff]
  %v387 = vld [vmem:[%s384 + $0x10] sm:$0xff]
  %v388 = vld [vmem:[%s384 + $0x18] sm:$0xff]
  %v389 = vld [vmem:[%s1 + $0x15] sm:$0x1]
  %v390 = vlaneseq
  %v391 = vshrl.u32 %v390, 7
  %v392 = vsub.s32 0, %v391
  %v393 = vrot.slane %v389, %v392
  %v394 = vmul.f32 %v385, %v393
  %v395 = vmul.f32 %v386, %v393
  %v396 = vmul.f32 %v387, %v393
  %v397 = vmul.f32 %v388, %v393
  %v398 = vadd.f32 %v380, %v394
  %v399 = vadd.f32 %v381, %v395
  %v400 = vadd.f32 %v382, %v396
  %v401 = vadd.f32 %v383, %v397
  %s402 = scalar_lea.vmem %s0, 704
  %v403 = vld [vmem:[%s402] sm:$0xff]
  %v404 = vld [vmem:[%s402 + $0x8] sm:$0xff]
  %v405 = vld [vmem:[%s402 + $0x10] sm:$0xff]
  %v406 = vld [vmem:[%s402 + $0x18] sm:$0xff]
  %v407 = vld [vmem:[%s1 + $0x16] sm:$0x1]
  %v408 = vlaneseq
  %v409 = vshrl.u32 %v408, 7
  %v410 = vsub.s32 0, %v409
  %v411 = vrot.slane %v407, %v410
  %v412 = vmul.f32 %v403, %v411
  %v413 = vmul.f32 %v404, %v411
  %v414 = vmul.f32 %v405, %v411
  %v415 = vmul.f32 %v406, %v411
  %v416 = vadd.f32 %v398, %v412
  %v417 = vadd.f32 %v399, %v413
  %v418 = vadd.f32 %v400, %v414
  %v419 = vadd.f32 %v401, %v415
  %s420 = scalar_lea.vmem %s0, 736
  %v421 = vld [vmem:[%s420] sm:$0xff]
  %v422 = vld [vmem:[%s420 + $0x8] sm:$0xff]
  %v423 = vld [vmem:[%s420 + $0x10] sm:$0xff]
  %v424 = vld [vmem:[%s420 + $0x18] sm:$0xff]
  %v425 = vld [vmem:[%s1 + $0x17] sm:$0x1]
  %v426 = vlaneseq
  %v427 = vshrl.u32 %v426, 7
  %v428 = vsub.s32 0, %v427
  %v429 = vrot.slane %v425, %v428
  %v430 = vmul.f32 %v421, %v429
  %v431 = vmul.f32 %v422, %v429
  %v432 = vmul.f32 %v423, %v429
  %v433 = vmul.f32 %v424, %v429
  %v434 = vadd.f32 %v416, %v430
  %v435 = vadd.f32 %v417, %v431
  %v436 = vadd.f32 %v418, %v432
  %v437 = vadd.f32 %v419, %v433
  %s438 = scalar_lea.vmem %s0, 768
  %v439 = vld [vmem:[%s438] sm:$0xff]
  %v440 = vld [vmem:[%s438 + $0x8] sm:$0xff]
  %v441 = vld [vmem:[%s438 + $0x10] sm:$0xff]
  %v442 = vld [vmem:[%s438 + $0x18] sm:$0xff]
  %v443 = vld [vmem:[%s1 + $0x18] sm:$0x1]
  %v444 = vlaneseq
  %v445 = vshrl.u32 %v444, 7
  %v446 = vsub.s32 0, %v445
  %v447 = vrot.slane %v443, %v446
  %v448 = vmul.f32 %v439, %v447
  %v449 = vmul.f32 %v440, %v447
  %v450 = vmul.f32 %v441, %v447
  %v451 = vmul.f32 %v442, %v447
  %v452 = vadd.f32 %v434, %v448
  %v453 = vadd.f32 %v435, %v449
  %v454 = vadd.f32 %v436, %v450
  %v455 = vadd.f32 %v437, %v451
  %456 = vst [vmem:[%s2] sm:$0xff] %v452
  %457 = vst [vmem:[%s2 + $0x8] sm:$0xff] %v453
  %458 = vst [vmem:[%s2 + $0x10] sm:$0xff] %v454
  %459 = vst [vmem:[%s2 + $0x18] sm:$0xff] %v455
  // Predicated region
  $region10: #{_forward_impl.404} parent=0 // pred_check
    _
  $region11: #{_forward_impl.404} parent=0 // pred_check_branch
    %461 = sbr.rel (0) target = $region13
  $region12: #{_forward_impl.404} parent=0 // pred_region
    _
  $region13: #{_forward_impl.404} parent=0 // pred_fallthru
    _
  // Predicated region
  $region14: #{_forward_impl.404} parent=0 // pred_check
    _
  $region15: #{_forward_impl.404} parent=0 // pred_check_branch
    %463 = sbr.rel (0) target = $region17
  $region16: #{_forward_impl.404} parent=0 // pred_region
    _
  $region17: #{_forward_impl.404} parent=0 // pred_fallthru
    _

// kernel: _forward_impl.369
$region0: #{_forward_impl.369}
  #allocation0 [shape = 'u32[]', space=smem, size = 0x4, offset = 0x4, fixed_abs, tag = 'smem constant byte address 0x4 - core index']
  #allocation1 [shape = 'u32[144,128]{1,0:T(1,128)}', space=vmem, size = 0x12000, scoped, tag = 'internal scratch']
  %s0 = inlined_call_operand.vmem [shape: f32[9,32,128], index: 0, kind: input, shape index: {}]
  %s1 = inlined_call_operand.vmem [shape: f32[32,128], index: 1, kind: output, shape index: {}]
  %s2 = sld [smem:[#allocation0]]
  $region14: #{_forward_impl.369} parent=0
    _
  %s4 = ssub.s32 1, %s2
  %s5 = scalar_select 0, %s4, %s2
  // Predicated region
  $region2: #{_forward_impl.369} parent=0 // pred_check
    _
  $region3: #{_forward_impl.369} parent=0 // pred_check_branch
    %7 = sbr.rel (0) target = $region5
  $region4: #{_forward_impl.369} parent=0 // pred_region
    _
  $region5: #{_forward_impl.369} parent=0 // pred_fallthru
    _
  %v8 = vld [vmem:[%s0] sm:$0xff]
  %v9 = vld [vmem:[%s0 + $0x8] sm:$0xff]
  %v10 = vld [vmem:[%s0 + $0x10] sm:$0xff]
  %v11 = vld [vmem:[%s0 + $0x18] sm:$0xff]
  %s12 = scalar_lea.vmem %s0, 32
  %v13 = vld [vmem:[%s12] sm:$0xff]
  %v14 = vld [vmem:[%s12 + $0x8] sm:$0xff]
  %v15 = vld [vmem:[%s12 + $0x10] sm:$0xff]
  %v16 = vld [vmem:[%s12 + $0x18] sm:$0xff]
  %v17 = vmax.f32 %v8, %v13
  %v18 = vmax.f32 %v9, %v14
  %v19 = vmax.f32 %v10, %v15
  %v20 = vmax.f32 %v11, %v16
  %s21 = scalar_lea.vmem %s0, 64
  %v22 = vld [vmem:[%s21] sm:$0xff]
  %v23 = vld [vmem:[%s21 + $0x8] sm:$0xff]
  %v24 = vld [vmem:[%s21 + $0x10] sm:$0xff]
  %v25 = vld [vmem:[%s21 + $0x18] sm:$0xff]
  %v26 = vmax.f32 %v17, %v22
  %v27 = vmax.f32 %v18, %v23
  %v28 = vmax.f32 %v19, %v24
  %v29 = vmax.f32 %v20, %v25
  %s30 = scalar_lea.vmem %s0, 96
  %v31 = vld [vmem:[%s30] sm:$0xff]
  %v32 = vld [vmem:[%s30 + $0x8] sm:$0xff]
  %v33 = vld [vmem:[%s30 + $0x10] sm:$0xff]
  %v34 = vld [vmem:[%s30 + $0x18] sm:$0xff]
  %v35 = vmax.f32 %v26, %v31
  %v36 = vmax.f32 %v27, %v32
  %v37 = vmax.f32 %v28, %v33
  %v38 = vmax.f32 %v29, %v34
  %s39 = scalar_lea.vmem %s0, 128
  %v40 = vld [vmem:[%s39] sm:$0xff]
  %v41 = vld [vmem:[%s39 + $0x8] sm:$0xff]
  %v42 = vld [vmem:[%s39 + $0x10] sm:$0xff]
  %v43 = vld [vmem:[%s39 + $0x18] sm:$0xff]
  %v44 = vmax.f32 %v35, %v40
  %v45 = vmax.f32 %v36, %v41
  %v46 = vmax.f32 %v37, %v42
  %v47 = vmax.f32 %v38, %v43
  %s48 = scalar_lea.vmem %s0, 160
  %v49 = vld [vmem:[%s48] sm:$0xff]
  %v50 = vld [vmem:[%s48 + $0x8] sm:$0xff]
  %v51 = vld [vmem:[%s48 + $0x10] sm:$0xff]
  %v52 = vld [vmem:[%s48 + $0x18] sm:$0xff]
  %v53 = vmax.f32 %v44, %v49
  %v54 = vmax.f32 %v45, %v50
  %v55 = vmax.f32 %v46, %v51
  %v56 = vmax.f32 %v47, %v52
  %s57 = scalar_lea.vmem %s0, 192
  %v58 = vld [vmem:[%s57] sm:$0xff]
  %v59 = vld [vmem:[%s57 + $0x8] sm:$0xff]
  %v60 = vld [vmem:[%s57 + $0x10] sm:$0xff]
  %v61 = vld [vmem:[%s57 + $0x18] sm:$0xff]
  %v62 = vmax.f32 %v53, %v58
  %v63 = vmax.f32 %v54, %v59
  %v64 = vmax.f32 %v55, %v60
  %v65 = vmax.f32 %v56, %v61
  %s66 = scalar_lea.vmem %s0, 224
  %v67 = vld [vmem:[%s66] sm:$0xff]
  %v68 = vld [vmem:[%s66 + $0x8] sm:$0xff]
  %v69 = vld [vmem:[%s66 + $0x10] sm:$0xff]
  %v70 = vld [vmem:[%s66 + $0x18] sm:$0xff]
  %v71 = vmax.f32 %v62, %v67
  %v72 = vmax.f32 %v63, %v68
  %v73 = vmax.f32 %v64, %v69
  %v74 = vmax.f32 %v65, %v70
  %s75 = scalar_lea.vmem %s0, 256
  %v76 = vld [vmem:[%s75] sm:$0xff]
  %v77 = vld [vmem:[%s75 + $0x8] sm:$0xff]
  %v78 = vld [vmem:[%s75 + $0x10] sm:$0xff]
  %v79 = vld [vmem:[%s75 + $0x18] sm:$0xff]
  %v80 = vmax.f32 %v71, %v76
  %v81 = vmax.f32 %v72, %v77
  %v82 = vmax.f32 %v73, %v78
  %v83 = vmax.f32 %v74, %v79
  %84 = vst [vmem:[%s1] sm:$0xff] %v80
  %85 = vst [vmem:[%s1 + $0x8] sm:$0xff] %v81
  %86 = vst [vmem:[%s1 + $0x10] sm:$0xff] %v82
  %87 = vst [vmem:[%s1 + $0x18] sm:$0xff] %v83
  // Predicated region
  $region6: #{_forward_impl.369} parent=0 // pred_check
    _
  $region7: #{_forward_impl.369} parent=0 // pred_check_branch
    %89 = sbr.rel (0) target = $region9
  $region8: #{_forward_impl.369} parent=0 // pred_region
    _
  $region9: #{_forward_impl.369} parent=0 // pred_fallthru
    _
  // Predicated region
  $region10: #{_forward_impl.369} parent=0 // pred_check
    _
  $region11: #{_forward_impl.369} parent=0 // pred_check_branch
    %91 = sbr.rel (0) target = $region13
  $region12: #{_forward_impl.369} parent=0 // pred_region
    _
  $region13: #{_forward_impl.369} parent=0 // pred_fallthru
    _

// kernel: _forward_impl.459
$region0: #{_forward_impl.459}
  #allocation0 [shape = 'u32[]', space=smem, size = 0x4, offset = 0x4, fixed_abs, tag = 'smem constant byte address 0x4 - core index']
  #allocation1 [shape = 'u32[144,128]{1,0:T(1,128)}', space=vmem, size = 0x12000, scoped, tag = 'internal scratch']
  %s0 = inlined_call_operand.vmem [shape: f32[32,128], index: 0, kind: input, shape index: {}]
  %s1 = inlined_call_operand.vmem [shape: f32[1,128], index: 1, kind: input, shape index: {}]
  %s2 = inlined_call_operand.vmem [shape: f32[1,128], index: 2, kind: input, shape index: {}]
  %s3 = inlined_call_operand.vmem [shape: f32[32,128], index: 3, kind: output, shape index: {}]
  %s4 = sld [smem:[#allocation0]]
  $region22: #{_forward_impl.459} parent=0
    _
  %s6 = ssub.s32 1, %s4
  %s7 = scalar_select 0, %s6, %s4
  // Predicated region
  $region2: #{_forward_impl.459} parent=0 // pred_check
    _
  $region3: #{_forward_impl.459} parent=0 // pred_check_branch
    %9 = sbr.rel (0) target = $region5
  $region4: #{_forward_impl.459} parent=0 // pred_region
    _
  $region5: #{_forward_impl.459} parent=0 // pred_fallthru
    _
  // Predicated region
  $region6: #{_forward_impl.459} parent=0 // pred_check
    _
  $region7: #{_forward_impl.459} parent=0 // pred_check_branch
    %11 = sbr.rel (0) target = $region9
  $region8: #{_forward_impl.459} parent=0 // pred_region
    _
  $region9: #{_forward_impl.459} parent=0 // pred_fallthru
    _
  // Predicated region
  $region10: #{_forward_impl.459} parent=0 // pred_check
    _
  $region11: #{_forward_impl.459} parent=0 // pred_check_branch
    %13 = sbr.rel (0) target = $region13
  $region12: #{_forward_impl.459} parent=0 // pred_region
    _
  $region13: #{_forward_impl.459} parent=0 // pred_fallthru
    _
  %v14 = vld [vmem:[%s0] sm:$0xff]
  %v15 = vld [vmem:[%s0 + $0x8] sm:$0xff]
  %v16 = vld [vmem:[%s0 + $0x10] sm:$0xff]
  %v17 = vld [vmem:[%s0 + $0x18] sm:$0xff]
  %v18 = vld [vmem:[%s1] sm:$0x1]
  %v20 = vlaneseq
  %v21 = vshrl.u32 %v20, 7
  %v22 = vsub.s32 0, %v21
  %v23 = vrot.slane %v18, %v22
  %v25 = vmul.f32 %v14, %v23
  %v26 = vmul.f32 %v15, %v23
  %v27 = vmul.f32 %v16, %v23
  %v28 = vmul.f32 %v17, %v23
  %v29 = vld [vmem:[%s2] sm:$0x1]
  %v31 = vlaneseq
  %v32 = vshrl.u32 %v31, 7
  %v33 = vsub.s32 0, %v32
  %v34 = vrot.slane %v29, %v33
  %v36 = vadd.f32 %v25, %v34
  %v37 = vadd.f32 %v26, %v34
  %v38 = vadd.f32 %v27, %v34
  %v39 = vadd.f32 %v28, %v34
  %40 = vst [vmem:[%s3] sm:$0xff] %v36
  %41 = vst [vmem:[%s3 + $0x8] sm:$0xff] %v37
  %42 = vst [vmem:[%s3 + $0x10] sm:$0xff] %v38
  %43 = vst [vmem:[%s3 + $0x18] sm:$0xff] %v39
  // Predicated region
  $region14: #{_forward_impl.459} parent=0 // pred_check
    _
  $region15: #{_forward_impl.459} parent=0 // pred_check_branch
    %45 = sbr.rel (0) target = $region17
  $region16: #{_forward_impl.459} parent=0 // pred_region
    _
  $region17: #{_forward_impl.459} parent=0 // pred_fallthru
    _
  // Predicated region
  $region18: #{_forward_impl.459} parent=0 // pred_check
    _
  $region19: #{_forward_impl.459} parent=0 // pred_check_branch
    %47 = sbr.rel (0) target = $region21
  $region20: #{_forward_impl.459} parent=0 // pred_region
    _
  $region21: #{_forward_impl.459} parent=0 // pred_fallthru
    _

// kernel: _forward_impl.438
$region0: #{_forward_impl.438}
  #allocation0 [shape = 'u32[]', space=smem, size = 0x4, offset = 0x4, fixed_abs, tag = 'smem constant byte address 0x4 - core index']
  #allocation1 [shape = 'u32[144,128]{1,0:T(1,128)}', space=vmem, size = 0x12000, scoped, tag = 'internal scratch']
  %s0 = inlined_call_operand.vmem [shape: f32[7,128], index: 0, kind: input, shape index: {}]
  %s1 = inlined_call_operand.vmem [shape: f32[32,128], index: 1, kind: input, shape index: {}]
  %s2 = inlined_call_operand.vmem [shape: f32[32,128], index: 2, kind: input, shape index: {}]
  %s3 = inlined_call_operand.vmem [shape: f32[32,128], index: 3, kind: input, shape index: {}]
  %s4 = inlined_call_operand.vmem [shape: f32[32,128], index: 4, kind: input, shape index: {}]
  %s5 = inlined_call_operand.vmem [shape: f32[32,128], index: 5, kind: input, shape index: {}]
  %s6 = inlined_call_operand.vmem [shape: f32[32,128], index: 6, kind: input, shape index: {}]
  %s7 = inlined_call_operand.vmem [shape: f32[32,128], index: 7, kind: input, shape index: {}]
  %s8 = inlined_call_operand.vmem [shape: f32[32,128], index: 8, kind: output, shape index: {}]
  %s9 = sld [smem:[#allocation0]]
  $region42: #{_forward_impl.438} parent=0
    _
  %s11 = ssub.s32 1, %s9
  %s12 = scalar_select 0, %s11, %s9
  // Predicated region
  $region2: #{_forward_impl.438} parent=0 // pred_check
    _
  $region3: #{_forward_impl.438} parent=0 // pred_check_branch
    %14 = sbr.rel (0) target = $region5
  $region4: #{_forward_impl.438} parent=0 // pred_region
    _
  $region5: #{_forward_impl.438} parent=0 // pred_fallthru
    _
  // Predicated region
  $region6: #{_forward_impl.438} parent=0 // pred_check
    _
  $region7: #{_forward_impl.438} parent=0 // pred_check_branch
    %16 = sbr.rel (0) target = $region9
  $region8: #{_forward_impl.438} parent=0 // pred_region
    _
  $region9: #{_forward_impl.438} parent=0 // pred_fallthru
    _
  // Predicated region
  $region10: #{_forward_impl.438} parent=0 // pred_check
    _
  $region11: #{_forward_impl.438} parent=0 // pred_check_branch
    %18 = sbr.rel (0) target = $region13
  $region12: #{_forward_impl.438} parent=0 // pred_region
    _
  $region13: #{_forward_impl.438} parent=0 // pred_fallthru
    _
  // Predicated region
  $region14: #{_forward_impl.438} parent=0 // pred_check
    _
  $region15: #{_forward_impl.438} parent=0 // pred_check_branch
    %20 = sbr.rel (0) target = $region17
  $region16: #{_forward_impl.438} parent=0 // pred_region
    _
  $region17: #{_forward_impl.438} parent=0 // pred_fallthru
    _
  // Predicated region
  $region18: #{_forward_impl.438} parent=0 // pred_check
    _
  $region19: #{_forward_impl.438} parent=0 // pred_check_branch
    %22 = sbr.rel (0) target = $region21
  $region20: #{_forward_impl.438} parent=0 // pred_region
    _
  $region21: #{_forward_impl.438} parent=0 // pred_fallthru
    _
  // Predicated region
  $region22: #{_forward_impl.438} parent=0 // pred_check
    _
  $region23: #{_forward_impl.438} parent=0 // pred_check_branch
    %24 = sbr.rel (0) target = $region25
  $region24: #{_forward_impl.438} parent=0 // pred_region
    _
  $region25: #{_forward_impl.438} parent=0 // pred_fallthru
    _
  // Predicated region
  $region26: #{_forward_impl.438} parent=0 // pred_check
    _
  $region27: #{_forward_impl.438} parent=0 // pred_check_branch
    %26 = sbr.rel (0) target = $region29
  $region28: #{_forward_impl.438} parent=0 // pred_region
    _
  $region29: #{_forward_impl.438} parent=0 // pred_fallthru
    _
  // Predicated region
  $region30: #{_forward_impl.438} parent=0 // pred_check
    _
  $region31: #{_forward_impl.438} parent=0 // pred_check_branch
    %28 = sbr.rel (0) target = $region33
  $region32: #{_forward_impl.438} parent=0 // pred_region
    _
  $region33: #{_forward_impl.438} parent=0 // pred_fallthru
    _
  %v29 = vld [vmem:[%s1] sm:$0xff]
  %v30 = vld [vmem:[%s1 + $0x8] sm:$0xff]
  %v31 = vld [vmem:[%s1 + $0x10] sm:$0xff]
  %v32 = vld [vmem:[%s1 + $0x18] sm:$0xff]
  %v33 = vld [vmem:[%s0] sm:$0x1]
  %v34 = vlaneseq
  %v35 = vshrl.u32 %v34, 7
  %v36 = vsub.s32 0, %v35
  %v37 = vrot.slane %v33, %v36
  %v38 = vmul.f32 %v29, %v37
  %v39 = vmul.f32 %v30, %v37
  %v40 = vmul.f32 %v31, %v37
  %v41 = vmul.f32 %v32, %v37
  %v42 = vld [vmem:[%s2] sm:$0xff]
  %v43 = vld [vmem:[%s2 + $0x8] sm:$0xff]
  %v44 = vld [vmem:[%s2 + $0x10] sm:$0xff]
  %v45 = vld [vmem:[%s2 + $0x18] sm:$0xff]
  %v46 = vld [vmem:[%s0 + $0x1] sm:$0x1]
  %v47 = vlaneseq
  %v48 = vshrl.u32 %v47, 7
  %v49 = vsub.s32 0, %v48
  %v50 = vrot.slane %v46, %v49
  %v51 = vmul.f32 %v42, %v50
  %v52 = vmul.f32 %v43, %v50
  %v53 = vmul.f32 %v44, %v50
  %v54 = vmul.f32 %v45, %v50
  %v55 = vadd.f32 %v38, %v51
  %v56 = vadd.f32 %v39, %v52
  %v57 = vadd.f32 %v40, %v53
  %v58 = vadd.f32 %v41, %v54
  %v59 = vld [vmem:[%s3] sm:$0xff]
  %v60 = vld [vmem:[%s3 + $0x8] sm:$0xff]
  %v61 = vld [vmem:[%s3 + $0x10] sm:$0xff]
  %v62 = vld [vmem:[%s3 + $0x18] sm:$0xff]
  %v63 = vld [vmem:[%s0 + $0x2] sm:$0x1]
  %v64 = vlaneseq
  %v65 = vshrl.u32 %v64, 7
  %v66 = vsub.s32 0, %v65
  %v67 = vrot.slane %v63, %v66
  %v68 = vmul.f32 %v59, %v67
  %v69 = vmul.f32 %v60, %v67
  %v70 = vmul.f32 %v61, %v67
  %v71 = vmul.f32 %v62, %v67
  %v72 = vadd.f32 %v55, %v68
  %v73 = vadd.f32 %v56, %v69
  %v74 = vadd.f32 %v57, %v70
  %v75 = vadd.f32 %v58, %v71
  %v76 = vld [vmem:[%s4] sm:$0xff]
  %v77 = vld [vmem:[%s4 + $0x8] sm:$0xff]
  %v78 = vld [vmem:[%s4 + $0x10] sm:$0xff]
  %v79 = vld [vmem:[%s4 + $0x18] sm:$0xff]
  %v80 = vld [vmem:[%s0 + $0x3] sm:$0x1]
  %v81 = vlaneseq
  %v82 = vshrl.u32 %v81, 7
  %v83 = vsub.s32 0, %v82
  %v84 = vrot.slane %v80, %v83
  %v85 = vmul.f32 %v76, %v84
  %v86 = vmul.f32 %v77, %v84
  %v87 = vmul.f32 %v78, %v84
  %v88 = vmul.f32 %v79, %v84
  %v89 = vadd.f32 %v72, %v85
  %v90 = vadd.f32 %v73, %v86
  %v91 = vadd.f32 %v74, %v87
  %v92 = vadd.f32 %v75, %v88
  %v93 = vld [vmem:[%s5] sm:$0xff]
  %v94 = vld [vmem:[%s5 + $0x8] sm:$0xff]
  %v95 = vld [vmem:[%s5 + $0x10] sm:$0xff]
  %v96 = vld [vmem:[%s5 + $0x18] sm:$0xff]
  %v97 = vld [vmem:[%s0 + $0x4] sm:$0x1]
  %v98 = vlaneseq
  %v99 = vshrl.u32 %v98, 7
  %v100 = vsub.s32 0, %v99
  %v101 = vrot.slane %v97, %v100
  %v102 = vmul.f32 %v93, %v101
  %v103 = vmul.f32 %v94, %v101
  %v104 = vmul.f32 %v95, %v101
  %v105 = vmul.f32 %v96, %v101
  %v106 = vadd.f32 %v89, %v102
  %v107 = vadd.f32 %v90, %v103
  %v108 = vadd.f32 %v91, %v104
  %v109 = vadd.f32 %v92, %v105
  %v110 = vld [vmem:[%s6] sm:$0xff]
  %v111 = vld [vmem:[%s6 + $0x8] sm:$0xff]
  %v112 = vld [vmem:[%s6 + $0x10] sm:$0xff]
  %v113 = vld [vmem:[%s6 + $0x18] sm:$0xff]
  %v114 = vld [vmem:[%s0 + $0x5] sm:$0x1]
  %v115 = vlaneseq
  %v116 = vshrl.u32 %v115, 7
  %v117 = vsub.s32 0, %v116
  %v118 = vrot.slane %v114, %v117
  %v119 = vmul.f32 %v110, %v118
  %v120 = vmul.f32 %v111, %v118
  %v121 = vmul.f32 %v112, %v118
  %v122 = vmul.f32 %v113, %v118
  %v123 = vadd.f32 %v106, %v119
  %v124 = vadd.f32 %v107, %v120
  %v125 = vadd.f32 %v108, %v121
  %v126 = vadd.f32 %v109, %v122
  %v127 = vld [vmem:[%s7] sm:$0xff]
  %v128 = vld [vmem:[%s7 + $0x8] sm:$0xff]
  %v129 = vld [vmem:[%s7 + $0x10] sm:$0xff]
  %v130 = vld [vmem:[%s7 + $0x18] sm:$0xff]
  %v131 = vld [vmem:[%s0 + $0x6] sm:$0x1]
  %v132 = vlaneseq
  %v133 = vshrl.u32 %v132, 7
  %v134 = vsub.s32 0, %v133
  %v135 = vrot.slane %v131, %v134
  %v136 = vmul.f32 %v127, %v135
  %v137 = vmul.f32 %v128, %v135
  %v138 = vmul.f32 %v129, %v135
  %v139 = vmul.f32 %v130, %v135
  %v140 = vadd.f32 %v123, %v136
  %v141 = vadd.f32 %v124, %v137
  %v142 = vadd.f32 %v125, %v138
  %v143 = vadd.f32 %v126, %v139
  %144 = vst [vmem:[%s8] sm:$0xff] %v140
  %145 = vst [vmem:[%s8 + $0x8] sm:$0xff] %v141
  %146 = vst [vmem:[%s8 + $0x10] sm:$0xff] %v142
  %147 = vst [vmem:[%s8 + $0x18] sm:$0xff] %v143
  // Predicated region
  $region34: #{_forward_impl.438} parent=0 // pred_check
    _
  $region35: #{_forward_impl.438} parent=0 // pred_check_branch
    %149 = sbr.rel (0) target = $region37
  $region36: #{_forward_impl.438} parent=0 // pred_region
    _
  $region37: #{_forward_impl.438} parent=0 // pred_fallthru
    _
  // Predicated region
  $region38: #{_forward_impl.438} parent=0 // pred_check
    _
  $region39: #{_forward_impl.438} parent=0 // pred_check_branch
    %151 = sbr.rel (0) target = $region41
  $region40: #{_forward_impl.438} parent=0 // pred_region
    _
  $region41: #{_forward_impl.438} parent=0 // pred_fallthru
    _

</llo_original>
